<compile_context>
chip_gen: v5e
topology: v5e:2x2
jax: 0.10.0
libtpu: 0.0.40
codegen_flags: <defaults>
</compile_context>

<pallas_src>
import jax
import jax.numpy as jnp
import numpy as np
from jax.experimental import pallas as pl
from jax.experimental.pallas import tpu as pltpu

_VMEM_LIMIT = 32 * 1024 * 1024
_FC1_K = 3136          # 32 * 14 * 7
_FC1_K_PAD = 3200      # next multiple of 128*? that 640 divides (5 x 640)
_FC1_KT = 640


# ----------------------------------------------------------------------------
# Kernel A: fused conv1 + pool + conv2 + pool (one image per grid step)
# ----------------------------------------------------------------------------
def _conv_stack_kernel(x_ref, w1_ref, b1_ref, sh1e_ref, sh1o_ref, sw1_ref,
                       w2_ref, b2_ref, sh2e_ref, sh2o_ref, sw2_ref,
                       o_ref, xp_ref, a1p_ref):
    f32 = jnp.float32
    bf16 = jnp.bfloat16

    def pool2x2(act, ch, sw_ref, she_ref, sho_ref):
        """act: (H, W*ch) f32 post-ReLU -> (H//2, (W//2)*ch) f32.

        W pairs: lane roll by `ch` + max (even-w lane groups hold the pair max).
        H pairs + compaction: two 0/1 row-selection matmuls + max.
        W compaction: one 0/1 column-selection matmul (bf16, exact)."""
        n_lane = act.shape[-1]
        wmax = jnp.maximum(act, pltpu.roll(act, n_lane - ch, 1))
        wmax = wmax.astype(bf16)
        he = jnp.dot(she_ref[...], wmax, preferred_element_type=f32)
        ho = jnp.dot(sho_ref[...], wmax, preferred_element_type=f32)
        hmax = jnp.maximum(he, ho).astype(bf16)     # exact: selection of bf16s
        return jnp.dot(hmax, sw_ref[...], preferred_element_type=f32)

    # ---- conv1 (1->16) as 3 banded MXU matmuls, lane dim = W*Cout = 448 ----
    # H zero-padding lives in a tiny VMEM scratch; W padding is folded into
    # the banded weight matrices, so the lane dim stays dense.
    xp_ref[0:1, :] = jnp.zeros((1, 28), bf16)
    xp_ref[57:58, :] = jnp.zeros((1, 28), bf16)
    xp_ref[1:57, :] = x_ref[...].astype(bf16)

    acc1 = jnp.dot(xp_ref[0:56, :], w1_ref[0], preferred_element_type=f32)
    acc1 += jnp.dot(xp_ref[1:57, :], w1_ref[1], preferred_element_type=f32)
    acc1 += jnp.dot(xp_ref[2:58, :], w1_ref[2], preferred_element_type=f32)
    a1 = jnp.maximum(acc1 + b1_ref[...], 0.0)                  # (56, 448)
    p1 = pool2x2(a1, 16, sw1_ref, sh1e_ref, sh1o_ref)          # (28, 224)

    # ---- conv2 (16->32), input lane dim = W*Cin = 224 ----------------------
    a1p_ref[0:1, :] = jnp.zeros((1, 224), bf16)
    a1p_ref[29:30, :] = jnp.zeros((1, 224), bf16)
    a1p_ref[1:29, :] = p1.astype(bf16)

    acc2 = jnp.dot(a1p_ref[0:28, :], w2_ref[0], preferred_element_type=f32)
    acc2 += jnp.dot(a1p_ref[1:29, :], w2_ref[1], preferred_element_type=f32)
    acc2 += jnp.dot(a1p_ref[2:30, :], w2_ref[2], preferred_element_type=f32)
    a2 = jnp.maximum(acc2 + b2_ref[...], 0.0)                  # (28, 448)
    p2 = pool2x2(a2, 32, sw2_ref, sh2e_ref, sh2o_ref)          # (14, 224)

    o_ref[...] = p2.astype(o_ref.dtype)


def conv_stack(x, pp):
    """x: (B, 56, 28) f32 -> (B, 14, 224) bf16, lane index = w*32 + c."""
    B = x.shape[0]
    return pl.pallas_call(
        _conv_stack_kernel,
        out_shape=jax.ShapeDtypeStruct((B, 14, 224), jnp.bfloat16),
        grid=(B,),
        in_specs=[
            pl.BlockSpec((None, 56, 28), lambda n: (n, 0, 0)),     # image
            pl.BlockSpec((3, 28, 448), lambda n: (0, 0, 0)),       # conv1 band
            pl.BlockSpec((1, 448), lambda n: (0, 0)),              # conv1 bias
            pl.BlockSpec((28, 56), lambda n: (0, 0)),              # H-sel even
            pl.BlockSpec((28, 56), lambda n: (0, 0)),              # H-sel odd
            pl.BlockSpec((448, 224), lambda n: (0, 0)),            # W-sel
            pl.BlockSpec((3, 224, 448), lambda n: (0, 0, 0)),      # conv2 band
            pl.BlockSpec((1, 448), lambda n: (0, 0)),              # conv2 bias
            pl.BlockSpec((14, 28), lambda n: (0, 0)),              # H-sel even
            pl.BlockSpec((14, 28), lambda n: (0, 0)),              # H-sel odd
            pl.BlockSpec((448, 224), lambda n: (0, 0)),            # W-sel
        ],
        out_specs=pl.BlockSpec((None, 14, 224), lambda n: (n, 0, 0)),
        scratch_shapes=[pltpu.VMEM((58, 28), jnp.bfloat16),   # H-padded image
                        pltpu.VMEM((30, 224), jnp.bfloat16)], # H-padded act
        compiler_params=pltpu.CompilerParams(
            dimension_semantics=("parallel",),
            vmem_limit_bytes=_VMEM_LIMIT),
    )(x, pp["w1b"], pp["b1"], pp["sh1e"], pp["sh1o"], pp["sw1"],
      pp["w2b"], pp["b2"], pp["sh2e"], pp["sh2o"], pp["sw2"])


# ----------------------------------------------------------------------------
# Kernel B: fc1 (K-pipelined) -> ReLU -> fc2 -> ReLU -> fc3 -> log_softmax
# ----------------------------------------------------------------------------
def _fc_head_kernel(x_ref, w1_ref, b1_ref, w2_ref, b2_ref, w3_ref, b3_ref,
                    o_ref, acc_ref):
    k = pl.program_id(0)

    @pl.when(k == 0)
    def _():
        acc_ref[...] = jnp.zeros_like(acc_ref)

    acc_ref[...] += jnp.dot(x_ref[...], w1_ref[...],
                            preferred_element_type=jnp.float32)

    @pl.when(k == pl.num_programs(0) - 1)
    def _():
        h1 = jnp.maximum(acc_ref[...] + b1_ref[...], 0.0)
        # dropout(p=0.25) is identity in inference mode
        h2 = jnp.dot(h1.astype(jnp.bfloat16), w2_ref[...],
                     preferred_element_type=jnp.float32) + b2_ref[...]
        h2 = jnp.maximum(h2, 0.0)
        logits = jnp.dot(h2.astype(jnp.bfloat16), w3_ref[...],
                         preferred_element_type=jnp.float32) + b3_ref[...]
        m = jnp.max(logits, axis=-1, keepdims=True)
        z = logits - m
        lse = jnp.log(jnp.sum(jnp.exp(z), axis=-1, keepdims=True))
        o_ref[...] = (z - lse).astype(o_ref.dtype)


def fc_head(x, w1, b1, w2, b2, w3, b3, *, kt=_FC1_KT):
    B, Kp = x.shape
    assert Kp % kt == 0
    N1, N2, N3 = w1.shape[1], w2.shape[1], w3.shape[1]
    return pl.pallas_call(
        _fc_head_kernel,
        out_shape=jax.ShapeDtypeStruct((B, N3), jnp.float32),
        grid=(Kp // kt,),
        in_specs=[
            pl.BlockSpec((B, kt), lambda k: (0, k)),
            pl.BlockSpec((kt, N1), lambda k: (k, 0)),
            pl.BlockSpec((1, N1), lambda k: (0, 0)),
            pl.BlockSpec((N1, N2), lambda k: (0, 0)),
            pl.BlockSpec((1, N2), lambda k: (0, 0)),
            pl.BlockSpec((N2, N3), lambda k: (0, 0)),
            pl.BlockSpec((1, N3), lambda k: (0, 0)),
        ],
        out_specs=pl.BlockSpec((B, N3), lambda k: (0, 0)),
        scratch_shapes=[pltpu.VMEM((B, N1), jnp.float32)],
        compiler_params=pltpu.CompilerParams(
            dimension_semantics=("arbitrary",),
            vmem_limit_bytes=_VMEM_LIMIT),
    )(x, w1, b1, w2, b2, w3, b3)


# ----------------------------------------------------------------------------
# One-time host-side parameter repack
# ----------------------------------------------------------------------------
def _banded_conv_weights(w_oihw, width):
    """(cout,cin,3,3) OIHW -> (3, width*cin, width*cout) banded W-tap matrices.

    out[di, wq*cin+ci, wo*cout+co] = W[co, ci, di, wq-wo+1] (band width 3);
    W zero-padding is implicit (taps outside [0,width) simply don't appear)."""
    w = np.asarray(w_oihw, np.float32)
    cout, cin, kh, kw = w.shape
    out = np.zeros((kh, width * cin, width * cout), np.float32)
    for di in range(kh):
        for dj in range(kw):
            wtap = w[:, :, di, dj].T                      # (cin, cout)
            for wo in range(width):
                wq = wo + dj - 1
                if 0 <= wq < width:
                    out[di, wq * cin:(wq + 1) * cin,
                        wo * cout:(wo + 1) * cout] = wtap
    return out


def _pool_row_select(h, parity):
    """(h//2, h): picks rows 2i+parity."""
    m = np.zeros((h // 2, h), np.float32)
    m[np.arange(h // 2), 2 * np.arange(h // 2) + parity] = 1.0
    return m


def _pool_col_select(width, ch):
    """(width*ch, (width//2)*ch): picks even-w lane groups (W-pair max)."""
    m = np.zeros((width * ch, (width // 2) * ch), np.float32)
    eye = np.eye(ch, dtype=np.float32)
    for j in range(width // 2):
        m[2 * j * ch:(2 * j + 1) * ch, j * ch:(j + 1) * ch] = eye
    return m


def init_params(key):
    ks = jax.random.split(key, 10)
    u = lambda k, shape, s: jax.random.uniform(k, shape, jnp.float32, -s, s)
    return {
        "conv1_w": u(ks[0], (16, 1, 3, 3), 1.0 / 3.0),
        "conv1_b": u(ks[1], (16,), 1.0 / 3.0),
        "conv2_w": u(ks[2], (32, 16, 3, 3), 1.0 / 12.0),
        "conv2_b": u(ks[3], (32,), 1.0 / 12.0),
        "fc1_w": u(ks[4], (512, 3136), 1.0 / 56.0),
        "fc1_b": u(ks[5], (512,), 1.0 / 56.0),
        "fc2_w": u(ks[6], (256, 512), 1.0 / 23.0),
        "fc2_b": u(ks[7], (256,), 1.0 / 23.0),
        "fc3_w": u(ks[8], (10, 256), 1.0 / 16.0),
        "fc3_b": u(ks[9], (10,), 1.0 / 16.0),
    }


def prepare_params(p):
    # fc1: torch (512, 3136) indexed by NCHW flatten (c*98 + h*7 + w)
    #   -> (3136, 512) indexed by the conv kernel's flatten (h*224 + w*32 + c),
    #   K zero-padded 3136 -> 3200 so fc1's K tiles are 128-aligned.
    fc1 = np.asarray(p["fc1_w"], np.float32).reshape(512, 32, 14, 7)
    fc1 = np.transpose(fc1, (2, 3, 1, 0)).reshape(_FC1_K, 512)
    fc1 = np.pad(fc1, ((0, _FC1_K_PAD - _FC1_K), (0, 0)))

    return {
        "w1b": jnp.asarray(_banded_conv_weights(p["conv1_w"], 28), jnp.bfloat16),
        "b1": jnp.asarray(np.tile(np.asarray(p["conv1_b"], np.float32), 28)
                          .reshape(1, 448)),
        "sh1e": jnp.asarray(_pool_row_select(56, 0), jnp.bfloat16),
        "sh1o": jnp.asarray(_pool_row_select(56, 1), jnp.bfloat16),
        "sw1": jnp.asarray(_pool_col_select(28, 16), jnp.bfloat16),
        "w2b": jnp.asarray(_banded_conv_weights(p["conv2_w"], 14), jnp.bfloat16),
        "b2": jnp.asarray(np.tile(np.asarray(p["conv2_b"], np.float32), 14)
                          .reshape(1, 448)),
        "sh2e": jnp.asarray(_pool_row_select(28, 0), jnp.bfloat16),
        "sh2o": jnp.asarray(_pool_row_select(28, 1), jnp.bfloat16),
        "sw2": jnp.asarray(_pool_col_select(14, 32), jnp.bfloat16),
        "fc1_w": jnp.asarray(fc1, jnp.bfloat16),                    # (3200, 512)
        "fc1_b": jnp.asarray(np.asarray(p["fc1_b"]).reshape(1, 512), jnp.float32),
        "fc2_w": jnp.asarray(np.asarray(p["fc2_w"]).T, jnp.bfloat16),
        "fc2_b": jnp.asarray(np.asarray(p["fc2_b"]).reshape(1, 256), jnp.float32),
        "fc3_w": jnp.asarray(np.asarray(p["fc3_w"]).T, jnp.bfloat16),
        "fc3_b": jnp.asarray(np.asarray(p["fc3_b"]).reshape(1, 10), jnp.float32),
    }


# ----------------------------------------------------------------------------
# Forward pass (Pallas) and pure-JAX f32 reference
# ----------------------------------------------------------------------------
def net_forward(x, pp):
    x = x.reshape(-1, 56, 28).astype(jnp.float32)        # x.view(-1, 1, 56, 28)
    B = x.shape[0]
    h = conv_stack(x, pp)                                 # (B, 14, 224) bf16
    h = h.reshape(B, 14 * 224)                            # flatten h*224+w*32+c
    h = jnp.pad(h, ((0, 0), (0, _FC1_K_PAD - _FC1_K)))    # tiny: K -> 3200
    return fc_head(h, pp["fc1_w"], pp["fc1_b"], pp["fc2_w"], pp["fc2_b"],
                   pp["fc3_w"], pp["fc3_b"])


def net_forward_ref(x, p):
    hp = jax.lax.Precision.HIGHEST
    x = x.reshape(-1, 1, 56, 28).astype(jnp.float32)

    def conv(h, w, b):
        y = jax.lax.conv_general_dilated(
            h, w, (1, 1), ((1, 1), (1, 1)),
            dimension_numbers=("NCHW", "OIHW", "NCHW"), precision=hp)
        return y + b[None, :, None, None]

    def pool(h):
        return jax.lax.reduce_window(h, -jnp.inf, jax.lax.max,
                                     (1, 1, 2, 2), (1, 1, 2, 2), "VALID")

    h = pool(jax.nn.relu(conv(x, p["conv1_w"], p["conv1_b"])))
    h = pool(jax.nn.relu(conv(h, p["conv2_w"], p["conv2_b"])))
    h = h.reshape(h.shape[0], -1)
    h = jax.nn.relu(jnp.dot(h, p["fc1_w"].T, precision=hp) + p["fc1_b"])
    h = jax.nn.relu(jnp.dot(h, p["fc2_w"].T, precision=hp) + p["fc2_b"])
    h = jnp.dot(h, p["fc3_w"].T, precision=hp) + p["fc3_b"]
    return jax.nn.log_softmax(h, axis=1)


# ----------------------------------------------------------------------------
if __name__ == "__main__":
    key = jax.random.PRNGKey(0)
    kx, kp = jax.random.split(key)
    x = jax.random.normal(kx, (2, 1, 56, 28), jnp.float32)   # batch=2 "images"
    params = init_params(kp)
    pp = prepare_params(params)                               # one-time repack

    out = jax.block_until_ready(jax.jit(net_forward)(x, pp))
    ref = jax.block_until_ready(net_forward_ref(x, params))

    out_np = np.asarray(out, dtype=np.float32)
    ref_np = np.asarray(ref, dtype=np.float32)
    assert out_np.shape == (2, 10)
    assert np.all(np.isfinite(out_np))
    # log_softmax self-consistency: probabilities sum to 1 per row
    assert np.allclose(np.exp(out_np).sum(axis=1), 1.0, atol=1e-3)
    # match the pure-JAX f32 reference (tolerance covers bf16 MXU operands)
    assert np.allclose(out_np, ref_np, atol=3e-2, rtol=3e-2), (
        f"max abs diff {np.abs(out_np - ref_np).max()}")

    print("KERNEL_OK")
</pallas_src>

<mosaic_0001>
module attributes {stable_mosaic.version = 11 : i64} {
  func.func @_conv_stack_kernel(%arg0: i32, %arg1: memref<1x56x28xf32, #tpu.memory_space<vmem>>, %arg2: memref<3x28x448xbf16, #tpu.memory_space<vmem>>, %arg3: memref<1x448xf32, #tpu.memory_space<vmem>>, %arg4: memref<28x56xbf16, #tpu.memory_space<vmem>>, %arg5: memref<28x56xbf16, #tpu.memory_space<vmem>>, %arg6: memref<448x224xbf16, #tpu.memory_space<vmem>>, %arg7: memref<3x224x448xbf16, #tpu.memory_space<vmem>>, %arg8: memref<1x448xf32, #tpu.memory_space<vmem>>, %arg9: memref<14x28xbf16, #tpu.memory_space<vmem>>, %arg10: memref<14x28xbf16, #tpu.memory_space<vmem>>, %arg11: memref<448x224xbf16, #tpu.memory_space<vmem>>, %arg12: memref<1x14x224xbf16, #tpu.memory_space<vmem>>, %arg13: memref<58x28xbf16, #tpu.memory_space<vmem>>, %arg14: memref<30x224xbf16, #tpu.memory_space<vmem>>) attributes {dimension_semantics = [#tpu.dimension_semantics<parallel>], iteration_bounds = array<i64: 2>, scalar_prefetch = 0 : i64, scratch_operands = 2 : i64, tpu.core_type = #tpu.core_type<tc>, window_params = [{transform_indices = @transform_0, window_bounds = array<i64: 1, 56, 28>}, {pipeline_mode = #tpu.pipeline_mode<synchronous>, transform_indices = @transform_1, window_bounds = array<i64: 3, 28, 448>}, {pipeline_mode = #tpu.pipeline_mode<synchronous>, transform_indices = @transform_2, window_bounds = array<i64: 1, 448>}, {pipeline_mode = #tpu.pipeline_mode<synchronous>, transform_indices = @transform_3, window_bounds = array<i64: 28, 56>}, {pipeline_mode = #tpu.pipeline_mode<synchronous>, transform_indices = @transform_4, window_bounds = array<i64: 28, 56>}, {pipeline_mode = #tpu.pipeline_mode<synchronous>, transform_indices = @transform_5, window_bounds = array<i64: 448, 224>}, {pipeline_mode = #tpu.pipeline_mode<synchronous>, transform_indices = @transform_6, window_bounds = array<i64: 3, 224, 448>}, {pipeline_mode = #tpu.pipeline_mode<synchronous>, transform_indices = @transform_7, window_bounds = array<i64: 1, 448>}, {pipeline_mode = #tpu.pipeline_mode<synchronous>, transform_indices = @transform_8, window_bounds = array<i64: 14, 28>}, {pipeline_mode = #tpu.pipeline_mode<synchronous>, transform_indices = @transform_9, window_bounds = array<i64: 14, 28>}, {pipeline_mode = #tpu.pipeline_mode<synchronous>, transform_indices = @transform_10, window_bounds = array<i64: 448, 224>}, {transform_indices = @transform_11, window_bounds = array<i64: 1, 14, 224>}]} {
    %cst = arith.constant 0.000000e+00 : bf16
    %0 = vector.broadcast %cst : bf16 to vector<1x28xbf16>
    %c0 = arith.constant 0 : index
    %c0_0 = arith.constant 0 : index
    %1 = vector.load %arg13[%c0, %c0_0] : memref<58x28xbf16, #tpu.memory_space<vmem>>, vector<1x28xbf16>
    tpu.vector_store %arg13[%c0, %c0_0], %0 {strides = array<i32>} : memref<58x28xbf16, #tpu.memory_space<vmem>>, vector<1x28xbf16>,
    %cst_1 = arith.constant 0.000000e+00 : bf16
    %2 = vector.broadcast %cst_1 : bf16 to vector<1x28xbf16>
    %c57 = arith.constant 57 : index
    %c0_2 = arith.constant 0 : index
    %3 = vector.load %arg13[%c57, %c0_2] : memref<58x28xbf16, #tpu.memory_space<vmem>>, vector<1x28xbf16>
    tpu.vector_store %arg13[%c57, %c0_2], %2 {strides = array<i32>} : memref<58x28xbf16, #tpu.memory_space<vmem>>, vector<1x28xbf16>,
    %c0_3 = arith.constant 0 : index
    %c0_4 = arith.constant 0 : index
    %c0_5 = arith.constant 0 : index
    %4 = vector.load %arg1[%c0_3, %c0_4, %c0_5] : memref<1x56x28xf32, #tpu.memory_space<vmem>>, vector<1x56x28xf32>
    %5 = vector.shape_cast %4 : vector<1x56x28xf32> to vector<56x28xf32>
    %6 = arith.truncf %5 : vector<56x28xf32> to vector<56x28xbf16>
    %c1 = arith.constant 1 : index
    %c0_6 = arith.constant 0 : index
    %7 = vector.load %arg13[%c1, %c0_6] : memref<58x28xbf16, #tpu.memory_space<vmem>>, vector<56x28xbf16>
    tpu.vector_store %arg13[%c1, %c0_6], %6 {strides = array<i32>} : memref<58x28xbf16, #tpu.memory_space<vmem>>, vector<56x28xbf16>,
    %c0_7 = arith.constant 0 : index
    %c0_8 = arith.constant 0 : index
    %8 = vector.load %arg13[%c0_7, %c0_8] : memref<58x28xbf16, #tpu.memory_space<vmem>>, vector<56x28xbf16>
    %c0_9 = arith.constant 0 : index
    %c0_10 = arith.constant 0 : index
    %c0_11 = arith.constant 0 : index
    %9 = vector.load %arg2[%c0_9, %c0_10, %c0_11] : memref<3x28x448xbf16, #tpu.memory_space<vmem>>, vector<1x28x448xbf16>
    %10 = vector.shape_cast %9 : vector<1x28x448xbf16> to vector<28x448xbf16>
    %cst_12 = arith.constant dense<0.000000e+00> : vector<56x448xf32>
    %11 = tpu.matmul %8, %10, %cst_12 {dimension_numbers = #tpu.dot_dimension_numbers<[1], [0], [0], [1], [0, 0, 1, 1], [], []>} : vector<56x28xbf16>, vector<28x448xbf16>, vector<56x448xf32> -> vector<56x448xf32>
    %c1_13 = arith.constant 1 : index
    %c0_14 = arith.constant 0 : index
    %12 = vector.load %arg13[%c1_13, %c0_14] : memref<58x28xbf16, #tpu.memory_space<vmem>>, vector<56x28xbf16>
    %c1_15 = arith.constant 1 : index
    %c0_16 = arith.constant 0 : index
    %c0_17 = arith.constant 0 : index
    %13 = vector.load %arg2[%c1_15, %c0_16, %c0_17] : memref<3x28x448xbf16, #tpu.memory_space<vmem>>, vector<1x28x448xbf16>
    %14 = vector.shape_cast %13 : vector<1x28x448xbf16> to vector<28x448xbf16>
    %cst_18 = arith.constant dense<0.000000e+00> : vector<56x448xf32>
    %15 = tpu.matmul %12, %14, %cst_18 {dimension_numbers = #tpu.dot_dimension_numbers<[1], [0], [0], [1], [0, 0, 1, 1], [], []>} : vector<56x28xbf16>, vector<28x448xbf16>, vector<56x448xf32> -> vector<56x448xf32>
    %16 = arith.addf %11, %15 : vector<56x448xf32>
    %c2 = arith.constant 2 : index
    %c0_19 = arith.constant 0 : index
    %17 = vector.load %arg13[%c2, %c0_19] : memref<58x28xbf16, #tpu.memory_space<vmem>>, vector<56x28xbf16>
    %c2_20 = arith.constant 2 : index
    %c0_21 = arith.constant 0 : index
    %c0_22 = arith.constant 0 : index
    %18 = vector.load %arg2[%c2_20, %c0_21, %c0_22] : memref<3x28x448xbf16, #tpu.memory_space<vmem>>, vector<1x28x448xbf16>
    %19 = vector.shape_cast %18 : vector<1x28x448xbf16> to vector<28x448xbf16>
    %cst_23 = arith.constant dense<0.000000e+00> : vector<56x448xf32>
    %20 = tpu.matmul %17, %19, %cst_23 {dimension_numbers = #tpu.dot_dimension_numbers<[1], [0], [0], [1], [0, 0, 1, 1], [], []>} : vector<56x28xbf16>, vector<28x448xbf16>, vector<56x448xf32> -> vector<56x448xf32>
    %21 = arith.addf %16, %20 : vector<56x448xf32>
    %c0_24 = arith.constant 0 : index
    %c0_25 = arith.constant 0 : index
    %22 = vector.load %arg3[%c0_24, %c0_25] : memref<1x448xf32, #tpu.memory_space<vmem>>, vector<1x448xf32>
    %23 = vector.broadcast %22 : vector<1x448xf32> to vector<56x448xf32>
    %24 = arith.addf %21, %23 : vector<56x448xf32>
    %cst_26 = arith.constant 0.000000e+00 : f32
    %25 = vector.broadcast %cst_26 : f32 to vector<56x448xf32>
    %26 = arith.maximumf %24, %25 : vector<56x448xf32>
    %c432_i32 = arith.constant 432 : i32
    %27 = tpu.dynamic_rotate %26 by %c432_i32 dim 1 : vector<56x448xf32>, i32 -> vector<56x448xf32>
    %28 = arith.maximumf %26, %27 : vector<56x448xf32>
    %29 = arith.truncf %28 : vector<56x448xf32> to vector<56x448xbf16>
    %c0_27 = arith.constant 0 : index
    %c0_28 = arith.constant 0 : index
    %30 = vector.load %arg4[%c0_27, %c0_28] : memref<28x56xbf16, #tpu.memory_space<vmem>>, vector<28x56xbf16>
    %cst_29 = arith.constant dense<0.000000e+00> : vector<28x448xf32>
    %31 = tpu.matmul %30, %29, %cst_29 {dimension_numbers = #tpu.dot_dimension_numbers<[1], [0], [0], [1], [0, 0, 1, 1], [], []>} : vector<28x56xbf16>, vector<56x448xbf16>, vector<28x448xf32> -> vector<28x448xf32>
    %c0_30 = arith.constant 0 : index
    %c0_31 = arith.constant 0 : index
    %32 = vector.load %arg5[%c0_30, %c0_31] : memref<28x56xbf16, #tpu.memory_space<vmem>>, vector<28x56xbf16>
    %cst_32 = arith.constant dense<0.000000e+00> : vector<28x448xf32>
    %33 = tpu.matmul %32, %29, %cst_32 {dimension_numbers = #tpu.dot_dimension_numbers<[1], [0], [0], [1], [0, 0, 1, 1], [], []>} : vector<28x56xbf16>, vector<56x448xbf16>, vector<28x448xf32> -> vector<28x448xf32>
    %34 = arith.maximumf %31, %33 : vector<28x448xf32>
    %35 = arith.truncf %34 : vector<28x448xf32> to vector<28x448xbf16>
    %c0_33 = arith.constant 0 : index
    %c0_34 = arith.constant 0 : index
    %36 = vector.load %arg6[%c0_33, %c0_34] : memref<448x224xbf16, #tpu.memory_space<vmem>>, vector<448x224xbf16>
    %cst_35 = arith.constant dense<0.000000e+00> : vector<28x224xf32>
    %37 = tpu.matmul %35, %36, %cst_35 {dimension_numbers = #tpu.dot_dimension_numbers<[1], [0], [0], [1], [0, 0, 1, 1], [], []>} : vector<28x448xbf16>, vector<448x224xbf16>, vector<28x224xf32> -> vector<28x224xf32>
    %cst_36 = arith.constant 0.000000e+00 : bf16
    %38 = vector.broadcast %cst_36 : bf16 to vector<1x224xbf16>
    %c0_37 = arith.constant 0 : index
    %c0_38 = arith.constant 0 : index
    %39 = vector.load %arg14[%c0_37, %c0_38] : memref<30x224xbf16, #tpu.memory_space<vmem>>, vector<1x224xbf16>
    tpu.vector_store %arg14[%c0_37, %c0_38], %38 {strides = array<i32>} : memref<30x224xbf16, #tpu.memory_space<vmem>>, vector<1x224xbf16>,
    %cst_39 = arith.constant 0.000000e+00 : bf16
    %40 = vector.broadcast %cst_39 : bf16 to vector<1x224xbf16>
    %c29 = arith.constant 29 : index
    %c0_40 = arith.constant 0 : index
    %41 = vector.load %arg14[%c29, %c0_40] : memref<30x224xbf16, #tpu.memory_space<vmem>>, vector<1x224xbf16>
    tpu.vector_store %arg14[%c29, %c0_40], %40 {strides = array<i32>} : memref<30x224xbf16, #tpu.memory_space<vmem>>, vector<1x224xbf16>,
    %42 = arith.truncf %37 : vector<28x224xf32> to vector<28x224xbf16>
    %c1_41 = arith.constant 1 : index
    %c0_42 = arith.constant 0 : index
    %43 = vector.load %arg14[%c1_41, %c0_42] : memref<30x224xbf16, #tpu.memory_space<vmem>>, vector<28x224xbf16>
    tpu.vector_store %arg14[%c1_41, %c0_42], %42 {strides = array<i32>} : memref<30x224xbf16, #tpu.memory_space<vmem>>, vector<28x224xbf16>,
    %c0_43 = arith.constant 0 : index
    %c0_44 = arith.constant 0 : index
    %44 = vector.load %arg14[%c0_43, %c0_44] : memref<30x224xbf16, #tpu.memory_space<vmem>>, vector<28x224xbf16>
    %c0_45 = arith.constant 0 : index
    %c0_46 = arith.constant 0 : index
    %c0_47 = arith.constant 0 : index
    %45 = vector.load %arg7[%c0_45, %c0_46, %c0_47] : memref<3x224x448xbf16, #tpu.memory_space<vmem>>, vector<1x224x448xbf16>
    %46 = vector.shape_cast %45 : vector<1x224x448xbf16> to vector<224x448xbf16>
    %cst_48 = arith.constant dense<0.000000e+00> : vector<28x448xf32>
    %47 = tpu.matmul %44, %46, %cst_48 {dimension_numbers = #tpu.dot_dimension_numbers<[1], [0], [0], [1], [0, 0, 1, 1], [], []>} : vector<28x224xbf16>, vector<224x448xbf16>, vector<28x448xf32> -> vector<28x448xf32>
    %c1_49 = arith.constant 1 : index
    %c0_50 = arith.constant 0 : index
    %48 = vector.load %arg14[%c1_49, %c0_50] : memref<30x224xbf16, #tpu.memory_space<vmem>>, vector<28x224xbf16>
    %c1_51 = arith.constant 1 : index
    %c0_52 = arith.constant 0 : index
    %c0_53 = arith.constant 0 : index
    %49 = vector.load %arg7[%c1_51, %c0_52, %c0_53] : memref<3x224x448xbf16, #tpu.memory_space<vmem>>, vector<1x224x448xbf16>
    %50 = vector.shape_cast %49 : vector<1x224x448xbf16> to vector<224x448xbf16>
    %cst_54 = arith.constant dense<0.000000e+00> : vector<28x448xf32>
    %51 = tpu.matmul %48, %50, %cst_54 {dimension_numbers = #tpu.dot_dimension_numbers<[1], [0], [0], [1], [0, 0, 1, 1], [], []>} : vector<28x224xbf16>, vector<224x448xbf16>, vector<28x448xf32> -> vector<28x448xf32>
    %52 = arith.addf %47, %51 : vector<28x448xf32>
    %c2_55 = arith.constant 2 : index
    %c0_56 = arith.constant 0 : index
    %53 = vector.load %arg14[%c2_55, %c0_56] : memref<30x224xbf16, #tpu.memory_space<vmem>>, vector<28x224xbf16>
    %c2_57 = arith.constant 2 : index
    %c0_58 = arith.constant 0 : index
    %c0_59 = arith.constant 0 : index
    %54 = vector.load %arg7[%c2_57, %c0_58, %c0_59] : memref<3x224x448xbf16, #tpu.memory_space<vmem>>, vector<1x224x448xbf16>
    %55 = vector.shape_cast %54 : vector<1x224x448xbf16> to vector<224x448xbf16>
    %cst_60 = arith.constant dense<0.000000e+00> : vector<28x448xf32>
    %56 = tpu.matmul %53, %55, %cst_60 {dimension_numbers = #tpu.dot_dimension_numbers<[1], [0], [0], [1], [0, 0, 1, 1], [], []>} : vector<28x224xbf16>, vector<224x448xbf16>, vector<28x448xf32> -> vector<28x448xf32>
    %57 = arith.addf %52, %56 : vector<28x448xf32>
    %c0_61 = arith.constant 0 : index
    %c0_62 = arith.constant 0 : index
    %58 = vector.load %arg8[%c0_61, %c0_62] : memref<1x448xf32, #tpu.memory_space<vmem>>, vector<1x448xf32>
    %59 = vector.broadcast %58 : vector<1x448xf32> to vector<28x448xf32>
    %60 = arith.addf %57, %59 : vector<28x448xf32>
    %cst_63 = arith.constant 0.000000e+00 : f32
    %61 = vector.broadcast %cst_63 : f32 to vector<28x448xf32>
    %62 = arith.maximumf %60, %61 : vector<28x448xf32>
    %c416_i32 = arith.constant 416 : i32
    %63 = tpu.dynamic_rotate %62 by %c416_i32 dim 1 : vector<28x448xf32>, i32 -> vector<28x448xf32>
    %64 = arith.maximumf %62, %63 : vector<28x448xf32>
    %65 = arith.truncf %64 : vector<28x448xf32> to vector<28x448xbf16>
    %c0_64 = arith.constant 0 : index
    %c0_65 = arith.constant 0 : index
    %66 = vector.load %arg9[%c0_64, %c0_65] : memref<14x28xbf16, #tpu.memory_space<vmem>>, vector<14x28xbf16>
    %cst_66 = arith.constant dense<0.000000e+00> : vector<14x448xf32>
    %67 = tpu.matmul %66, %65, %cst_66 {dimension_numbers = #tpu.dot_dimension_numbers<[1], [0], [0], [1], [0, 0, 1, 1], [], []>} : vector<14x28xbf16>, vector<28x448xbf16>, vector<14x448xf32> -> vector<14x448xf32>
    %c0_67 = arith.constant 0 : index
    %c0_68 = arith.constant 0 : index
    %68 = vector.load %arg10[%c0_67, %c0_68] : memref<14x28xbf16, #tpu.memory_space<vmem>>, vector<14x28xbf16>
    %cst_69 = arith.constant dense<0.000000e+00> : vector<14x448xf32>
    %69 = tpu.matmul %68, %65, %cst_69 {dimension_numbers = #tpu.dot_dimension_numbers<[1], [0], [0], [1], [0, 0, 1, 1], [], []>} : vector<14x28xbf16>, vector<28x448xbf16>, vector<14x448xf32> -> vector<14x448xf32>
    %70 = arith.maximumf %67, %69 : vector<14x448xf32>
    %71 = arith.truncf %70 : vector<14x448xf32> to vector<14x448xbf16>
    %c0_70 = arith.constant 0 : index
    %c0_71 = arith.constant 0 : index
    %72 = vector.load %arg11[%c0_70, %c0_71] : memref<448x224xbf16, #tpu.memory_space<vmem>>, vector<448x224xbf16>
    %cst_72 = arith.constant dense<0.000000e+00> : vector<14x224xf32>
    %73 = tpu.matmul %71, %72, %cst_72 {dimension_numbers = #tpu.dot_dimension_numbers<[1], [0], [0], [1], [0, 0, 1, 1], [], []>} : vector<14x448xbf16>, vector<448x224xbf16>, vector<14x224xf32> -> vector<14x224xf32>
    %74 = arith.truncf %73 : vector<14x224xf32> to vector<14x224xbf16>
    %c0_73 = arith.constant 0 : index
    %c0_74 = arith.constant 0 : index
    %c0_75 = arith.constant 0 : index
    %75 = vector.load %arg12[%c0_73, %c0_74, %c0_75] : memref<1x14x224xbf16, #tpu.memory_space<vmem>>, vector<1x14x224xbf16>
    %76 = vector.shape_cast %75 : vector<1x14x224xbf16> to vector<14x224xbf16>
    %77 = vector.shape_cast %74 : vector<14x224xbf16> to vector<1x14x224xbf16>
    tpu.vector_store %arg12[%c0_73, %c0_74, %c0_75], %77 {strides = array<i32>} : memref<1x14x224xbf16, #tpu.memory_space<vmem>>, vector<1x14x224xbf16>,
    return
  }
  func.func @transform_0(%arg0: i32) -> (i32, i32, i32) {
    %c0_i32 = arith.constant 0 : i32
    %c0_i32_0 = arith.constant 0 : i32
    %c0_i32_1 = arith.constant 0 : i32
    return %arg0, %c0_i32, %c0_i32_0 : i32, i32, i32
  }
  func.func @transform_1(%arg0: i32) -> (i32, i32, i32) {
    %c0_i32 = arith.constant 0 : i32
    %c0_i32_0 = arith.constant 0 : i32
    %c0_i32_1 = arith.constant 0 : i32
    %c0_i32_2 = arith.constant 0 : i32
    return %c0_i32, %c0_i32_0, %c0_i32_1 : i32, i32, i32
  }
  func.func @transform_2(%arg0: i32) -> (i32, i32) {
    %c0_i32 = arith.constant 0 : i32
    %c0_i32_0 = arith.constant 0 : i32
    %c0_i32_1 = arith.constant 0 : i32
    return %c0_i32, %c0_i32_0 : i32, i32
  }
  func.func @transform_3(%arg0: i32) -> (i32, i32) {
    %c0_i32 = arith.constant 0 : i32
    %c0_i32_0 = arith.constant 0 : i32
    %c0_i32_1 = arith.constant 0 : i32
    return %c0_i32, %c0_i32_0 : i32, i32
  }
  func.func @transform_4(%arg0: i32) -> (i32, i32) {
    %c0_i32 = arith.constant 0 : i32
    %c0_i32_0 = arith.constant 0 : i32
    %c0_i32_1 = arith.constant 0 : i32
    return %c0_i32, %c0_i32_0 : i32, i32
  }
  func.func @transform_5(%arg0: i32) -> (i32, i32) {
    %c0_i32 = arith.constant 0 : i32
    %c0_i32_0 = arith.constant 0 : i32
    %c0_i32_1 = arith.constant 0 : i32
    return %c0_i32, %c0_i32_0 : i32, i32
  }
  func.func @transform_6(%arg0: i32) -> (i32, i32, i32) {
    %c0_i32 = arith.constant 0 : i32
    %c0_i32_0 = arith.constant 0 : i32
    %c0_i32_1 = arith.constant 0 : i32
    %c0_i32_2 = arith.constant 0 : i32
    return %c0_i32, %c0_i32_0, %c0_i32_1 : i32, i32, i32
  }
  func.func @transform_7(%arg0: i32) -> (i32, i32) {
    %c0_i32 = arith.constant 0 : i32
    %c0_i32_0 = arith.constant 0 : i32
    %c0_i32_1 = arith.constant 0 : i32
    return %c0_i32, %c0_i32_0 : i32, i32
  }
  func.func @transform_8(%arg0: i32) -> (i32, i32) {
    %c0_i32 = arith.constant 0 : i32
    %c0_i32_0 = arith.constant 0 : i32
    %c0_i32_1 = arith.constant 0 : i32
    return %c0_i32, %c0_i32_0 : i32, i32
  }
  func.func @transform_9(%arg0: i32) -> (i32, i32) {
    %c0_i32 = arith.constant 0 : i32
    %c0_i32_0 = arith.constant 0 : i32
    %c0_i32_1 = arith.constant 0 : i32
    return %c0_i32, %c0_i32_0 : i32, i32
  }
  func.func @transform_10(%arg0: i32) -> (i32, i32) {
    %c0_i32 = arith.constant 0 : i32
    %c0_i32_0 = arith.constant 0 : i32
    %c0_i32_1 = arith.constant 0 : i32
    return %c0_i32, %c0_i32_0 : i32, i32
  }
  func.func @transform_11(%arg0: i32) -> (i32, i32, i32) {
    %c0_i32 = arith.constant 0 : i32
    %c0_i32_0 = arith.constant 0 : i32
    %c0_i32_1 = arith.constant 0 : i32
    return %arg0, %c0_i32, %c0_i32_0 : i32, i32, i32
  }
}

module attributes {stable_mosaic.version = 11 : i64} {
  func.func @_fc_head_kernel(%arg0: i32, %arg1: memref<2x640xbf16, #tpu.memory_space<vmem>>, %arg2: memref<640x512xbf16, #tpu.memory_space<vmem>>, %arg3: memref<1x512xf32, #tpu.memory_space<vmem>>, %arg4: memref<512x256xbf16, #tpu.memory_space<vmem>>, %arg5: memref<1x256xf32, #tpu.memory_space<vmem>>, %arg6: memref<256x10xbf16, #tpu.memory_space<vmem>>, %arg7: memref<1x10xf32, #tpu.memory_space<vmem>>, %arg8: memref<2x10xf32, #tpu.memory_space<vmem>>, %arg9: memref<2x512xf32, #tpu.memory_space<vmem>>) attributes {dimension_semantics = [#tpu.dimension_semantics<arbitrary>], iteration_bounds = array<i64: 5>, scalar_prefetch = 0 : i64, scratch_operands = 1 : i64, tpu.core_type = #tpu.core_type<tc>, window_params = [{transform_indices = @transform_0, window_bounds = array<i64: 2, 640>}, {transform_indices = @transform_1, window_bounds = array<i64: 640, 512>}, {pipeline_mode = #tpu.pipeline_mode<synchronous>, transform_indices = @transform_2, window_bounds = array<i64: 1, 512>}, {pipeline_mode = #tpu.pipeline_mode<synchronous>, transform_indices = @transform_3, window_bounds = array<i64: 512, 256>}, {pipeline_mode = #tpu.pipeline_mode<synchronous>, transform_indices = @transform_4, window_bounds = array<i64: 1, 256>}, {pipeline_mode = #tpu.pipeline_mode<synchronous>, transform_indices = @transform_5, window_bounds = array<i64: 256, 10>}, {pipeline_mode = #tpu.pipeline_mode<synchronous>, transform_indices = @transform_6, window_bounds = array<i64: 1, 10>}, {pipeline_mode = #tpu.pipeline_mode<synchronous>, transform_indices = @transform_7, window_bounds = array<i64: 2, 10>}]} {
    %c0_i32 = arith.constant 0 : i32
    %0 = arith.cmpi eq, %arg0, %c0_i32 : i32
    %1 = arith.extui %0 : i1 to i32
    %c0_i32_0 = arith.constant 0 : i32
    %2 = arith.cmpi ne, %1, %c0_i32_0 : i32
    scf.if %2 {
      %cst_9 = arith.constant 0.000000e+00 : f32
      %12 = vector.broadcast %cst_9 : f32 to vector<2x512xf32>
      %c0_10 = arith.constant 0 : index
      %c0_11 = arith.constant 0 : index
      %13 = vector.load %arg9[%c0_10, %c0_11] : memref<2x512xf32, #tpu.memory_space<vmem>>, vector<2x512xf32>
      tpu.vector_store %arg9[%c0_10, %c0_11], %12 {strides = array<i32>} : memref<2x512xf32, #tpu.memory_space<vmem>>, vector<2x512xf32>,
    } else {
    }
    %c0 = arith.constant 0 : index
    %c0_1 = arith.constant 0 : index
    %3 = vector.load %arg9[%c0, %c0_1] : memref<2x512xf32, #tpu.memory_space<vmem>>, vector<2x512xf32>
    %c0_2 = arith.constant 0 : index
    %c0_3 = arith.constant 0 : index
    %4 = vector.load %arg1[%c0_2, %c0_3] : memref<2x640xbf16, #tpu.memory_space<vmem>>, vector<2x640xbf16>
    %c0_4 = arith.constant 0 : index
    %c0_5 = arith.constant 0 : index
    %5 = vector.load %arg2[%c0_4, %c0_5] : memref<640x512xbf16, #tpu.memory_space<vmem>>, vector<640x512xbf16>
    %cst = arith.constant dense<0.000000e+00> : vector<2x512xf32>
    %6 = tpu.matmul %4, %5, %cst {dimension_numbers = #tpu.dot_dimension_numbers<[1], [0], [0], [1], [0, 0, 1, 1], [], []>} : vector<2x640xbf16>, vector<640x512xbf16>, vector<2x512xf32> -> vector<2x512xf32>
    %7 = arith.addf %3, %6 : vector<2x512xf32>
    %c0_6 = arith.constant 0 : index
    %c0_7 = arith.constant 0 : index
    %8 = vector.load %arg9[%c0_6, %c0_7] : memref<2x512xf32, #tpu.memory_space<vmem>>, vector<2x512xf32>
    tpu.vector_store %arg9[%c0_6, %c0_7], %7 {strides = array<i32>} : memref<2x512xf32, #tpu.memory_space<vmem>>, vector<2x512xf32>,
    %c4_i32 = arith.constant 4 : i32
    %9 = arith.cmpi eq, %arg0, %c4_i32 : i32
    %10 = arith.extui %9 : i1 to i32
    %c0_i32_8 = arith.constant 0 : i32
    %11 = arith.cmpi ne, %10, %c0_i32_8 : i32
    scf.if %11 {
      %c0_9 = arith.constant 0 : index
      %c0_10 = arith.constant 0 : index
      %12 = vector.load %arg9[%c0_9, %c0_10] : memref<2x512xf32, #tpu.memory_space<vmem>>, vector<2x512xf32>
      %c0_11 = arith.constant 0 : index
      %c0_12 = arith.constant 0 : index
      %13 = vector.load %arg3[%c0_11, %c0_12] : memref<1x512xf32, #tpu.memory_space<vmem>>, vector<1x512xf32>
      %14 = vector.broadcast %13 : vector<1x512xf32> to vector<2x512xf32>
      %15 = arith.addf %12, %14 : vector<2x512xf32>
      %cst_13 = arith.constant 0.000000e+00 : f32
      %16 = vector.broadcast %cst_13 : f32 to vector<2x512xf32>
      %17 = arith.maximumf %15, %16 : vector<2x512xf32>
      %18 = arith.truncf %17 : vector<2x512xf32> to vector<2x512xbf16>
      %c0_14 = arith.constant 0 : index
      %c0_15 = arith.constant 0 : index
      %19 = vector.load %arg4[%c0_14, %c0_15] : memref<512x256xbf16, #tpu.memory_space<vmem>>, vector<512x256xbf16>
      %cst_16 = arith.constant dense<0.000000e+00> : vector<2x256xf32>
      %20 = tpu.matmul %18, %19, %cst_16 {dimension_numbers = #tpu.dot_dimension_numbers<[1], [0], [0], [1], [0, 0, 1, 1], [], []>} : vector<2x512xbf16>, vector<512x256xbf16>, vector<2x256xf32> -> vector<2x256xf32>
      %c0_17 = arith.constant 0 : index
      %c0_18 = arith.constant 0 : index
      %21 = vector.load %arg5[%c0_17, %c0_18] : memref<1x256xf32, #tpu.memory_space<vmem>>, vector<1x256xf32>
      %22 = vector.broadcast %21 : vector<1x256xf32> to vector<2x256xf32>
      %23 = arith.addf %20, %22 : vector<2x256xf32>
      %cst_19 = arith.constant 0.000000e+00 : f32
      %24 = vector.broadcast %cst_19 : f32 to vector<2x256xf32>
      %25 = arith.maximumf %23, %24 : vector<2x256xf32>
      %26 = arith.truncf %25 : vector<2x256xf32> to vector<2x256xbf16>
      %c0_20 = arith.constant 0 : index
      %c0_21 = arith.constant 0 : index
      %27 = vector.load %arg6[%c0_20, %c0_21] : memref<256x10xbf16, #tpu.memory_space<vmem>>, vector<256x10xbf16>
      %cst_22 = arith.constant dense<0.000000e+00> : vector<2x10xf32>
      %28 = tpu.matmul %26, %27, %cst_22 {dimension_numbers = #tpu.dot_dimension_numbers<[1], [0], [0], [1], [0, 0, 1, 1], [], []>} : vector<2x256xbf16>, vector<256x10xbf16>, vector<2x10xf32> -> vector<2x10xf32>
      %c0_23 = arith.constant 0 : index
      %c0_24 = arith.constant 0 : index
      %29 = vector.load %arg7[%c0_23, %c0_24] : memref<1x10xf32, #tpu.memory_space<vmem>>, vector<1x10xf32>
      %30 = vector.broadcast %29 : vector<1x10xf32> to vector<2x10xf32>
      %31 = arith.addf %28, %30 : vector<2x10xf32>
      %cst_25 = arith.constant dense<0xFF800000> : vector<2xf32>
      %32 = vector.multi_reduction <maximumf>, %31, %cst_25 [1] : vector<2x10xf32> to vector<2xf32>
      %33 = vector.shape_cast %32 : vector<2xf32> to vector<2x1xf32>
      %34 = vector.broadcast %33 : vector<2x1xf32> to vector<2x10xf32>
      %35 = arith.subf %31, %34 : vector<2x10xf32>
      %36 = math.exp %35 : vector<2x10xf32>
      %cst_26 = arith.constant dense<0.000000e+00> : vector<2xf32>
      %37 = vector.multi_reduction <add>, %36, %cst_26 [1] : vector<2x10xf32> to vector<2xf32>
      %38 = vector.shape_cast %37 : vector<2xf32> to vector<2x1xf32>
      %39 = math.log %38 : vector<2x1xf32>
      %40 = vector.broadcast %39 : vector<2x1xf32> to vector<2x10xf32>
      %41 = arith.subf %35, %40 : vector<2x10xf32>
      %c0_27 = arith.constant 0 : index
      %c0_28 = arith.constant 0 : index
      %42 = vector.load %arg8[%c0_27, %c0_28] : memref<2x10xf32, #tpu.memory_space<vmem>>, vector<2x10xf32>
      tpu.vector_store %arg8[%c0_27, %c0_28], %41 {strides = array<i32>} : memref<2x10xf32, #tpu.memory_space<vmem>>, vector<2x10xf32>,
    } else {
    }
    return
  }
  func.func @transform_0(%arg0: i32) -> (i32, i32) {
    %c0_i32 = arith.constant 0 : i32
    %c0_i32_0 = arith.constant 0 : i32
    return %c0_i32, %arg0 : i32, i32
  }
  func.func @transform_1(%arg0: i32) -> (i32, i32) {
    %c0_i32 = arith.constant 0 : i32
    %c0_i32_0 = arith.constant 0 : i32
    return %arg0, %c0_i32 : i32, i32
  }
  func.func @transform_2(%arg0: i32) -> (i32, i32) {
    %c0_i32 = arith.constant 0 : i32
    %c0_i32_0 = arith.constant 0 : i32
    %c0_i32_1 = arith.constant 0 : i32
    return %c0_i32, %c0_i32_0 : i32, i32
  }
  func.func @transform_3(%arg0: i32) -> (i32, i32) {
    %c0_i32 = arith.constant 0 : i32
    %c0_i32_0 = arith.constant 0 : i32
    %c0_i32_1 = arith.constant 0 : i32
    return %c0_i32, %c0_i32_0 : i32, i32
  }
  func.func @transform_4(%arg0: i32) -> (i32, i32) {
    %c0_i32 = arith.constant 0 : i32
    %c0_i32_0 = arith.constant 0 : i32
    %c0_i32_1 = arith.constant 0 : i32
    return %c0_i32, %c0_i32_0 : i32, i32
  }
  func.func @transform_5(%arg0: i32) -> (i32, i32) {
    %c0_i32 = arith.constant 0 : i32
    %c0_i32_0 = arith.constant 0 : i32
    %c0_i32_1 = arith.constant 0 : i32
    return %c0_i32, %c0_i32_0 : i32, i32
  }
  func.func @transform_6(%arg0: i32) -> (i32, i32) {
    %c0_i32 = arith.constant 0 : i32
    %c0_i32_0 = arith.constant 0 : i32
    %c0_i32_1 = arith.constant 0 : i32
    return %c0_i32, %c0_i32_0 : i32, i32
  }
  func.func @transform_7(%arg0: i32) -> (i32, i32) {
    %c0_i32 = arith.constant 0 : i32
    %c0_i32_0 = arith.constant 0 : i32
    %c0_i32_1 = arith.constant 0 : i32
    return %c0_i32, %c0_i32_0 : i32, i32
  }
}

</mosaic_0001>

<llo_original>
// kernel: net_forward.3
$region0: #{net_forward.3}
  #allocation0 [shape = 'u32[]', space=smem, size = 0x4, offset = 0x4, fixed_abs, tag = 'smem constant byte address 0x4 - core index']
  #allocation1 [shape = 'u32[72,128]{1,0:T(1,128)}', space=vmem, size = 0x9000, scoped, tag = 'internal scratch']
  #allocation2 [shape = 'f32[2,512]{1,0:T(2,128)}', space=vmem, size = 0x1000, scoped, tag = 'scratch operand']
  %s0 = inlined_call_operand.vmem [shape: bf16[2,3200], index: 0, kind: input, shape index: {}]
  %s1 = inlined_call_operand.hbm [shape: bf16[3200,512], index: 1, kind: input, shape index: {}]
  %s2 = inlined_call_operand.hbm [shape: f32[1,512], index: 2, kind: input, shape index: {}]
  %s3 = inlined_call_operand.hbm [shape: bf16[512,256], index: 3, kind: input, shape index: {}]
  %s4 = inlined_call_operand.hbm [shape: f32[1,256], index: 4, kind: input, shape index: {}]
  %s5 = inlined_call_operand.vmem [shape: bf16[256,10], index: 5, kind: input, shape index: {}]
  %s6 = inlined_call_operand.hbm [shape: f32[1,10], index: 6, kind: input, shape index: {}]
  %s7 = inlined_call_operand.hbm [shape: f32[2,10], index: 7, kind: output, shape index: {}]
  %s8 = sld [smem:[#allocation0]]
  $region89: #{net_forward.3} parent=0
    _
  %s10 = ssub.s32 1, %s8
  %s11 = scalar_select 0, %s10, %s8
  $region1: #{net_forward.3} parent=0
    #allocation3 [shape = 'u8[1310720]{0}', space=vmem, size = 0x140000, scoped, tag = 'input window, operand 1']
    #allocation4 [shape = 's32[2]{0}', space=sflag, size = 0x8, scoped, tag = 'scoped memory for net_forward.3']
    #allocation5 [shape = 's32[2]{0}', space=sflag, size = 0x8, scoped, tag = 'scoped memory for net_forward.3']
    #allocation6 [shape = 'u8[2048]{0}', space=vmem, size = 0x800, scoped, tag = 'input window, operand 2, single buffered']
    #allocation7 [shape = 's32[1]{0}', space=sflag, size = 0x4, scoped, tag = 'scoped memory for net_forward.3']
    #allocation8 [shape = 'u8[262144]{0}', space=vmem, size = 0x40000, scoped, tag = 'input window, operand 3, single buffered']
    #allocation9 [shape = 'u8[1024]{0}', space=vmem, size = 0x400, scoped, tag = 'input window, operand 4, single buffered']
    #allocation10 [shape = 's32[1]{0}', space=sflag, size = 0x4, scoped, tag = 'scoped memory for net_forward.3']
    #allocation11 [shape = 'u8[512]{0}', space=vmem, size = 0x400, scoped, tag = 'input window, operand 6, single buffered']
    #allocation12 [shape = 'u8[1024]{0}', space=vmem, size = 0x400, scoped, tag = 'output window, operand 0, single buffered']
    %12 = vsyncpa [#allocation4], 0
    %s13 = scalar_lea.sflag [#allocation4], 1
    %14 = vsyncpa %s13, 0
    %15 = vsyncpa [#allocation7], 0
    %16 = vsyncpa [#allocation10], 0
    %17 = vsyncpa [#allocation5], 0
    loop: start=0, step=1, limit=7
    $region2: #{net_forward.3} parent=1 // loop_pre_header
      _
    $region3: #{net_forward.3} parent=1 // loop_header
      %s19 = sphi 0, %s23
      %p20 = scmp.ge.s32.totalorder %s19, 7
      %s29 = sphi 0, %s31
      %s32 = sphi 0, %s29
      %s33 = sphi 0, %s32
      %s49 = sphi 0, %s33
      %s55 = sphi 0, %s57
      %s58 = sphi 0, %s55
      %s59 = sphi 0, %s58
      %s75 = sphi 0, %s59
      %s79 = sphi 0, %s79
      %s81 = sphi 0, %s79
      %s82 = sphi 0, %s81
      %s96 = sphi 0, %s82
      %s100 = sphi 0, %s100
      %s102 = sphi 0, %s100
      %s103 = sphi 0, %s102
      %s117 = sphi 0, %s103
      %s121 = sphi 0, %s121
      %s123 = sphi 0, %s121
      %s124 = sphi 0, %s123
      %s138 = sphi 0, %s124
      %s142 = sphi 0, %s142
      %s144 = sphi 0, %s142
      %s145 = sphi 0, %s144
      %s159 = sphi 0, %s145
      %s163 = sphi 0, %s163
      %s165 = sphi 0, %s163
      %s166 = sphi 0, %s165
      %s180 = sphi 0, %s166
      %s184 = sphi 0, %s184
      %s186 = sphi 0, %s184
      %s187 = sphi 0, %s186
      %s201 = sphi 0, %s187
    $region4: #{net_forward.3} parent=1 // loop_header_branch
      %22 = sbr.rel (%p20) target = $region8
    $region5: #{net_forward.3} parent=1 // loop_body
      %s24 = ssub.s32 %s19, 1
      %s25 = ssub.s32 %s19, 2
      %s26 = sadd.s32 %s19, 1
      %s27 = ssub.s32 %s19, %s26
      %p28 = scmp.eq.s32.totalorder %s27, 0
      %s30 = sadd.s32 %s29, 1
      %s31 = scalar_select %p28, %s29, %s30
      %p34 = pneg %p28
      %p35 = scmp.eq.s32.totalorder %s19, 4
      %p36 = por %p34, %p35
      %p37 = scmp.ne.s32.totalorder %s29, %s32
      %p38 = scmp.eq.s32.totalorder %s19, 0
      %p39 = por %p37, %p38
      %p40 = scmp.ne.s32.totalorder %s29, %s32
      %p41 = scmp.eq.s32.totalorder %s24, 4
      %p42 = por %p40, %p41
      %p43 = scmp.ne.s32.totalorder %s32, %s33
      %p44 = scmp.eq.s32.totalorder %s24, 0
      %p45 = por %p43, %p44
      %p46 = scmp.ne.s32.totalorder %s32, %s33
      %p47 = scmp.eq.s32.totalorder %s25, 4
      %p48 = por %p46, %p47
      %p50 = scmp.ne.s32.totalorder %s33, %s49
      %p51 = scmp.eq.s32.totalorder %s25, 0
      %p52 = por %p50, %p51
      %s53 = ssub.s32 %s19, %s26
      %p54 = scmp.eq.s32.totalorder %s53, 0
      %s56 = sadd.s32 %s55, 1
      %s57 = scalar_select %p54, %s55, %s56
      %p60 = pneg %p54
      %p61 = scmp.eq.s32.totalorder %s19, 4
      %p62 = por %p60, %p61
      %p63 = scmp.ne.s32.totalorder %s55, %s58
      %p64 = scmp.eq.s32.totalorder %s19, 0
      %p65 = por %p63, %p64
      %p66 = scmp.ne.s32.totalorder %s55, %s58
      %p67 = scmp.eq.s32.totalorder %s24, 4
      %p68 = por %p66, %p67
      %p69 = scmp.ne.s32.totalorder %s58, %s59
      %p70 = scmp.eq.s32.totalorder %s24, 0
      %p71 = por %p69, %p70
      %p72 = scmp.ne.s32.totalorder %s58, %s59
      %p73 = scmp.eq.s32.totalorder %s25, 4
      %p74 = por %p72, %p73
      %p76 = scmp.ne.s32.totalorder %s59, %s75
      %p77 = scmp.eq.s32.totalorder %s25, 0
      %p78 = por %p76, %p77
      %s80 = sadd.s32 %s79, 1
      %p83 = scmp.eq.s32.totalorder %s19, 4
      %p84 = scmp.ne.s32.totalorder %s79, %s81
      %p85 = scmp.eq.s32.totalorder %s19, 0
      %p86 = por %p84, %p85
      %p87 = scmp.ne.s32.totalorder %s79, %s81
      %p88 = scmp.eq.s32.totalorder %s24, 4
      %p89 = por %p87, %p88
      %p90 = scmp.ne.s32.totalorder %s81, %s82
      %p91 = scmp.eq.s32.totalorder %s24, 0
      %p92 = por %p90, %p91
      %p93 = scmp.ne.s32.totalorder %s81, %s82
      %p94 = scmp.eq.s32.totalorder %s25, 4
      %p95 = por %p93, %p94
      %p97 = scmp.ne.s32.totalorder %s82, %s96
      %p98 = scmp.eq.s32.totalorder %s25, 0
      %p99 = por %p97, %p98
      %s101 = sadd.s32 %s100, 1
      %p104 = scmp.eq.s32.totalorder %s19, 4
      %p105 = scmp.ne.s32.totalorder %s100, %s102
      %p106 = scmp.eq.s32.totalorder %s19, 0
      %p107 = por %p105, %p106
      %p108 = scmp.ne.s32.totalorder %s100, %s102
      %p109 = scmp.eq.s32.totalorder %s24, 4
      %p110 = por %p108, %p109
      %p111 = scmp.ne.s32.totalorder %s102, %s103
      %p112 = scmp.eq.s32.totalorder %s24, 0
      %p113 = por %p111, %p112
      %p114 = scmp.ne.s32.totalorder %s102, %s103
      %p115 = scmp.eq.s32.totalorder %s25, 4
      %p116 = por %p114, %p115
      %p118 = scmp.ne.s32.totalorder %s103, %s117
      %p119 = scmp.eq.s32.totalorder %s25, 0
      %p120 = por %p118, %p119
      %s122 = sadd.s32 %s121, 1
      %p125 = scmp.eq.s32.totalorder %s19, 4
      %p126 = scmp.ne.s32.totalorder %s121, %s123
      %p127 = scmp.eq.s32.totalorder %s19, 0
      %p128 = por %p126, %p127
      %p129 = scmp.ne.s32.totalorder %s121, %s123
      %p130 = scmp.eq.s32.totalorder %s24, 4
      %p131 = por %p129, %p130
      %p132 = scmp.ne.s32.totalorder %s123, %s124
      %p133 = scmp.eq.s32.totalorder %s24, 0
      %p134 = por %p132, %p133
      %p135 = scmp.ne.s32.totalorder %s123, %s124
      %p136 = scmp.eq.s32.totalorder %s25, 4
      %p137 = por %p135, %p136
      %p139 = scmp.ne.s32.totalorder %s124, %s138
      %p140 = scmp.eq.s32.totalorder %s25, 0
      %p141 = por %p139, %p140
      %s143 = sadd.s32 %s142, 1
      %p146 = scmp.eq.s32.totalorder %s19, 4
      %p147 = scmp.ne.s32.totalorder %s142, %s144
      %p148 = scmp.eq.s32.totalorder %s19, 0
      %p149 = por %p147, %p148
      %p150 = scmp.ne.s32.totalorder %s142, %s144
      %p151 = scmp.eq.s32.totalorder %s24, 4
      %p152 = por %p150, %p151
      %p153 = scmp.ne.s32.totalorder %s144, %s145
      %p154 = scmp.eq.s32.totalorder %s24, 0
      %p155 = por %p153, %p154
      %p156 = scmp.ne.s32.totalorder %s144, %s145
      %p157 = scmp.eq.s32.totalorder %s25, 4
      %p158 = por %p156, %p157
      %p160 = scmp.ne.s32.totalorder %s145, %s159
      %p161 = scmp.eq.s32.totalorder %s25, 0
      %p162 = por %p160, %p161
      %s164 = sadd.s32 %s163, 1
      %p167 = scmp.eq.s32.totalorder %s19, 4
      %p168 = scmp.ne.s32.totalorder %s163, %s165
      %p169 = scmp.eq.s32.totalorder %s19, 0
      %p170 = por %p168, %p169
      %p171 = scmp.ne.s32.totalorder %s163, %s165
      %p172 = scmp.eq.s32.totalorder %s24, 4
      %p173 = por %p171, %p172
      %p174 = scmp.ne.s32.totalorder %s165, %s166
      %p175 = scmp.eq.s32.totalorder %s24, 0
      %p176 = por %p174, %p175
      %p177 = scmp.ne.s32.totalorder %s165, %s166
      %p178 = scmp.eq.s32.totalorder %s25, 4
      %p179 = por %p177, %p178
      %p181 = scmp.ne.s32.totalorder %s166, %s180
      %p182 = scmp.eq.s32.totalorder %s25, 0
      %p183 = por %p181, %p182
      %s185 = sadd.s32 %s184, 1
      %p188 = scmp.eq.s32.totalorder %s19, 4
      %p189 = scmp.ne.s32.totalorder %s184, %s186
      %p190 = scmp.eq.s32.totalorder %s19, 0
      %p191 = por %p189, %p190
      %p192 = scmp.ne.s32.totalorder %s184, %s186
      %p193 = scmp.eq.s32.totalorder %s24, 4
      %p194 = por %p192, %p193
      %p195 = scmp.ne.s32.totalorder %s186, %s187
      %p196 = scmp.eq.s32.totalorder %s24, 0
      %p197 = por %p195, %p196
      %p198 = scmp.ne.s32.totalorder %s186, %s187
      %p199 = scmp.eq.s32.totalorder %s25, 4
      %p200 = por %p198, %p199
      %p202 = scmp.ne.s32.totalorder %s187, %s201
      %p203 = scmp.eq.s32.totalorder %s25, 0
      %p204 = por %p202, %p203
      %p205 = scmp.le.s32.totalorder 1, %s19
      %p206 = scmp.lt.s32.totalorder %s19, 6
      %p207 = pnand %p205, %p206
      %p208 = pneg %p207
      // Predicated region
      $region9: #{net_forward.3} parent=5 // pred_check
        _
      $region10: #{net_forward.3} parent=5 // pred_check_branch
        %210 = sbr.rel (%p207) target = $region12
      $region11: #{net_forward.3} parent=5 // pred_region
        %s211 = ssub.s32 %s19, 1
        // Predicated region
        $region13: #{net_forward.3} parent=11 // pred_check
          %p212 = pneg %p92
        $region14: #{net_forward.3} parent=11 // pred_check_branch
          %214 = sbr.rel (%p212) target = $region16
        $region15: #{net_forward.3} parent=11 // pred_region
          %216 = vsyncadd [#allocation7], 0
          %s218 = sshll.u32 %s2, 4
          %s219 = int_to_ptr.hbm [resolvable:$true] %s218
          %s220 = sshll.u32 [#allocation6], 4
          %s221 = int_to_ptr.vmem [resolvable:$true] %s220
          %223 = dma.hbm_to_vmem [thread:$0]  %s219, 64, %s221, [#allocation7]
        $region16: #{net_forward.3} parent=11 // pred_fallthru
          _
        // Predicated region
        $region17: #{net_forward.3} parent=11 // pred_check
          %p224 = pneg %p113
        $region18: #{net_forward.3} parent=11 // pred_check_branch
          %226 = sbr.rel (%p224) target = $region20
        $region19: #{net_forward.3} parent=11 // pred_region
          %228 = vsyncadd [#allocation7], 0
          %s229 = sshll.u32 %s3, 4
          %s230 = int_to_ptr.hbm [resolvable:$true] %s229
          %s231 = sshll.u32 [#allocation8], 4
          %s232 = int_to_ptr.vmem [resolvable:$true] %s231
          %237 = dma.hbm_to_vmem [thread:$0]  %s230, 8192, %s232, [#allocation7], 128, 128, 8
        $region20: #{net_forward.3} parent=11 // pred_fallthru
          _
        // Predicated region
        $region21: #{net_forward.3} parent=11 // pred_check
          %p238 = pneg %p134
        $region22: #{net_forward.3} parent=11 // pred_check_branch
          %240 = sbr.rel (%p238) target = $region24
        $region23: #{net_forward.3} parent=11 // pred_region
          %242 = vsyncadd [#allocation10], 0
          %s244 = sshll.u32 %s4, 4
          %s245 = int_to_ptr.hbm [resolvable:$true] %s244
          %s246 = sshll.u32 [#allocation9], 4
          %s247 = int_to_ptr.vmem [resolvable:$true] %s246
          %249 = dma.hbm_to_vmem [thread:$0]  %s245, 32, %s247, [#allocation10]
        $region24: #{net_forward.3} parent=11 // pred_fallthru
          _
        // Predicated region
        $region25: #{net_forward.3} parent=11 // pred_check
          %p250 = pneg %p155
        $region26: #{net_forward.3} parent=11 // pred_check_branch
          %252 = sbr.rel (%p250) target = $region28
        $region27: #{net_forward.3} parent=11 // pred_region
          _
        $region28: #{net_forward.3} parent=11 // pred_fallthru
          _
        // Predicated region
        $region29: #{net_forward.3} parent=11 // pred_check
          %p253 = pneg %p176
        $region30: #{net_forward.3} parent=11 // pred_check_branch
          %255 = sbr.rel (%p253) target = $region32
        $region31: #{net_forward.3} parent=11 // pred_region
          %257 = vsyncadd [#allocation10], 0
          %s259 = sshll.u32 %s6, 4
          %s260 = int_to_ptr.hbm [resolvable:$true] %s259
          %s261 = sshll.u32 [#allocation11], 4
          %s262 = int_to_ptr.vmem [resolvable:$true] %s261
          %264 = dma.hbm_to_vmem [thread:$0]  %s260, 16, %s262, [#allocation10]
        $region32: #{net_forward.3} parent=11 // pred_fallthru
          _
      $region12: #{net_forward.3} parent=5 // pred_fallthru
        _
      %p265 = scmp.lt.s32.totalorder %s19, 5
      // Predicated region
      $region33: #{net_forward.3} parent=5 // pred_check
        %p266 = pneg %p265
      $region34: #{net_forward.3} parent=5 // pred_check_branch
        %268 = sbr.rel (%p266) target = $region36
      $region35: #{net_forward.3} parent=5 // pred_region
        // Predicated region
        $region37: #{net_forward.3} parent=35 // pred_check
          %p269 = pneg %p39
        $region38: #{net_forward.3} parent=35 // pred_check_branch
          %271 = sbr.rel (%p269) target = $region40
        $region39: #{net_forward.3} parent=35 // pred_region
          %s272 = smul.u32 5, %s19
          %p273 = scmp.lt.s32.totalorder %s272, 24
          %s274 = scalar_select %p273, %s272, 24
          %s275 = scalar_lea.vmem %s0, %s274
          %s276 = smul.u32 5, %s19
        $region40: #{net_forward.3} parent=35 // pred_fallthru
          _
        // Predicated region
        $region41: #{net_forward.3} parent=35 // pred_check
          %p277 = pneg %p65
        $region42: #{net_forward.3} parent=35 // pred_check_branch
          %279 = sbr.rel (%p277) target = $region44
        $region43: #{net_forward.3} parent=35 // pred_region
          %s280 = sand.u32 %s55, 1
          %s281 = scalar_lea.sflag [#allocation4], %s280
          %s282 = sand.u32 %s55, 1
          %s283 = smul.addr %s282, 1280
          %s284 = scalar_lea.vmem [#allocation3], %s283
          %s285 = smul.u32 80, %s19
          %287 = vsyncadd %s281, 0
          %s288 = smul.addr %s285, 4
          %s289 = smul.addr %s288, 4
          %s290 = scalar_lea.hbm %s1, %s289
          %s291 = sshll.u32 %s290, 4
          %s292 = int_to_ptr.hbm [resolvable:$true] %s291
          %s293 = sshll.u32 %s284, 4
          %s294 = int_to_ptr.vmem [resolvable:$true] %s293
          %299 = dma.hbm_to_vmem [thread:$0]  %s292, 20480, %s294, %s281, 256, 256, 16
        $region44: #{net_forward.3} parent=35 // pred_fallthru
          _
      $region36: #{net_forward.3} parent=5 // pred_fallthru
        _
      %p300 = scmp.le.s32.totalorder 1, %s19
      %p301 = scmp.lt.s32.totalorder %s19, 6
      %p302 = pnand %p300, %p301
      %p303 = pneg %p302
      // Predicated region
      $region45: #{net_forward.3} parent=5 // pred_check
        _
      $region46: #{net_forward.3} parent=5 // pred_check_branch
        %305 = sbr.rel (%p302) target = $region48
      $region47: #{net_forward.3} parent=5 // pred_region
        %s306 = ssub.s32 %s19, 1
        %s307 = sand.u32 %s58, 1
        %s308 = scalar_lea.sflag [#allocation4], %s307
        %s309 = sand.u32 %s58, 1
        %s310 = smul.addr %s309, 1280
        %s311 = scalar_lea.vmem [#allocation3], %s310
        // Predicated region
        $region49: #{net_forward.3} parent=47 // pred_check
          %p312 = pneg %p71
        $region50: #{net_forward.3} parent=47 // pred_check_branch
          %314 = sbr.rel (%p312) target = $region52
        $region51: #{net_forward.3} parent=47 // pred_region
          %316 = dma.done %s308, 20480
        $region52: #{net_forward.3} parent=47 // pred_fallthru
          _
        // Predicated region
        $region53: #{net_forward.3} parent=47 // pred_check
          %p317 = pneg %p92
        $region54: #{net_forward.3} parent=47 // pred_check_branch
          %319 = sbr.rel (%p317) target = $region56
        $region55: #{net_forward.3} parent=47 // pred_region
          %321 = dma.done [#allocation7], 64
        $region56: #{net_forward.3} parent=47 // pred_fallthru
          _
        // Predicated region
        $region57: #{net_forward.3} parent=47 // pred_check
          %p322 = pneg %p113
        $region58: #{net_forward.3} parent=47 // pred_check_branch
          %324 = sbr.rel (%p322) target = $region60
        $region59: #{net_forward.3} parent=47 // pred_region
          %326 = dma.done [#allocation7], 8192
        $region60: #{net_forward.3} parent=47 // pred_fallthru
          _
        // Predicated region
        $region61: #{net_forward.3} parent=47 // pred_check
          %p327 = pneg %p134
        $region62: #{net_forward.3} parent=47 // pred_check_branch
          %329 = sbr.rel (%p327) target = $region64
        $region63: #{net_forward.3} parent=47 // pred_region
          %331 = dma.done [#allocation10], 32
        $region64: #{net_forward.3} parent=47 // pred_fallthru
          _
        // Predicated region
        $region65: #{net_forward.3} parent=47 // pred_check
          %p332 = pneg %p176
        $region66: #{net_forward.3} parent=47 // pred_check_branch
          %334 = sbr.rel (%p332) target = $region68
        $region67: #{net_forward.3} parent=47 // pred_region
          %336 = dma.done [#allocation10], 16
        $region68: #{net_forward.3} parent=47 // pred_fallthru
          _
        %s337 = smul.u32 5, %s24
        %p338 = scmp.lt.s32.totalorder %s337, 24
        %s339 = scalar_select %p338, %s337, 24
        %s340 = scalar_lea.vmem %s0, %s339
        %p341 = pneg %p45
        %p342 = pneg %p42
        %s343 = sand.u32 %s58, 1
        %s344 = scalar_lea.sflag [#allocation4], %s343
        %s345 = sand.u32 %s58, 1
        %s346 = smul.addr %s345, 1280
        %s347 = scalar_lea.vmem [#allocation3], %s346
        %p348 = pneg %p71
        %p349 = pneg %p68
        %p350 = pneg %p92
        %p351 = pneg %p89
        %p352 = pneg %p113
        %p353 = pneg %p110
        %p354 = pneg %p134
        %p355 = pneg %p131
        %p356 = pneg %p155
        %p357 = pneg %p152
        %p358 = pneg %p176
        %p359 = pneg %p173
        %p360 = pneg %p197
        %p361 = pneg %p194
        %s362 = smul.u32 5, %s24
        %p363 = scmp.lt.s32.totalorder %s362, 24
        %s364 = scalar_select %p363, %s362, 24
        %s365 = scalar_lea.vmem %s0, %s364
        %s366 = smul.u32 5, %s24
        %s367 = smul.u32 80, %s24
        %p368 = scmp.eq.s32.totalorder %s24, 0
        // Predicated region
        $region69: #{net_forward.3} parent=47 // pred_check
          %p369 = pneg %p368
        $region70: #{net_forward.3} parent=47 // pred_check_branch
          %371 = sbr.rel (%p369) target = $region72
        $region71: #{net_forward.3} parent=47 // pred_region
          %372 = vst [vmem:[#allocation2] sm:$0xff] 0.0
        $region72: #{net_forward.3} parent=47 // pred_fallthru
          _
        %v373 = vld [vmem:[#allocation2] sm:$0xff]
        %v374 = vld [vmem:[%s365] sm:$0x1f]
        %v375 = vld [vmem:[%s311] sm:$0xff]
        %v376 = vld [vmem:[%s311 + $0x8] sm:$0xff]
        %v377 = vld [vmem:[%s311 + $0x10] sm:$0xff]
        %v378 = vld [vmem:[%s311 + $0x18] sm:$0xff]
        %v379 = vld [vmem:[%s311 + $0x20] sm:$0xff]
        %v380 = vld [vmem:[%s311 + $0x28] sm:$0xff]
        %v381 = vld [vmem:[%s311 + $0x30] sm:$0xff]
        %v382 = vld [vmem:[%s311 + $0x38] sm:$0xff]
        %v383 = vld [vmem:[%s311 + $0x40] sm:$0xff]
        %v384 = vld [vmem:[%s311 + $0x48] sm:$0xff]
        %v385 = vld [vmem:[%s311 + $0x50] sm:$0xff]
        %v386 = vld [vmem:[%s311 + $0x58] sm:$0xff]
        %v387 = vld [vmem:[%s311 + $0x60] sm:$0xff]
        %v388 = vld [vmem:[%s311 + $0x68] sm:$0xff]
        %v389 = vld [vmem:[%s311 + $0x70] sm:$0xff]
        %v390 = vld [vmem:[%s311 + $0x78] sm:$0xff]
        %v391 = vld [vmem:[%s311 + $0x80] sm:$0xff]
        %v392 = vld [vmem:[%s311 + $0x88] sm:$0xff]
        %v393 = vld [vmem:[%s311 + $0x90] sm:$0xff]
        %v394 = vld [vmem:[%s311 + $0x98] sm:$0xff]
        %v395 = vld [vmem:[%s311 + $0xa0] sm:$0xff]
        %v396 = vld [vmem:[%s311 + $0xa8] sm:$0xff]
        %v397 = vld [vmem:[%s311 + $0xb0] sm:$0xff]
        %v398 = vld [vmem:[%s311 + $0xb8] sm:$0xff]
        %v399 = vld [vmem:[%s311 + $0xc0] sm:$0xff]
        %v400 = vld [vmem:[%s311 + $0xc8] sm:$0xff]
        %v401 = vld [vmem:[%s311 + $0xd0] sm:$0xff]
        %v402 = vld [vmem:[%s311 + $0xd8] sm:$0xff]
        %v403 = vld [vmem:[%s311 + $0xe0] sm:$0xff]
        %v404 = vld [vmem:[%s311 + $0xe8] sm:$0xff]
        %v405 = vld [vmem:[%s311 + $0xf0] sm:$0xff]
        %v406 = vld [vmem:[%s311 + $0xf8] sm:$0xff]
        %v407 = vld [vmem:[%s311 + $0x100] sm:$0xff]
        %v408 = vld [vmem:[%s311 + $0x108] sm:$0xff]
        %v409 = vld [vmem:[%s311 + $0x110] sm:$0xff]
        %v410 = vld [vmem:[%s311 + $0x118] sm:$0xff]
        %v411 = vld [vmem:[%s311 + $0x120] sm:$0xff]
        %v412 = vld [vmem:[%s311 + $0x128] sm:$0xff]
        %v413 = vld [vmem:[%s311 + $0x130] sm:$0xff]
        %v414 = vld [vmem:[%s311 + $0x138] sm:$0xff]
        %v415 = vld [vmem:[%s311 + $0x140] sm:$0xff]
        %v416 = vld [vmem:[%s311 + $0x148] sm:$0xff]
        %v417 = vld [vmem:[%s311 + $0x150] sm:$0xff]
        %v418 = vld [vmem:[%s311 + $0x158] sm:$0xff]
        %v419 = vld [vmem:[%s311 + $0x160] sm:$0xff]
        %v420 = vld [vmem:[%s311 + $0x168] sm:$0xff]
        %v421 = vld [vmem:[%s311 + $0x170] sm:$0xff]
        %v422 = vld [vmem:[%s311 + $0x178] sm:$0xff]
        %v423 = vld [vmem:[%s311 + $0x180] sm:$0xff]
        %v424 = vld [vmem:[%s311 + $0x188] sm:$0xff]
        %v425 = vld [vmem:[%s311 + $0x190] sm:$0xff]
        %v426 = vld [vmem:[%s311 + $0x198] sm:$0xff]
        %v427 = vld [vmem:[%s311 + $0x1a0] sm:$0xff]
        %v428 = vld [vmem:[%s311 + $0x1a8] sm:$0xff]
        %v429 = vld [vmem:[%s311 + $0x1b0] sm:$0xff]
        %v430 = vld [vmem:[%s311 + $0x1b8] sm:$0xff]
        %v431 = vld [vmem:[%s311 + $0x1c0] sm:$0xff]
        %v432 = vld [vmem:[%s311 + $0x1c8] sm:$0xff]
        %v433 = vld [vmem:[%s311 + $0x1d0] sm:$0xff]
        %v434 = vld [vmem:[%s311 + $0x1d8] sm:$0xff]
        %v435 = vld [vmem:[%s311 + $0x1e0] sm:$0xff]
        %v436 = vld [vmem:[%s311 + $0x1e8] sm:$0xff]
        %v437 = vld [vmem:[%s311 + $0x1f0] sm:$0xff]
        %v438 = vld [vmem:[%s311 + $0x1f8] sm:$0xff]
        %v439 = vld [vmem:[%s311 + $0x200] sm:$0xff]
        %v440 = vld [vmem:[%s311 + $0x208] sm:$0xff]
        %v441 = vld [vmem:[%s311 + $0x210] sm:$0xff]
        %v442 = vld [vmem:[%s311 + $0x218] sm:$0xff]
        %v443 = vld [vmem:[%s311 + $0x220] sm:$0xff]
        %v444 = vld [vmem:[%s311 + $0x228] sm:$0xff]
        %v445 = vld [vmem:[%s311 + $0x230] sm:$0xff]
        %v446 = vld [vmem:[%s311 + $0x238] sm:$0xff]
        %v447 = vld [vmem:[%s311 + $0x240] sm:$0xff]
        %v448 = vld [vmem:[%s311 + $0x248] sm:$0xff]
        %v449 = vld [vmem:[%s311 + $0x250] sm:$0xff]
        %v450 = vld [vmem:[%s311 + $0x258] sm:$0xff]
        %v451 = vld [vmem:[%s311 + $0x260] sm:$0xff]
        %v452 = vld [vmem:[%s311 + $0x268] sm:$0xff]
        %v453 = vld [vmem:[%s311 + $0x270] sm:$0xff]
        %v454 = vld [vmem:[%s311 + $0x278] sm:$0xff]
        %v455 = vld [vmem:[%s311 + $0x280] sm:$0xff]
        %v456 = vld [vmem:[%s311 + $0x288] sm:$0xff]
        %v457 = vld [vmem:[%s311 + $0x290] sm:$0xff]
        %v458 = vld [vmem:[%s311 + $0x298] sm:$0xff]
        %v459 = vld [vmem:[%s311 + $0x2a0] sm:$0xff]
        %v460 = vld [vmem:[%s311 + $0x2a8] sm:$0xff]
        %v461 = vld [vmem:[%s311 + $0x2b0] sm:$0xff]
        %v462 = vld [vmem:[%s311 + $0x2b8] sm:$0xff]
        %v463 = vld [vmem:[%s311 + $0x2c0] sm:$0xff]
        %v464 = vld [vmem:[%s311 + $0x2c8] sm:$0xff]
        %v465 = vld [vmem:[%s311 + $0x2d0] sm:$0xff]
        %v466 = vld [vmem:[%s311 + $0x2d8] sm:$0xff]
        %v467 = vld [vmem:[%s311 + $0x2e0] sm:$0xff]
        %v468 = vld [vmem:[%s311 + $0x2e8] sm:$0xff]
        %v469 = vld [vmem:[%s311 + $0x2f0] sm:$0xff]
        %v470 = vld [vmem:[%s311 + $0x2f8] sm:$0xff]
        %v471 = vld [vmem:[%s311 + $0x300] sm:$0xff]
        %v472 = vld [vmem:[%s311 + $0x308] sm:$0xff]
        %v473 = vld [vmem:[%s311 + $0x310] sm:$0xff]
        %v474 = vld [vmem:[%s311 + $0x318] sm:$0xff]
        %v475 = vld [vmem:[%s311 + $0x320] sm:$0xff]
        %v476 = vld [vmem:[%s311 + $0x328] sm:$0xff]
        %v477 = vld [vmem:[%s311 + $0x330] sm:$0xff]
        %v478 = vld [vmem:[%s311 + $0x338] sm:$0xff]
        %v479 = vld [vmem:[%s311 + $0x340] sm:$0xff]
        %v480 = vld [vmem:[%s311 + $0x348] sm:$0xff]
        %v481 = vld [vmem:[%s311 + $0x350] sm:$0xff]
        %v482 = vld [vmem:[%s311 + $0x358] sm:$0xff]
        %v483 = vld [vmem:[%s311 + $0x360] sm:$0xff]
        %v484 = vld [vmem:[%s311 + $0x368] sm:$0xff]
        %v485 = vld [vmem:[%s311 + $0x370] sm:$0xff]
        %v486 = vld [vmem:[%s311 + $0x378] sm:$0xff]
        %v487 = vld [vmem:[%s311 + $0x380] sm:$0xff]
        %v488 = vld [vmem:[%s311 + $0x388] sm:$0xff]
        %v489 = vld [vmem:[%s311 + $0x390] sm:$0xff]
        %v490 = vld [vmem:[%s311 + $0x398] sm:$0xff]
        %v491 = vld [vmem:[%s311 + $0x3a0] sm:$0xff]
        %v492 = vld [vmem:[%s311 + $0x3a8] sm:$0xff]
        %v493 = vld [vmem:[%s311 + $0x3b0] sm:$0xff]
        %v494 = vld [vmem:[%s311 + $0x3b8] sm:$0xff]
        %v495 = vld [vmem:[%s311 + $0x3c0] sm:$0xff]
        %v496 = vld [vmem:[%s311 + $0x3c8] sm:$0xff]
        %v497 = vld [vmem:[%s311 + $0x3d0] sm:$0xff]
        %v498 = vld [vmem:[%s311 + $0x3d8] sm:$0xff]
        %v499 = vld [vmem:[%s311 + $0x3e0] sm:$0xff]
        %v500 = vld [vmem:[%s311 + $0x3e8] sm:$0xff]
        %v501 = vld [vmem:[%s311 + $0x3f0] sm:$0xff]
        %v502 = vld [vmem:[%s311 + $0x3f8] sm:$0xff]
        %v503 = vld [vmem:[%s311 + $0x400] sm:$0xff]
        %v504 = vld [vmem:[%s311 + $0x408] sm:$0xff]
        %v505 = vld [vmem:[%s311 + $0x410] sm:$0xff]
        %v506 = vld [vmem:[%s311 + $0x418] sm:$0xff]
        %v507 = vld [vmem:[%s311 + $0x420] sm:$0xff]
        %v508 = vld [vmem:[%s311 + $0x428] sm:$0xff]
        %v509 = vld [vmem:[%s311 + $0x430] sm:$0xff]
        %v510 = vld [vmem:[%s311 + $0x438] sm:$0xff]
        %v511 = vld [vmem:[%s311 + $0x440] sm:$0xff]
        %v512 = vld [vmem:[%s311 + $0x448] sm:$0xff]
        %v513 = vld [vmem:[%s311 + $0x450] sm:$0xff]
        %v514 = vld [vmem:[%s311 + $0x458] sm:$0xff]
        %v515 = vld [vmem:[%s311 + $0x460] sm:$0xff]
        %v516 = vld [vmem:[%s311 + $0x468] sm:$0xff]
        %v517 = vld [vmem:[%s311 + $0x470] sm:$0xff]
        %v518 = vld [vmem:[%s311 + $0x478] sm:$0xff]
        %v519 = vld [vmem:[%s311 + $0x480] sm:$0xff]
        %v520 = vld [vmem:[%s311 + $0x488] sm:$0xff]
        %v521 = vld [vmem:[%s311 + $0x490] sm:$0xff]
        %v522 = vld [vmem:[%s311 + $0x498] sm:$0xff]
        %v523 = vld [vmem:[%s311 + $0x4a0] sm:$0xff]
        %v524 = vld [vmem:[%s311 + $0x4a8] sm:$0xff]
        %v525 = vld [vmem:[%s311 + $0x4b0] sm:$0xff]
        %v526 = vld [vmem:[%s311 + $0x4b8] sm:$0xff]
        %v527 = vld [vmem:[%s311 + $0x4c0] sm:$0xff]
        %v528 = vld [vmem:[%s311 + $0x4c8] sm:$0xff]
        %v529 = vld [vmem:[%s311 + $0x4d0] sm:$0xff]
        %v530 = vld [vmem:[%s311 + $0x4d8] sm:$0xff]
        %v531 = vld [vmem:[%s311 + $0x4e0] sm:$0xff]
        %v532 = vld [vmem:[%s311 + $0x4e8] sm:$0xff]
        %v533 = vld [vmem:[%s311 + $0x4f0] sm:$0xff]
        %v534 = vld [vmem:[%s311 + $0x4f8] sm:$0xff]
        %536 = vst [vmem:[#allocation1] ss:$9 sm:$0xff] %v374
        %v537 = vld [vmem:[#allocation1] sm:$0xff]
        %v538 = vld [vmem:[#allocation1 + $0x9] sm:$0xff]
        %v539 = vld [vmem:[#allocation1 + $0x12] sm:$0xff]
        %v540 = vld [vmem:[#allocation1 + $0x1b] sm:$0xff]
        %v541 = vld [vmem:[#allocation1 + $0x24] sm:$0xff]
        %v707 = vunpack.c.l.b16 %v375
        %v708 = vunpack.c.h.b16 %v375
        %v709 = vunpack.c.l.b16 %v376
        %v710 = vunpack.c.h.b16 %v376
        %v711 = vunpack.c.l.b16 %v377
        %v712 = vunpack.c.h.b16 %v377
        %v713 = vunpack.c.l.b16 %v378
        %v714 = vunpack.c.h.b16 %v378
        %v715 = vunpack.c.l.b16 %v379
        %v716 = vunpack.c.h.b16 %v379
        %v717 = vunpack.c.l.b16 %v380
        %v718 = vunpack.c.h.b16 %v380
        %v719 = vunpack.c.l.b16 %v381
        %v720 = vunpack.c.h.b16 %v381
        %v721 = vunpack.c.l.b16 %v382
        %v722 = vunpack.c.h.b16 %v382
        %v723 = vunpack.c.l.b16 %v383
        %v724 = vunpack.c.h.b16 %v383
        %v725 = vunpack.c.l.b16 %v384
        %v726 = vunpack.c.h.b16 %v384
        %v727 = vunpack.c.l.b16 %v385
        %v728 = vunpack.c.h.b16 %v385
        %v729 = vunpack.c.l.b16 %v386
        %v730 = vunpack.c.h.b16 %v386
        %v731 = vunpack.c.l.b16 %v387
        %v732 = vunpack.c.h.b16 %v387
        %v733 = vunpack.c.l.b16 %v388
        %v734 = vunpack.c.h.b16 %v388
        %v735 = vunpack.c.l.b16 %v389
        %v736 = vunpack.c.h.b16 %v389
        %v737 = vunpack.c.l.b16 %v390
        %v738 = vunpack.c.h.b16 %v390
        %v739 = vunpack.c.l.b16 %v391
        %v740 = vunpack.c.h.b16 %v391
        %v741 = vunpack.c.l.b16 %v392
        %v742 = vunpack.c.h.b16 %v392
        %v743 = vunpack.c.l.b16 %v393
        %v744 = vunpack.c.h.b16 %v393
        %v745 = vunpack.c.l.b16 %v394
        %v746 = vunpack.c.h.b16 %v394
        %v747 = vunpack.c.l.b16 %v395
        %v748 = vunpack.c.h.b16 %v395
        %v749 = vunpack.c.l.b16 %v396
        %v750 = vunpack.c.h.b16 %v396
        %v751 = vunpack.c.l.b16 %v397
        %v752 = vunpack.c.h.b16 %v397
        %v753 = vunpack.c.l.b16 %v398
        %v754 = vunpack.c.h.b16 %v398
        %v755 = vunpack.c.l.b16 %v399
        %v756 = vunpack.c.h.b16 %v399
        %v757 = vunpack.c.l.b16 %v400
        %v758 = vunpack.c.h.b16 %v400
        %v759 = vunpack.c.l.b16 %v401
        %v760 = vunpack.c.h.b16 %v401
        %v761 = vunpack.c.l.b16 %v402
        %v762 = vunpack.c.h.b16 %v402
        %v763 = vunpack.c.l.b16 %v403
        %v764 = vunpack.c.h.b16 %v403
        %v765 = vunpack.c.l.b16 %v404
        %v766 = vunpack.c.h.b16 %v404
        %v767 = vunpack.c.l.b16 %v405
        %v768 = vunpack.c.h.b16 %v405
        %v769 = vunpack.c.l.b16 %v406
        %v770 = vunpack.c.h.b16 %v406
        %v771 = vunpack.c.l.b16 %v407
        %v772 = vunpack.c.h.b16 %v407
        %v773 = vunpack.c.l.b16 %v408
        %v774 = vunpack.c.h.b16 %v408
        %v775 = vunpack.c.l.b16 %v409
        %v776 = vunpack.c.h.b16 %v409
        %v777 = vunpack.c.l.b16 %v410
        %v778 = vunpack.c.h.b16 %v410
        %v779 = vunpack.c.l.b16 %v411
        %v780 = vunpack.c.h.b16 %v411
        %v781 = vunpack.c.l.b16 %v412
        %v782 = vunpack.c.h.b16 %v412
        %v783 = vunpack.c.l.b16 %v413
        %v784 = vunpack.c.h.b16 %v413
        %v785 = vunpack.c.l.b16 %v414
        %v786 = vunpack.c.h.b16 %v414
        %v787 = vunpack.c.l.b16 %v415
        %v788 = vunpack.c.h.b16 %v415
        %v789 = vunpack.c.l.b16 %v416
        %v790 = vunpack.c.h.b16 %v416
        %v791 = vunpack.c.l.b16 %v417
        %v792 = vunpack.c.h.b16 %v417
        %v793 = vunpack.c.l.b16 %v418
        %v794 = vunpack.c.h.b16 %v418
        %v795 = vunpack.c.l.b16 %v419
        %v796 = vunpack.c.h.b16 %v419
        %v797 = vunpack.c.l.b16 %v420
        %v798 = vunpack.c.h.b16 %v420
        %v799 = vunpack.c.l.b16 %v421
        %v800 = vunpack.c.h.b16 %v421
        %v801 = vunpack.c.l.b16 %v422
        %v802 = vunpack.c.h.b16 %v422
        %v803 = vunpack.c.l.b16 %v423
        %v804 = vunpack.c.h.b16 %v423
        %v805 = vunpack.c.l.b16 %v424
        %v806 = vunpack.c.h.b16 %v424
        %v807 = vunpack.c.l.b16 %v425
        %v808 = vunpack.c.h.b16 %v425
        %v809 = vunpack.c.l.b16 %v426
        %v810 = vunpack.c.h.b16 %v426
        %v811 = vunpack.c.l.b16 %v427
        %v812 = vunpack.c.h.b16 %v427
        %v813 = vunpack.c.l.b16 %v428
        %v814 = vunpack.c.h.b16 %v428
        %v815 = vunpack.c.l.b16 %v429
        %v816 = vunpack.c.h.b16 %v429
        %v817 = vunpack.c.l.b16 %v430
        %v818 = vunpack.c.h.b16 %v430
        %v819 = vunpack.c.l.b16 %v431
        %v820 = vunpack.c.h.b16 %v431
        %v821 = vunpack.c.l.b16 %v432
        %v822 = vunpack.c.h.b16 %v432
        %v823 = vunpack.c.l.b16 %v433
        %v824 = vunpack.c.h.b16 %v433
        %v825 = vunpack.c.l.b16 %v434
        %v826 = vunpack.c.h.b16 %v434
        %v827 = vunpack.c.l.b16 %v435
        %v828 = vunpack.c.h.b16 %v435
        %v829 = vunpack.c.l.b16 %v436
        %v830 = vunpack.c.h.b16 %v436
        %v831 = vunpack.c.l.b16 %v437
        %v832 = vunpack.c.h.b16 %v437
        %v833 = vunpack.c.l.b16 %v438
        %v834 = vunpack.c.h.b16 %v438
        %v835 = vunpack.c.l.b16 %v439
        %v836 = vunpack.c.h.b16 %v439
        %v837 = vunpack.c.l.b16 %v440
        %v838 = vunpack.c.h.b16 %v440
        %v839 = vunpack.c.l.b16 %v441
        %v840 = vunpack.c.h.b16 %v441
        %v841 = vunpack.c.l.b16 %v442
        %v842 = vunpack.c.h.b16 %v442
        %v843 = vunpack.c.l.b16 %v443
        %v844 = vunpack.c.h.b16 %v443
        %v845 = vunpack.c.l.b16 %v444
        %v846 = vunpack.c.h.b16 %v444
        %v847 = vunpack.c.l.b16 %v445
        %v848 = vunpack.c.h.b16 %v445
        %v849 = vunpack.c.l.b16 %v446
        %v850 = vunpack.c.h.b16 %v446
        %v851 = vunpack.c.l.b16 %v447
        %v852 = vunpack.c.h.b16 %v447
        %v853 = vunpack.c.l.b16 %v448
        %v854 = vunpack.c.h.b16 %v448
        %v855 = vunpack.c.l.b16 %v449
        %v856 = vunpack.c.h.b16 %v449
        %v857 = vunpack.c.l.b16 %v450
        %v858 = vunpack.c.h.b16 %v450
        %v859 = vunpack.c.l.b16 %v451
        %v860 = vunpack.c.h.b16 %v451
        %v861 = vunpack.c.l.b16 %v452
        %v862 = vunpack.c.h.b16 %v452
        %v863 = vunpack.c.l.b16 %v453
        %v864 = vunpack.c.h.b16 %v453
        %v865 = vunpack.c.l.b16 %v454
        %v866 = vunpack.c.h.b16 %v454
        %v867 = vunpack.c.l.b16 %v455
        %v868 = vunpack.c.h.b16 %v455
        %v869 = vunpack.c.l.b16 %v456
        %v870 = vunpack.c.h.b16 %v456
        %v871 = vunpack.c.l.b16 %v457
        %v872 = vunpack.c.h.b16 %v457
        %v873 = vunpack.c.l.b16 %v458
        %v874 = vunpack.c.h.b16 %v458
        %v875 = vunpack.c.l.b16 %v459
        %v876 = vunpack.c.h.b16 %v459
        %v877 = vunpack.c.l.b16 %v460
        %v878 = vunpack.c.h.b16 %v460
        %v879 = vunpack.c.l.b16 %v461
        %v880 = vunpack.c.h.b16 %v461
        %v881 = vunpack.c.l.b16 %v462
        %v882 = vunpack.c.h.b16 %v462
        %v883 = vunpack.c.l.b16 %v463
        %v884 = vunpack.c.h.b16 %v463
        %v885 = vunpack.c.l.b16 %v464
        %v886 = vunpack.c.h.b16 %v464
        %v887 = vunpack.c.l.b16 %v465
        %v888 = vunpack.c.h.b16 %v465
        %v889 = vunpack.c.l.b16 %v466
        %v890 = vunpack.c.h.b16 %v466
        %v891 = vunpack.c.l.b16 %v467
        %v892 = vunpack.c.h.b16 %v467
        %v893 = vunpack.c.l.b16 %v468
        %v894 = vunpack.c.h.b16 %v468
        %v895 = vunpack.c.l.b16 %v469
        %v896 = vunpack.c.h.b16 %v469
        %v897 = vunpack.c.l.b16 %v470
        %v898 = vunpack.c.h.b16 %v470
        %v899 = vunpack.c.l.b16 %v471
        %v900 = vunpack.c.h.b16 %v471
        %v901 = vunpack.c.l.b16 %v472
        %v902 = vunpack.c.h.b16 %v472
        %v903 = vunpack.c.l.b16 %v473
        %v904 = vunpack.c.h.b16 %v473
        %v905 = vunpack.c.l.b16 %v474
        %v906 = vunpack.c.h.b16 %v474
        %v907 = vunpack.c.l.b16 %v475
        %v908 = vunpack.c.h.b16 %v475
        %v909 = vunpack.c.l.b16 %v476
        %v910 = vunpack.c.h.b16 %v476
        %v911 = vunpack.c.l.b16 %v477
        %v912 = vunpack.c.h.b16 %v477
        %v913 = vunpack.c.l.b16 %v478
        %v914 = vunpack.c.h.b16 %v478
        %v915 = vunpack.c.l.b16 %v479
        %v916 = vunpack.c.h.b16 %v479
        %v917 = vunpack.c.l.b16 %v480
        %v918 = vunpack.c.h.b16 %v480
        %v919 = vunpack.c.l.b16 %v481
        %v920 = vunpack.c.h.b16 %v481
        %v921 = vunpack.c.l.b16 %v482
        %v922 = vunpack.c.h.b16 %v482
        %v923 = vunpack.c.l.b16 %v483
        %v924 = vunpack.c.h.b16 %v483
        %v925 = vunpack.c.l.b16 %v484
        %v926 = vunpack.c.h.b16 %v484
        %v927 = vunpack.c.l.b16 %v485
        %v928 = vunpack.c.h.b16 %v485
        %v929 = vunpack.c.l.b16 %v486
        %v930 = vunpack.c.h.b16 %v486
        %v931 = vunpack.c.l.b16 %v487
        %v932 = vunpack.c.h.b16 %v487
        %v933 = vunpack.c.l.b16 %v488
        %v934 = vunpack.c.h.b16 %v488
        %v935 = vunpack.c.l.b16 %v489
        %v936 = vunpack.c.h.b16 %v489
        %v937 = vunpack.c.l.b16 %v490
        %v938 = vunpack.c.h.b16 %v490
        %v939 = vunpack.c.l.b16 %v491
        %v940 = vunpack.c.h.b16 %v491
        %v941 = vunpack.c.l.b16 %v492
        %v942 = vunpack.c.h.b16 %v492
        %v943 = vunpack.c.l.b16 %v493
        %v944 = vunpack.c.h.b16 %v493
        %v945 = vunpack.c.l.b16 %v494
        %v946 = vunpack.c.h.b16 %v494
        %v947 = vunpack.c.l.b16 %v495
        %v948 = vunpack.c.h.b16 %v495
        %v949 = vunpack.c.l.b16 %v496
        %v950 = vunpack.c.h.b16 %v496
        %v951 = vunpack.c.l.b16 %v497
        %v952 = vunpack.c.h.b16 %v497
        %v953 = vunpack.c.l.b16 %v498
        %v954 = vunpack.c.h.b16 %v498
        %v955 = vunpack.c.l.b16 %v499
        %v956 = vunpack.c.h.b16 %v499
        %v957 = vunpack.c.l.b16 %v500
        %v958 = vunpack.c.h.b16 %v500
        %v959 = vunpack.c.l.b16 %v501
        %v960 = vunpack.c.h.b16 %v501
        %v961 = vunpack.c.l.b16 %v502
        %v962 = vunpack.c.h.b16 %v502
        %v963 = vunpack.c.l.b16 %v503
        %v964 = vunpack.c.h.b16 %v503
        %v965 = vunpack.c.l.b16 %v504
        %v966 = vunpack.c.h.b16 %v504
        %v967 = vunpack.c.l.b16 %v505
        %v968 = vunpack.c.h.b16 %v505
        %v969 = vunpack.c.l.b16 %v506
        %v970 = vunpack.c.h.b16 %v506
        %v971 = vunpack.c.l.b16 %v507
        %v972 = vunpack.c.h.b16 %v507
        %v973 = vunpack.c.l.b16 %v508
        %v974 = vunpack.c.h.b16 %v508
        %v975 = vunpack.c.l.b16 %v509
        %v976 = vunpack.c.h.b16 %v509
        %v977 = vunpack.c.l.b16 %v510
        %v978 = vunpack.c.h.b16 %v510
        %v979 = vunpack.c.l.b16 %v511
        %v980 = vunpack.c.h.b16 %v511
        %v981 = vunpack.c.l.b16 %v512
        %v982 = vunpack.c.h.b16 %v512
        %v983 = vunpack.c.l.b16 %v513
        %v984 = vunpack.c.h.b16 %v513
        %v985 = vunpack.c.l.b16 %v514
        %v986 = vunpack.c.h.b16 %v514
        %v987 = vunpack.c.l.b16 %v515
        %v988 = vunpack.c.h.b16 %v515
        %v989 = vunpack.c.l.b16 %v516
        %v990 = vunpack.c.h.b16 %v516
        %v991 = vunpack.c.l.b16 %v517
        %v992 = vunpack.c.h.b16 %v517
        %v993 = vunpack.c.l.b16 %v518
        %v994 = vunpack.c.h.b16 %v518
        %v995 = vunpack.c.l.b16 %v519
        %v996 = vunpack.c.h.b16 %v519
        %v997 = vunpack.c.l.b16 %v520
        %v998 = vunpack.c.h.b16 %v520
        %v999 = vunpack.c.l.b16 %v521
        %v1000 = vunpack.c.h.b16 %v521
        %v1001 = vunpack.c.l.b16 %v522
        %v1002 = vunpack.c.h.b16 %v522
        %v1003 = vunpack.c.l.b16 %v523
        %v1004 = vunpack.c.h.b16 %v523
        %v1005 = vunpack.c.l.b16 %v524
        %v1006 = vunpack.c.h.b16 %v524
        %v1007 = vunpack.c.l.b16 %v525
        %v1008 = vunpack.c.h.b16 %v525
        %v1009 = vunpack.c.l.b16 %v526
        %v1010 = vunpack.c.h.b16 %v526
        %v1011 = vunpack.c.l.b16 %v527
        %v1012 = vunpack.c.h.b16 %v527
        %v1013 = vunpack.c.l.b16 %v528
        %v1014 = vunpack.c.h.b16 %v528
        %v1015 = vunpack.c.l.b16 %v529
        %v1016 = vunpack.c.h.b16 %v529
        %v1017 = vunpack.c.l.b16 %v530
        %v1018 = vunpack.c.h.b16 %v530
        %v1019 = vunpack.c.l.b16 %v531
        %v1020 = vunpack.c.h.b16 %v531
        %v1021 = vunpack.c.l.b16 %v532
        %v1022 = vunpack.c.h.b16 %v532
        %v1023 = vunpack.c.l.b16 %v533
        %v1024 = vunpack.c.h.b16 %v533
        %v1025 = vunpack.c.l.b16 %v534
        %v1026 = vunpack.c.h.b16 %v534
        %v1027 = vpack.c.b16 %v711, %v707
        %v1028 = vpack.c.b16 %v712, %v708
        %v1029 = vpack.c.b16 %v713, %v709
        %v1030 = vpack.c.b16 %v714, %v710
        %v1031 = vpack.c.b16 %v719, %v715
        %v1032 = vpack.c.b16 %v720, %v716
        %v1033 = vpack.c.b16 %v721, %v717
        %v1034 = vpack.c.b16 %v722, %v718
        %v1035 = vpack.c.b16 %v727, %v723
        %v1036 = vpack.c.b16 %v728, %v724
        %v1037 = vpack.c.b16 %v729, %v725
        %v1038 = vpack.c.b16 %v730, %v726
        %v1039 = vpack.c.b16 %v735, %v731
        %v1040 = vpack.c.b16 %v736, %v732
        %v1041 = vpack.c.b16 %v737, %v733
        %v1042 = vpack.c.b16 %v738, %v734
        %v1043 = vpack.c.b16 %v743, %v739
        %v1044 = vpack.c.b16 %v744, %v740
        %v1045 = vpack.c.b16 %v745, %v741
        %v1046 = vpack.c.b16 %v746, %v742
        %v1047 = vpack.c.b16 %v751, %v747
        %v1048 = vpack.c.b16 %v752, %v748
        %v1049 = vpack.c.b16 %v753, %v749
        %v1050 = vpack.c.b16 %v754, %v750
        %v1051 = vpack.c.b16 %v759, %v755
        %v1052 = vpack.c.b16 %v760, %v756
        %v1053 = vpack.c.b16 %v761, %v757
        %v1054 = vpack.c.b16 %v762, %v758
        %v1055 = vpack.c.b16 %v767, %v763
        %v1056 = vpack.c.b16 %v768, %v764
        %v1057 = vpack.c.b16 %v769, %v765
        %v1058 = vpack.c.b16 %v770, %v766
        %v1059 = vpack.c.b16 %v775, %v771
        %v1060 = vpack.c.b16 %v776, %v772
        %v1061 = vpack.c.b16 %v777, %v773
        %v1062 = vpack.c.b16 %v778, %v774
        %v1063 = vpack.c.b16 %v783, %v779
        %v1064 = vpack.c.b16 %v784, %v780
        %v1065 = vpack.c.b16 %v785, %v781
        %v1066 = vpack.c.b16 %v786, %v782
        %v1067 = vpack.c.b16 %v791, %v787
        %v1068 = vpack.c.b16 %v792, %v788
        %v1069 = vpack.c.b16 %v793, %v789
        %v1070 = vpack.c.b16 %v794, %v790
        %v1071 = vpack.c.b16 %v799, %v795
        %v1072 = vpack.c.b16 %v800, %v796
        %v1073 = vpack.c.b16 %v801, %v797
        %v1074 = vpack.c.b16 %v802, %v798
        %v1075 = vpack.c.b16 %v807, %v803
        %v1076 = vpack.c.b16 %v808, %v804
        %v1077 = vpack.c.b16 %v809, %v805
        %v1078 = vpack.c.b16 %v810, %v806
        %v1079 = vpack.c.b16 %v815, %v811
        %v1080 = vpack.c.b16 %v816, %v812
        %v1081 = vpack.c.b16 %v817, %v813
        %v1082 = vpack.c.b16 %v818, %v814
        %v1083 = vpack.c.b16 %v823, %v819
        %v1084 = vpack.c.b16 %v824, %v820
        %v1085 = vpack.c.b16 %v825, %v821
        %v1086 = vpack.c.b16 %v826, %v822
        %v1087 = vpack.c.b16 %v831, %v827
        %v1088 = vpack.c.b16 %v832, %v828
        %v1089 = vpack.c.b16 %v833, %v829
        %v1090 = vpack.c.b16 %v834, %v830
        %v1091 = vpack.c.b16 %v839, %v835
        %v1092 = vpack.c.b16 %v840, %v836
        %v1093 = vpack.c.b16 %v841, %v837
        %v1094 = vpack.c.b16 %v842, %v838
        %v1095 = vpack.c.b16 %v847, %v843
        %v1096 = vpack.c.b16 %v848, %v844
        %v1097 = vpack.c.b16 %v849, %v845
        %v1098 = vpack.c.b16 %v850, %v846
        %v1099 = vpack.c.b16 %v855, %v851
        %v1100 = vpack.c.b16 %v856, %v852
        %v1101 = vpack.c.b16 %v857, %v853
        %v1102 = vpack.c.b16 %v858, %v854
        %v1103 = vpack.c.b16 %v863, %v859
        %v1104 = vpack.c.b16 %v864, %v860
        %v1105 = vpack.c.b16 %v865, %v861
        %v1106 = vpack.c.b16 %v866, %v862
        %v1107 = vpack.c.b16 %v871, %v867
        %v1108 = vpack.c.b16 %v872, %v868
        %v1109 = vpack.c.b16 %v873, %v869
        %v1110 = vpack.c.b16 %v874, %v870
        %v1111 = vpack.c.b16 %v879, %v875
        %v1112 = vpack.c.b16 %v880, %v876
        %v1113 = vpack.c.b16 %v881, %v877
        %v1114 = vpack.c.b16 %v882, %v878
        %v1115 = vpack.c.b16 %v887, %v883
        %v1116 = vpack.c.b16 %v888, %v884
        %v1117 = vpack.c.b16 %v889, %v885
        %v1118 = vpack.c.b16 %v890, %v886
        %v1119 = vpack.c.b16 %v895, %v891
        %v1120 = vpack.c.b16 %v896, %v892
        %v1121 = vpack.c.b16 %v897, %v893
        %v1122 = vpack.c.b16 %v898, %v894
        %v1123 = vpack.c.b16 %v903, %v899
        %v1124 = vpack.c.b16 %v904, %v900
        %v1125 = vpack.c.b16 %v905, %v901
        %v1126 = vpack.c.b16 %v906, %v902
        %v1127 = vpack.c.b16 %v911, %v907
        %v1128 = vpack.c.b16 %v912, %v908
        %v1129 = vpack.c.b16 %v913, %v909
        %v1130 = vpack.c.b16 %v914, %v910
        %v1131 = vpack.c.b16 %v919, %v915
        %v1132 = vpack.c.b16 %v920, %v916
        %v1133 = vpack.c.b16 %v921, %v917
        %v1134 = vpack.c.b16 %v922, %v918
        %v1135 = vpack.c.b16 %v927, %v923
        %v1136 = vpack.c.b16 %v928, %v924
        %v1137 = vpack.c.b16 %v929, %v925
        %v1138 = vpack.c.b16 %v930, %v926
        %v1139 = vpack.c.b16 %v935, %v931
        %v1140 = vpack.c.b16 %v936, %v932
        %v1141 = vpack.c.b16 %v937, %v933
        %v1142 = vpack.c.b16 %v938, %v934
        %v1143 = vpack.c.b16 %v943, %v939
        %v1144 = vpack.c.b16 %v944, %v940
        %v1145 = vpack.c.b16 %v945, %v941
        %v1146 = vpack.c.b16 %v946, %v942
        %v1147 = vpack.c.b16 %v951, %v947
        %v1148 = vpack.c.b16 %v952, %v948
        %v1149 = vpack.c.b16 %v953, %v949
        %v1150 = vpack.c.b16 %v954, %v950
        %v1151 = vpack.c.b16 %v959, %v955
        %v1152 = vpack.c.b16 %v960, %v956
        %v1153 = vpack.c.b16 %v961, %v957
        %v1154 = vpack.c.b16 %v962, %v958
        %v1155 = vpack.c.b16 %v967, %v963
        %v1156 = vpack.c.b16 %v968, %v964
        %v1157 = vpack.c.b16 %v969, %v965
        %v1158 = vpack.c.b16 %v970, %v966
        %v1159 = vpack.c.b16 %v975, %v971
        %v1160 = vpack.c.b16 %v976, %v972
        %v1161 = vpack.c.b16 %v977, %v973
        %v1162 = vpack.c.b16 %v978, %v974
        %v1163 = vpack.c.b16 %v983, %v979
        %v1164 = vpack.c.b16 %v984, %v980
        %v1165 = vpack.c.b16 %v985, %v981
        %v1166 = vpack.c.b16 %v986, %v982
        %v1167 = vpack.c.b16 %v991, %v987
        %v1168 = vpack.c.b16 %v992, %v988
        %v1169 = vpack.c.b16 %v993, %v989
        %v1170 = vpack.c.b16 %v994, %v990
        %v1171 = vpack.c.b16 %v999, %v995
        %v1172 = vpack.c.b16 %v1000, %v996
        %v1173 = vpack.c.b16 %v1001, %v997
        %v1174 = vpack.c.b16 %v1002, %v998
        %v1175 = vpack.c.b16 %v1007, %v1003
        %v1176 = vpack.c.b16 %v1008, %v1004
        %v1177 = vpack.c.b16 %v1009, %v1005
        %v1178 = vpack.c.b16 %v1010, %v1006
        %v1179 = vpack.c.b16 %v1015, %v1011
        %v1180 = vpack.c.b16 %v1016, %v1012
        %v1181 = vpack.c.b16 %v1017, %v1013
        %v1182 = vpack.c.b16 %v1018, %v1014
        %v1183 = vpack.c.b16 %v1023, %v1019
        %v1184 = vpack.c.b16 %v1024, %v1020
        %v1185 = vpack.c.b16 %v1025, %v1021
        %v1186 = vpack.c.b16 %v1026, %v1022
        %1347 = vmatpush.bf16.msra.mxu0 %v1055
        %1348 = vmatpush.bf16.msra.mxu0 %v1051
        %1349 = vmatpush.bf16.msra.mxu0 %v1047
        %1350 = vmatpush.bf16.msra.mxu0 %v1043
        %1351 = vmatpush.bf16.msra.mxu0 %v1039
        %1352 = vmatpush.bf16.msra.mxu0 %v1035
        %1353 = vmatpush.bf16.msra.mxu0 %v1031
        %1354 = vmatpush.bf16.msra.mxu0 %v1027
        %1355 = vmatmul.bf16.gmra.mxu0 %v537
        %v1356 = vpop.f32.mrf.mxu0
        %v1357 = vadd.f32 0.0, %v1356
        %v1358 = vpop.f32.mrf.mxu0
        %1359 = vdwg.mxu0
        %1360 = vmatpush.bf16.msra.mxu0 %v1087
        %1361 = vmatpush.bf16.msra.mxu0 %v1083
        %1362 = vmatpush.bf16.msra.mxu0 %v1079
        %1363 = vmatpush.bf16.msra.mxu0 %v1075
        %1364 = vmatpush.bf16.msra.mxu0 %v1071
        %1365 = vmatpush.bf16.msra.mxu0 %v1067
        %1366 = vmatpush.bf16.msra.mxu0 %v1063
        %1367 = vmatpush.bf16.msra.mxu0 %v1059
        %1368 = vmatmul.bf16.gmra.mxu0 %v538
        %v1369 = vpop.f32.mrf.mxu0
        %v1370 = vadd.f32 %v1357, %v1369
        %v1371 = vpop.f32.mrf.mxu0
        %1372 = vdwg.mxu0
        %1373 = vmatpush.bf16.msra.mxu0 %v1119
        %1374 = vmatpush.bf16.msra.mxu0 %v1115
        %1375 = vmatpush.bf16.msra.mxu0 %v1111
        %1376 = vmatpush.bf16.msra.mxu0 %v1107
        %1377 = vmatpush.bf16.msra.mxu0 %v1103
        %1378 = vmatpush.bf16.msra.mxu0 %v1099
        %1379 = vmatpush.bf16.msra.mxu0 %v1095
        %1380 = vmatpush.bf16.msra.mxu0 %v1091
        %1381 = vmatmul.bf16.gmra.mxu0 %v539
        %v1382 = vpop.f32.mrf.mxu0
        %v1383 = vadd.f32 %v1370, %v1382
        %v1384 = vpop.f32.mrf.mxu0
        %1385 = vdwg.mxu0
        %1386 = vmatpush.bf16.msra.mxu0 %v1151
        %1387 = vmatpush.bf16.msra.mxu0 %v1147
        %1388 = vmatpush.bf16.msra.mxu0 %v1143
        %1389 = vmatpush.bf16.msra.mxu0 %v1139
        %1390 = vmatpush.bf16.msra.mxu0 %v1135
        %1391 = vmatpush.bf16.msra.mxu0 %v1131
        %1392 = vmatpush.bf16.msra.mxu0 %v1127
        %1393 = vmatpush.bf16.msra.mxu0 %v1123
        %1394 = vmatmul.bf16.gmra.mxu0 %v540
        %v1395 = vpop.f32.mrf.mxu0
        %v1396 = vadd.f32 %v1383, %v1395
        %v1397 = vpop.f32.mrf.mxu0
        %1398 = vdwg.mxu0
        %1399 = vmatpush.bf16.msra.mxu0 %v1183
        %1400 = vmatpush.bf16.msra.mxu0 %v1179
        %1401 = vmatpush.bf16.msra.mxu0 %v1175
        %1402 = vmatpush.bf16.msra.mxu0 %v1171
        %1403 = vmatpush.bf16.msra.mxu0 %v1167
        %1404 = vmatpush.bf16.msra.mxu0 %v1163
        %1405 = vmatpush.bf16.msra.mxu0 %v1159
        %1406 = vmatpush.bf16.msra.mxu0 %v1155
        %1407 = vmatmul.bf16.gmra.mxu0 %v541
        %v1408 = vpop.f32.mrf.mxu0
        %v1409 = vadd.f32 %v1396, %v1408
        %v1410 = vpop.f32.mrf.mxu0
        %1411 = vdwg.mxu0
        %1412 = vmatpush.bf16.msra.mxu0 %v1056
        %1413 = vmatpush.bf16.msra.mxu0 %v1052
        %1414 = vmatpush.bf16.msra.mxu0 %v1048
        %1415 = vmatpush.bf16.msra.mxu0 %v1044
        %1416 = vmatpush.bf16.msra.mxu0 %v1040
        %1417 = vmatpush.bf16.msra.mxu0 %v1036
        %1418 = vmatpush.bf16.msra.mxu0 %v1032
        %1419 = vmatpush.bf16.msra.mxu0 %v1028
        %1420 = vmatmul.bf16.gmra.mxu0 %v537
        %v1421 = vpop.f32.mrf.mxu0
        %v1422 = vadd.f32 0.0, %v1421
        %v1423 = vpop.f32.mrf.mxu0
        %1424 = vdwg.mxu0
        %1425 = vmatpush.bf16.msra.mxu0 %v1088
        %1426 = vmatpush.bf16.msra.mxu0 %v1084
        %1427 = vmatpush.bf16.msra.mxu0 %v1080
        %1428 = vmatpush.bf16.msra.mxu0 %v1076
        %1429 = vmatpush.bf16.msra.mxu0 %v1072
        %1430 = vmatpush.bf16.msra.mxu0 %v1068
        %1431 = vmatpush.bf16.msra.mxu0 %v1064
        %1432 = vmatpush.bf16.msra.mxu0 %v1060
        %1433 = vmatmul.bf16.gmra.mxu0 %v538
        %v1434 = vpop.f32.mrf.mxu0
        %v1435 = vadd.f32 %v1422, %v1434
        %v1436 = vpop.f32.mrf.mxu0
        %1437 = vdwg.mxu0
        %1438 = vmatpush.bf16.msra.mxu0 %v1120
        %1439 = vmatpush.bf16.msra.mxu0 %v1116
        %1440 = vmatpush.bf16.msra.mxu0 %v1112
        %1441 = vmatpush.bf16.msra.mxu0 %v1108
        %1442 = vmatpush.bf16.msra.mxu0 %v1104
        %1443 = vmatpush.bf16.msra.mxu0 %v1100
        %1444 = vmatpush.bf16.msra.mxu0 %v1096
        %1445 = vmatpush.bf16.msra.mxu0 %v1092
        %1446 = vmatmul.bf16.gmra.mxu0 %v539
        %v1447 = vpop.f32.mrf.mxu0
        %v1448 = vadd.f32 %v1435, %v1447
        %v1449 = vpop.f32.mrf.mxu0
        %1450 = vdwg.mxu0
        %1451 = vmatpush.bf16.msra.mxu0 %v1152
        %1452 = vmatpush.bf16.msra.mxu0 %v1148
        %1453 = vmatpush.bf16.msra.mxu0 %v1144
        %1454 = vmatpush.bf16.msra.mxu0 %v1140
        %1455 = vmatpush.bf16.msra.mxu0 %v1136
        %1456 = vmatpush.bf16.msra.mxu0 %v1132
        %1457 = vmatpush.bf16.msra.mxu0 %v1128
        %1458 = vmatpush.bf16.msra.mxu0 %v1124
        %1459 = vmatmul.bf16.gmra.mxu0 %v540
        %v1460 = vpop.f32.mrf.mxu0
        %v1461 = vadd.f32 %v1448, %v1460
        %v1462 = vpop.f32.mrf.mxu0
        %1463 = vdwg.mxu0
        %1464 = vmatpush.bf16.msra.mxu0 %v1184
        %1465 = vmatpush.bf16.msra.mxu0 %v1180
        %1466 = vmatpush.bf16.msra.mxu0 %v1176
        %1467 = vmatpush.bf16.msra.mxu0 %v1172
        %1468 = vmatpush.bf16.msra.mxu0 %v1168
        %1469 = vmatpush.bf16.msra.mxu0 %v1164
        %1470 = vmatpush.bf16.msra.mxu0 %v1160
        %1471 = vmatpush.bf16.msra.mxu0 %v1156
        %1472 = vmatmul.bf16.gmra.mxu0 %v541
        %v1473 = vpop.f32.mrf.mxu0
        %v1474 = vadd.f32 %v1461, %v1473
        %v1475 = vpop.f32.mrf.mxu0
        %1476 = vdwg.mxu0
        %1477 = vmatpush.bf16.msra.mxu0 %v1057
        %1478 = vmatpush.bf16.msra.mxu0 %v1053
        %1479 = vmatpush.bf16.msra.mxu0 %v1049
        %1480 = vmatpush.bf16.msra.mxu0 %v1045
        %1481 = vmatpush.bf16.msra.mxu0 %v1041
        %1482 = vmatpush.bf16.msra.mxu0 %v1037
        %1483 = vmatpush.bf16.msra.mxu0 %v1033
        %1484 = vmatpush.bf16.msra.mxu0 %v1029
        %1485 = vmatmul.bf16.gmra.mxu0 %v537
        %v1486 = vpop.f32.mrf.mxu0
        %v1487 = vadd.f32 0.0, %v1486
        %v1488 = vpop.f32.mrf.mxu0
        %1489 = vdwg.mxu0
        %1490 = vmatpush.bf16.msra.mxu0 %v1089
        %1491 = vmatpush.bf16.msra.mxu0 %v1085
        %1492 = vmatpush.bf16.msra.mxu0 %v1081
        %1493 = vmatpush.bf16.msra.mxu0 %v1077
        %1494 = vmatpush.bf16.msra.mxu0 %v1073
        %1495 = vmatpush.bf16.msra.mxu0 %v1069
        %1496 = vmatpush.bf16.msra.mxu0 %v1065
        %1497 = vmatpush.bf16.msra.mxu0 %v1061
        %1498 = vmatmul.bf16.gmra.mxu0 %v538
        %v1499 = vpop.f32.mrf.mxu0
        %v1500 = vadd.f32 %v1487, %v1499
        %v1501 = vpop.f32.mrf.mxu0
        %1502 = vdwg.mxu0
        %1503 = vmatpush.bf16.msra.mxu0 %v1121
        %1504 = vmatpush.bf16.msra.mxu0 %v1117
        %1505 = vmatpush.bf16.msra.mxu0 %v1113
        %1506 = vmatpush.bf16.msra.mxu0 %v1109
        %1507 = vmatpush.bf16.msra.mxu0 %v1105
        %1508 = vmatpush.bf16.msra.mxu0 %v1101
        %1509 = vmatpush.bf16.msra.mxu0 %v1097
        %1510 = vmatpush.bf16.msra.mxu0 %v1093
        %1511 = vmatmul.bf16.gmra.mxu0 %v539
        %v1512 = vpop.f32.mrf.mxu0
        %v1513 = vadd.f32 %v1500, %v1512
        %v1514 = vpop.f32.mrf.mxu0
        %1515 = vdwg.mxu0
        %1516 = vmatpush.bf16.msra.mxu0 %v1153
        %1517 = vmatpush.bf16.msra.mxu0 %v1149
        %1518 = vmatpush.bf16.msra.mxu0 %v1145
        %1519 = vmatpush.bf16.msra.mxu0 %v1141
        %1520 = vmatpush.bf16.msra.mxu0 %v1137
        %1521 = vmatpush.bf16.msra.mxu0 %v1133
        %1522 = vmatpush.bf16.msra.mxu0 %v1129
        %1523 = vmatpush.bf16.msra.mxu0 %v1125
        %1524 = vmatmul.bf16.gmra.mxu0 %v540
        %v1525 = vpop.f32.mrf.mxu0
        %v1526 = vadd.f32 %v1513, %v1525
        %v1527 = vpop.f32.mrf.mxu0
        %1528 = vdwg.mxu0
        %1529 = vmatpush.bf16.msra.mxu0 %v1185
        %1530 = vmatpush.bf16.msra.mxu0 %v1181
        %1531 = vmatpush.bf16.msra.mxu0 %v1177
        %1532 = vmatpush.bf16.msra.mxu0 %v1173
        %1533 = vmatpush.bf16.msra.mxu0 %v1169
        %1534 = vmatpush.bf16.msra.mxu0 %v1165
        %1535 = vmatpush.bf16.msra.mxu0 %v1161
        %1536 = vmatpush.bf16.msra.mxu0 %v1157
        %1537 = vmatmul.bf16.gmra.mxu0 %v541
        %v1538 = vpop.f32.mrf.mxu0
        %v1539 = vadd.f32 %v1526, %v1538
        %v1540 = vpop.f32.mrf.mxu0
        %1541 = vdwg.mxu0
        %1542 = vmatpush.bf16.msra.mxu0 %v1058
        %1543 = vmatpush.bf16.msra.mxu0 %v1054
        %1544 = vmatpush.bf16.msra.mxu0 %v1050
        %1545 = vmatpush.bf16.msra.mxu0 %v1046
        %1546 = vmatpush.bf16.msra.mxu0 %v1042
        %1547 = vmatpush.bf16.msra.mxu0 %v1038
        %1548 = vmatpush.bf16.msra.mxu0 %v1034
        %1549 = vmatpush.bf16.msra.mxu0 %v1030
        %1550 = vmatmul.bf16.gmra.mxu0 %v537
        %v1551 = vpop.f32.mrf.mxu0
        %v1552 = vadd.f32 0.0, %v1551
        %v1553 = vpop.f32.mrf.mxu0
        %1554 = vdwg.mxu0
        %1555 = vmatpush.bf16.msra.mxu0 %v1090
        %1556 = vmatpush.bf16.msra.mxu0 %v1086
        %1557 = vmatpush.bf16.msra.mxu0 %v1082
        %1558 = vmatpush.bf16.msra.mxu0 %v1078
        %1559 = vmatpush.bf16.msra.mxu0 %v1074
        %1560 = vmatpush.bf16.msra.mxu0 %v1070
        %1561 = vmatpush.bf16.msra.mxu0 %v1066
        %1562 = vmatpush.bf16.msra.mxu0 %v1062
        %1563 = vmatmul.bf16.gmra.mxu0 %v538
        %v1564 = vpop.f32.mrf.mxu0
        %v1565 = vadd.f32 %v1552, %v1564
        %v1566 = vpop.f32.mrf.mxu0
        %1567 = vdwg.mxu0
        %1568 = vmatpush.bf16.msra.mxu0 %v1122
        %1569 = vmatpush.bf16.msra.mxu0 %v1118
        %1570 = vmatpush.bf16.msra.mxu0 %v1114
        %1571 = vmatpush.bf16.msra.mxu0 %v1110
        %1572 = vmatpush.bf16.msra.mxu0 %v1106
        %1573 = vmatpush.bf16.msra.mxu0 %v1102
        %1574 = vmatpush.bf16.msra.mxu0 %v1098
        %1575 = vmatpush.bf16.msra.mxu0 %v1094
        %1576 = vmatmul.bf16.gmra.mxu0 %v539
        %v1577 = vpop.f32.mrf.mxu0
        %v1578 = vadd.f32 %v1565, %v1577
        %v1579 = vpop.f32.mrf.mxu0
        %1580 = vdwg.mxu0
        %1581 = vmatpush.bf16.msra.mxu0 %v1154
        %1582 = vmatpush.bf16.msra.mxu0 %v1150
        %1583 = vmatpush.bf16.msra.mxu0 %v1146
        %1584 = vmatpush.bf16.msra.mxu0 %v1142
        %1585 = vmatpush.bf16.msra.mxu0 %v1138
        %1586 = vmatpush.bf16.msra.mxu0 %v1134
        %1587 = vmatpush.bf16.msra.mxu0 %v1130
        %1588 = vmatpush.bf16.msra.mxu0 %v1126
        %1589 = vmatmul.bf16.gmra.mxu0 %v540
        %v1590 = vpop.f32.mrf.mxu0
        %v1591 = vadd.f32 %v1578, %v1590
        %v1592 = vpop.f32.mrf.mxu0
        %1593 = vdwg.mxu0
        %1594 = vmatpush.bf16.msra.mxu0 %v1186
        %1595 = vmatpush.bf16.msra.mxu0 %v1182
        %1596 = vmatpush.bf16.msra.mxu0 %v1178
        %1597 = vmatpush.bf16.msra.mxu0 %v1174
        %1598 = vmatpush.bf16.msra.mxu0 %v1170
        %1599 = vmatpush.bf16.msra.mxu0 %v1166
        %1600 = vmatpush.bf16.msra.mxu0 %v1162
        %1601 = vmatpush.bf16.msra.mxu0 %v1158
        %1602 = vmatmul.bf16.gmra.mxu0 %v541
        %v1603 = vpop.f32.mrf.mxu0
        %v1604 = vadd.f32 %v1591, %v1603
        %v1605 = vpop.f32.mrf.mxu0
        %1606 = vdwg.mxu0
        %v1611 = vrot.slane %v1474, 6
        %v1612 = vrot.slane %v1539, 4
        %v1613 = vrot.slane %v1604, 2
        %vm1614 = vcmask 1041408
        %v1615 = vsel %vm1614, %v1409, %v1611
        %vm1616 = vcmask 1045508
        %v1617 = vsel %vm1616, %v1612, %v1613
        %vm1618 = vcmask 1043456
        %v1619 = vsel %vm1618, %v1615, %v1617
        %v1621 = vadd.f32 %v373, %v1619
        %1622 = vst [vmem:[#allocation2] sm:$0xff] %v1621
        %p1623 = scmp.eq.s32.totalorder %s24, 4
        // Predicated region
        $region73: #{net_forward.3} parent=47 // pred_check
          %p1624 = pneg %p1623
        $region74: #{net_forward.3} parent=47 // pred_check_branch
          %1626 = sbr.rel (%p1624) target = $region76
        $region75: #{net_forward.3} parent=47 // pred_region
          %v1627 = vld [vmem:[#allocation2] sm:$0xff]
          %v1628 = vld [vmem:[#allocation6] sm:$0xf]
          %v1630 = vperm.slane %v1628, 0
          %v1631 = vperm.slane %v1628, 1
          %v1632 = vperm.slane %v1628, 2
          %v1633 = vperm.slane %v1628, 3
          %v1634 = vrot.slane %v1631, 6
          %v1635 = vrot.slane %v1632, 4
          %v1636 = vrot.slane %v1633, 2
          %v1637 = vsel %vm1614, %v1630, %v1634
          %v1638 = vsel %vm1616, %v1635, %v1636
          %v1639 = vsel %vm1618, %v1637, %v1638
          %v1641 = vadd.f32 %v1627, %v1639
          %v1642 = vmax.f32 %v1641, 0.0
          %1644 = vst [vmem:[#allocation1] ss:$4 sm:$0xff] %v1642
          %v1645 = vld.sshfl [vmem:[#allocation1] sm:$0xff pattern:$0x73625140]
          %v1646 = vld.sshfl [vmem:[#allocation1 + $0x8] sm:$0xff pattern:$0x73625140]
          %v1647 = vld.sshfl [vmem:[#allocation1 + $0x10] sm:$0xff pattern:$0x73625140]
          %v1648 = vld.sshfl [vmem:[#allocation1 + $0x18] sm:$0xff pattern:$0x73625140]
          %v1653 = vpack.c.bf16 %v1645, %v1645
          %v1654 = vpack.c.bf16 %v1646, %v1646
          %v1655 = vpack.c.bf16 %v1647, %v1647
          %v1656 = vpack.c.bf16 %v1648, %v1648
          %v1657 = vld [vmem:[#allocation8] sm:$0xff]
          %v1658 = vld [vmem:[#allocation8 + $0x8] sm:$0xff]
          %v1659 = vld [vmem:[#allocation8 + $0x10] sm:$0xff]
          %v1660 = vld [vmem:[#allocation8 + $0x18] sm:$0xff]
          %v1661 = vld [vmem:[#allocation8 + $0x20] sm:$0xff]
          %v1662 = vld [vmem:[#allocation8 + $0x28] sm:$0xff]
          %v1663 = vld [vmem:[#allocation8 + $0x30] sm:$0xff]
          %v1664 = vld [vmem:[#allocation8 + $0x38] sm:$0xff]
          %v1665 = vld [vmem:[#allocation8 + $0x40] sm:$0xff]
          %v1666 = vld [vmem:[#allocation8 + $0x48] sm:$0xff]
          %v1667 = vld [vmem:[#allocation8 + $0x50] sm:$0xff]
          %v1668 = vld [vmem:[#allocation8 + $0x58] sm:$0xff]
          %v1669 = vld [vmem:[#allocation8 + $0x60] sm:$0xff]
          %v1670 = vld [vmem:[#allocation8 + $0x68] sm:$0xff]
          %v1671 = vld [vmem:[#allocation8 + $0x70] sm:$0xff]
          %v1672 = vld [vmem:[#allocation8 + $0x78] sm:$0xff]
          %v1673 = vld [vmem:[#allocation8 + $0x80] sm:$0xff]
          %v1674 = vld [vmem:[#allocation8 + $0x88] sm:$0xff]
          %v1675 = vld [vmem:[#allocation8 + $0x90] sm:$0xff]
          %v1676 = vld [vmem:[#allocation8 + $0x98] sm:$0xff]
          %v1677 = vld [vmem:[#allocation8 + $0xa0] sm:$0xff]
          %v1678 = vld [vmem:[#allocation8 + $0xa8] sm:$0xff]
          %v1679 = vld [vmem:[#allocation8 + $0xb0] sm:$0xff]
          %v1680 = vld [vmem:[#allocation8 + $0xb8] sm:$0xff]
          %v1681 = vld [vmem:[#allocation8 + $0xc0] sm:$0xff]
          %v1682 = vld [vmem:[#allocation8 + $0xc8] sm:$0xff]
          %v1683 = vld [vmem:[#allocation8 + $0xd0] sm:$0xff]
          %v1684 = vld [vmem:[#allocation8 + $0xd8] sm:$0xff]
          %v1685 = vld [vmem:[#allocation8 + $0xe0] sm:$0xff]
          %v1686 = vld [vmem:[#allocation8 + $0xe8] sm:$0xff]
          %v1687 = vld [vmem:[#allocation8 + $0xf0] sm:$0xff]
          %v1688 = vld [vmem:[#allocation8 + $0xf8] sm:$0xff]
          %v1689 = vld [vmem:[#allocation8 + $0x100] sm:$0xff]
          %v1690 = vld [vmem:[#allocation8 + $0x108] sm:$0xff]
          %v1691 = vld [vmem:[#allocation8 + $0x110] sm:$0xff]
          %v1692 = vld [vmem:[#allocation8 + $0x118] sm:$0xff]
          %v1693 = vld [vmem:[#allocation8 + $0x120] sm:$0xff]
          %v1694 = vld [vmem:[#allocation8 + $0x128] sm:$0xff]
          %v1695 = vld [vmem:[#allocation8 + $0x130] sm:$0xff]
          %v1696 = vld [vmem:[#allocation8 + $0x138] sm:$0xff]
          %v1697 = vld [vmem:[#allocation8 + $0x140] sm:$0xff]
          %v1698 = vld [vmem:[#allocation8 + $0x148] sm:$0xff]
          %v1699 = vld [vmem:[#allocation8 + $0x150] sm:$0xff]
          %v1700 = vld [vmem:[#allocation8 + $0x158] sm:$0xff]
          %v1701 = vld [vmem:[#allocation8 + $0x160] sm:$0xff]
          %v1702 = vld [vmem:[#allocation8 + $0x168] sm:$0xff]
          %v1703 = vld [vmem:[#allocation8 + $0x170] sm:$0xff]
          %v1704 = vld [vmem:[#allocation8 + $0x178] sm:$0xff]
          %v1705 = vld [vmem:[#allocation8 + $0x180] sm:$0xff]
          %v1706 = vld [vmem:[#allocation8 + $0x188] sm:$0xff]
          %v1707 = vld [vmem:[#allocation8 + $0x190] sm:$0xff]
          %v1708 = vld [vmem:[#allocation8 + $0x198] sm:$0xff]
          %v1709 = vld [vmem:[#allocation8 + $0x1a0] sm:$0xff]
          %v1710 = vld [vmem:[#allocation8 + $0x1a8] sm:$0xff]
          %v1711 = vld [vmem:[#allocation8 + $0x1b0] sm:$0xff]
          %v1712 = vld [vmem:[#allocation8 + $0x1b8] sm:$0xff]
          %v1713 = vld [vmem:[#allocation8 + $0x1c0] sm:$0xff]
          %v1714 = vld [vmem:[#allocation8 + $0x1c8] sm:$0xff]
          %v1715 = vld [vmem:[#allocation8 + $0x1d0] sm:$0xff]
          %v1716 = vld [vmem:[#allocation8 + $0x1d8] sm:$0xff]
          %v1717 = vld [vmem:[#allocation8 + $0x1e0] sm:$0xff]
          %v1718 = vld [vmem:[#allocation8 + $0x1e8] sm:$0xff]
          %v1719 = vld [vmem:[#allocation8 + $0x1f0] sm:$0xff]
          %v1720 = vld [vmem:[#allocation8 + $0x1f8] sm:$0xff]
          %v1721 = vld [vmem:[#allocation9] sm:$0x3]
          %v1723 = vperm.slane %v1721, 0
          %v1724 = vperm.slane %v1721, 1
          %v1791 = vunpack.c.l.b16 %v1657
          %v1792 = vunpack.c.h.b16 %v1657
          %v1793 = vunpack.c.l.b16 %v1658
          %v1794 = vunpack.c.h.b16 %v1658
          %v1795 = vunpack.c.l.b16 %v1659
          %v1796 = vunpack.c.h.b16 %v1659
          %v1797 = vunpack.c.l.b16 %v1660
          %v1798 = vunpack.c.h.b16 %v1660
          %v1799 = vunpack.c.l.b16 %v1661
          %v1800 = vunpack.c.h.b16 %v1661
          %v1801 = vunpack.c.l.b16 %v1662
          %v1802 = vunpack.c.h.b16 %v1662
          %v1803 = vunpack.c.l.b16 %v1663
          %v1804 = vunpack.c.h.b16 %v1663
          %v1805 = vunpack.c.l.b16 %v1664
          %v1806 = vunpack.c.h.b16 %v1664
          %v1807 = vunpack.c.l.b16 %v1665
          %v1808 = vunpack.c.h.b16 %v1665
          %v1809 = vunpack.c.l.b16 %v1666
          %v1810 = vunpack.c.h.b16 %v1666
          %v1811 = vunpack.c.l.b16 %v1667
          %v1812 = vunpack.c.h.b16 %v1667
          %v1813 = vunpack.c.l.b16 %v1668
          %v1814 = vunpack.c.h.b16 %v1668
          %v1815 = vunpack.c.l.b16 %v1669
          %v1816 = vunpack.c.h.b16 %v1669
          %v1817 = vunpack.c.l.b16 %v1670
          %v1818 = vunpack.c.h.b16 %v1670
          %v1819 = vunpack.c.l.b16 %v1671
          %v1820 = vunpack.c.h.b16 %v1671
          %v1821 = vunpack.c.l.b16 %v1672
          %v1822 = vunpack.c.h.b16 %v1672
          %v1823 = vunpack.c.l.b16 %v1673
          %v1824 = vunpack.c.h.b16 %v1673
          %v1825 = vunpack.c.l.b16 %v1674
          %v1826 = vunpack.c.h.b16 %v1674
          %v1827 = vunpack.c.l.b16 %v1675
          %v1828 = vunpack.c.h.b16 %v1675
          %v1829 = vunpack.c.l.b16 %v1676
          %v1830 = vunpack.c.h.b16 %v1676
          %v1831 = vunpack.c.l.b16 %v1677
          %v1832 = vunpack.c.h.b16 %v1677
          %v1833 = vunpack.c.l.b16 %v1678
          %v1834 = vunpack.c.h.b16 %v1678
          %v1835 = vunpack.c.l.b16 %v1679
          %v1836 = vunpack.c.h.b16 %v1679
          %v1837 = vunpack.c.l.b16 %v1680
          %v1838 = vunpack.c.h.b16 %v1680
          %v1839 = vunpack.c.l.b16 %v1681
          %v1840 = vunpack.c.h.b16 %v1681
          %v1841 = vunpack.c.l.b16 %v1682
          %v1842 = vunpack.c.h.b16 %v1682
          %v1843 = vunpack.c.l.b16 %v1683
          %v1844 = vunpack.c.h.b16 %v1683
          %v1845 = vunpack.c.l.b16 %v1684
          %v1846 = vunpack.c.h.b16 %v1684
          %v1847 = vunpack.c.l.b16 %v1685
          %v1848 = vunpack.c.h.b16 %v1685
          %v1849 = vunpack.c.l.b16 %v1686
          %v1850 = vunpack.c.h.b16 %v1686
          %v1851 = vunpack.c.l.b16 %v1687
          %v1852 = vunpack.c.h.b16 %v1687
          %v1853 = vunpack.c.l.b16 %v1688
          %v1854 = vunpack.c.h.b16 %v1688
          %v1855 = vunpack.c.l.b16 %v1689
          %v1856 = vunpack.c.h.b16 %v1689
          %v1857 = vunpack.c.l.b16 %v1690
          %v1858 = vunpack.c.h.b16 %v1690
          %v1859 = vunpack.c.l.b16 %v1691
          %v1860 = vunpack.c.h.b16 %v1691
          %v1861 = vunpack.c.l.b16 %v1692
          %v1862 = vunpack.c.h.b16 %v1692
          %v1863 = vunpack.c.l.b16 %v1693
          %v1864 = vunpack.c.h.b16 %v1693
          %v1865 = vunpack.c.l.b16 %v1694
          %v1866 = vunpack.c.h.b16 %v1694
          %v1867 = vunpack.c.l.b16 %v1695
          %v1868 = vunpack.c.h.b16 %v1695
          %v1869 = vunpack.c.l.b16 %v1696
          %v1870 = vunpack.c.h.b16 %v1696
          %v1871 = vunpack.c.l.b16 %v1697
          %v1872 = vunpack.c.h.b16 %v1697
          %v1873 = vunpack.c.l.b16 %v1698
          %v1874 = vunpack.c.h.b16 %v1698
          %v1875 = vunpack.c.l.b16 %v1699
          %v1876 = vunpack.c.h.b16 %v1699
          %v1877 = vunpack.c.l.b16 %v1700
          %v1878 = vunpack.c.h.b16 %v1700
          %v1879 = vunpack.c.l.b16 %v1701
          %v1880 = vunpack.c.h.b16 %v1701
          %v1881 = vunpack.c.l.b16 %v1702
          %v1882 = vunpack.c.h.b16 %v1702
          %v1883 = vunpack.c.l.b16 %v1703
          %v1884 = vunpack.c.h.b16 %v1703
          %v1885 = vunpack.c.l.b16 %v1704
          %v1886 = vunpack.c.h.b16 %v1704
          %v1887 = vunpack.c.l.b16 %v1705
          %v1888 = vunpack.c.h.b16 %v1705
          %v1889 = vunpack.c.l.b16 %v1706
          %v1890 = vunpack.c.h.b16 %v1706
          %v1891 = vunpack.c.l.b16 %v1707
          %v1892 = vunpack.c.h.b16 %v1707
          %v1893 = vunpack.c.l.b16 %v1708
          %v1894 = vunpack.c.h.b16 %v1708
          %v1895 = vunpack.c.l.b16 %v1709
          %v1896 = vunpack.c.h.b16 %v1709
          %v1897 = vunpack.c.l.b16 %v1710
          %v1898 = vunpack.c.h.b16 %v1710
          %v1899 = vunpack.c.l.b16 %v1711
          %v1900 = vunpack.c.h.b16 %v1711
          %v1901 = vunpack.c.l.b16 %v1712
          %v1902 = vunpack.c.h.b16 %v1712
          %v1903 = vunpack.c.l.b16 %v1713
          %v1904 = vunpack.c.h.b16 %v1713
          %v1905 = vunpack.c.l.b16 %v1714
          %v1906 = vunpack.c.h.b16 %v1714
          %v1907 = vunpack.c.l.b16 %v1715
          %v1908 = vunpack.c.h.b16 %v1715
          %v1909 = vunpack.c.l.b16 %v1716
          %v1910 = vunpack.c.h.b16 %v1716
          %v1911 = vunpack.c.l.b16 %v1717
          %v1912 = vunpack.c.h.b16 %v1717
          %v1913 = vunpack.c.l.b16 %v1718
          %v1914 = vunpack.c.h.b16 %v1718
          %v1915 = vunpack.c.l.b16 %v1719
          %v1916 = vunpack.c.h.b16 %v1719
          %v1917 = vunpack.c.l.b16 %v1720
          %v1918 = vunpack.c.h.b16 %v1720
          %v1919 = vpack.c.b16 %v1793, %v1791
          %v1920 = vpack.c.b16 %v1794, %v1792
          %v1921 = vpack.c.b16 %v1797, %v1795
          %v1922 = vpack.c.b16 %v1798, %v1796
          %v1923 = vpack.c.b16 %v1801, %v1799
          %v1924 = vpack.c.b16 %v1802, %v1800
          %v1925 = vpack.c.b16 %v1805, %v1803
          %v1926 = vpack.c.b16 %v1806, %v1804
          %v1927 = vpack.c.b16 %v1809, %v1807
          %v1928 = vpack.c.b16 %v1810, %v1808
          %v1929 = vpack.c.b16 %v1813, %v1811
          %v1930 = vpack.c.b16 %v1814, %v1812
          %v1931 = vpack.c.b16 %v1817, %v1815
          %v1932 = vpack.c.b16 %v1818, %v1816
          %v1933 = vpack.c.b16 %v1821, %v1819
          %v1934 = vpack.c.b16 %v1822, %v1820
          %v1935 = vpack.c.b16 %v1825, %v1823
          %v1936 = vpack.c.b16 %v1826, %v1824
          %v1937 = vpack.c.b16 %v1829, %v1827
          %v1938 = vpack.c.b16 %v1830, %v1828
          %v1939 = vpack.c.b16 %v1833, %v1831
          %v1940 = vpack.c.b16 %v1834, %v1832
          %v1941 = vpack.c.b16 %v1837, %v1835
          %v1942 = vpack.c.b16 %v1838, %v1836
          %v1943 = vpack.c.b16 %v1841, %v1839
          %v1944 = vpack.c.b16 %v1842, %v1840
          %v1945 = vpack.c.b16 %v1845, %v1843
          %v1946 = vpack.c.b16 %v1846, %v1844
          %v1947 = vpack.c.b16 %v1849, %v1847
          %v1948 = vpack.c.b16 %v1850, %v1848
          %v1949 = vpack.c.b16 %v1853, %v1851
          %v1950 = vpack.c.b16 %v1854, %v1852
          %v1951 = vpack.c.b16 %v1857, %v1855
          %v1952 = vpack.c.b16 %v1858, %v1856
          %v1953 = vpack.c.b16 %v1861, %v1859
          %v1954 = vpack.c.b16 %v1862, %v1860
          %v1955 = vpack.c.b16 %v1865, %v1863
          %v1956 = vpack.c.b16 %v1866, %v1864
          %v1957 = vpack.c.b16 %v1869, %v1867
          %v1958 = vpack.c.b16 %v1870, %v1868
          %v1959 = vpack.c.b16 %v1873, %v1871
          %v1960 = vpack.c.b16 %v1874, %v1872
          %v1961 = vpack.c.b16 %v1877, %v1875
          %v1962 = vpack.c.b16 %v1878, %v1876
          %v1963 = vpack.c.b16 %v1881, %v1879
          %v1964 = vpack.c.b16 %v1882, %v1880
          %v1965 = vpack.c.b16 %v1885, %v1883
          %v1966 = vpack.c.b16 %v1886, %v1884
          %v1967 = vpack.c.b16 %v1889, %v1887
          %v1968 = vpack.c.b16 %v1890, %v1888
          %v1969 = vpack.c.b16 %v1893, %v1891
          %v1970 = vpack.c.b16 %v1894, %v1892
          %v1971 = vpack.c.b16 %v1897, %v1895
          %v1972 = vpack.c.b16 %v1898, %v1896
          %v1973 = vpack.c.b16 %v1901, %v1899
          %v1974 = vpack.c.b16 %v1902, %v1900
          %v1975 = vpack.c.b16 %v1905, %v1903
          %v1976 = vpack.c.b16 %v1906, %v1904
          %v1977 = vpack.c.b16 %v1909, %v1907
          %v1978 = vpack.c.b16 %v1910, %v1908
          %v1979 = vpack.c.b16 %v1913, %v1911
          %v1980 = vpack.c.b16 %v1914, %v1912
          %v1981 = vpack.c.b16 %v1917, %v1915
          %v1982 = vpack.c.b16 %v1918, %v1916
          %2047 = vmatpush.bf16.msra.mxu0 %v1933
          %2048 = vmatpush.bf16.msra.mxu0 %v1931
          %2049 = vmatpush.bf16.msra.mxu0 %v1929
          %2050 = vmatpush.bf16.msra.mxu0 %v1927
          %2051 = vmatpush.bf16.msra.mxu0 %v1925
          %2052 = vmatpush.bf16.msra.mxu0 %v1923
          %2053 = vmatpush.bf16.msra.mxu0 %v1921
          %2054 = vmatpush.bf16.msra.mxu0 %v1919
          %2055 = vmatmul.bf16.gmra.mxu0 %v1653
          %v2056 = vpop.f32.mrf.mxu0
          %v2057 = vadd.f32 %v1723, %v2056
          %v2058 = vpop.f32.mrf.mxu0
          %2059 = vdwg.mxu0
          %2060 = vmatpush.bf16.msra.mxu0 %v1949
          %2061 = vmatpush.bf16.msra.mxu0 %v1947
          %2062 = vmatpush.bf16.msra.mxu0 %v1945
          %2063 = vmatpush.bf16.msra.mxu0 %v1943
          %2064 = vmatpush.bf16.msra.mxu0 %v1941
          %2065 = vmatpush.bf16.msra.mxu0 %v1939
          %2066 = vmatpush.bf16.msra.mxu0 %v1937
          %2067 = vmatpush.bf16.msra.mxu0 %v1935
          %2068 = vmatmul.bf16.gmra.mxu0 %v1654
          %v2069 = vpop.f32.mrf.mxu0
          %v2070 = vadd.f32 %v2057, %v2069
          %v2071 = vpop.f32.mrf.mxu0
          %2072 = vdwg.mxu0
          %2073 = vmatpush.bf16.msra.mxu0 %v1965
          %2074 = vmatpush.bf16.msra.mxu0 %v1963
          %2075 = vmatpush.bf16.msra.mxu0 %v1961
          %2076 = vmatpush.bf16.msra.mxu0 %v1959
          %2077 = vmatpush.bf16.msra.mxu0 %v1957
          %2078 = vmatpush.bf16.msra.mxu0 %v1955
          %2079 = vmatpush.bf16.msra.mxu0 %v1953
          %2080 = vmatpush.bf16.msra.mxu0 %v1951
          %2081 = vmatmul.bf16.gmra.mxu0 %v1655
          %v2082 = vpop.f32.mrf.mxu0
          %v2083 = vadd.f32 %v2070, %v2082
          %v2084 = vpop.f32.mrf.mxu0
          %2085 = vdwg.mxu0
          %2086 = vmatpush.bf16.msra.mxu0 %v1981
          %2087 = vmatpush.bf16.msra.mxu0 %v1979
          %2088 = vmatpush.bf16.msra.mxu0 %v1977
          %2089 = vmatpush.bf16.msra.mxu0 %v1975
          %2090 = vmatpush.bf16.msra.mxu0 %v1973
          %2091 = vmatpush.bf16.msra.mxu0 %v1971
          %2092 = vmatpush.bf16.msra.mxu0 %v1969
          %2093 = vmatpush.bf16.msra.mxu0 %v1967
          %2094 = vmatmul.bf16.gmra.mxu0 %v1656
          %v2095 = vpop.f32.mrf.mxu0
          %v2096 = vadd.f32 %v2083, %v2095
          %v2097 = vpop.f32.mrf.mxu0
          %2098 = vdwg.mxu0
          %2099 = vmatpush.bf16.msra.mxu0 %v1934
          %2100 = vmatpush.bf16.msra.mxu0 %v1932
          %2101 = vmatpush.bf16.msra.mxu0 %v1930
          %2102 = vmatpush.bf16.msra.mxu0 %v1928
          %2103 = vmatpush.bf16.msra.mxu0 %v1926
          %2104 = vmatpush.bf16.msra.mxu0 %v1924
          %2105 = vmatpush.bf16.msra.mxu0 %v1922
          %2106 = vmatpush.bf16.msra.mxu0 %v1920
          %2107 = vmatmul.bf16.gmra.mxu0 %v1653
          %v2108 = vpop.f32.mrf.mxu0
          %v2109 = vadd.f32 %v1724, %v2108
          %v2110 = vpop.f32.mrf.mxu0
          %2111 = vdwg.mxu0
          %2112 = vmatpush.bf16.msra.mxu0 %v1950
          %2113 = vmatpush.bf16.msra.mxu0 %v1948
          %2114 = vmatpush.bf16.msra.mxu0 %v1946
          %2115 = vmatpush.bf16.msra.mxu0 %v1944
          %2116 = vmatpush.bf16.msra.mxu0 %v1942
          %2117 = vmatpush.bf16.msra.mxu0 %v1940
          %2118 = vmatpush.bf16.msra.mxu0 %v1938
          %2119 = vmatpush.bf16.msra.mxu0 %v1936
          %2120 = vmatmul.bf16.gmra.mxu0 %v1654
          %v2121 = vpop.f32.mrf.mxu0
          %v2122 = vadd.f32 %v2109, %v2121
          %v2123 = vpop.f32.mrf.mxu0
          %2124 = vdwg.mxu0
          %2125 = vmatpush.bf16.msra.mxu0 %v1966
          %2126 = vmatpush.bf16.msra.mxu0 %v1964
          %2127 = vmatpush.bf16.msra.mxu0 %v1962
          %2128 = vmatpush.bf16.msra.mxu0 %v1960
          %2129 = vmatpush.bf16.msra.mxu0 %v1958
          %2130 = vmatpush.bf16.msra.mxu0 %v1956
          %2131 = vmatpush.bf16.msra.mxu0 %v1954
          %2132 = vmatpush.bf16.msra.mxu0 %v1952
          %2133 = vmatmul.bf16.gmra.mxu0 %v1655
          %v2134 = vpop.f32.mrf.mxu0
          %v2135 = vadd.f32 %v2122, %v2134
          %v2136 = vpop.f32.mrf.mxu0
          %2137 = vdwg.mxu0
          %2138 = vmatpush.bf16.msra.mxu0 %v1982
          %2139 = vmatpush.bf16.msra.mxu0 %v1980
          %2140 = vmatpush.bf16.msra.mxu0 %v1978
          %2141 = vmatpush.bf16.msra.mxu0 %v1976
          %2142 = vmatpush.bf16.msra.mxu0 %v1974
          %2143 = vmatpush.bf16.msra.mxu0 %v1972
          %2144 = vmatpush.bf16.msra.mxu0 %v1970
          %2145 = vmatpush.bf16.msra.mxu0 %v1968
          %2146 = vmatmul.bf16.gmra.mxu0 %v1656
          %v2147 = vpop.f32.mrf.mxu0
          %v2148 = vadd.f32 %v2135, %v2147
          %v2149 = vpop.f32.mrf.mxu0
          %2150 = vdwg.mxu0
          %v2151 = vmax.f32 %v2096, 0.0
          %v2152 = vmax.f32 %v2148, 0.0
          %v2153 = vpack.c.bf16 %v2151, %v2151
          %v2154 = vpack.c.bf16 %v2152, %v2152
          %v2155 = vld [vmem:[%s5] sm:$0xf]
          %v2156 = vld [vmem:[%s5 + $0x4] sm:$0xf]
          %v2157 = vld [vmem:[%s5 + $0x8] sm:$0xf]
          %v2158 = vld [vmem:[%s5 + $0xc] sm:$0xf]
          %v2159 = vld [vmem:[%s5 + $0x10] sm:$0xf]
          %v2160 = vld [vmem:[%s5 + $0x14] sm:$0xf]
          %v2161 = vld [vmem:[%s5 + $0x18] sm:$0xf]
          %v2162 = vld [vmem:[%s5 + $0x1c] sm:$0xf]
          %v2163 = vld [vmem:[%s5 + $0x20] sm:$0xf]
          %v2164 = vld [vmem:[%s5 + $0x24] sm:$0xf]
          %v2165 = vld [vmem:[%s5 + $0x28] sm:$0xf]
          %v2166 = vld [vmem:[%s5 + $0x2c] sm:$0xf]
          %v2167 = vld [vmem:[%s5 + $0x30] sm:$0xf]
          %v2168 = vld [vmem:[%s5 + $0x34] sm:$0xf]
          %v2169 = vld [vmem:[%s5 + $0x38] sm:$0xf]
          %v2170 = vld [vmem:[%s5 + $0x3c] sm:$0xf]
          %v2171 = vld [vmem:[%s5 + $0x40] sm:$0xf]
          %v2172 = vld [vmem:[%s5 + $0x44] sm:$0xf]
          %v2173 = vld [vmem:[%s5 + $0x48] sm:$0xf]
          %v2174 = vld [vmem:[%s5 + $0x4c] sm:$0xf]
          %v2175 = vld [vmem:[%s5 + $0x50] sm:$0xf]
          %v2176 = vld [vmem:[%s5 + $0x54] sm:$0xf]
          %v2177 = vld [vmem:[%s5 + $0x58] sm:$0xf]
          %v2178 = vld [vmem:[%s5 + $0x5c] sm:$0xf]
          %v2179 = vld [vmem:[%s5 + $0x60] sm:$0xf]
          %v2180 = vld [vmem:[%s5 + $0x64] sm:$0xf]
          %v2181 = vld [vmem:[%s5 + $0x68] sm:$0xf]
          %v2182 = vld [vmem:[%s5 + $0x6c] sm:$0xf]
          %v2183 = vld [vmem:[%s5 + $0x70] sm:$0xf]
          %v2184 = vld [vmem:[%s5 + $0x74] sm:$0xf]
          %v2185 = vld [vmem:[%s5 + $0x78] sm:$0xf]
          %v2186 = vld [vmem:[%s5 + $0x7c] sm:$0xf]
          %v2187 = vld [vmem:[#allocation11] sm:$0x1]
          %v2189 = vperm.slane %v2187, 0
          %v2223 = vunpack.c.l.b16 %v2155
          %v2224 = vunpack.c.l.b16 %v2156
          %v2225 = vunpack.c.l.b16 %v2157
          %v2226 = vunpack.c.l.b16 %v2158
          %v2227 = vunpack.c.l.b16 %v2159
          %v2228 = vunpack.c.l.b16 %v2160
          %v2229 = vunpack.c.l.b16 %v2161
          %v2230 = vunpack.c.l.b16 %v2162
          %v2231 = vunpack.c.l.b16 %v2163
          %v2232 = vunpack.c.l.b16 %v2164
          %v2233 = vunpack.c.l.b16 %v2165
          %v2234 = vunpack.c.l.b16 %v2166
          %v2235 = vunpack.c.l.b16 %v2167
          %v2236 = vunpack.c.l.b16 %v2168
          %v2237 = vunpack.c.l.b16 %v2169
          %v2238 = vunpack.c.l.b16 %v2170
          %v2239 = vunpack.c.l.b16 %v2171
          %v2240 = vunpack.c.l.b16 %v2172
          %v2241 = vunpack.c.l.b16 %v2173
          %v2242 = vunpack.c.l.b16 %v2174
          %v2243 = vunpack.c.l.b16 %v2175
          %v2244 = vunpack.c.l.b16 %v2176
          %v2245 = vunpack.c.l.b16 %v2177
          %v2246 = vunpack.c.l.b16 %v2178
          %v2247 = vunpack.c.l.b16 %v2179
          %v2248 = vunpack.c.l.b16 %v2180
          %v2249 = vunpack.c.l.b16 %v2181
          %v2250 = vunpack.c.l.b16 %v2182
          %v2251 = vunpack.c.l.b16 %v2183
          %v2252 = vunpack.c.l.b16 %v2184
          %v2253 = vunpack.c.l.b16 %v2185
          %v2254 = vunpack.c.l.b16 %v2186
          %v2255 = vpack.c.b16 %v2224, %v2223
          %v2256 = vpack.c.b16 %v2226, %v2225
          %v2257 = vpack.c.b16 %v2228, %v2227
          %v2258 = vpack.c.b16 %v2230, %v2229
          %v2259 = vpack.c.b16 %v2232, %v2231
          %v2260 = vpack.c.b16 %v2234, %v2233
          %v2261 = vpack.c.b16 %v2236, %v2235
          %v2262 = vpack.c.b16 %v2238, %v2237
          %v2263 = vpack.c.b16 %v2240, %v2239
          %v2264 = vpack.c.b16 %v2242, %v2241
          %v2265 = vpack.c.b16 %v2244, %v2243
          %v2266 = vpack.c.b16 %v2246, %v2245
          %v2267 = vpack.c.b16 %v2248, %v2247
          %v2268 = vpack.c.b16 %v2250, %v2249
          %v2269 = vpack.c.b16 %v2252, %v2251
          %v2270 = vpack.c.b16 %v2254, %v2253
          %2287 = vmatpush.bf16.msra.mxu0 %v2262
          %2288 = vmatpush.bf16.msra.mxu0 %v2261
          %2289 = vmatpush.bf16.msra.mxu0 %v2260
          %2290 = vmatpush.bf16.msra.mxu0 %v2259
          %2291 = vmatpush.bf16.msra.mxu0 %v2258
          %2292 = vmatpush.bf16.msra.mxu0 %v2257
          %2293 = vmatpush.bf16.msra.mxu0 %v2256
          %2294 = vmatpush.bf16.msra.mxu0 %v2255
          %2295 = vmatmul.bf16.gmra.mxu0 %v2153
          %v2296 = vpop.f32.mrf.mxu0
          %v2297 = vadd.f32 %v2189, %v2296
          %v2298 = vpop.f32.mrf.mxu0
          %2299 = vdwg.mxu0
          %2300 = vmatpush.bf16.msra.mxu0 %v2270
          %2301 = vmatpush.bf16.msra.mxu0 %v2269
          %2302 = vmatpush.bf16.msra.mxu0 %v2268
          %2303 = vmatpush.bf16.msra.mxu0 %v2267
          %2304 = vmatpush.bf16.msra.mxu0 %v2266
          %2305 = vmatpush.bf16.msra.mxu0 %v2265
          %2306 = vmatpush.bf16.msra.mxu0 %v2264
          %2307 = vmatpush.bf16.msra.mxu0 %v2263
          %2308 = vmatmul.bf16.gmra.mxu0 %v2154
          %v2309 = vpop.f32.mrf.mxu0
          %v2310 = vadd.f32 %v2297, %v2309
          %v2311 = vpop.f32.mrf.mxu0
          %2312 = vdwg.mxu0
          %vm2313 = vcmask 74752
          %v2314 = vsel %vm2313, %v2310, -inf
          %2315 = vmax.xlane.f32.xlu0 %v2314
          %v2316 = vpop.xlane.xlu0 %2315
          %v2317 = vsub.f32 %v2310, %v2316
          %v2318 = vmul.f32 %v2317, 1.442695
          %v2319 = vpow.pop %v2318
          %v2320 = vsel %vm2313, %v2319, 0.0
          %2321 = vadd.xlane.f32.xlu0 %v2320
          %v2322 = vpop.xlane.xlu0 %2321
          %v2323 = vlog2.pop %v2322
          %v2324 = vmul.f32 %v2323, 0.6931472
          %v2325 = vsub.f32 %v2317, %v2324
          %2326 = vst.msk [vmem:[#allocation12] sm:$0x3] %vm2313, %v2325
        $region76: #{net_forward.3} parent=47 // pred_fallthru
          _
        // Predicated region
        $region77: #{net_forward.3} parent=47 // pred_check
          %p2327 = pneg %p194
        $region78: #{net_forward.3} parent=47 // pred_check_branch
          %2329 = sbr.rel (%p2327) target = $region80
        $region79: #{net_forward.3} parent=47 // pred_region
          %2331 = vsyncadd [#allocation5], 0
          %s2333 = sshll.u32 [#allocation12], 4
          %s2334 = int_to_ptr.vmem [resolvable:$true] %s2333
          %s2335 = sshll.u32 %s7, 4
          %s2336 = int_to_ptr.hbm [resolvable:$true] %s2335
          %2338 = dma.vmem_to_hbm [thread:$0]  %s2334, 32, %s2336, [#allocation5]
        $region80: #{net_forward.3} parent=47 // pred_fallthru
          _
        // Predicated region
        $region81: #{net_forward.3} parent=47 // pred_check
          %p2339 = pneg %p194
        $region82: #{net_forward.3} parent=47 // pred_check_branch
          %2341 = sbr.rel (%p2339) target = $region84
        $region83: #{net_forward.3} parent=47 // pred_region
          %2343 = dma.done [#allocation5], 32
        $region84: #{net_forward.3} parent=47 // pred_fallthru
          _
      $region48: #{net_forward.3} parent=5 // pred_fallthru
        _
      %p2344 = scmp.le.s32.totalorder 2, %s19
      // Predicated region
      $region85: #{net_forward.3} parent=5 // pred_check
        %p2345 = pneg %p2344
      $region86: #{net_forward.3} parent=5 // pred_check_branch
        %2347 = sbr.rel (%p2345) target = $region88
      $region87: #{net_forward.3} parent=5 // pred_region
        %s2348 = ssub.s32 %s19, 2
      $region88: #{net_forward.3} parent=5 // pred_fallthru
        _
    $region6: #{net_forward.3} parent=1 // loop_footer
      %s23 = sadd.s32 1, %s19
    $region7: #{net_forward.3} parent=1 // loop_footer_branch
      %18 = sbr.rel target = $region3
    $region8: #{net_forward.3} parent=1 // loop_exit
      _
    %2349 = vsyncpa [#allocation4], 1
    %s2350 = scalar_lea.sflag [#allocation4], 1
    %2351 = vsyncpa %s2350, 1
    %2352 = vsyncpa [#allocation7], 1
    %2353 = vsyncpa [#allocation10], 1
    %2354 = vsyncpa [#allocation5], 1
    %s2355 = scalar_lea.sflag [#allocation5], 1
    %2356 = vsyncpa %s2355, 1

// kernel: net_forward.2
$region0: #{net_forward.2}
  #allocation0 [shape = 'u32[]', space=smem, size = 0x4, offset = 0x4, fixed_abs, tag = 'smem constant byte address 0x4 - core index']
  #allocation1 [shape = 'u32[72,128]{1,0:T(1,128)}', space=vmem, size = 0x9000, scoped, tag = 'internal scratch']
  #allocation2 [shape = 'bf16[58,28]{1,0:T(8,128)(2,1)}', space=vmem, size = 0x4000, scoped, tag = 'scratch operand']
  #allocation3 [shape = 'bf16[30,224]{1,0:T(8,128)(2,1)}', space=vmem, size = 0x4000, scoped, tag = 'scratch operand']
  %s0 = inlined_call_operand.vmem [shape: f32[2,56,28], index: 0, kind: input, shape index: {}]
  %s1 = inlined_call_operand.hbm [shape: bf16[3,28,448], index: 1, kind: input, shape index: {}]
  %s2 = inlined_call_operand.hbm [shape: f32[1,448], index: 2, kind: input, shape index: {}]
  %s3 = inlined_call_operand.hbm [shape: bf16[28,56], index: 3, kind: input, shape index: {}]
  %s4 = inlined_call_operand.hbm [shape: bf16[28,56], index: 4, kind: input, shape index: {}]
  %s5 = inlined_call_operand.hbm [shape: bf16[448,224], index: 5, kind: input, shape index: {}]
  %s6 = inlined_call_operand.hbm [shape: bf16[3,224,448], index: 6, kind: input, shape index: {}]
  %s7 = inlined_call_operand.hbm [shape: f32[1,448], index: 7, kind: input, shape index: {}]
  %s8 = inlined_call_operand.hbm [shape: bf16[14,28], index: 8, kind: input, shape index: {}]
  %s9 = inlined_call_operand.hbm [shape: bf16[14,28], index: 9, kind: input, shape index: {}]
  %s10 = inlined_call_operand.hbm [shape: bf16[448,224], index: 10, kind: input, shape index: {}]
  %s11 = inlined_call_operand.vmem [shape: bf16[2,14,224], index: 11, kind: output, shape index: {}]
  %s12 = sld [smem:[#allocation0]]
  $region117: #{net_forward.2} parent=0
    _
  %s14 = ssub.s32 1, %s12
  %s15 = scalar_select 0, %s14, %s12
  $region1: #{net_forward.2} parent=0
    #allocation4 [shape = 'u8[98304]{0}', space=vmem, size = 0x18000, scoped, tag = 'input window, operand 1, single buffered']
    #allocation5 [shape = 's32[2]{0}', space=sflag, size = 0x8, scoped, tag = 'scoped memory for net_forward.2']
    #allocation6 [shape = 'u8[2048]{0}', space=vmem, size = 0x800, scoped, tag = 'input window, operand 2, single buffered']
    #allocation7 [shape = 's32[1]{0}', space=sflag, size = 0x4, scoped, tag = 'scoped memory for net_forward.2']
    #allocation8 [shape = 'u8[8192]{0}', space=vmem, size = 0x2000, scoped, tag = 'input window, operand 3, single buffered']
    #allocation9 [shape = 'u8[8192]{0}', space=vmem, size = 0x2000, scoped, tag = 'input window, operand 4, single buffered']
    #allocation10 [shape = 's32[1]{0}', space=sflag, size = 0x4, scoped, tag = 'scoped memory for net_forward.2']
    #allocation11 [shape = 'u8[229376]{0}', space=vmem, size = 0x38000, scoped, tag = 'input window, operand 5, single buffered']
    #allocation12 [shape = 'u8[688128]{0}', space=vmem, size = 0xa8000, scoped, tag = 'input window, operand 6, single buffered']
    #allocation13 [shape = 's32[1]{0}', space=sflag, size = 0x4, scoped, tag = 'scoped memory for net_forward.2']
    #allocation14 [shape = 'u8[2048]{0}', space=vmem, size = 0x800, scoped, tag = 'input window, operand 7, single buffered']
    #allocation15 [shape = 'u8[4096]{0}', space=vmem, size = 0x1000, scoped, tag = 'input window, operand 8, single buffered']
    #allocation16 [shape = 's32[1]{0}', space=sflag, size = 0x4, scoped, tag = 'scoped memory for net_forward.2']
    #allocation17 [shape = 'u8[4096]{0}', space=vmem, size = 0x1000, scoped, tag = 'input window, operand 9, single buffered']
    #allocation18 [shape = 'u8[229376]{0}', space=vmem, size = 0x38000, scoped, tag = 'input window, operand 10, single buffered']
    #allocation19 [shape = 's32[1]{0}', space=sflag, size = 0x4, scoped, tag = 'scoped memory for net_forward.2']
    %16 = vsyncpa [#allocation5], 0
    %17 = vsyncpa [#allocation7], 0
    %18 = vsyncpa [#allocation10], 0
    %19 = vsyncpa [#allocation13], 0
    %20 = vsyncpa [#allocation16], 0
    %21 = vsyncpa [#allocation19], 0
    loop: start=0, step=1, limit=4
    $region2: #{net_forward.2} parent=1 // loop_pre_header
      _
    $region3: #{net_forward.2} parent=1 // loop_header
      %s23 = sphi 0, %s27
      %p24 = scmp.ge.s32.totalorder %s23, 4
      %s33 = sphi 0, %s35
      %s36 = sphi 0, %s33
      %s37 = sphi 0, %s36
      %s53 = sphi 0, %s37
      %s57 = sphi 0, %s57
      %s59 = sphi 0, %s57
      %s60 = sphi 0, %s59
      %s74 = sphi 0, %s60
      %s78 = sphi 0, %s78
      %s80 = sphi 0, %s78
      %s81 = sphi 0, %s80
      %s95 = sphi 0, %s81
      %s99 = sphi 0, %s99
      %s101 = sphi 0, %s99
      %s102 = sphi 0, %s101
      %s116 = sphi 0, %s102
      %s120 = sphi 0, %s120
      %s122 = sphi 0, %s120
      %s123 = sphi 0, %s122
      %s137 = sphi 0, %s123
      %s141 = sphi 0, %s141
      %s143 = sphi 0, %s141
      %s144 = sphi 0, %s143
      %s158 = sphi 0, %s144
      %s162 = sphi 0, %s162
      %s164 = sphi 0, %s162
      %s165 = sphi 0, %s164
      %s179 = sphi 0, %s165
      %s183 = sphi 0, %s183
      %s185 = sphi 0, %s183
      %s186 = sphi 0, %s185
      %s200 = sphi 0, %s186
      %s204 = sphi 0, %s204
      %s206 = sphi 0, %s204
      %s207 = sphi 0, %s206
      %s221 = sphi 0, %s207
      %s225 = sphi 0, %s225
      %s227 = sphi 0, %s225
      %s228 = sphi 0, %s227
      %s242 = sphi 0, %s228
      %s246 = sphi 0, %s246
      %s248 = sphi 0, %s246
      %s249 = sphi 0, %s248
      %s263 = sphi 0, %s249
      %s269 = sphi 0, %s271
      %s272 = sphi 0, %s269
      %s273 = sphi 0, %s272
      %s289 = sphi 0, %s273
    $region4: #{net_forward.2} parent=1 // loop_header_branch
      %26 = sbr.rel (%p24) target = $region8
    $region5: #{net_forward.2} parent=1 // loop_body
      %s28 = ssub.s32 %s23, 1
      %s29 = ssub.s32 %s23, 2
      %s30 = sadd.s32 %s23, 1
      %s31 = ssub.s32 %s23, %s30
      %p32 = scmp.eq.s32.totalorder %s31, 0
      %s34 = sadd.s32 %s33, 1
      %s35 = scalar_select %p32, %s33, %s34
      %p38 = pneg %p32
      %p39 = scmp.eq.s32.totalorder %s23, 1
      %p40 = por %p38, %p39
      %p41 = scmp.ne.s32.totalorder %s33, %s36
      %p42 = scmp.eq.s32.totalorder %s23, 0
      %p43 = por %p41, %p42
      %p44 = scmp.ne.s32.totalorder %s33, %s36
      %p45 = scmp.eq.s32.totalorder %s28, 1
      %p46 = por %p44, %p45
      %p47 = scmp.ne.s32.totalorder %s36, %s37
      %p48 = scmp.eq.s32.totalorder %s28, 0
      %p49 = por %p47, %p48
      %p50 = scmp.ne.s32.totalorder %s36, %s37
      %p51 = scmp.eq.s32.totalorder %s29, 1
      %p52 = por %p50, %p51
      %p54 = scmp.ne.s32.totalorder %s37, %s53
      %p55 = scmp.eq.s32.totalorder %s29, 0
      %p56 = por %p54, %p55
      %s58 = sadd.s32 %s57, 1
      %p61 = scmp.eq.s32.totalorder %s23, 1
      %p62 = scmp.ne.s32.totalorder %s57, %s59
      %p63 = scmp.eq.s32.totalorder %s23, 0
      %p64 = por %p62, %p63
      %p65 = scmp.ne.s32.totalorder %s57, %s59
      %p66 = scmp.eq.s32.totalorder %s28, 1
      %p67 = por %p65, %p66
      %p68 = scmp.ne.s32.totalorder %s59, %s60
      %p69 = scmp.eq.s32.totalorder %s28, 0
      %p70 = por %p68, %p69
      %p71 = scmp.ne.s32.totalorder %s59, %s60
      %p72 = scmp.eq.s32.totalorder %s29, 1
      %p73 = por %p71, %p72
      %p75 = scmp.ne.s32.totalorder %s60, %s74
      %p76 = scmp.eq.s32.totalorder %s29, 0
      %p77 = por %p75, %p76
      %s79 = sadd.s32 %s78, 1
      %p82 = scmp.eq.s32.totalorder %s23, 1
      %p83 = scmp.ne.s32.totalorder %s78, %s80
      %p84 = scmp.eq.s32.totalorder %s23, 0
      %p85 = por %p83, %p84
      %p86 = scmp.ne.s32.totalorder %s78, %s80
      %p87 = scmp.eq.s32.totalorder %s28, 1
      %p88 = por %p86, %p87
      %p89 = scmp.ne.s32.totalorder %s80, %s81
      %p90 = scmp.eq.s32.totalorder %s28, 0
      %p91 = por %p89, %p90
      %p92 = scmp.ne.s32.totalorder %s80, %s81
      %p93 = scmp.eq.s32.totalorder %s29, 1
      %p94 = por %p92, %p93
      %p96 = scmp.ne.s32.totalorder %s81, %s95
      %p97 = scmp.eq.s32.totalorder %s29, 0
      %p98 = por %p96, %p97
      %s100 = sadd.s32 %s99, 1
      %p103 = scmp.eq.s32.totalorder %s23, 1
      %p104 = scmp.ne.s32.totalorder %s99, %s101
      %p105 = scmp.eq.s32.totalorder %s23, 0
      %p106 = por %p104, %p105
      %p107 = scmp.ne.s32.totalorder %s99, %s101
      %p108 = scmp.eq.s32.totalorder %s28, 1
      %p109 = por %p107, %p108
      %p110 = scmp.ne.s32.totalorder %s101, %s102
      %p111 = scmp.eq.s32.totalorder %s28, 0
      %p112 = por %p110, %p111
      %p113 = scmp.ne.s32.totalorder %s101, %s102
      %p114 = scmp.eq.s32.totalorder %s29, 1
      %p115 = por %p113, %p114
      %p117 = scmp.ne.s32.totalorder %s102, %s116
      %p118 = scmp.eq.s32.totalorder %s29, 0
      %p119 = por %p117, %p118
      %s121 = sadd.s32 %s120, 1
      %p124 = scmp.eq.s32.totalorder %s23, 1
      %p125 = scmp.ne.s32.totalorder %s120, %s122
      %p126 = scmp.eq.s32.totalorder %s23, 0
      %p127 = por %p125, %p126
      %p128 = scmp.ne.s32.totalorder %s120, %s122
      %p129 = scmp.eq.s32.totalorder %s28, 1
      %p130 = por %p128, %p129
      %p131 = scmp.ne.s32.totalorder %s122, %s123
      %p132 = scmp.eq.s32.totalorder %s28, 0
      %p133 = por %p131, %p132
      %p134 = scmp.ne.s32.totalorder %s122, %s123
      %p135 = scmp.eq.s32.totalorder %s29, 1
      %p136 = por %p134, %p135
      %p138 = scmp.ne.s32.totalorder %s123, %s137
      %p139 = scmp.eq.s32.totalorder %s29, 0
      %p140 = por %p138, %p139
      %s142 = sadd.s32 %s141, 1
      %p145 = scmp.eq.s32.totalorder %s23, 1
      %p146 = scmp.ne.s32.totalorder %s141, %s143
      %p147 = scmp.eq.s32.totalorder %s23, 0
      %p148 = por %p146, %p147
      %p149 = scmp.ne.s32.totalorder %s141, %s143
      %p150 = scmp.eq.s32.totalorder %s28, 1
      %p151 = por %p149, %p150
      %p152 = scmp.ne.s32.totalorder %s143, %s144
      %p153 = scmp.eq.s32.totalorder %s28, 0
      %p154 = por %p152, %p153
      %p155 = scmp.ne.s32.totalorder %s143, %s144
      %p156 = scmp.eq.s32.totalorder %s29, 1
      %p157 = por %p155, %p156
      %p159 = scmp.ne.s32.totalorder %s144, %s158
      %p160 = scmp.eq.s32.totalorder %s29, 0
      %p161 = por %p159, %p160
      %s163 = sadd.s32 %s162, 1
      %p166 = scmp.eq.s32.totalorder %s23, 1
      %p167 = scmp.ne.s32.totalorder %s162, %s164
      %p168 = scmp.eq.s32.totalorder %s23, 0
      %p169 = por %p167, %p168
      %p170 = scmp.ne.s32.totalorder %s162, %s164
      %p171 = scmp.eq.s32.totalorder %s28, 1
      %p172 = por %p170, %p171
      %p173 = scmp.ne.s32.totalorder %s164, %s165
      %p174 = scmp.eq.s32.totalorder %s28, 0
      %p175 = por %p173, %p174
      %p176 = scmp.ne.s32.totalorder %s164, %s165
      %p177 = scmp.eq.s32.totalorder %s29, 1
      %p178 = por %p176, %p177
      %p180 = scmp.ne.s32.totalorder %s165, %s179
      %p181 = scmp.eq.s32.totalorder %s29, 0
      %p182 = por %p180, %p181
      %s184 = sadd.s32 %s183, 1
      %p187 = scmp.eq.s32.totalorder %s23, 1
      %p188 = scmp.ne.s32.totalorder %s183, %s185
      %p189 = scmp.eq.s32.totalorder %s23, 0
      %p190 = por %p188, %p189
      %p191 = scmp.ne.s32.totalorder %s183, %s185
      %p192 = scmp.eq.s32.totalorder %s28, 1
      %p193 = por %p191, %p192
      %p194 = scmp.ne.s32.totalorder %s185, %s186
      %p195 = scmp.eq.s32.totalorder %s28, 0
      %p196 = por %p194, %p195
      %p197 = scmp.ne.s32.totalorder %s185, %s186
      %p198 = scmp.eq.s32.totalorder %s29, 1
      %p199 = por %p197, %p198
      %p201 = scmp.ne.s32.totalorder %s186, %s200
      %p202 = scmp.eq.s32.totalorder %s29, 0
      %p203 = por %p201, %p202
      %s205 = sadd.s32 %s204, 1
      %p208 = scmp.eq.s32.totalorder %s23, 1
      %p209 = scmp.ne.s32.totalorder %s204, %s206
      %p210 = scmp.eq.s32.totalorder %s23, 0
      %p211 = por %p209, %p210
      %p212 = scmp.ne.s32.totalorder %s204, %s206
      %p213 = scmp.eq.s32.totalorder %s28, 1
      %p214 = por %p212, %p213
      %p215 = scmp.ne.s32.totalorder %s206, %s207
      %p216 = scmp.eq.s32.totalorder %s28, 0
      %p217 = por %p215, %p216
      %p218 = scmp.ne.s32.totalorder %s206, %s207
      %p219 = scmp.eq.s32.totalorder %s29, 1
      %p220 = por %p218, %p219
      %p222 = scmp.ne.s32.totalorder %s207, %s221
      %p223 = scmp.eq.s32.totalorder %s29, 0
      %p224 = por %p222, %p223
      %s226 = sadd.s32 %s225, 1
      %p229 = scmp.eq.s32.totalorder %s23, 1
      %p230 = scmp.ne.s32.totalorder %s225, %s227
      %p231 = scmp.eq.s32.totalorder %s23, 0
      %p232 = por %p230, %p231
      %p233 = scmp.ne.s32.totalorder %s225, %s227
      %p234 = scmp.eq.s32.totalorder %s28, 1
      %p235 = por %p233, %p234
      %p236 = scmp.ne.s32.totalorder %s227, %s228
      %p237 = scmp.eq.s32.totalorder %s28, 0
      %p238 = por %p236, %p237
      %p239 = scmp.ne.s32.totalorder %s227, %s228
      %p240 = scmp.eq.s32.totalorder %s29, 1
      %p241 = por %p239, %p240
      %p243 = scmp.ne.s32.totalorder %s228, %s242
      %p244 = scmp.eq.s32.totalorder %s29, 0
      %p245 = por %p243, %p244
      %s247 = sadd.s32 %s246, 1
      %p250 = scmp.eq.s32.totalorder %s23, 1
      %p251 = scmp.ne.s32.totalorder %s246, %s248
      %p252 = scmp.eq.s32.totalorder %s23, 0
      %p253 = por %p251, %p252
      %p254 = scmp.ne.s32.totalorder %s246, %s248
      %p255 = scmp.eq.s32.totalorder %s28, 1
      %p256 = por %p254, %p255
      %p257 = scmp.ne.s32.totalorder %s248, %s249
      %p258 = scmp.eq.s32.totalorder %s28, 0
      %p259 = por %p257, %p258
      %p260 = scmp.ne.s32.totalorder %s248, %s249
      %p261 = scmp.eq.s32.totalorder %s29, 1
      %p262 = por %p260, %p261
      %p264 = scmp.ne.s32.totalorder %s249, %s263
      %p265 = scmp.eq.s32.totalorder %s29, 0
      %p266 = por %p264, %p265
      %s267 = ssub.s32 %s23, %s30
      %p268 = scmp.eq.s32.totalorder %s267, 0
      %s270 = sadd.s32 %s269, 1
      %s271 = scalar_select %p268, %s269, %s270
      %p274 = pneg %p268
      %p275 = scmp.eq.s32.totalorder %s23, 1
      %p276 = por %p274, %p275
      %p277 = scmp.ne.s32.totalorder %s269, %s272
      %p278 = scmp.eq.s32.totalorder %s23, 0
      %p279 = por %p277, %p278
      %p280 = scmp.ne.s32.totalorder %s269, %s272
      %p281 = scmp.eq.s32.totalorder %s28, 1
      %p282 = por %p280, %p281
      %p283 = scmp.ne.s32.totalorder %s272, %s273
      %p284 = scmp.eq.s32.totalorder %s28, 0
      %p285 = por %p283, %p284
      %p286 = scmp.ne.s32.totalorder %s272, %s273
      %p287 = scmp.eq.s32.totalorder %s29, 1
      %p288 = por %p286, %p287
      %p290 = scmp.ne.s32.totalorder %s273, %s289
      %p291 = scmp.eq.s32.totalorder %s29, 0
      %p292 = por %p290, %p291
      %p293 = scmp.le.s32.totalorder 1, %s23
      %p294 = scmp.lt.s32.totalorder %s23, 3
      %p295 = pnand %p293, %p294
      %p296 = pneg %p295
      // Predicated region
      $region9: #{net_forward.2} parent=5 // pred_check
        _
      $region10: #{net_forward.2} parent=5 // pred_check_branch
        %298 = sbr.rel (%p295) target = $region12
      $region11: #{net_forward.2} parent=5 // pred_region
        %s299 = ssub.s32 %s23, 1
        // Predicated region
        $region13: #{net_forward.2} parent=11 // pred_check
          %p300 = pneg %p70
        $region14: #{net_forward.2} parent=11 // pred_check_branch
          %302 = sbr.rel (%p300) target = $region16
        $region15: #{net_forward.2} parent=11 // pred_region
          %304 = vsyncadd [#allocation5], 0
          %s305 = sshll.u32 %s1, 4
          %s306 = int_to_ptr.hbm [resolvable:$true] %s305
          %s307 = sshll.u32 [#allocation4], 4
          %s308 = int_to_ptr.vmem [resolvable:$true] %s307
          %313 = dma.hbm_to_vmem [thread:$0]  %s306, 3072, %s308, [#allocation5], 256, 256, 16
        $region16: #{net_forward.2} parent=11 // pred_fallthru
          _
        // Predicated region
        $region17: #{net_forward.2} parent=11 // pred_check
          %p314 = pneg %p91
        $region18: #{net_forward.2} parent=11 // pred_check_branch
          %316 = sbr.rel (%p314) target = $region20
        $region19: #{net_forward.2} parent=11 // pred_region
          %318 = vsyncadd [#allocation7], 0
          %s320 = sshll.u32 %s2, 4
          %s321 = int_to_ptr.hbm [resolvable:$true] %s320
          %s322 = sshll.u32 [#allocation6], 4
          %s323 = int_to_ptr.vmem [resolvable:$true] %s322
          %325 = dma.hbm_to_vmem [thread:$0]  %s321, 64, %s323, [#allocation7]
        $region20: #{net_forward.2} parent=11 // pred_fallthru
          _
        // Predicated region
        $region21: #{net_forward.2} parent=11 // pred_check
          %p326 = pneg %p112
        $region22: #{net_forward.2} parent=11 // pred_check_branch
          %328 = sbr.rel (%p326) target = $region24
        $region23: #{net_forward.2} parent=11 // pred_region
          %330 = vsyncadd [#allocation7], 0
          %s331 = sshll.u32 %s3, 4
          %s332 = int_to_ptr.hbm [resolvable:$true] %s331
          %s333 = sshll.u32 [#allocation8], 4
          %s334 = int_to_ptr.vmem [resolvable:$true] %s333
          %339 = dma.hbm_to_vmem [thread:$0]  %s332, 256, %s334, [#allocation7], 64, 64, 4
        $region24: #{net_forward.2} parent=11 // pred_fallthru
          _
        // Predicated region
        $region25: #{net_forward.2} parent=11 // pred_check
          %p340 = pneg %p133
        $region26: #{net_forward.2} parent=11 // pred_check_branch
          %342 = sbr.rel (%p340) target = $region28
        $region27: #{net_forward.2} parent=11 // pred_region
          %344 = vsyncadd [#allocation10], 0
          %s345 = sshll.u32 %s4, 4
          %s346 = int_to_ptr.hbm [resolvable:$true] %s345
          %s347 = sshll.u32 [#allocation9], 4
          %s348 = int_to_ptr.vmem [resolvable:$true] %s347
          %353 = dma.hbm_to_vmem [thread:$0]  %s346, 256, %s348, [#allocation10], 64, 64, 4
        $region28: #{net_forward.2} parent=11 // pred_fallthru
          _
        // Predicated region
        $region29: #{net_forward.2} parent=11 // pred_check
          %p354 = pneg %p154
        $region30: #{net_forward.2} parent=11 // pred_check_branch
          %356 = sbr.rel (%p354) target = $region32
        $region31: #{net_forward.2} parent=11 // pred_region
          %358 = vsyncadd [#allocation10], 0
          %s359 = sshll.u32 %s5, 4
          %s360 = int_to_ptr.hbm [resolvable:$true] %s359
          %s361 = sshll.u32 [#allocation11], 4
          %s362 = int_to_ptr.vmem [resolvable:$true] %s361
          %367 = dma.hbm_to_vmem [thread:$0]  %s360, 7168, %s362, [#allocation10], 128, 128, 8
        $region32: #{net_forward.2} parent=11 // pred_fallthru
          _
        // Predicated region
        $region33: #{net_forward.2} parent=11 // pred_check
          %p368 = pneg %p175
        $region34: #{net_forward.2} parent=11 // pred_check_branch
          %370 = sbr.rel (%p368) target = $region36
        $region35: #{net_forward.2} parent=11 // pred_region
          %372 = vsyncadd [#allocation13], 0
          %s373 = sshll.u32 %s6, 4
          %s374 = int_to_ptr.hbm [resolvable:$true] %s373
          %s375 = sshll.u32 [#allocation12], 4
          %s376 = int_to_ptr.vmem [resolvable:$true] %s375
          %381 = dma.hbm_to_vmem [thread:$0]  %s374, 21504, %s376, [#allocation13], 256, 256, 16
        $region36: #{net_forward.2} parent=11 // pred_fallthru
          _
        // Predicated region
        $region37: #{net_forward.2} parent=11 // pred_check
          %p382 = pneg %p196
        $region38: #{net_forward.2} parent=11 // pred_check_branch
          %384 = sbr.rel (%p382) target = $region40
        $region39: #{net_forward.2} parent=11 // pred_region
          %386 = vsyncadd [#allocation13], 0
          %s388 = sshll.u32 %s7, 4
          %s389 = int_to_ptr.hbm [resolvable:$true] %s388
          %s390 = sshll.u32 [#allocation14], 4
          %s391 = int_to_ptr.vmem [resolvable:$true] %s390
          %393 = dma.hbm_to_vmem [thread:$0]  %s389, 64, %s391, [#allocation13]
        $region40: #{net_forward.2} parent=11 // pred_fallthru
          _
        // Predicated region
        $region41: #{net_forward.2} parent=11 // pred_check
          %p394 = pneg %p217
        $region42: #{net_forward.2} parent=11 // pred_check_branch
          %396 = sbr.rel (%p394) target = $region44
        $region43: #{net_forward.2} parent=11 // pred_region
          %398 = vsyncadd [#allocation16], 0
          %s399 = sshll.u32 %s8, 4
          %s400 = int_to_ptr.hbm [resolvable:$true] %s399
          %s401 = sshll.u32 [#allocation15], 4
          %s402 = int_to_ptr.vmem [resolvable:$true] %s401
          %407 = dma.hbm_to_vmem [thread:$0]  %s400, 128, %s402, [#allocation16], 64, 64, 4
        $region44: #{net_forward.2} parent=11 // pred_fallthru
          _
        // Predicated region
        $region45: #{net_forward.2} parent=11 // pred_check
          %p408 = pneg %p238
        $region46: #{net_forward.2} parent=11 // pred_check_branch
          %410 = sbr.rel (%p408) target = $region48
        $region47: #{net_forward.2} parent=11 // pred_region
          %412 = vsyncadd [#allocation16], 0
          %s413 = sshll.u32 %s9, 4
          %s414 = int_to_ptr.hbm [resolvable:$true] %s413
          %s415 = sshll.u32 [#allocation17], 4
          %s416 = int_to_ptr.vmem [resolvable:$true] %s415
          %421 = dma.hbm_to_vmem [thread:$0]  %s414, 128, %s416, [#allocation16], 64, 64, 4
        $region48: #{net_forward.2} parent=11 // pred_fallthru
          _
        // Predicated region
        $region49: #{net_forward.2} parent=11 // pred_check
          %p422 = pneg %p259
        $region50: #{net_forward.2} parent=11 // pred_check_branch
          %424 = sbr.rel (%p422) target = $region52
        $region51: #{net_forward.2} parent=11 // pred_region
          %426 = vsyncadd [#allocation19], 0
          %s427 = sshll.u32 %s10, 4
          %s428 = int_to_ptr.hbm [resolvable:$true] %s427
          %s429 = sshll.u32 [#allocation18], 4
          %s430 = int_to_ptr.vmem [resolvable:$true] %s429
          %435 = dma.hbm_to_vmem [thread:$0]  %s428, 7168, %s430, [#allocation19], 128, 128, 8
        $region52: #{net_forward.2} parent=11 // pred_fallthru
          _
      $region12: #{net_forward.2} parent=5 // pred_fallthru
        _
      %p436 = scmp.lt.s32.totalorder %s23, 2
      // Predicated region
      $region53: #{net_forward.2} parent=5 // pred_check
        %p437 = pneg %p436
      $region54: #{net_forward.2} parent=5 // pred_check_branch
        %439 = sbr.rel (%p437) target = $region56
      $region55: #{net_forward.2} parent=5 // pred_region
        // Predicated region
        $region57: #{net_forward.2} parent=55 // pred_check
          %p440 = pneg %p43
        $region58: #{net_forward.2} parent=55 // pred_check_branch
          %442 = sbr.rel (%p440) target = $region60
        $region59: #{net_forward.2} parent=55 // pred_region
          %p443 = scmp.lt.s32.totalorder %s23, 1
          %s444 = scalar_select %p443, %s23, 1
          %s445 = smul.addr %s444, 7
          %s446 = smul.addr %s445, 8
          %s447 = scalar_lea.vmem %s0, %s446
        $region60: #{net_forward.2} parent=55 // pred_fallthru
          _
      $region56: #{net_forward.2} parent=5 // pred_fallthru
        _
      %p448 = scmp.le.s32.totalorder 1, %s23
      %p449 = scmp.lt.s32.totalorder %s23, 3
      %p450 = pnand %p448, %p449
      %p451 = pneg %p450
      // Predicated region
      $region61: #{net_forward.2} parent=5 // pred_check
        _
      $region62: #{net_forward.2} parent=5 // pred_check_branch
        %453 = sbr.rel (%p450) target = $region64
      $region63: #{net_forward.2} parent=5 // pred_region
        %s454 = ssub.s32 %s23, 1
        // Predicated region
        $region65: #{net_forward.2} parent=63 // pred_check
          %p455 = pneg %p70
        $region66: #{net_forward.2} parent=63 // pred_check_branch
          %457 = sbr.rel (%p455) target = $region68
        $region67: #{net_forward.2} parent=63 // pred_region
          %459 = dma.done [#allocation5], 3072
        $region68: #{net_forward.2} parent=63 // pred_fallthru
          _
        // Predicated region
        $region69: #{net_forward.2} parent=63 // pred_check
          %p460 = pneg %p91
        $region70: #{net_forward.2} parent=63 // pred_check_branch
          %462 = sbr.rel (%p460) target = $region72
        $region71: #{net_forward.2} parent=63 // pred_region
          %464 = dma.done [#allocation7], 64
        $region72: #{net_forward.2} parent=63 // pred_fallthru
          _
        // Predicated region
        $region73: #{net_forward.2} parent=63 // pred_check
          %p465 = pneg %p112
        $region74: #{net_forward.2} parent=63 // pred_check_branch
          %467 = sbr.rel (%p465) target = $region76
        $region75: #{net_forward.2} parent=63 // pred_region
          %469 = dma.done [#allocation7], 256
        $region76: #{net_forward.2} parent=63 // pred_fallthru
          _
        // Predicated region
        $region77: #{net_forward.2} parent=63 // pred_check
          %p470 = pneg %p133
        $region78: #{net_forward.2} parent=63 // pred_check_branch
          %472 = sbr.rel (%p470) target = $region80
        $region79: #{net_forward.2} parent=63 // pred_region
          %474 = dma.done [#allocation10], 256
        $region80: #{net_forward.2} parent=63 // pred_fallthru
          _
        // Predicated region
        $region81: #{net_forward.2} parent=63 // pred_check
          %p475 = pneg %p154
        $region82: #{net_forward.2} parent=63 // pred_check_branch
          %477 = sbr.rel (%p475) target = $region84
        $region83: #{net_forward.2} parent=63 // pred_region
          %479 = dma.done [#allocation10], 7168
        $region84: #{net_forward.2} parent=63 // pred_fallthru
          _
        // Predicated region
        $region85: #{net_forward.2} parent=63 // pred_check
          %p480 = pneg %p175
        $region86: #{net_forward.2} parent=63 // pred_check_branch
          %482 = sbr.rel (%p480) target = $region88
        $region87: #{net_forward.2} parent=63 // pred_region
          %484 = dma.done [#allocation13], 21504
        $region88: #{net_forward.2} parent=63 // pred_fallthru
          _
        // Predicated region
        $region89: #{net_forward.2} parent=63 // pred_check
          %p485 = pneg %p196
        $region90: #{net_forward.2} parent=63 // pred_check_branch
          %487 = sbr.rel (%p485) target = $region92
        $region91: #{net_forward.2} parent=63 // pred_region
          %489 = dma.done [#allocation13], 64
        $region92: #{net_forward.2} parent=63 // pred_fallthru
          _
        // Predicated region
        $region93: #{net_forward.2} parent=63 // pred_check
          %p490 = pneg %p217
        $region94: #{net_forward.2} parent=63 // pred_check_branch
          %492 = sbr.rel (%p490) target = $region96
        $region95: #{net_forward.2} parent=63 // pred_region
          %494 = dma.done [#allocation16], 128
        $region96: #{net_forward.2} parent=63 // pred_fallthru
          _
        // Predicated region
        $region97: #{net_forward.2} parent=63 // pred_check
          %p495 = pneg %p238
        $region98: #{net_forward.2} parent=63 // pred_check_branch
          %497 = sbr.rel (%p495) target = $region100
        $region99: #{net_forward.2} parent=63 // pred_region
          %499 = dma.done [#allocation16], 128
        $region100: #{net_forward.2} parent=63 // pred_fallthru
          _
        // Predicated region
        $region101: #{net_forward.2} parent=63 // pred_check
          %p500 = pneg %p259
        $region102: #{net_forward.2} parent=63 // pred_check_branch
          %502 = sbr.rel (%p500) target = $region104
        $region103: #{net_forward.2} parent=63 // pred_region
          %504 = dma.done [#allocation19], 7168
        $region104: #{net_forward.2} parent=63 // pred_fallthru
          _
        %p505 = scmp.lt.s32.totalorder %s28, 1
        %s506 = scalar_select %p505, %s28, 1
        %s507 = smul.addr %s506, 7
        %s508 = smul.addr %s507, 8
        %s509 = scalar_lea.vmem %s0, %s508
        %p510 = pneg %p49
        %p511 = pneg %p46
        %p512 = pneg %p70
        %p513 = pneg %p67
        %p514 = pneg %p91
        %p515 = pneg %p88
        %p516 = pneg %p112
        %p517 = pneg %p109
        %p518 = pneg %p133
        %p519 = pneg %p130
        %p520 = pneg %p154
        %p521 = pneg %p151
        %p522 = pneg %p175
        %p523 = pneg %p172
        %p524 = pneg %p196
        %p525 = pneg %p193
        %p526 = pneg %p217
        %p527 = pneg %p214
        %p528 = pneg %p238
        %p529 = pneg %p235
        %p530 = pneg %p259
        %p531 = pneg %p256
        %p532 = pneg %p285
        %p533 = pneg %p282
        %p534 = scmp.lt.s32.totalorder %s28, 1
        %s535 = scalar_select %p534, %s28, 1
        %s536 = smul.addr %s535, 4
        %s537 = smul.addr %s536, 4
        %s538 = scalar_lea.vmem %s11, %s537
        %p539 = scmp.lt.s32.totalorder %s28, 1
        %s540 = scalar_select %p539, %s28, 1
        %s541 = smul.addr %s540, 7
        %s542 = smul.addr %s541, 8
        %s543 = scalar_lea.vmem %s0, %s542
        %p544 = scmp.lt.s32.totalorder %s28, 1
        %s545 = scalar_select %p544, %s28, 1
        %s546 = smul.addr %s545, 4
        %s547 = smul.addr %s546, 4
        %s548 = scalar_lea.vmem %s11, %s547
        %vm550 = vcmask 221184
        %vm551 = vsmask.f32 256
        %vm552 = vmand %vm550, %vm551
        %v553 = vld [vmem:[#allocation2] sm:$0x1]
        %v554 = vsel %vm552, 0, %v553
        %555 = vst [vmem:[#allocation2] sm:$0x1] %v554
        %vm556 = vsmask.f32 7938
        %vm557 = vmand %vm550, %vm556
        %v558 = vld [vmem:[#allocation2 + $0x1c] sm:$0x1]
        %v559 = vsel %vm557, 0, %v558
        %560 = vst [vmem:[#allocation2 + $0x1c] sm:$0x1] %v559
        %v561 = vld [vmem:[%s543] sm:$0xff]
        %v562 = vld [vmem:[%s543 + $0x8] sm:$0xff]
        %v563 = vld [vmem:[%s543 + $0x10] sm:$0xff]
        %v564 = vld [vmem:[%s543 + $0x18] sm:$0xff]
        %v565 = vld [vmem:[%s543 + $0x20] sm:$0xff]
        %v566 = vld [vmem:[%s543 + $0x28] sm:$0xff]
        %v567 = vld [vmem:[%s543 + $0x30] sm:$0xff]
        %v568 = vpack.c.bf16 %v561, %v561
        %v569 = vpack.c.bf16 %v562, %v562
        %v570 = vpack.c.bf16 %v563, %v563
        %v571 = vpack.c.bf16 %v564, %v564
        %v572 = vpack.c.bf16 %v565, %v565
        %v573 = vpack.c.bf16 %v566, %v566
        %v574 = vpack.c.bf16 %v567, %v567
        %vm575 = vsmask.f32 4368
        %vm576 = vmor %vm551, %vm575
        %v578 = vshrl.u32 %v568, 16
        %v580 = vrot.slane %v578, 7
        %v581 = vshll.u32 %v568, 16
        %v583 = vor.u32 %v580, %v581
        %v584 = vrot.slane %v580, 4
        %v586 = vshrl.u32 %v569, 16
        %v588 = vrot.slane %v586, 7
        %v589 = vshll.u32 %v569, 16
        %v591 = vor.u32 %v588, %v589
        %v592 = vsel %vm576, %v584, %v591
        %v593 = vrot.slane %v588, 4
        %v595 = vshrl.u32 %v570, 16
        %v597 = vrot.slane %v595, 7
        %v598 = vshll.u32 %v570, 16
        %v600 = vor.u32 %v597, %v598
        %v601 = vsel %vm576, %v593, %v600
        %v602 = vrot.slane %v597, 4
        %v604 = vshrl.u32 %v571, 16
        %v606 = vrot.slane %v604, 7
        %v607 = vshll.u32 %v571, 16
        %v609 = vor.u32 %v606, %v607
        %v610 = vsel %vm576, %v602, %v609
        %v611 = vrot.slane %v606, 4
        %v613 = vshrl.u32 %v572, 16
        %v615 = vrot.slane %v613, 7
        %v616 = vshll.u32 %v572, 16
        %v618 = vor.u32 %v615, %v616
        %v619 = vsel %vm576, %v611, %v618
        %v620 = vrot.slane %v615, 4
        %v622 = vshrl.u32 %v573, 16
        %v624 = vrot.slane %v622, 7
        %v625 = vshll.u32 %v573, 16
        %v627 = vor.u32 %v624, %v625
        %v628 = vsel %vm576, %v620, %v627
        %v629 = vrot.slane %v624, 4
        %v631 = vshrl.u32 %v574, 16
        %v633 = vrot.slane %v631, 7
        %v634 = vshll.u32 %v574, 16
        %v636 = vor.u32 %v633, %v634
        %v637 = vsel %vm576, %v629, %v636
        %v638 = vrot.slane %v633, 4
        %vm647 = vcmask 224256
        %vm648 = vmand %vm647, %vm556
        %v649 = vld [vmem:[#allocation2] sm:$0xf]
        %v650 = vsel %vm648, %v583, %v649
        %651 = vst [vmem:[#allocation2] sm:$0xf] %v650
        %vm652 = vcmask 224256
        %653 = vst.msk [vmem:[#allocation2 + $0x4] sm:$0xf] %vm652, %v592
        %654 = vst.msk [vmem:[#allocation2 + $0x8] sm:$0xf] %vm652, %v601
        %655 = vst.msk [vmem:[#allocation2 + $0xc] sm:$0xf] %vm652, %v610
        %656 = vst.msk [vmem:[#allocation2 + $0x10] sm:$0xf] %vm652, %v619
        %657 = vst.msk [vmem:[#allocation2 + $0x14] sm:$0xf] %vm652, %v628
        %658 = vst.msk [vmem:[#allocation2 + $0x18] sm:$0xf] %vm652, %v637
        %v659 = vld [vmem:[#allocation2 + $0x1c] sm:$0x1]
        %v660 = vsel %vm552, %v638, %v659
        %661 = vst [vmem:[#allocation2 + $0x1c] sm:$0x1] %v660
        %v662 = vld [vmem:[#allocation2] sm:$0xf]
        %v663 = vld [vmem:[#allocation2 + $0x4] sm:$0xf]
        %v664 = vld [vmem:[#allocation2 + $0x8] sm:$0xf]
        %v665 = vld [vmem:[#allocation2 + $0xc] sm:$0xf]
        %v666 = vld [vmem:[#allocation2 + $0x10] sm:$0xf]
        %v667 = vld [vmem:[#allocation2 + $0x14] sm:$0xf]
        %v668 = vld [vmem:[#allocation2 + $0x18] sm:$0xf]
        %v669 = vld [vmem:[#allocation4] sm:$0xff]
        %v670 = vld [vmem:[#allocation4 + $0x8] sm:$0xff]
        %v671 = vld [vmem:[#allocation4 + $0x10] sm:$0xff]
        %v672 = vld [vmem:[#allocation4 + $0x18] sm:$0xff]
        %v673 = vld [vmem:[#allocation4 + $0x20] sm:$0xff]
        %v674 = vld [vmem:[#allocation4 + $0x28] sm:$0xff]
        %v675 = vld [vmem:[#allocation4 + $0x30] sm:$0x33]
        %v676 = vld [vmem:[#allocation4 + $0x38] sm:$0x33]
        %v677 = vld [vmem:[#allocation2 + $0x1c] sm:$0x1]
        %s678 = scalar_lea.vmem [#allocation4], 64
        %v679 = vld [vmem:[%s678] sm:$0xff]
        %v680 = vld [vmem:[%s678 + $0x8] sm:$0xff]
        %v681 = vld [vmem:[%s678 + $0x10] sm:$0xff]
        %v682 = vld [vmem:[%s678 + $0x18] sm:$0xff]
        %v683 = vld [vmem:[%s678 + $0x20] sm:$0xff]
        %v684 = vld [vmem:[%s678 + $0x28] sm:$0xff]
        %v685 = vld [vmem:[%s678 + $0x30] sm:$0x33]
        %v686 = vld [vmem:[%s678 + $0x38] sm:$0x33]
        %v695 = vunpack.c.l.b16 %v662
        %v696 = vunpack.c.l.b16 %v663
        %v697 = vunpack.c.l.b16 %v664
        %v698 = vunpack.c.l.b16 %v665
        %v699 = vunpack.c.l.b16 %v666
        %v700 = vunpack.c.l.b16 %v667
        %v701 = vunpack.c.l.b16 %v668
        %v702 = vunpack.c.l.b16 %v677
        %v703 = vpack.c.b16 %v696, %v695
        %v704 = vpack.c.b16 %v698, %v697
        %v705 = vpack.c.b16 %v700, %v699
        %v706 = vpack.c.b16 %v702, %v701
        %vm707 = vsmask.f32 7424
        %v709 = vshrl.u32 %v703, 16
        %v711 = vshll.u32 %v703, 16
        %v713 = vrot.slane %v711, 1
        %v714 = vor.u32 %v709, %v713
        %v716 = vshll.u32 %v704, 16
        %v718 = vrot.slane %v716, 1
        %v719 = vsel %vm707, %v714, %v718
        %v720 = vshrl.u32 %v704, 16
        %v722 = vor.u32 %v720, %v718
        %v724 = vshll.u32 %v705, 16
        %v726 = vrot.slane %v724, 1
        %v727 = vsel %vm707, %v722, %v726
        %v728 = vshrl.u32 %v705, 16
        %v730 = vor.u32 %v728, %v726
        %v732 = vshll.u32 %v706, 16
        %v734 = vrot.slane %v732, 1
        %v735 = vsel %vm707, %v730, %v734
        %v736 = vshrl.u32 %v706, 16
        %v738 = vor.u32 %v736, %v734
        %v747 = vunpack.c.l.b16 %v679
        %v748 = vunpack.c.h.b16 %v679
        %v749 = vunpack.c.l.b16 %v680
        %v750 = vunpack.c.h.b16 %v680
        %v751 = vunpack.c.l.b16 %v681
        %v752 = vunpack.c.h.b16 %v681
        %v753 = vunpack.c.l.b16 %v682
        %v754 = vunpack.c.h.b16 %v682
        %v755 = vunpack.c.l.b16 %v683
        %v756 = vunpack.c.h.b16 %v683
        %v757 = vunpack.c.l.b16 %v684
        %v758 = vunpack.c.h.b16 %v684
        %v759 = vunpack.c.l.b16 %v685
        %v760 = vunpack.c.h.b16 %v685
        %v761 = vunpack.c.l.b16 %v686
        %v762 = vunpack.c.h.b16 %v686
        %v763 = vpack.c.b16 %v751, %v747
        %v764 = vpack.c.b16 %v752, %v748
        %v765 = vpack.c.b16 %v753, %v749
        %v766 = vpack.c.b16 %v754, %v750
        %v767 = vpack.c.b16 %v759, %v755
        %v768 = vpack.c.b16 %v760, %v756
        %v769 = vpack.c.b16 %v761, %v757
        %v770 = vpack.c.b16 %v762, %v758
        %vm775 = vcmask 228352
        %v777 = vsel %vm775, %v719, 0
        %v780 = vsel %vm775, %v727, 0
        %v783 = vsel %vm775, %v735, 0
        %v786 = vsel %vm775, %v738, 0
        %vm788 = vcmask 1045504
        %v790 = vsel %vm788, %v767, 0
        %v793 = vsel %vm788, %v768, 0
        %v796 = vsel %vm788, %v769, 0
        %v799 = vsel %vm788, %v770, 0
        %801 = vmatpush.bf16.msra.mxu0 0
        %802 = vmatpush.bf16.msra.mxu0 0
        %803 = vmatpush.bf16.msra.mxu0 0
        %804 = vmatpush.bf16.msra.mxu0 0
        %805 = vmatpush.bf16.msra.mxu0 0
        %806 = vmatpush.bf16.msra.mxu0 0
        %807 = vmatpush.bf16.msra.mxu0 %v790
        %808 = vmatpush.bf16.msra.mxu0 %v763
        %809 = vmatmul.bf16.gmra.mxu0 %v777
        %v810 = vpop.f32.mrf.mxu0
        %v811 = vadd.f32 0.0, %v810
        %v812 = vpop.f32.mrf.mxu0
        %v813 = vadd.f32 0.0, %v812
        %814 = vmatmul.bf16.gmra.mxu0 %v780
        %v815 = vpop.f32.mrf.mxu0
        %v816 = vadd.f32 0.0, %v815
        %v817 = vpop.f32.mrf.mxu0
        %v818 = vadd.f32 0.0, %v817
        %819 = vmatmul.bf16.gmra.mxu0 %v783
        %v820 = vpop.f32.mrf.mxu0
        %v821 = vadd.f32 0.0, %v820
        %v822 = vpop.f32.mrf.mxu0
        %v823 = vadd.f32 0.0, %v822
        %824 = vmatmul.bf16.gmra.mxu0 %v786
        %v825 = vpop.f32.mrf.mxu0
        %v826 = vadd.f32 0.0, %v825
        %v827 = vpop.f32.mrf.mxu0
        %828 = vdwg.mxu0
        %829 = vmatpush.bf16.msra.mxu0 0
        %830 = vmatpush.bf16.msra.mxu0 0
        %831 = vmatpush.bf16.msra.mxu0 0
        %832 = vmatpush.bf16.msra.mxu0 0
        %833 = vmatpush.bf16.msra.mxu0 0
        %834 = vmatpush.bf16.msra.mxu0 0
        %835 = vmatpush.bf16.msra.mxu0 %v793
        %836 = vmatpush.bf16.msra.mxu0 %v764
        %837 = vmatmul.bf16.gmra.mxu0 %v777
        %v838 = vpop.f32.mrf.mxu0
        %v839 = vadd.f32 0.0, %v838
        %v840 = vpop.f32.mrf.mxu0
        %v841 = vadd.f32 0.0, %v840
        %842 = vmatmul.bf16.gmra.mxu0 %v780
        %v843 = vpop.f32.mrf.mxu0
        %v844 = vadd.f32 0.0, %v843
        %v845 = vpop.f32.mrf.mxu0
        %v846 = vadd.f32 0.0, %v845
        %847 = vmatmul.bf16.gmra.mxu0 %v783
        %v848 = vpop.f32.mrf.mxu0
        %v849 = vadd.f32 0.0, %v848
        %v850 = vpop.f32.mrf.mxu0
        %v851 = vadd.f32 0.0, %v850
        %852 = vmatmul.bf16.gmra.mxu0 %v786
        %v853 = vpop.f32.mrf.mxu0
        %v854 = vadd.f32 0.0, %v853
        %v855 = vpop.f32.mrf.mxu0
        %856 = vdwg.mxu0
        %857 = vmatpush.bf16.msra.mxu0 0
        %858 = vmatpush.bf16.msra.mxu0 0
        %859 = vmatpush.bf16.msra.mxu0 0
        %860 = vmatpush.bf16.msra.mxu0 0
        %861 = vmatpush.bf16.msra.mxu0 0
        %862 = vmatpush.bf16.msra.mxu0 0
        %863 = vmatpush.bf16.msra.mxu0 %v796
        %864 = vmatpush.bf16.msra.mxu0 %v765
        %865 = vmatmul.bf16.gmra.mxu0 %v777
        %v866 = vpop.f32.mrf.mxu0
        %v867 = vadd.f32 0.0, %v866
        %v868 = vpop.f32.mrf.mxu0
        %v869 = vadd.f32 0.0, %v868
        %870 = vmatmul.bf16.gmra.mxu0 %v780
        %v871 = vpop.f32.mrf.mxu0
        %v872 = vadd.f32 0.0, %v871
        %v873 = vpop.f32.mrf.mxu0
        %v874 = vadd.f32 0.0, %v873
        %875 = vmatmul.bf16.gmra.mxu0 %v783
        %v876 = vpop.f32.mrf.mxu0
        %v877 = vadd.f32 0.0, %v876
        %v878 = vpop.f32.mrf.mxu0
        %v879 = vadd.f32 0.0, %v878
        %880 = vmatmul.bf16.gmra.mxu0 %v786
        %v881 = vpop.f32.mrf.mxu0
        %v882 = vadd.f32 0.0, %v881
        %v883 = vpop.f32.mrf.mxu0
        %884 = vdwg.mxu0
        %885 = vmatpush.bf16.msra.mxu0 0
        %886 = vmatpush.bf16.msra.mxu0 0
        %887 = vmatpush.bf16.msra.mxu0 0
        %888 = vmatpush.bf16.msra.mxu0 0
        %889 = vmatpush.bf16.msra.mxu0 0
        %890 = vmatpush.bf16.msra.mxu0 0
        %891 = vmatpush.bf16.msra.mxu0 %v799
        %892 = vmatpush.bf16.msra.mxu0 %v766
        %893 = vmatmul.bf16.gmra.mxu0 %v777
        %v894 = vpop.f32.mrf.mxu0
        %v895 = vadd.f32 0.0, %v894
        %v896 = vpop.f32.mrf.mxu0
        %v897 = vadd.f32 0.0, %v896
        %898 = vmatmul.bf16.gmra.mxu0 %v780
        %v899 = vpop.f32.mrf.mxu0
        %v900 = vadd.f32 0.0, %v899
        %v901 = vpop.f32.mrf.mxu0
        %v902 = vadd.f32 0.0, %v901
        %903 = vmatmul.bf16.gmra.mxu0 %v783
        %v904 = vpop.f32.mrf.mxu0
        %v905 = vadd.f32 0.0, %v904
        %v906 = vpop.f32.mrf.mxu0
        %v907 = vadd.f32 0.0, %v906
        %908 = vmatmul.bf16.gmra.mxu0 %v786
        %v909 = vpop.f32.mrf.mxu0
        %v910 = vadd.f32 0.0, %v909
        %v911 = vpop.f32.mrf.mxu0
        %912 = vdwg.mxu0
        %v913 = vpack.c.b16 %v701, %v701
        %v922 = vunpack.c.l.b16 %v669
        %v923 = vunpack.c.h.b16 %v669
        %v924 = vunpack.c.l.b16 %v670
        %v925 = vunpack.c.h.b16 %v670
        %v926 = vunpack.c.l.b16 %v671
        %v927 = vunpack.c.h.b16 %v671
        %v928 = vunpack.c.l.b16 %v672
        %v929 = vunpack.c.h.b16 %v672
        %v930 = vunpack.c.l.b16 %v673
        %v931 = vunpack.c.h.b16 %v673
        %v932 = vunpack.c.l.b16 %v674
        %v933 = vunpack.c.h.b16 %v674
        %v934 = vunpack.c.l.b16 %v675
        %v935 = vunpack.c.h.b16 %v675
        %v936 = vunpack.c.l.b16 %v676
        %v937 = vunpack.c.h.b16 %v676
        %v938 = vpack.c.b16 %v926, %v922
        %v939 = vpack.c.b16 %v927, %v923
        %v940 = vpack.c.b16 %v928, %v924
        %v941 = vpack.c.b16 %v929, %v925
        %v942 = vpack.c.b16 %v934, %v930
        %v943 = vpack.c.b16 %v935, %v931
        %v944 = vpack.c.b16 %v936, %v932
        %v945 = vpack.c.b16 %v937, %v933
        %v950 = vsel %vm775, %v703, 0
        %v952 = vsel %vm775, %v704, 0
        %v954 = vsel %vm775, %v705, 0
        %v957 = vsel %vm775, %v913, 0
        %v960 = vsel %vm788, %v942, 0
        %v963 = vsel %vm788, %v943, 0
        %v966 = vsel %vm788, %v944, 0
        %v969 = vsel %vm788, %v945, 0
        %971 = vmatpush.bf16.msra.mxu0 0
        %972 = vmatpush.bf16.msra.mxu0 0
        %973 = vmatpush.bf16.msra.mxu0 0
        %974 = vmatpush.bf16.msra.mxu0 0
        %975 = vmatpush.bf16.msra.mxu0 0
        %976 = vmatpush.bf16.msra.mxu0 0
        %977 = vmatpush.bf16.msra.mxu0 %v960
        %978 = vmatpush.bf16.msra.mxu0 %v938
        %979 = vmatmul.bf16.gmra.mxu0 %v950
        %v980 = vpop.f32.mrf.mxu0
        %v981 = vadd.f32 %v811, %v980
        %v982 = vpop.f32.mrf.mxu0
        %v983 = vadd.f32 %v813, %v982
        %984 = vmatmul.bf16.gmra.mxu0 %v952
        %v985 = vpop.f32.mrf.mxu0
        %v986 = vadd.f32 %v816, %v985
        %v987 = vpop.f32.mrf.mxu0
        %v988 = vadd.f32 %v818, %v987
        %989 = vmatmul.bf16.gmra.mxu0 %v954
        %v990 = vpop.f32.mrf.mxu0
        %v991 = vadd.f32 %v821, %v990
        %v992 = vpop.f32.mrf.mxu0
        %v993 = vadd.f32 %v823, %v992
        %994 = vmatmul.bf16.gmra.mxu0 %v957
        %v995 = vpop.f32.mrf.mxu0
        %v996 = vadd.f32 %v826, %v995
        %v997 = vpop.f32.mrf.mxu0
        %998 = vdwg.mxu0
        %999 = vmatpush.bf16.msra.mxu0 0
        %1000 = vmatpush.bf16.msra.mxu0 0
        %1001 = vmatpush.bf16.msra.mxu0 0
        %1002 = vmatpush.bf16.msra.mxu0 0
        %1003 = vmatpush.bf16.msra.mxu0 0
        %1004 = vmatpush.bf16.msra.mxu0 0
        %1005 = vmatpush.bf16.msra.mxu0 %v963
        %1006 = vmatpush.bf16.msra.mxu0 %v939
        %1007 = vmatmul.bf16.gmra.mxu0 %v950
        %v1008 = vpop.f32.mrf.mxu0
        %v1009 = vadd.f32 %v839, %v1008
        %v1010 = vpop.f32.mrf.mxu0
        %v1011 = vadd.f32 %v841, %v1010
        %1012 = vmatmul.bf16.gmra.mxu0 %v952
        %v1013 = vpop.f32.mrf.mxu0
        %v1014 = vadd.f32 %v844, %v1013
        %v1015 = vpop.f32.mrf.mxu0
        %v1016 = vadd.f32 %v846, %v1015
        %1017 = vmatmul.bf16.gmra.mxu0 %v954
        %v1018 = vpop.f32.mrf.mxu0
        %v1019 = vadd.f32 %v849, %v1018
        %v1020 = vpop.f32.mrf.mxu0
        %v1021 = vadd.f32 %v851, %v1020
        %1022 = vmatmul.bf16.gmra.mxu0 %v957
        %v1023 = vpop.f32.mrf.mxu0
        %v1024 = vadd.f32 %v854, %v1023
        %v1025 = vpop.f32.mrf.mxu0
        %1026 = vdwg.mxu0
        %1027 = vmatpush.bf16.msra.mxu0 0
        %1028 = vmatpush.bf16.msra.mxu0 0
        %1029 = vmatpush.bf16.msra.mxu0 0
        %1030 = vmatpush.bf16.msra.mxu0 0
        %1031 = vmatpush.bf16.msra.mxu0 0
        %1032 = vmatpush.bf16.msra.mxu0 0
        %1033 = vmatpush.bf16.msra.mxu0 %v966
        %1034 = vmatpush.bf16.msra.mxu0 %v940
        %1035 = vmatmul.bf16.gmra.mxu0 %v950
        %v1036 = vpop.f32.mrf.mxu0
        %v1037 = vadd.f32 %v867, %v1036
        %v1038 = vpop.f32.mrf.mxu0
        %v1039 = vadd.f32 %v869, %v1038
        %1040 = vmatmul.bf16.gmra.mxu0 %v952
        %v1041 = vpop.f32.mrf.mxu0
        %v1042 = vadd.f32 %v872, %v1041
        %v1043 = vpop.f32.mrf.mxu0
        %v1044 = vadd.f32 %v874, %v1043
        %1045 = vmatmul.bf16.gmra.mxu0 %v954
        %v1046 = vpop.f32.mrf.mxu0
        %v1047 = vadd.f32 %v877, %v1046
        %v1048 = vpop.f32.mrf.mxu0
        %v1049 = vadd.f32 %v879, %v1048
        %1050 = vmatmul.bf16.gmra.mxu0 %v957
        %v1051 = vpop.f32.mrf.mxu0
        %v1052 = vadd.f32 %v882, %v1051
        %v1053 = vpop.f32.mrf.mxu0
        %1054 = vdwg.mxu0
        %1055 = vmatpush.bf16.msra.mxu0 0
        %1056 = vmatpush.bf16.msra.mxu0 0
        %1057 = vmatpush.bf16.msra.mxu0 0
        %1058 = vmatpush.bf16.msra.mxu0 0
        %1059 = vmatpush.bf16.msra.mxu0 0
        %1060 = vmatpush.bf16.msra.mxu0 0
        %1061 = vmatpush.bf16.msra.mxu0 %v969
        %1062 = vmatpush.bf16.msra.mxu0 %v941
        %1063 = vmatmul.bf16.gmra.mxu0 %v950
        %v1064 = vpop.f32.mrf.mxu0
        %v1065 = vadd.f32 %v895, %v1064
        %v1066 = vpop.f32.mrf.mxu0
        %v1067 = vadd.f32 %v897, %v1066
        %1068 = vmatmul.bf16.gmra.mxu0 %v952
        %v1069 = vpop.f32.mrf.mxu0
        %v1070 = vadd.f32 %v900, %v1069
        %v1071 = vpop.f32.mrf.mxu0
        %v1072 = vadd.f32 %v902, %v1071
        %1073 = vmatmul.bf16.gmra.mxu0 %v954
        %v1074 = vpop.f32.mrf.mxu0
        %v1075 = vadd.f32 %v905, %v1074
        %v1076 = vpop.f32.mrf.mxu0
        %v1077 = vadd.f32 %v907, %v1076
        %1078 = vmatmul.bf16.gmra.mxu0 %v957
        %v1079 = vpop.f32.mrf.mxu0
        %v1080 = vadd.f32 %v910, %v1079
        %v1081 = vpop.f32.mrf.mxu0
        %1082 = vdwg.mxu0
        %v1083 = vld [vmem:[#allocation2] sm:$0xe]
        %s1084 = scalar_lea.vmem [#allocation4], 128
        %v1085 = vld [vmem:[%s1084] sm:$0xff]
        %v1086 = vld [vmem:[%s1084 + $0x8] sm:$0xff]
        %v1087 = vld [vmem:[%s1084 + $0x10] sm:$0xff]
        %v1088 = vld [vmem:[%s1084 + $0x18] sm:$0xff]
        %v1089 = vld [vmem:[%s1084 + $0x20] sm:$0xff]
        %v1090 = vld [vmem:[%s1084 + $0x28] sm:$0xff]
        %v1091 = vld [vmem:[%s1084 + $0x30] sm:$0x33]
        %v1092 = vld [vmem:[%s1084 + $0x38] sm:$0x33]
        %v1094 = vunpack.c.l.b16 %v1083
        %v1095 = vpack.c.b16 %v696, %v1094
        %vm1096 = vcmask 1046528
        %v1097 = vrot.slane %v1095, 1
        %v1098 = vrot.slane %v704, 1
        %v1099 = vsel %vm1096, %v1097, %v1098
        %v1100 = vrot.slane %v705, 1
        %v1101 = vsel %vm1096, %v1098, %v1100
        %v1102 = vrot.slane %v706, 1
        %v1103 = vsel %vm1096, %v1100, %v1102
        %v1112 = vunpack.c.l.b16 %v1085
        %v1113 = vunpack.c.h.b16 %v1085
        %v1114 = vunpack.c.l.b16 %v1086
        %v1115 = vunpack.c.h.b16 %v1086
        %v1116 = vunpack.c.l.b16 %v1087
        %v1117 = vunpack.c.h.b16 %v1087
        %v1118 = vunpack.c.l.b16 %v1088
        %v1119 = vunpack.c.h.b16 %v1088
        %v1120 = vunpack.c.l.b16 %v1089
        %v1121 = vunpack.c.h.b16 %v1089
        %v1122 = vunpack.c.l.b16 %v1090
        %v1123 = vunpack.c.h.b16 %v1090
        %v1124 = vunpack.c.l.b16 %v1091
        %v1125 = vunpack.c.h.b16 %v1091
        %v1126 = vunpack.c.l.b16 %v1092
        %v1127 = vunpack.c.h.b16 %v1092
        %v1128 = vpack.c.b16 %v1116, %v1112
        %v1129 = vpack.c.b16 %v1117, %v1113
        %v1130 = vpack.c.b16 %v1118, %v1114
        %v1131 = vpack.c.b16 %v1119, %v1115
        %v1132 = vpack.c.b16 %v1124, %v1120
        %v1133 = vpack.c.b16 %v1125, %v1121
        %v1134 = vpack.c.b16 %v1126, %v1122
        %v1135 = vpack.c.b16 %v1127, %v1123
        %v1141 = vsel %vm775, %v1099, 0
        %v1144 = vsel %vm775, %v1101, 0
        %v1147 = vsel %vm775, %v1103, 0
        %v1150 = vsel %vm775, %v1102, 0
        %v1153 = vsel %vm788, %v1132, 0
        %v1156 = vsel %vm788, %v1133, 0
        %v1159 = vsel %vm788, %v1134, 0
        %v1162 = vsel %vm788, %v1135, 0
        %1164 = vmatpush.bf16.msra.mxu0 0
        %1165 = vmatpush.bf16.msra.mxu0 0
        %1166 = vmatpush.bf16.msra.mxu0 0
        %1167 = vmatpush.bf16.msra.mxu0 0
        %1168 = vmatpush.bf16.msra.mxu0 0
        %1169 = vmatpush.bf16.msra.mxu0 0
        %1170 = vmatpush.bf16.msra.mxu0 %v1153
        %1171 = vmatpush.bf16.msra.mxu0 %v1128
        %1172 = vmatmul.bf16.gmra.mxu0 %v1141
        %v1173 = vpop.f32.mrf.mxu0
        %v1174 = vadd.f32 0.0, %v1173
        %v1175 = vpop.f32.mrf.mxu0
        %v1176 = vadd.f32 0.0, %v1175
        %1177 = vmatmul.bf16.gmra.mxu0 %v1144
        %v1178 = vpop.f32.mrf.mxu0
        %v1179 = vadd.f32 0.0, %v1178
        %v1180 = vpop.f32.mrf.mxu0
        %v1181 = vadd.f32 0.0, %v1180
        %1182 = vmatmul.bf16.gmra.mxu0 %v1147
        %v1183 = vpop.f32.mrf.mxu0
        %v1184 = vadd.f32 0.0, %v1183
        %v1185 = vpop.f32.mrf.mxu0
        %v1186 = vadd.f32 0.0, %v1185
        %1187 = vmatmul.bf16.gmra.mxu0 %v1150
        %v1188 = vpop.f32.mrf.mxu0
        %v1189 = vadd.f32 0.0, %v1188
        %v1190 = vpop.f32.mrf.mxu0
        %1191 = vdwg.mxu0
        %1192 = vmatpush.bf16.msra.mxu0 0
        %1193 = vmatpush.bf16.msra.mxu0 0
        %1194 = vmatpush.bf16.msra.mxu0 0
        %1195 = vmatpush.bf16.msra.mxu0 0
        %1196 = vmatpush.bf16.msra.mxu0 0
        %1197 = vmatpush.bf16.msra.mxu0 0
        %1198 = vmatpush.bf16.msra.mxu0 %v1156
        %1199 = vmatpush.bf16.msra.mxu0 %v1129
        %1200 = vmatmul.bf16.gmra.mxu0 %v1141
        %v1201 = vpop.f32.mrf.mxu0
        %v1202 = vadd.f32 0.0, %v1201
        %v1203 = vpop.f32.mrf.mxu0
        %v1204 = vadd.f32 0.0, %v1203
        %1205 = vmatmul.bf16.gmra.mxu0 %v1144
        %v1206 = vpop.f32.mrf.mxu0
        %v1207 = vadd.f32 0.0, %v1206
        %v1208 = vpop.f32.mrf.mxu0
        %v1209 = vadd.f32 0.0, %v1208
        %1210 = vmatmul.bf16.gmra.mxu0 %v1147
        %v1211 = vpop.f32.mrf.mxu0
        %v1212 = vadd.f32 0.0, %v1211
        %v1213 = vpop.f32.mrf.mxu0
        %v1214 = vadd.f32 0.0, %v1213
        %1215 = vmatmul.bf16.gmra.mxu0 %v1150
        %v1216 = vpop.f32.mrf.mxu0
        %v1217 = vadd.f32 0.0, %v1216
        %v1218 = vpop.f32.mrf.mxu0
        %1219 = vdwg.mxu0
        %1220 = vmatpush.bf16.msra.mxu0 0
        %1221 = vmatpush.bf16.msra.mxu0 0
        %1222 = vmatpush.bf16.msra.mxu0 0
        %1223 = vmatpush.bf16.msra.mxu0 0
        %1224 = vmatpush.bf16.msra.mxu0 0
        %1225 = vmatpush.bf16.msra.mxu0 0
        %1226 = vmatpush.bf16.msra.mxu0 %v1159
        %1227 = vmatpush.bf16.msra.mxu0 %v1130
        %1228 = vmatmul.bf16.gmra.mxu0 %v1141
        %v1229 = vpop.f32.mrf.mxu0
        %v1230 = vadd.f32 0.0, %v1229
        %v1231 = vpop.f32.mrf.mxu0
        %v1232 = vadd.f32 0.0, %v1231
        %1233 = vmatmul.bf16.gmra.mxu0 %v1144
        %v1234 = vpop.f32.mrf.mxu0
        %v1235 = vadd.f32 0.0, %v1234
        %v1236 = vpop.f32.mrf.mxu0
        %v1237 = vadd.f32 0.0, %v1236
        %1238 = vmatmul.bf16.gmra.mxu0 %v1147
        %v1239 = vpop.f32.mrf.mxu0
        %v1240 = vadd.f32 0.0, %v1239
        %v1241 = vpop.f32.mrf.mxu0
        %v1242 = vadd.f32 0.0, %v1241
        %1243 = vmatmul.bf16.gmra.mxu0 %v1150
        %v1244 = vpop.f32.mrf.mxu0
        %v1245 = vadd.f32 0.0, %v1244
        %v1246 = vpop.f32.mrf.mxu0
        %1247 = vdwg.mxu0
        %1248 = vmatpush.bf16.msra.mxu0 0
        %1249 = vmatpush.bf16.msra.mxu0 0
        %1250 = vmatpush.bf16.msra.mxu0 0
        %1251 = vmatpush.bf16.msra.mxu0 0
        %1252 = vmatpush.bf16.msra.mxu0 0
        %1253 = vmatpush.bf16.msra.mxu0 0
        %1254 = vmatpush.bf16.msra.mxu0 %v1162
        %1255 = vmatpush.bf16.msra.mxu0 %v1131
        %1256 = vmatmul.bf16.gmra.mxu0 %v1141
        %v1257 = vpop.f32.mrf.mxu0
        %v1258 = vadd.f32 0.0, %v1257
        %v1259 = vpop.f32.mrf.mxu0
        %v1260 = vadd.f32 0.0, %v1259
        %1261 = vmatmul.bf16.gmra.mxu0 %v1144
        %v1262 = vpop.f32.mrf.mxu0
        %v1263 = vadd.f32 0.0, %v1262
        %v1264 = vpop.f32.mrf.mxu0
        %v1265 = vadd.f32 0.0, %v1264
        %1266 = vmatmul.bf16.gmra.mxu0 %v1147
        %v1267 = vpop.f32.mrf.mxu0
        %v1268 = vadd.f32 0.0, %v1267
        %v1269 = vpop.f32.mrf.mxu0
        %v1270 = vadd.f32 0.0, %v1269
        %1271 = vmatmul.bf16.gmra.mxu0 %v1150
        %v1272 = vpop.f32.mrf.mxu0
        %v1273 = vadd.f32 0.0, %v1272
        %v1274 = vpop.f32.mrf.mxu0
        %1275 = vdwg.mxu0
        %v1276 = vadd.f32 %v981, %v1174
        %v1277 = vadd.f32 %v1009, %v1202
        %v1278 = vadd.f32 %v1037, %v1230
        %v1279 = vadd.f32 %v1065, %v1258
        %v1280 = vadd.f32 %v983, %v1176
        %v1281 = vadd.f32 %v1011, %v1204
        %v1282 = vadd.f32 %v1039, %v1232
        %v1283 = vadd.f32 %v1067, %v1260
        %v1284 = vadd.f32 %v986, %v1179
        %v1285 = vadd.f32 %v1014, %v1207
        %v1286 = vadd.f32 %v1042, %v1235
        %v1287 = vadd.f32 %v1070, %v1263
        %v1288 = vadd.f32 %v988, %v1181
        %v1289 = vadd.f32 %v1016, %v1209
        %v1290 = vadd.f32 %v1044, %v1237
        %v1291 = vadd.f32 %v1072, %v1265
        %v1292 = vadd.f32 %v991, %v1184
        %v1293 = vadd.f32 %v1019, %v1212
        %v1294 = vadd.f32 %v1047, %v1240
        %v1295 = vadd.f32 %v1075, %v1268
        %v1296 = vadd.f32 %v993, %v1186
        %v1297 = vadd.f32 %v1021, %v1214
        %v1298 = vadd.f32 %v1049, %v1242
        %v1299 = vadd.f32 %v1077, %v1270
        %v1300 = vadd.f32 %v996, %v1189
        %v1301 = vadd.f32 %v1024, %v1217
        %v1302 = vadd.f32 %v1052, %v1245
        %v1303 = vadd.f32 %v1080, %v1273
        %v1304 = vld [vmem:[#allocation6] sm:$0xf]
        %v1306 = vperm.slane %v1304, 0
        %v1307 = vperm.slane %v1304, 1
        %v1308 = vperm.slane %v1304, 2
        %v1309 = vperm.slane %v1304, 3
        %v1314 = vadd.f32 %v1276, %v1306
        %v1315 = vadd.f32 %v1277, %v1307
        %v1316 = vadd.f32 %v1278, %v1308
        %v1317 = vadd.f32 %v1279, %v1309
        %v1318 = vadd.f32 %v1280, %v1306
        %v1319 = vadd.f32 %v1281, %v1307
        %v1320 = vadd.f32 %v1282, %v1308
        %v1321 = vadd.f32 %v1283, %v1309
        %v1322 = vadd.f32 %v1284, %v1306
        %v1323 = vadd.f32 %v1285, %v1307
        %v1324 = vadd.f32 %v1286, %v1308
        %v1325 = vadd.f32 %v1287, %v1309
        %v1326 = vadd.f32 %v1288, %v1306
        %v1327 = vadd.f32 %v1289, %v1307
        %v1328 = vadd.f32 %v1290, %v1308
        %v1329 = vadd.f32 %v1291, %v1309
        %v1330 = vadd.f32 %v1292, %v1306
        %v1331 = vadd.f32 %v1293, %v1307
        %v1332 = vadd.f32 %v1294, %v1308
        %v1333 = vadd.f32 %v1295, %v1309
        %v1334 = vadd.f32 %v1296, %v1306
        %v1335 = vadd.f32 %v1297, %v1307
        %v1336 = vadd.f32 %v1298, %v1308
        %v1337 = vadd.f32 %v1299, %v1309
        %v1338 = vadd.f32 %v1300, %v1306
        %v1339 = vadd.f32 %v1301, %v1307
        %v1340 = vadd.f32 %v1302, %v1308
        %v1341 = vadd.f32 %v1303, %v1309
        %v1342 = vmax.f32 %v1314, 0.0
        %v1343 = vmax.f32 %v1315, 0.0
        %v1344 = vmax.f32 %v1316, 0.0
        %v1345 = vmax.f32 %v1317, 0.0
        %v1346 = vmax.f32 %v1318, 0.0
        %v1347 = vmax.f32 %v1319, 0.0
        %v1348 = vmax.f32 %v1320, 0.0
        %v1349 = vmax.f32 %v1321, 0.0
        %v1350 = vmax.f32 %v1322, 0.0
        %v1351 = vmax.f32 %v1323, 0.0
        %v1352 = vmax.f32 %v1324, 0.0
        %v1353 = vmax.f32 %v1325, 0.0
        %v1354 = vmax.f32 %v1326, 0.0
        %v1355 = vmax.f32 %v1327, 0.0
        %v1356 = vmax.f32 %v1328, 0.0
        %v1357 = vmax.f32 %v1329, 0.0
        %v1358 = vmax.f32 %v1330, 0.0
        %v1359 = vmax.f32 %v1331, 0.0
        %v1360 = vmax.f32 %v1332, 0.0
        %v1361 = vmax.f32 %v1333, 0.0
        %v1362 = vmax.f32 %v1334, 0.0
        %v1363 = vmax.f32 %v1335, 0.0
        %v1364 = vmax.f32 %v1336, 0.0
        %v1365 = vmax.f32 %v1337, 0.0
        %v1366 = vmax.f32 %v1338, 0.0
        %v1367 = vmax.f32 %v1339, 0.0
        %v1368 = vmax.f32 %v1340, 0.0
        %v1369 = vmax.f32 %v1341, 0.0
        %vm1370 = vcmask 1048064
        %1371 = vrot.lane.b32.xlu0 %v1342, 64
        %v1372 = vpop.permute.xlu0 %1371
        %1373 = vrot.lane.b32.xlu0 %v1346, 64
        %v1374 = vpop.permute.xlu0 %1373
        %1375 = vrot.lane.b32.xlu0 %v1350, 64
        %v1376 = vpop.permute.xlu0 %1375
        %1377 = vrot.lane.b32.xlu0 %v1354, 64
        %v1378 = vpop.permute.xlu0 %1377
        %1379 = vrot.lane.b32.xlu0 %v1358, 64
        %v1380 = vpop.permute.xlu0 %1379
        %1381 = vrot.lane.b32.xlu0 %v1362, 64
        %v1382 = vpop.permute.xlu0 %1381
        %1383 = vrot.lane.b32.xlu0 %v1366, 64
        %v1384 = vpop.permute.xlu0 %1383
        %v1385 = vsel %vm1370, %v1372, %v1345
        %v1386 = vsel %vm1370, %v1374, %v1349
        %v1387 = vsel %vm1370, %v1376, %v1353
        %v1388 = vsel %vm1370, %v1378, %v1357
        %v1389 = vsel %vm1370, %v1380, %v1361
        %v1390 = vsel %vm1370, %v1382, %v1365
        %v1391 = vsel %vm1370, %v1384, %v1369
        %1420 = vrot.lane.b32.xlu0 %v1342, 112
        %v1421 = vpop.permute.xlu0 %1420
        %1422 = vrot.lane.b32.xlu0 %v1343, 112
        %v1423 = vpop.permute.xlu0 %1422
        %1424 = vrot.lane.b32.xlu0 %v1344, 112
        %v1425 = vpop.permute.xlu0 %1424
        %1426 = vrot.lane.b32.xlu0 %v1385, 112
        %v1427 = vpop.permute.xlu0 %1426
        %1428 = vrot.lane.b32.xlu0 %v1346, 112
        %v1429 = vpop.permute.xlu0 %1428
        %1430 = vrot.lane.b32.xlu0 %v1347, 112
        %v1431 = vpop.permute.xlu0 %1430
        %1432 = vrot.lane.b32.xlu0 %v1348, 112
        %v1433 = vpop.permute.xlu0 %1432
        %1434 = vrot.lane.b32.xlu0 %v1386, 112
        %v1435 = vpop.permute.xlu0 %1434
        %1436 = vrot.lane.b32.xlu0 %v1350, 112
        %v1437 = vpop.permute.xlu0 %1436
        %1438 = vrot.lane.b32.xlu0 %v1351, 112
        %v1439 = vpop.permute.xlu0 %1438
        %1440 = vrot.lane.b32.xlu0 %v1352, 112
        %v1441 = vpop.permute.xlu0 %1440
        %1442 = vrot.lane.b32.xlu0 %v1387, 112
        %v1443 = vpop.permute.xlu0 %1442
        %1444 = vrot.lane.b32.xlu0 %v1354, 112
        %v1445 = vpop.permute.xlu0 %1444
        %1446 = vrot.lane.b32.xlu0 %v1355, 112
        %v1447 = vpop.permute.xlu0 %1446
        %1448 = vrot.lane.b32.xlu0 %v1356, 112
        %v1449 = vpop.permute.xlu0 %1448
        %1450 = vrot.lane.b32.xlu0 %v1388, 112
        %v1451 = vpop.permute.xlu0 %1450
        %1452 = vrot.lane.b32.xlu0 %v1358, 112
        %v1453 = vpop.permute.xlu0 %1452
        %1454 = vrot.lane.b32.xlu0 %v1359, 112
        %v1455 = vpop.permute.xlu0 %1454
        %1456 = vrot.lane.b32.xlu0 %v1360, 112
        %v1457 = vpop.permute.xlu0 %1456
        %1458 = vrot.lane.b32.xlu0 %v1389, 112
        %v1459 = vpop.permute.xlu0 %1458
        %1460 = vrot.lane.b32.xlu0 %v1362, 112
        %v1461 = vpop.permute.xlu0 %1460
        %1462 = vrot.lane.b32.xlu0 %v1363, 112
        %v1463 = vpop.permute.xlu0 %1462
        %1464 = vrot.lane.b32.xlu0 %v1364, 112
        %v1465 = vpop.permute.xlu0 %1464
        %1466 = vrot.lane.b32.xlu0 %v1390, 112
        %v1467 = vpop.permute.xlu0 %1466
        %1468 = vrot.lane.b32.xlu0 %v1366, 112
        %v1469 = vpop.permute.xlu0 %1468
        %1470 = vrot.lane.b32.xlu0 %v1367, 112
        %v1471 = vpop.permute.xlu0 %1470
        %1472 = vrot.lane.b32.xlu0 %v1368, 112
        %v1473 = vpop.permute.xlu0 %1472
        %1474 = vrot.lane.b32.xlu0 %v1391, 112
        %v1475 = vpop.permute.xlu0 %1474
        %vm1476 = vcmask 916480
        %v1477 = vsel %vm1476, %v1421, %v1423
        %v1478 = vsel %vm1476, %v1423, %v1425
        %v1479 = vsel %vm1476, %v1425, %v1427
        %v1480 = vsel %vm1476, %v1429, %v1431
        %v1481 = vsel %vm1476, %v1431, %v1433
        %v1482 = vsel %vm1476, %v1433, %v1435
        %v1483 = vsel %vm1476, %v1437, %v1439
        %v1484 = vsel %vm1476, %v1439, %v1441
        %v1485 = vsel %vm1476, %v1441, %v1443
        %v1486 = vsel %vm1476, %v1445, %v1447
        %v1487 = vsel %vm1476, %v1447, %v1449
        %v1488 = vsel %vm1476, %v1449, %v1451
        %v1489 = vsel %vm1476, %v1453, %v1455
        %v1490 = vsel %vm1476, %v1455, %v1457
        %v1491 = vsel %vm1476, %v1457, %v1459
        %v1492 = vsel %vm1476, %v1461, %v1463
        %v1493 = vsel %vm1476, %v1463, %v1465
        %v1494 = vsel %vm1476, %v1465, %v1467
        %v1495 = vsel %vm1476, %v1469, %v1471
        %v1496 = vsel %vm1476, %v1471, %v1473
        %v1497 = vsel %vm1476, %v1473, %v1475
        %v1526 = vmax.f32 %v1342, %v1477
        %v1527 = vmax.f32 %v1343, %v1478
        %v1528 = vmax.f32 %v1344, %v1479
        %v1529 = vmax.f32 %v1345, %v1427
        %v1530 = vmax.f32 %v1346, %v1480
        %v1531 = vmax.f32 %v1347, %v1481
        %v1532 = vmax.f32 %v1348, %v1482
        %v1533 = vmax.f32 %v1349, %v1435
        %v1534 = vmax.f32 %v1350, %v1483
        %v1535 = vmax.f32 %v1351, %v1484
        %v1536 = vmax.f32 %v1352, %v1485
        %v1537 = vmax.f32 %v1353, %v1443
        %v1538 = vmax.f32 %v1354, %v1486
        %v1539 = vmax.f32 %v1355, %v1487
        %v1540 = vmax.f32 %v1356, %v1488
        %v1541 = vmax.f32 %v1357, %v1451
        %v1542 = vmax.f32 %v1358, %v1489
        %v1543 = vmax.f32 %v1359, %v1490
        %v1544 = vmax.f32 %v1360, %v1491
        %v1545 = vmax.f32 %v1361, %v1459
        %v1546 = vmax.f32 %v1362, %v1492
        %v1547 = vmax.f32 %v1363, %v1493
        %v1548 = vmax.f32 %v1364, %v1494
        %v1549 = vmax.f32 %v1365, %v1467
        %v1550 = vmax.f32 %v1366, %v1495
        %v1551 = vmax.f32 %v1367, %v1496
        %v1552 = vmax.f32 %v1368, %v1497
        %v1553 = vmax.f32 %v1369, %v1475
        %v1554 = vpack.c.bf16 %v1530, %v1526
        %v1555 = vpack.c.bf16 %v1531, %v1527
        %v1556 = vpack.c.bf16 %v1532, %v1528
        %v1557 = vpack.c.bf16 %v1533, %v1529
        %v1558 = vpack.c.bf16 %v1538, %v1534
        %v1559 = vpack.c.bf16 %v1539, %v1535
        %v1560 = vpack.c.bf16 %v1540, %v1536
        %v1561 = vpack.c.bf16 %v1541, %v1537
        %v1562 = vpack.c.bf16 %v1546, %v1542
        %v1563 = vpack.c.bf16 %v1547, %v1543
        %v1564 = vpack.c.bf16 %v1548, %v1544
        %v1565 = vpack.c.bf16 %v1549, %v1545
        %v1566 = vpack.c.bf16 %v1550, %v1550
        %v1567 = vpack.c.bf16 %v1551, %v1551
        %v1568 = vpack.c.bf16 %v1552, %v1552
        %v1569 = vpack.c.bf16 %v1553, %v1553
        %v1570 = vld [vmem:[#allocation8] sm:$0xf]
        %v1571 = vld [vmem:[#allocation8 + $0x4] sm:$0xf]
        %v1572 = vld [vmem:[#allocation8 + $0x8] sm:$0xf]
        %v1573 = vld [vmem:[#allocation8 + $0xc] sm:$0x3]
        %v1578 = vunpack.c.l.b16 %v1570
        %v1579 = vunpack.c.l.b16 %v1571
        %v1580 = vunpack.c.l.b16 %v1572
        %v1581 = vunpack.c.l.b16 %v1573
        %v1582 = vpack.c.b16 %v1579, %v1578
        %v1583 = vpack.c.b16 %v1581, %v1580
        %vm1584 = vcmask 457728
        %v1586 = vsel %vm1584, %v1582, 0
        %v1589 = vsel %vm1584, %v1583, 0
        %vm1591 = vcmask 1043456
        %v1593 = vsel %vm1591, %v1566, 0
        %v1596 = vsel %vm1591, %v1567, 0
        %v1599 = vsel %vm1591, %v1568, 0
        %v1602 = vsel %vm1591, %v1569, 0
        %1604 = vmatpush.bf16.msra.mxu0 0
        %1605 = vmatpush.bf16.msra.mxu0 0
        %1606 = vmatpush.bf16.msra.mxu0 0
        %1607 = vmatpush.bf16.msra.mxu0 0
        %1608 = vmatpush.bf16.msra.mxu0 %v1593
        %1609 = vmatpush.bf16.msra.mxu0 %v1562
        %1610 = vmatpush.bf16.msra.mxu0 %v1558
        %1611 = vmatpush.bf16.msra.mxu0 %v1554
        %1612 = vmatmul.bf16.gmra.mxu0 %v1586
        %v1613 = vpop.f32.mrf.mxu0
        %v1614 = vadd.f32 0.0, %v1613
        %v1615 = vpop.f32.mrf.mxu0
        %v1616 = vadd.f32 0.0, %v1615
        %1617 = vmatmul.bf16.gmra.mxu0 %v1589
        %v1618 = vpop.f32.mrf.mxu0
        %v1619 = vadd.f32 0.0, %v1618
        %v1620 = vpop.f32.mrf.mxu0
        %v1621 = vadd.f32 0.0, %v1620
        %1622 = vdwg.mxu0
        %1623 = vmatpush.bf16.msra.mxu0 0
        %1624 = vmatpush.bf16.msra.mxu0 0
        %1625 = vmatpush.bf16.msra.mxu0 0
        %1626 = vmatpush.bf16.msra.mxu0 0
        %1627 = vmatpush.bf16.msra.mxu0 %v1596
        %1628 = vmatpush.bf16.msra.mxu0 %v1563
        %1629 = vmatpush.bf16.msra.mxu0 %v1559
        %1630 = vmatpush.bf16.msra.mxu0 %v1555
        %1631 = vmatmul.bf16.gmra.mxu0 %v1586
        %v1632 = vpop.f32.mrf.mxu0
        %v1633 = vadd.f32 0.0, %v1632
        %v1634 = vpop.f32.mrf.mxu0
        %v1635 = vadd.f32 0.0, %v1634
        %1636 = vmatmul.bf16.gmra.mxu0 %v1589
        %v1637 = vpop.f32.mrf.mxu0
        %v1638 = vadd.f32 0.0, %v1637
        %v1639 = vpop.f32.mrf.mxu0
        %v1640 = vadd.f32 0.0, %v1639
        %1641 = vdwg.mxu0
        %1642 = vmatpush.bf16.msra.mxu0 0
        %1643 = vmatpush.bf16.msra.mxu0 0
        %1644 = vmatpush.bf16.msra.mxu0 0
        %1645 = vmatpush.bf16.msra.mxu0 0
        %1646 = vmatpush.bf16.msra.mxu0 %v1599
        %1647 = vmatpush.bf16.msra.mxu0 %v1564
        %1648 = vmatpush.bf16.msra.mxu0 %v1560
        %1649 = vmatpush.bf16.msra.mxu0 %v1556
        %1650 = vmatmul.bf16.gmra.mxu0 %v1586
        %v1651 = vpop.f32.mrf.mxu0
        %v1652 = vadd.f32 0.0, %v1651
        %v1653 = vpop.f32.mrf.mxu0
        %v1654 = vadd.f32 0.0, %v1653
        %1655 = vmatmul.bf16.gmra.mxu0 %v1589
        %v1656 = vpop.f32.mrf.mxu0
        %v1657 = vadd.f32 0.0, %v1656
        %v1658 = vpop.f32.mrf.mxu0
        %v1659 = vadd.f32 0.0, %v1658
        %1660 = vdwg.mxu0
        %1661 = vmatpush.bf16.msra.mxu0 0
        %1662 = vmatpush.bf16.msra.mxu0 0
        %1663 = vmatpush.bf16.msra.mxu0 0
        %1664 = vmatpush.bf16.msra.mxu0 0
        %1665 = vmatpush.bf16.msra.mxu0 %v1602
        %1666 = vmatpush.bf16.msra.mxu0 %v1565
        %1667 = vmatpush.bf16.msra.mxu0 %v1561
        %1668 = vmatpush.bf16.msra.mxu0 %v1557
        %1669 = vmatmul.bf16.gmra.mxu0 %v1586
        %v1670 = vpop.f32.mrf.mxu0
        %v1671 = vadd.f32 0.0, %v1670
        %v1672 = vpop.f32.mrf.mxu0
        %v1673 = vadd.f32 0.0, %v1672
        %1674 = vmatmul.bf16.gmra.mxu0 %v1589
        %v1675 = vpop.f32.mrf.mxu0
        %v1676 = vadd.f32 0.0, %v1675
        %v1677 = vpop.f32.mrf.mxu0
        %v1678 = vadd.f32 0.0, %v1677
        %1679 = vdwg.mxu0
        %v1680 = vld [vmem:[#allocation9] sm:$0xf]
        %v1681 = vld [vmem:[#allocation9 + $0x4] sm:$0xf]
        %v1682 = vld [vmem:[#allocation9 + $0x8] sm:$0xf]
        %v1683 = vld [vmem:[#allocation9 + $0xc] sm:$0x3]
        %v1688 = vunpack.c.l.b16 %v1680
        %v1689 = vunpack.c.l.b16 %v1681
        %v1690 = vunpack.c.l.b16 %v1682
        %v1691 = vunpack.c.l.b16 %v1683
        %v1692 = vpack.c.b16 %v1689, %v1688
        %v1693 = vpack.c.b16 %v1691, %v1690
        %v1695 = vsel %vm1584, %v1692, 0
        %v1698 = vsel %vm1584, %v1693, 0
        %1700 = vmatpush.bf16.msra.mxu0 0
        %1701 = vmatpush.bf16.msra.mxu0 0
        %1702 = vmatpush.bf16.msra.mxu0 0
        %1703 = vmatpush.bf16.msra.mxu0 0
        %1704 = vmatpush.bf16.msra.mxu0 %v1593
        %1705 = vmatpush.bf16.msra.mxu0 %v1562
        %1706 = vmatpush.bf16.msra.mxu0 %v1558
        %1707 = vmatpush.bf16.msra.mxu0 %v1554
        %1708 = vmatmul.bf16.gmra.mxu0 %v1695
        %v1709 = vpop.f32.mrf.mxu0
        %v1710 = vadd.f32 0.0, %v1709
        %v1711 = vpop.f32.mrf.mxu0
        %v1712 = vadd.f32 0.0, %v1711
        %1713 = vmatmul.bf16.gmra.mxu0 %v1698
        %v1714 = vpop.f32.mrf.mxu0
        %v1715 = vadd.f32 0.0, %v1714
        %v1716 = vpop.f32.mrf.mxu0
        %v1717 = vadd.f32 0.0, %v1716
        %1718 = vdwg.mxu0
        %1719 = vmatpush.bf16.msra.mxu0 0
        %1720 = vmatpush.bf16.msra.mxu0 0
        %1721 = vmatpush.bf16.msra.mxu0 0
        %1722 = vmatpush.bf16.msra.mxu0 0
        %1723 = vmatpush.bf16.msra.mxu0 %v1596
        %1724 = vmatpush.bf16.msra.mxu0 %v1563
        %1725 = vmatpush.bf16.msra.mxu0 %v1559
        %1726 = vmatpush.bf16.msra.mxu0 %v1555
        %1727 = vmatmul.bf16.gmra.mxu0 %v1695
        %v1728 = vpop.f32.mrf.mxu0
        %v1729 = vadd.f32 0.0, %v1728
        %v1730 = vpop.f32.mrf.mxu0
        %v1731 = vadd.f32 0.0, %v1730
        %1732 = vmatmul.bf16.gmra.mxu0 %v1698
        %v1733 = vpop.f32.mrf.mxu0
        %v1734 = vadd.f32 0.0, %v1733
        %v1735 = vpop.f32.mrf.mxu0
        %v1736 = vadd.f32 0.0, %v1735
        %1737 = vdwg.mxu0
        %1738 = vmatpush.bf16.msra.mxu0 0
        %1739 = vmatpush.bf16.msra.mxu0 0
        %1740 = vmatpush.bf16.msra.mxu0 0
        %1741 = vmatpush.bf16.msra.mxu0 0
        %1742 = vmatpush.bf16.msra.mxu0 %v1599
        %1743 = vmatpush.bf16.msra.mxu0 %v1564
        %1744 = vmatpush.bf16.msra.mxu0 %v1560
        %1745 = vmatpush.bf16.msra.mxu0 %v1556
        %1746 = vmatmul.bf16.gmra.mxu0 %v1695
        %v1747 = vpop.f32.mrf.mxu0
        %v1748 = vadd.f32 0.0, %v1747
        %v1749 = vpop.f32.mrf.mxu0
        %v1750 = vadd.f32 0.0, %v1749
        %1751 = vmatmul.bf16.gmra.mxu0 %v1698
        %v1752 = vpop.f32.mrf.mxu0
        %v1753 = vadd.f32 0.0, %v1752
        %v1754 = vpop.f32.mrf.mxu0
        %v1755 = vadd.f32 0.0, %v1754
        %1756 = vdwg.mxu0
        %1757 = vmatpush.bf16.msra.mxu0 0
        %1758 = vmatpush.bf16.msra.mxu0 0
        %1759 = vmatpush.bf16.msra.mxu0 0
        %1760 = vmatpush.bf16.msra.mxu0 0
        %1761 = vmatpush.bf16.msra.mxu0 %v1602
        %1762 = vmatpush.bf16.msra.mxu0 %v1565
        %1763 = vmatpush.bf16.msra.mxu0 %v1561
        %1764 = vmatpush.bf16.msra.mxu0 %v1557
        %1765 = vmatmul.bf16.gmra.mxu0 %v1695
        %v1766 = vpop.f32.mrf.mxu0
        %v1767 = vadd.f32 0.0, %v1766
        %v1768 = vpop.f32.mrf.mxu0
        %v1769 = vadd.f32 0.0, %v1768
        %1770 = vmatmul.bf16.gmra.mxu0 %v1698
        %v1771 = vpop.f32.mrf.mxu0
        %v1772 = vadd.f32 0.0, %v1771
        %v1773 = vpop.f32.mrf.mxu0
        %v1774 = vadd.f32 0.0, %v1773
        %1775 = vdwg.mxu0
        %v1776 = vmax.f32 %v1614, %v1710
        %v1777 = vmax.f32 %v1633, %v1729
        %v1778 = vmax.f32 %v1652, %v1748
        %v1779 = vmax.f32 %v1671, %v1767
        %v1780 = vmax.f32 %v1616, %v1712
        %v1781 = vmax.f32 %v1635, %v1731
        %v1782 = vmax.f32 %v1654, %v1750
        %v1783 = vmax.f32 %v1673, %v1769
        %v1784 = vmax.f32 %v1619, %v1715
        %v1785 = vmax.f32 %v1638, %v1734
        %v1786 = vmax.f32 %v1657, %v1753
        %v1787 = vmax.f32 %v1676, %v1772
        %v1788 = vmax.f32 %v1621, %v1717
        %v1789 = vmax.f32 %v1640, %v1736
        %v1790 = vmax.f32 %v1659, %v1755
        %v1791 = vmax.f32 %v1678, %v1774
        %v1792 = vpack.c.bf16 %v1780, %v1776
        %v1793 = vpack.c.bf16 %v1781, %v1777
        %v1794 = vpack.c.bf16 %v1782, %v1778
        %v1795 = vpack.c.bf16 %v1783, %v1779
        %v1796 = vpack.c.bf16 %v1788, %v1784
        %v1797 = vpack.c.bf16 %v1789, %v1785
        %v1798 = vpack.c.bf16 %v1790, %v1786
        %v1799 = vpack.c.bf16 %v1791, %v1787
        %v1800 = vld [vmem:[#allocation11] sm:$0xff]
        %v1801 = vld [vmem:[#allocation11 + $0x8] sm:$0xff]
        %v1802 = vld [vmem:[#allocation11 + $0x10] sm:$0xff]
        %v1803 = vld [vmem:[#allocation11 + $0x18] sm:$0xff]
        %v1804 = vld [vmem:[#allocation11 + $0x20] sm:$0xff]
        %v1805 = vld [vmem:[#allocation11 + $0x28] sm:$0xff]
        %v1806 = vld [vmem:[#allocation11 + $0x30] sm:$0xff]
        %v1807 = vld [vmem:[#allocation11 + $0x38] sm:$0xff]
        %v1808 = vld [vmem:[#allocation11 + $0x40] sm:$0xff]
        %v1809 = vld [vmem:[#allocation11 + $0x48] sm:$0xff]
        %v1810 = vld [vmem:[#allocation11 + $0x50] sm:$0xff]
        %v1811 = vld [vmem:[#allocation11 + $0x58] sm:$0xff]
        %v1812 = vld [vmem:[#allocation11 + $0x60] sm:$0xff]
        %v1813 = vld [vmem:[#allocation11 + $0x68] sm:$0xff]
        %v1814 = vld [vmem:[#allocation11 + $0x70] sm:$0xff]
        %v1815 = vld [vmem:[#allocation11 + $0x78] sm:$0xff]
        %v1816 = vld [vmem:[#allocation11 + $0x80] sm:$0xff]
        %v1817 = vld [vmem:[#allocation11 + $0x88] sm:$0xff]
        %v1818 = vld [vmem:[#allocation11 + $0x90] sm:$0xff]
        %v1819 = vld [vmem:[#allocation11 + $0x98] sm:$0xff]
        %v1820 = vld [vmem:[#allocation11 + $0xa0] sm:$0xff]
        %v1821 = vld [vmem:[#allocation11 + $0xa8] sm:$0xff]
        %v1822 = vld [vmem:[#allocation11 + $0xb0] sm:$0xff]
        %v1823 = vld [vmem:[#allocation11 + $0xb8] sm:$0xff]
        %v1824 = vld [vmem:[#allocation11 + $0xc0] sm:$0xff]
        %v1825 = vld [vmem:[#allocation11 + $0xc8] sm:$0xff]
        %v1826 = vld [vmem:[#allocation11 + $0xd0] sm:$0xff]
        %v1827 = vld [vmem:[#allocation11 + $0xd8] sm:$0xff]
        %v1828 = vld [vmem:[#allocation11 + $0xe0] sm:$0xff]
        %v1829 = vld [vmem:[#allocation11 + $0xe8] sm:$0xff]
        %v1830 = vld [vmem:[#allocation11 + $0xf0] sm:$0xff]
        %v1831 = vld [vmem:[#allocation11 + $0xf8] sm:$0xff]
        %v1832 = vld [vmem:[#allocation11 + $0x100] sm:$0xff]
        %v1833 = vld [vmem:[#allocation11 + $0x108] sm:$0xff]
        %v1834 = vld [vmem:[#allocation11 + $0x110] sm:$0xff]
        %v1835 = vld [vmem:[#allocation11 + $0x118] sm:$0xff]
        %v1836 = vld [vmem:[#allocation11 + $0x120] sm:$0xff]
        %v1837 = vld [vmem:[#allocation11 + $0x128] sm:$0xff]
        %v1838 = vld [vmem:[#allocation11 + $0x130] sm:$0xff]
        %v1839 = vld [vmem:[#allocation11 + $0x138] sm:$0xff]
        %v1840 = vld [vmem:[#allocation11 + $0x140] sm:$0xff]
        %v1841 = vld [vmem:[#allocation11 + $0x148] sm:$0xff]
        %v1842 = vld [vmem:[#allocation11 + $0x150] sm:$0xff]
        %v1843 = vld [vmem:[#allocation11 + $0x158] sm:$0xff]
        %v1844 = vld [vmem:[#allocation11 + $0x160] sm:$0xff]
        %v1845 = vld [vmem:[#allocation11 + $0x168] sm:$0xff]
        %v1846 = vld [vmem:[#allocation11 + $0x170] sm:$0xff]
        %v1847 = vld [vmem:[#allocation11 + $0x178] sm:$0xff]
        %v1848 = vld [vmem:[#allocation11 + $0x180] sm:$0xff]
        %v1849 = vld [vmem:[#allocation11 + $0x188] sm:$0xff]
        %v1850 = vld [vmem:[#allocation11 + $0x190] sm:$0xff]
        %v1851 = vld [vmem:[#allocation11 + $0x198] sm:$0xff]
        %v1852 = vld [vmem:[#allocation11 + $0x1a0] sm:$0xff]
        %v1853 = vld [vmem:[#allocation11 + $0x1a8] sm:$0xff]
        %v1854 = vld [vmem:[#allocation11 + $0x1b0] sm:$0xff]
        %v1855 = vld [vmem:[#allocation11 + $0x1b8] sm:$0xff]
        %v1912 = vunpack.c.l.b16 %v1800
        %v1913 = vunpack.c.h.b16 %v1800
        %v1914 = vunpack.c.l.b16 %v1801
        %v1915 = vunpack.c.h.b16 %v1801
        %v1916 = vunpack.c.l.b16 %v1802
        %v1917 = vunpack.c.h.b16 %v1802
        %v1918 = vunpack.c.l.b16 %v1803
        %v1919 = vunpack.c.h.b16 %v1803
        %v1920 = vunpack.c.l.b16 %v1804
        %v1921 = vunpack.c.h.b16 %v1804
        %v1922 = vunpack.c.l.b16 %v1805
        %v1923 = vunpack.c.h.b16 %v1805
        %v1924 = vunpack.c.l.b16 %v1806
        %v1925 = vunpack.c.h.b16 %v1806
        %v1926 = vunpack.c.l.b16 %v1807
        %v1927 = vunpack.c.h.b16 %v1807
        %v1928 = vunpack.c.l.b16 %v1808
        %v1929 = vunpack.c.h.b16 %v1808
        %v1930 = vunpack.c.l.b16 %v1809
        %v1931 = vunpack.c.h.b16 %v1809
        %v1932 = vunpack.c.l.b16 %v1810
        %v1933 = vunpack.c.h.b16 %v1810
        %v1934 = vunpack.c.l.b16 %v1811
        %v1935 = vunpack.c.h.b16 %v1811
        %v1936 = vunpack.c.l.b16 %v1812
        %v1937 = vunpack.c.h.b16 %v1812
        %v1938 = vunpack.c.l.b16 %v1813
        %v1939 = vunpack.c.h.b16 %v1813
        %v1940 = vunpack.c.l.b16 %v1814
        %v1941 = vunpack.c.h.b16 %v1814
        %v1942 = vunpack.c.l.b16 %v1815
        %v1943 = vunpack.c.h.b16 %v1815
        %v1944 = vunpack.c.l.b16 %v1816
        %v1945 = vunpack.c.h.b16 %v1816
        %v1946 = vunpack.c.l.b16 %v1817
        %v1947 = vunpack.c.h.b16 %v1817
        %v1948 = vunpack.c.l.b16 %v1818
        %v1949 = vunpack.c.h.b16 %v1818
        %v1950 = vunpack.c.l.b16 %v1819
        %v1951 = vunpack.c.h.b16 %v1819
        %v1952 = vunpack.c.l.b16 %v1820
        %v1953 = vunpack.c.h.b16 %v1820
        %v1954 = vunpack.c.l.b16 %v1821
        %v1955 = vunpack.c.h.b16 %v1821
        %v1956 = vunpack.c.l.b16 %v1822
        %v1957 = vunpack.c.h.b16 %v1822
        %v1958 = vunpack.c.l.b16 %v1823
        %v1959 = vunpack.c.h.b16 %v1823
        %v1960 = vunpack.c.l.b16 %v1824
        %v1961 = vunpack.c.h.b16 %v1824
        %v1962 = vunpack.c.l.b16 %v1825
        %v1963 = vunpack.c.h.b16 %v1825
        %v1964 = vunpack.c.l.b16 %v1826
        %v1965 = vunpack.c.h.b16 %v1826
        %v1966 = vunpack.c.l.b16 %v1827
        %v1967 = vunpack.c.h.b16 %v1827
        %v1968 = vunpack.c.l.b16 %v1828
        %v1969 = vunpack.c.h.b16 %v1828
        %v1970 = vunpack.c.l.b16 %v1829
        %v1971 = vunpack.c.h.b16 %v1829
        %v1972 = vunpack.c.l.b16 %v1830
        %v1973 = vunpack.c.h.b16 %v1830
        %v1974 = vunpack.c.l.b16 %v1831
        %v1975 = vunpack.c.h.b16 %v1831
        %v1976 = vunpack.c.l.b16 %v1832
        %v1977 = vunpack.c.h.b16 %v1832
        %v1978 = vunpack.c.l.b16 %v1833
        %v1979 = vunpack.c.h.b16 %v1833
        %v1980 = vunpack.c.l.b16 %v1834
        %v1981 = vunpack.c.h.b16 %v1834
        %v1982 = vunpack.c.l.b16 %v1835
        %v1983 = vunpack.c.h.b16 %v1835
        %v1984 = vunpack.c.l.b16 %v1836
        %v1985 = vunpack.c.h.b16 %v1836
        %v1986 = vunpack.c.l.b16 %v1837
        %v1987 = vunpack.c.h.b16 %v1837
        %v1988 = vunpack.c.l.b16 %v1838
        %v1989 = vunpack.c.h.b16 %v1838
        %v1990 = vunpack.c.l.b16 %v1839
        %v1991 = vunpack.c.h.b16 %v1839
        %v1992 = vunpack.c.l.b16 %v1840
        %v1993 = vunpack.c.h.b16 %v1840
        %v1994 = vunpack.c.l.b16 %v1841
        %v1995 = vunpack.c.h.b16 %v1841
        %v1996 = vunpack.c.l.b16 %v1842
        %v1997 = vunpack.c.h.b16 %v1842
        %v1998 = vunpack.c.l.b16 %v1843
        %v1999 = vunpack.c.h.b16 %v1843
        %v2000 = vunpack.c.l.b16 %v1844
        %v2001 = vunpack.c.h.b16 %v1844
        %v2002 = vunpack.c.l.b16 %v1845
        %v2003 = vunpack.c.h.b16 %v1845
        %v2004 = vunpack.c.l.b16 %v1846
        %v2005 = vunpack.c.h.b16 %v1846
        %v2006 = vunpack.c.l.b16 %v1847
        %v2007 = vunpack.c.h.b16 %v1847
        %v2008 = vunpack.c.l.b16 %v1848
        %v2009 = vunpack.c.h.b16 %v1848
        %v2010 = vunpack.c.l.b16 %v1849
        %v2011 = vunpack.c.h.b16 %v1849
        %v2012 = vunpack.c.l.b16 %v1850
        %v2013 = vunpack.c.h.b16 %v1850
        %v2014 = vunpack.c.l.b16 %v1851
        %v2015 = vunpack.c.h.b16 %v1851
        %v2016 = vunpack.c.l.b16 %v1852
        %v2017 = vunpack.c.h.b16 %v1852
        %v2018 = vunpack.c.l.b16 %v1853
        %v2019 = vunpack.c.h.b16 %v1853
        %v2020 = vunpack.c.l.b16 %v1854
        %v2021 = vunpack.c.h.b16 %v1854
        %v2022 = vunpack.c.l.b16 %v1855
        %v2023 = vunpack.c.h.b16 %v1855
        %v2024 = vpack.c.b16 %v1914, %v1912
        %v2025 = vpack.c.b16 %v1915, %v1913
        %v2026 = vpack.c.b16 %v1918, %v1916
        %v2027 = vpack.c.b16 %v1919, %v1917
        %v2028 = vpack.c.b16 %v1922, %v1920
        %v2029 = vpack.c.b16 %v1923, %v1921
        %v2030 = vpack.c.b16 %v1926, %v1924
        %v2031 = vpack.c.b16 %v1927, %v1925
        %v2032 = vpack.c.b16 %v1930, %v1928
        %v2033 = vpack.c.b16 %v1931, %v1929
        %v2034 = vpack.c.b16 %v1934, %v1932
        %v2035 = vpack.c.b16 %v1935, %v1933
        %v2036 = vpack.c.b16 %v1938, %v1936
        %v2037 = vpack.c.b16 %v1939, %v1937
        %v2038 = vpack.c.b16 %v1942, %v1940
        %v2039 = vpack.c.b16 %v1943, %v1941
        %v2040 = vpack.c.b16 %v1946, %v1944
        %v2041 = vpack.c.b16 %v1947, %v1945
        %v2042 = vpack.c.b16 %v1950, %v1948
        %v2043 = vpack.c.b16 %v1951, %v1949
        %v2044 = vpack.c.b16 %v1954, %v1952
        %v2045 = vpack.c.b16 %v1955, %v1953
        %v2046 = vpack.c.b16 %v1958, %v1956
        %v2047 = vpack.c.b16 %v1959, %v1957
        %v2048 = vpack.c.b16 %v1962, %v1960
        %v2049 = vpack.c.b16 %v1963, %v1961
        %v2050 = vpack.c.b16 %v1966, %v1964
        %v2051 = vpack.c.b16 %v1967, %v1965
        %v2052 = vpack.c.b16 %v1970, %v1968
        %v2053 = vpack.c.b16 %v1971, %v1969
        %v2054 = vpack.c.b16 %v1974, %v1972
        %v2055 = vpack.c.b16 %v1975, %v1973
        %v2056 = vpack.c.b16 %v1978, %v1976
        %v2057 = vpack.c.b16 %v1979, %v1977
        %v2058 = vpack.c.b16 %v1982, %v1980
        %v2059 = vpack.c.b16 %v1983, %v1981
        %v2060 = vpack.c.b16 %v1986, %v1984
        %v2061 = vpack.c.b16 %v1987, %v1985
        %v2062 = vpack.c.b16 %v1990, %v1988
        %v2063 = vpack.c.b16 %v1991, %v1989
        %v2064 = vpack.c.b16 %v1994, %v1992
        %v2065 = vpack.c.b16 %v1995, %v1993
        %v2066 = vpack.c.b16 %v1998, %v1996
        %v2067 = vpack.c.b16 %v1999, %v1997
        %v2068 = vpack.c.b16 %v2002, %v2000
        %v2069 = vpack.c.b16 %v2003, %v2001
        %v2070 = vpack.c.b16 %v2006, %v2004
        %v2071 = vpack.c.b16 %v2007, %v2005
        %v2072 = vpack.c.b16 %v2010, %v2008
        %v2073 = vpack.c.b16 %v2011, %v2009
        %v2074 = vpack.c.b16 %v2014, %v2012
        %v2075 = vpack.c.b16 %v2015, %v2013
        %v2076 = vpack.c.b16 %v2018, %v2016
        %v2077 = vpack.c.b16 %v2019, %v2017
        %v2078 = vpack.c.b16 %v2022, %v2020
        %v2079 = vpack.c.b16 %v2023, %v2021
        %vm2136 = vcmask 523264
        %v2138 = vsel %vm2136, %v1795, 0
        %v2141 = vsel %vm2136, %v1799, 0
        %2143 = vmatpush.bf16.msra.mxu0 %v2038
        %2144 = vmatpush.bf16.msra.mxu0 %v2036
        %2145 = vmatpush.bf16.msra.mxu0 %v2034
        %2146 = vmatpush.bf16.msra.mxu0 %v2032
        %2147 = vmatpush.bf16.msra.mxu0 %v2030
        %2148 = vmatpush.bf16.msra.mxu0 %v2028
        %2149 = vmatpush.bf16.msra.mxu0 %v2026
        %2150 = vmatpush.bf16.msra.mxu0 %v2024
        %2151 = vmatmul.bf16.gmra.mxu0 %v1792
        %v2152 = vpop.f32.mrf.mxu0
        %v2153 = vadd.f32 0.0, %v2152
        %v2154 = vpop.f32.mrf.mxu0
        %v2155 = vadd.f32 0.0, %v2154
        %2156 = vmatmul.bf16.gmra.mxu0 %v1796
        %v2157 = vpop.f32.mrf.mxu0
        %v2158 = vadd.f32 0.0, %v2157
        %v2159 = vpop.f32.mrf.mxu0
        %v2160 = vadd.f32 0.0, %v2159
        %2161 = vdwg.mxu0
        %2162 = vmatpush.bf16.msra.mxu0 %v2054
        %2163 = vmatpush.bf16.msra.mxu0 %v2052
        %2164 = vmatpush.bf16.msra.mxu0 %v2050
        %2165 = vmatpush.bf16.msra.mxu0 %v2048
        %2166 = vmatpush.bf16.msra.mxu0 %v2046
        %2167 = vmatpush.bf16.msra.mxu0 %v2044
        %2168 = vmatpush.bf16.msra.mxu0 %v2042
        %2169 = vmatpush.bf16.msra.mxu0 %v2040
        %2170 = vmatmul.bf16.gmra.mxu0 %v1793
        %v2171 = vpop.f32.mrf.mxu0
        %v2172 = vadd.f32 %v2153, %v2171
        %v2173 = vpop.f32.mrf.mxu0
        %v2174 = vadd.f32 %v2155, %v2173
        %2175 = vmatmul.bf16.gmra.mxu0 %v1797
        %v2176 = vpop.f32.mrf.mxu0
        %v2177 = vadd.f32 %v2158, %v2176
        %v2178 = vpop.f32.mrf.mxu0
        %v2179 = vadd.f32 %v2160, %v2178
        %2180 = vdwg.mxu0
        %2181 = vmatpush.bf16.msra.mxu0 %v2070
        %2182 = vmatpush.bf16.msra.mxu0 %v2068
        %2183 = vmatpush.bf16.msra.mxu0 %v2066
        %2184 = vmatpush.bf16.msra.mxu0 %v2064
        %2185 = vmatpush.bf16.msra.mxu0 %v2062
        %2186 = vmatpush.bf16.msra.mxu0 %v2060
        %2187 = vmatpush.bf16.msra.mxu0 %v2058
        %2188 = vmatpush.bf16.msra.mxu0 %v2056
        %2189 = vmatmul.bf16.gmra.mxu0 %v1794
        %v2190 = vpop.f32.mrf.mxu0
        %v2191 = vadd.f32 %v2172, %v2190
        %v2192 = vpop.f32.mrf.mxu0
        %v2193 = vadd.f32 %v2174, %v2192
        %2194 = vmatmul.bf16.gmra.mxu0 %v1798
        %v2195 = vpop.f32.mrf.mxu0
        %v2196 = vadd.f32 %v2177, %v2195
        %v2197 = vpop.f32.mrf.mxu0
        %v2198 = vadd.f32 %v2179, %v2197
        %2199 = vdwg.mxu0
        %2200 = vmatpush.bf16.msra.mxu0 0
        %2201 = vmatpush.bf16.msra.mxu0 0
        %2202 = vmatpush.bf16.msra.mxu0 0
        %2203 = vmatpush.bf16.msra.mxu0 0
        %2204 = vmatpush.bf16.msra.mxu0 %v2078
        %2205 = vmatpush.bf16.msra.mxu0 %v2076
        %2206 = vmatpush.bf16.msra.mxu0 %v2074
        %2207 = vmatpush.bf16.msra.mxu0 %v2072
        %2208 = vmatmul.bf16.gmra.mxu0 %v2138
        %v2209 = vpop.f32.mrf.mxu0
        %v2210 = vadd.f32 %v2191, %v2209
        %v2211 = vpop.f32.mrf.mxu0
        %v2212 = vadd.f32 %v2193, %v2211
        %2213 = vmatmul.bf16.gmra.mxu0 %v2141
        %v2214 = vpop.f32.mrf.mxu0
        %v2215 = vadd.f32 %v2196, %v2214
        %v2216 = vpop.f32.mrf.mxu0
        %v2217 = vadd.f32 %v2198, %v2216
        %2218 = vdwg.mxu0
        %2219 = vmatpush.bf16.msra.mxu0 %v2039
        %2220 = vmatpush.bf16.msra.mxu0 %v2037
        %2221 = vmatpush.bf16.msra.mxu0 %v2035
        %2222 = vmatpush.bf16.msra.mxu0 %v2033
        %2223 = vmatpush.bf16.msra.mxu0 %v2031
        %2224 = vmatpush.bf16.msra.mxu0 %v2029
        %2225 = vmatpush.bf16.msra.mxu0 %v2027
        %2226 = vmatpush.bf16.msra.mxu0 %v2025
        %2227 = vmatmul.bf16.gmra.mxu0 %v1792
        %v2228 = vpop.f32.mrf.mxu0
        %v2229 = vadd.f32 0.0, %v2228
        %v2230 = vpop.f32.mrf.mxu0
        %v2231 = vadd.f32 0.0, %v2230
        %2232 = vmatmul.bf16.gmra.mxu0 %v1796
        %v2233 = vpop.f32.mrf.mxu0
        %v2234 = vadd.f32 0.0, %v2233
        %v2235 = vpop.f32.mrf.mxu0
        %v2236 = vadd.f32 0.0, %v2235
        %2237 = vdwg.mxu0
        %2238 = vmatpush.bf16.msra.mxu0 %v2055
        %2239 = vmatpush.bf16.msra.mxu0 %v2053
        %2240 = vmatpush.bf16.msra.mxu0 %v2051
        %2241 = vmatpush.bf16.msra.mxu0 %v2049
        %2242 = vmatpush.bf16.msra.mxu0 %v2047
        %2243 = vmatpush.bf16.msra.mxu0 %v2045
        %2244 = vmatpush.bf16.msra.mxu0 %v2043
        %2245 = vmatpush.bf16.msra.mxu0 %v2041
        %2246 = vmatmul.bf16.gmra.mxu0 %v1793
        %v2247 = vpop.f32.mrf.mxu0
        %v2248 = vadd.f32 %v2229, %v2247
        %v2249 = vpop.f32.mrf.mxu0
        %v2250 = vadd.f32 %v2231, %v2249
        %2251 = vmatmul.bf16.gmra.mxu0 %v1797
        %v2252 = vpop.f32.mrf.mxu0
        %v2253 = vadd.f32 %v2234, %v2252
        %v2254 = vpop.f32.mrf.mxu0
        %v2255 = vadd.f32 %v2236, %v2254
        %2256 = vdwg.mxu0
        %2257 = vmatpush.bf16.msra.mxu0 %v2071
        %2258 = vmatpush.bf16.msra.mxu0 %v2069
        %2259 = vmatpush.bf16.msra.mxu0 %v2067
        %2260 = vmatpush.bf16.msra.mxu0 %v2065
        %2261 = vmatpush.bf16.msra.mxu0 %v2063
        %2262 = vmatpush.bf16.msra.mxu0 %v2061
        %2263 = vmatpush.bf16.msra.mxu0 %v2059
        %2264 = vmatpush.bf16.msra.mxu0 %v2057
        %2265 = vmatmul.bf16.gmra.mxu0 %v1794
        %v2266 = vpop.f32.mrf.mxu0
        %v2267 = vadd.f32 %v2248, %v2266
        %v2268 = vpop.f32.mrf.mxu0
        %v2269 = vadd.f32 %v2250, %v2268
        %2270 = vmatmul.bf16.gmra.mxu0 %v1798
        %v2271 = vpop.f32.mrf.mxu0
        %v2272 = vadd.f32 %v2253, %v2271
        %v2273 = vpop.f32.mrf.mxu0
        %v2274 = vadd.f32 %v2255, %v2273
        %2275 = vdwg.mxu0
        %2276 = vmatpush.bf16.msra.mxu0 0
        %2277 = vmatpush.bf16.msra.mxu0 0
        %2278 = vmatpush.bf16.msra.mxu0 0
        %2279 = vmatpush.bf16.msra.mxu0 0
        %2280 = vmatpush.bf16.msra.mxu0 %v2079
        %2281 = vmatpush.bf16.msra.mxu0 %v2077
        %2282 = vmatpush.bf16.msra.mxu0 %v2075
        %2283 = vmatpush.bf16.msra.mxu0 %v2073
        %2284 = vmatmul.bf16.gmra.mxu0 %v2138
        %v2285 = vpop.f32.mrf.mxu0
        %v2286 = vadd.f32 %v2267, %v2285
        %v2287 = vpop.f32.mrf.mxu0
        %v2288 = vadd.f32 %v2269, %v2287
        %2289 = vmatmul.bf16.gmra.mxu0 %v2141
        %v2290 = vpop.f32.mrf.mxu0
        %v2291 = vadd.f32 %v2272, %v2290
        %v2292 = vpop.f32.mrf.mxu0
        %v2293 = vadd.f32 %v2274, %v2292
        %2294 = vdwg.mxu0
        %vm2295 = vcmask 1040384
        %vm2296 = vmand %vm2295, %vm551
        %vm2297 = vcmask 782340
        %vm2298 = vsmask.f32 4352
        %vm2299 = vmand %vm2297, %vm2298
        %vm2300 = vmor %vm2299, %vm2296
        %v2301 = vld [vmem:[#allocation3] sm:$0x11]
        %v2302 = vsel %vm2300, 0, %v2301
        %2303 = vst [vmem:[#allocation3] sm:$0x11] %v2302
        %vm2304 = vcmask 1042434
        %vm2305 = vsmask.f32 7946
        %vm2306 = vmand %vm2304, %vm2305
        %vm2307 = vcmask 784390
        %vm2308 = vsmask.f32 7962
        %vm2309 = vmand %vm2307, %vm2308
        %vm2310 = vmor %vm2309, %vm2306
        %v2311 = vld [vmem:[#allocation3 + $0x18] sm:$0x44]
        %v2312 = vsel %vm2310, 0, %v2311
        %2313 = vst [vmem:[#allocation3 + $0x18] sm:$0x44] %v2312
        %v2314 = vpack.c.bf16 %v2286, %v2210
        %v2315 = vpack.c.bf16 %v2288, %v2212
        %v2316 = vpack.c.bf16 %v2291, %v2215
        %v2317 = vpack.c.bf16 %v2293, %v2217
        %v2319 = vshrl.u32 %v2314, 16
        %v2321 = vrot.slane %v2319, 7
        %v2322 = vshll.u32 %v2314, 16
        %v2324 = vor.u32 %v2321, %v2322
        %v2325 = vrot.slane %v2321, 4
        %v2327 = vshrl.u32 %v2315, 16
        %v2329 = vrot.slane %v2327, 7
        %v2330 = vshll.u32 %v2315, 16
        %v2332 = vor.u32 %v2329, %v2330
        %v2333 = vsel %vm576, %v2325, %v2332
        %v2334 = vrot.slane %v2329, 4
        %v2336 = vshrl.u32 %v2316, 16
        %v2338 = vrot.slane %v2336, 7
        %v2339 = vshll.u32 %v2316, 16
        %v2341 = vor.u32 %v2338, %v2339
        %v2342 = vsel %vm576, %v2334, %v2341
        %v2343 = vrot.slane %v2338, 4
        %v2345 = vshrl.u32 %v2317, 16
        %v2347 = vrot.slane %v2345, 7
        %v2348 = vshll.u32 %v2317, 16
        %v2350 = vor.u32 %v2347, %v2348
        %v2351 = vsel %vm576, %v2343, %v2350
        %vm2356 = vcmask 1043456
        %vm2357 = vmand %vm2356, %vm556
        %vm2358 = vcmask 785412
        %vm2359 = vsmask.f32 7954
        %vm2360 = vmand %vm2358, %vm2359
        %vm2361 = vmor %vm2360, %vm2357
        %v2362 = vld [vmem:[#allocation3] sm:$0xff]
        %v2363 = vsel %vm2361, %v2324, %v2362
        %2364 = vst [vmem:[#allocation3] sm:$0xff] %v2363
        %vm2365 = vcmask 785412
        %vm2366 = vmor %vm2365, %vm1591
        %2367 = vst.msk [vmem:[#allocation3 + $0x8] sm:$0xff] %vm2366, %v2333
        %2368 = vst.msk [vmem:[#allocation3 + $0x10] sm:$0xff] %vm2366, %v2342
        %vm2369 = vcmask 1042432
        %vm2370 = vsmask.f32 2304
        %vm2371 = vmand %vm2369, %vm2370
        %vm2372 = vcmask 784388
        %vm2373 = vsmask.f32 6400
        %vm2374 = vmand %vm2372, %vm2373
        %vm2375 = vmor %vm2374, %vm2371
        %v2376 = vld [vmem:[#allocation3 + $0x18] sm:$0x77]
        %v2377 = vsel %vm2375, %v2351, %v2376
        %2378 = vst [vmem:[#allocation3 + $0x18] sm:$0x77] %v2377
        %v2379 = vld [vmem:[#allocation3] sm:$0xff]
        %v2380 = vld [vmem:[#allocation3 + $0x8] sm:$0xff]
        %v2381 = vld [vmem:[#allocation3 + $0x10] sm:$0xff]
        %v2382 = vld [vmem:[#allocation3 + $0x18] sm:$0x33]
        %v2383 = vld [vmem:[#allocation12] sm:$0xff]
        %v2384 = vld [vmem:[#allocation12 + $0x8] sm:$0xff]
        %v2385 = vld [vmem:[#allocation12 + $0x10] sm:$0xff]
        %v2386 = vld [vmem:[#allocation12 + $0x18] sm:$0xff]
        %v2387 = vld [vmem:[#allocation12 + $0x20] sm:$0xff]
        %v2388 = vld [vmem:[#allocation12 + $0x28] sm:$0xff]
        %v2389 = vld [vmem:[#allocation12 + $0x30] sm:$0xff]
        %v2390 = vld [vmem:[#allocation12 + $0x38] sm:$0xff]
        %v2391 = vld [vmem:[#allocation12 + $0x40] sm:$0xff]
        %v2392 = vld [vmem:[#allocation12 + $0x48] sm:$0xff]
        %v2393 = vld [vmem:[#allocation12 + $0x50] sm:$0xff]
        %v2394 = vld [vmem:[#allocation12 + $0x58] sm:$0xff]
        %v2395 = vld [vmem:[#allocation12 + $0x60] sm:$0xff]
        %v2396 = vld [vmem:[#allocation12 + $0x68] sm:$0xff]
        %v2397 = vld [vmem:[#allocation12 + $0x70] sm:$0xff]
        %v2398 = vld [vmem:[#allocation12 + $0x78] sm:$0xff]
        %v2399 = vld [vmem:[#allocation12 + $0x80] sm:$0xff]
        %v2400 = vld [vmem:[#allocation12 + $0x88] sm:$0xff]
        %v2401 = vld [vmem:[#allocation12 + $0x90] sm:$0xff]
        %v2402 = vld [vmem:[#allocation12 + $0x98] sm:$0xff]
        %v2403 = vld [vmem:[#allocation12 + $0xa0] sm:$0xff]
        %v2404 = vld [vmem:[#allocation12 + $0xa8] sm:$0xff]
        %v2405 = vld [vmem:[#allocation12 + $0xb0] sm:$0xff]
        %v2406 = vld [vmem:[#allocation12 + $0xb8] sm:$0xff]
        %v2407 = vld [vmem:[#allocation12 + $0xc0] sm:$0xff]
        %v2408 = vld [vmem:[#allocation12 + $0xc8] sm:$0xff]
        %v2409 = vld [vmem:[#allocation12 + $0xd0] sm:$0xff]
        %v2410 = vld [vmem:[#allocation12 + $0xd8] sm:$0xff]
        %v2411 = vld [vmem:[#allocation12 + $0xe0] sm:$0xff]
        %v2412 = vld [vmem:[#allocation12 + $0xe8] sm:$0xff]
        %v2413 = vld [vmem:[#allocation12 + $0xf0] sm:$0xff]
        %v2414 = vld [vmem:[#allocation12 + $0xf8] sm:$0xff]
        %v2415 = vld [vmem:[#allocation12 + $0x100] sm:$0xff]
        %v2416 = vld [vmem:[#allocation12 + $0x108] sm:$0xff]
        %v2417 = vld [vmem:[#allocation12 + $0x110] sm:$0xff]
        %v2418 = vld [vmem:[#allocation12 + $0x118] sm:$0xff]
        %v2419 = vld [vmem:[#allocation12 + $0x120] sm:$0xff]
        %v2420 = vld [vmem:[#allocation12 + $0x128] sm:$0xff]
        %v2421 = vld [vmem:[#allocation12 + $0x130] sm:$0xff]
        %v2422 = vld [vmem:[#allocation12 + $0x138] sm:$0xff]
        %v2423 = vld [vmem:[#allocation12 + $0x140] sm:$0xff]
        %v2424 = vld [vmem:[#allocation12 + $0x148] sm:$0xff]
        %v2425 = vld [vmem:[#allocation12 + $0x150] sm:$0xff]
        %v2426 = vld [vmem:[#allocation12 + $0x158] sm:$0xff]
        %v2427 = vld [vmem:[#allocation12 + $0x160] sm:$0xff]
        %v2428 = vld [vmem:[#allocation12 + $0x168] sm:$0xff]
        %v2429 = vld [vmem:[#allocation12 + $0x170] sm:$0xff]
        %v2430 = vld [vmem:[#allocation12 + $0x178] sm:$0xff]
        %v2431 = vld [vmem:[#allocation12 + $0x180] sm:$0xff]
        %v2432 = vld [vmem:[#allocation12 + $0x188] sm:$0xff]
        %v2433 = vld [vmem:[#allocation12 + $0x190] sm:$0xff]
        %v2434 = vld [vmem:[#allocation12 + $0x198] sm:$0xff]
        %v2435 = vld [vmem:[#allocation12 + $0x1a0] sm:$0xff]
        %v2436 = vld [vmem:[#allocation12 + $0x1a8] sm:$0xff]
        %v2437 = vld [vmem:[#allocation12 + $0x1b0] sm:$0xff]
        %v2438 = vld [vmem:[#allocation12 + $0x1b8] sm:$0xff]
        %v2439 = vld [vmem:[#allocation3 + $0x18] sm:$0x77]
        %s2440 = scalar_lea.vmem [#allocation12], 448
        %v2441 = vld [vmem:[%s2440] sm:$0xff]
        %v2442 = vld [vmem:[%s2440 + $0x8] sm:$0xff]
        %v2443 = vld [vmem:[%s2440 + $0x10] sm:$0xff]
        %v2444 = vld [vmem:[%s2440 + $0x18] sm:$0xff]
        %v2445 = vld [vmem:[%s2440 + $0x20] sm:$0xff]
        %v2446 = vld [vmem:[%s2440 + $0x28] sm:$0xff]
        %v2447 = vld [vmem:[%s2440 + $0x30] sm:$0xff]
        %v2448 = vld [vmem:[%s2440 + $0x38] sm:$0xff]
        %v2449 = vld [vmem:[%s2440 + $0x40] sm:$0xff]
        %v2450 = vld [vmem:[%s2440 + $0x48] sm:$0xff]
        %v2451 = vld [vmem:[%s2440 + $0x50] sm:$0xff]
        %v2452 = vld [vmem:[%s2440 + $0x58] sm:$0xff]
        %v2453 = vld [vmem:[%s2440 + $0x60] sm:$0xff]
        %v2454 = vld [vmem:[%s2440 + $0x68] sm:$0xff]
        %v2455 = vld [vmem:[%s2440 + $0x70] sm:$0xff]
        %v2456 = vld [vmem:[%s2440 + $0x78] sm:$0xff]
        %v2457 = vld [vmem:[%s2440 + $0x80] sm:$0xff]
        %v2458 = vld [vmem:[%s2440 + $0x88] sm:$0xff]
        %v2459 = vld [vmem:[%s2440 + $0x90] sm:$0xff]
        %v2460 = vld [vmem:[%s2440 + $0x98] sm:$0xff]
        %v2461 = vld [vmem:[%s2440 + $0xa0] sm:$0xff]
        %v2462 = vld [vmem:[%s2440 + $0xa8] sm:$0xff]
        %v2463 = vld [vmem:[%s2440 + $0xb0] sm:$0xff]
        %v2464 = vld [vmem:[%s2440 + $0xb8] sm:$0xff]
        %v2465 = vld [vmem:[%s2440 + $0xc0] sm:$0xff]
        %v2466 = vld [vmem:[%s2440 + $0xc8] sm:$0xff]
        %v2467 = vld [vmem:[%s2440 + $0xd0] sm:$0xff]
        %v2468 = vld [vmem:[%s2440 + $0xd8] sm:$0xff]
        %v2469 = vld [vmem:[%s2440 + $0xe0] sm:$0xff]
        %v2470 = vld [vmem:[%s2440 + $0xe8] sm:$0xff]
        %v2471 = vld [vmem:[%s2440 + $0xf0] sm:$0xff]
        %v2472 = vld [vmem:[%s2440 + $0xf8] sm:$0xff]
        %v2473 = vld [vmem:[%s2440 + $0x100] sm:$0xff]
        %v2474 = vld [vmem:[%s2440 + $0x108] sm:$0xff]
        %v2475 = vld [vmem:[%s2440 + $0x110] sm:$0xff]
        %v2476 = vld [vmem:[%s2440 + $0x118] sm:$0xff]
        %v2477 = vld [vmem:[%s2440 + $0x120] sm:$0xff]
        %v2478 = vld [vmem:[%s2440 + $0x128] sm:$0xff]
        %v2479 = vld [vmem:[%s2440 + $0x130] sm:$0xff]
        %v2480 = vld [vmem:[%s2440 + $0x138] sm:$0xff]
        %v2481 = vld [vmem:[%s2440 + $0x140] sm:$0xff]
        %v2482 = vld [vmem:[%s2440 + $0x148] sm:$0xff]
        %v2483 = vld [vmem:[%s2440 + $0x150] sm:$0xff]
        %v2484 = vld [vmem:[%s2440 + $0x158] sm:$0xff]
        %v2485 = vld [vmem:[%s2440 + $0x160] sm:$0xff]
        %v2486 = vld [vmem:[%s2440 + $0x168] sm:$0xff]
        %v2487 = vld [vmem:[%s2440 + $0x170] sm:$0xff]
        %v2488 = vld [vmem:[%s2440 + $0x178] sm:$0xff]
        %v2489 = vld [vmem:[%s2440 + $0x180] sm:$0xff]
        %v2490 = vld [vmem:[%s2440 + $0x188] sm:$0xff]
        %v2491 = vld [vmem:[%s2440 + $0x190] sm:$0xff]
        %v2492 = vld [vmem:[%s2440 + $0x198] sm:$0xff]
        %v2493 = vld [vmem:[%s2440 + $0x1a0] sm:$0xff]
        %v2494 = vld [vmem:[%s2440 + $0x1a8] sm:$0xff]
        %v2495 = vld [vmem:[%s2440 + $0x1b0] sm:$0xff]
        %v2496 = vld [vmem:[%s2440 + $0x1b8] sm:$0xff]
        %v2501 = vunpack.c.l.b16 %v2379
        %v2502 = vunpack.c.h.b16 %v2379
        %v2503 = vunpack.c.l.b16 %v2380
        %v2504 = vunpack.c.h.b16 %v2380
        %v2505 = vunpack.c.l.b16 %v2381
        %v2506 = vunpack.c.h.b16 %v2381
        %v2507 = vunpack.c.l.b16 %v2439
        %v2508 = vunpack.c.h.b16 %v2439
        %v2509 = vpack.c.b16 %v2503, %v2501
        %v2510 = vpack.c.b16 %v2504, %v2502
        %v2511 = vpack.c.b16 %v2507, %v2505
        %v2512 = vpack.c.b16 %v2508, %v2506
        %v2514 = vshrl.u32 %v2509, 16
        %v2516 = vshll.u32 %v2509, 16
        %v2518 = vrot.slane %v2516, 1
        %v2519 = vor.u32 %v2514, %v2518
        %v2521 = vshll.u32 %v2511, 16
        %v2523 = vrot.slane %v2521, 1
        %v2524 = vsel %vm707, %v2519, %v2523
        %v2526 = vshrl.u32 %v2510, 16
        %v2528 = vshll.u32 %v2510, 16
        %v2530 = vrot.slane %v2528, 1
        %v2531 = vor.u32 %v2526, %v2530
        %v2533 = vshll.u32 %v2512, 16
        %v2535 = vrot.slane %v2533, 1
        %v2536 = vsel %vm707, %v2531, %v2535
        %v2537 = vshrl.u32 %v2511, 16
        %v2539 = vor.u32 %v2537, %v2523
        %v2540 = vshrl.u32 %v2512, 16
        %v2542 = vor.u32 %v2540, %v2535
        %v2601 = vunpack.c.l.b16 %v2441
        %v2602 = vunpack.c.h.b16 %v2441
        %v2603 = vunpack.c.l.b16 %v2442
        %v2604 = vunpack.c.h.b16 %v2442
        %v2605 = vunpack.c.l.b16 %v2443
        %v2606 = vunpack.c.h.b16 %v2443
        %v2607 = vunpack.c.l.b16 %v2444
        %v2608 = vunpack.c.h.b16 %v2444
        %v2609 = vunpack.c.l.b16 %v2445
        %v2610 = vunpack.c.h.b16 %v2445
        %v2611 = vunpack.c.l.b16 %v2446
        %v2612 = vunpack.c.h.b16 %v2446
        %v2613 = vunpack.c.l.b16 %v2447
        %v2614 = vunpack.c.h.b16 %v2447
        %v2615 = vunpack.c.l.b16 %v2448
        %v2616 = vunpack.c.h.b16 %v2448
        %v2617 = vunpack.c.l.b16 %v2449
        %v2618 = vunpack.c.h.b16 %v2449
        %v2619 = vunpack.c.l.b16 %v2450
        %v2620 = vunpack.c.h.b16 %v2450
        %v2621 = vunpack.c.l.b16 %v2451
        %v2622 = vunpack.c.h.b16 %v2451
        %v2623 = vunpack.c.l.b16 %v2452
        %v2624 = vunpack.c.h.b16 %v2452
        %v2625 = vunpack.c.l.b16 %v2453
        %v2626 = vunpack.c.h.b16 %v2453
        %v2627 = vunpack.c.l.b16 %v2454
        %v2628 = vunpack.c.h.b16 %v2454
        %v2629 = vunpack.c.l.b16 %v2455
        %v2630 = vunpack.c.h.b16 %v2455
        %v2631 = vunpack.c.l.b16 %v2456
        %v2632 = vunpack.c.h.b16 %v2456
        %v2633 = vunpack.c.l.b16 %v2457
        %v2634 = vunpack.c.h.b16 %v2457
        %v2635 = vunpack.c.l.b16 %v2458
        %v2636 = vunpack.c.h.b16 %v2458
        %v2637 = vunpack.c.l.b16 %v2459
        %v2638 = vunpack.c.h.b16 %v2459
        %v2639 = vunpack.c.l.b16 %v2460
        %v2640 = vunpack.c.h.b16 %v2460
        %v2641 = vunpack.c.l.b16 %v2461
        %v2642 = vunpack.c.h.b16 %v2461
        %v2643 = vunpack.c.l.b16 %v2462
        %v2644 = vunpack.c.h.b16 %v2462
        %v2645 = vunpack.c.l.b16 %v2463
        %v2646 = vunpack.c.h.b16 %v2463
        %v2647 = vunpack.c.l.b16 %v2464
        %v2648 = vunpack.c.h.b16 %v2464
        %v2649 = vunpack.c.l.b16 %v2465
        %v2650 = vunpack.c.h.b16 %v2465
        %v2651 = vunpack.c.l.b16 %v2466
        %v2652 = vunpack.c.h.b16 %v2466
        %v2653 = vunpack.c.l.b16 %v2467
        %v2654 = vunpack.c.h.b16 %v2467
        %v2655 = vunpack.c.l.b16 %v2468
        %v2656 = vunpack.c.h.b16 %v2468
        %v2657 = vunpack.c.l.b16 %v2469
        %v2658 = vunpack.c.h.b16 %v2469
        %v2659 = vunpack.c.l.b16 %v2470
        %v2660 = vunpack.c.h.b16 %v2470
        %v2661 = vunpack.c.l.b16 %v2471
        %v2662 = vunpack.c.h.b16 %v2471
        %v2663 = vunpack.c.l.b16 %v2472
        %v2664 = vunpack.c.h.b16 %v2472
        %v2665 = vunpack.c.l.b16 %v2473
        %v2666 = vunpack.c.h.b16 %v2473
        %v2667 = vunpack.c.l.b16 %v2474
        %v2668 = vunpack.c.h.b16 %v2474
        %v2669 = vunpack.c.l.b16 %v2475
        %v2670 = vunpack.c.h.b16 %v2475
        %v2671 = vunpack.c.l.b16 %v2476
        %v2672 = vunpack.c.h.b16 %v2476
        %v2673 = vunpack.c.l.b16 %v2477
        %v2674 = vunpack.c.h.b16 %v2477
        %v2675 = vunpack.c.l.b16 %v2478
        %v2676 = vunpack.c.h.b16 %v2478
        %v2677 = vunpack.c.l.b16 %v2479
        %v2678 = vunpack.c.h.b16 %v2479
        %v2679 = vunpack.c.l.b16 %v2480
        %v2680 = vunpack.c.h.b16 %v2480
        %v2681 = vunpack.c.l.b16 %v2481
        %v2682 = vunpack.c.h.b16 %v2481
        %v2683 = vunpack.c.l.b16 %v2482
        %v2684 = vunpack.c.h.b16 %v2482
        %v2685 = vunpack.c.l.b16 %v2483
        %v2686 = vunpack.c.h.b16 %v2483
        %v2687 = vunpack.c.l.b16 %v2484
        %v2688 = vunpack.c.h.b16 %v2484
        %v2689 = vunpack.c.l.b16 %v2485
        %v2690 = vunpack.c.h.b16 %v2485
        %v2691 = vunpack.c.l.b16 %v2486
        %v2692 = vunpack.c.h.b16 %v2486
        %v2693 = vunpack.c.l.b16 %v2487
        %v2694 = vunpack.c.h.b16 %v2487
        %v2695 = vunpack.c.l.b16 %v2488
        %v2696 = vunpack.c.h.b16 %v2488
        %v2697 = vunpack.c.l.b16 %v2489
        %v2698 = vunpack.c.h.b16 %v2489
        %v2699 = vunpack.c.l.b16 %v2490
        %v2700 = vunpack.c.h.b16 %v2490
        %v2701 = vunpack.c.l.b16 %v2491
        %v2702 = vunpack.c.h.b16 %v2491
        %v2703 = vunpack.c.l.b16 %v2492
        %v2704 = vunpack.c.h.b16 %v2492
        %v2705 = vunpack.c.l.b16 %v2493
        %v2706 = vunpack.c.h.b16 %v2493
        %v2707 = vunpack.c.l.b16 %v2494
        %v2708 = vunpack.c.h.b16 %v2494
        %v2709 = vunpack.c.l.b16 %v2495
        %v2710 = vunpack.c.h.b16 %v2495
        %v2711 = vunpack.c.l.b16 %v2496
        %v2712 = vunpack.c.h.b16 %v2496
        %v2713 = vpack.c.b16 %v2605, %v2601
        %v2714 = vpack.c.b16 %v2606, %v2602
        %v2715 = vpack.c.b16 %v2607, %v2603
        %v2716 = vpack.c.b16 %v2608, %v2604
        %v2717 = vpack.c.b16 %v2613, %v2609
        %v2718 = vpack.c.b16 %v2614, %v2610
        %v2719 = vpack.c.b16 %v2615, %v2611
        %v2720 = vpack.c.b16 %v2616, %v2612
        %v2721 = vpack.c.b16 %v2621, %v2617
        %v2722 = vpack.c.b16 %v2622, %v2618
        %v2723 = vpack.c.b16 %v2623, %v2619
        %v2724 = vpack.c.b16 %v2624, %v2620
        %v2725 = vpack.c.b16 %v2629, %v2625
        %v2726 = vpack.c.b16 %v2630, %v2626
        %v2727 = vpack.c.b16 %v2631, %v2627
        %v2728 = vpack.c.b16 %v2632, %v2628
        %v2729 = vpack.c.b16 %v2637, %v2633
        %v2730 = vpack.c.b16 %v2638, %v2634
        %v2731 = vpack.c.b16 %v2639, %v2635
        %v2732 = vpack.c.b16 %v2640, %v2636
        %v2733 = vpack.c.b16 %v2645, %v2641
        %v2734 = vpack.c.b16 %v2646, %v2642
        %v2735 = vpack.c.b16 %v2647, %v2643
        %v2736 = vpack.c.b16 %v2648, %v2644
        %v2737 = vpack.c.b16 %v2653, %v2649
        %v2738 = vpack.c.b16 %v2654, %v2650
        %v2739 = vpack.c.b16 %v2655, %v2651
        %v2740 = vpack.c.b16 %v2656, %v2652
        %v2741 = vpack.c.b16 %v2661, %v2657
        %v2742 = vpack.c.b16 %v2662, %v2658
        %v2743 = vpack.c.b16 %v2663, %v2659
        %v2744 = vpack.c.b16 %v2664, %v2660
        %v2745 = vpack.c.b16 %v2669, %v2665
        %v2746 = vpack.c.b16 %v2670, %v2666
        %v2747 = vpack.c.b16 %v2671, %v2667
        %v2748 = vpack.c.b16 %v2672, %v2668
        %v2749 = vpack.c.b16 %v2677, %v2673
        %v2750 = vpack.c.b16 %v2678, %v2674
        %v2751 = vpack.c.b16 %v2679, %v2675
        %v2752 = vpack.c.b16 %v2680, %v2676
        %v2753 = vpack.c.b16 %v2685, %v2681
        %v2754 = vpack.c.b16 %v2686, %v2682
        %v2755 = vpack.c.b16 %v2687, %v2683
        %v2756 = vpack.c.b16 %v2688, %v2684
        %v2757 = vpack.c.b16 %v2693, %v2689
        %v2758 = vpack.c.b16 %v2694, %v2690
        %v2759 = vpack.c.b16 %v2695, %v2691
        %v2760 = vpack.c.b16 %v2696, %v2692
        %v2761 = vpack.c.b16 %v2701, %v2697
        %v2762 = vpack.c.b16 %v2702, %v2698
        %v2763 = vpack.c.b16 %v2703, %v2699
        %v2764 = vpack.c.b16 %v2704, %v2700
        %v2765 = vpack.c.b16 %v2709, %v2705
        %v2766 = vpack.c.b16 %v2710, %v2706
        %v2767 = vpack.c.b16 %v2711, %v2707
        %v2768 = vpack.c.b16 %v2712, %v2708
        %vm2825 = vcmask 785408
        %v2827 = vsel %vm2825, %v2536, 0
        %v2830 = vsel %vm2825, %v2542, 0
        %2832 = vmatpush.bf16.msra.mxu0 %v2741
        %2833 = vmatpush.bf16.msra.mxu0 %v2737
        %2834 = vmatpush.bf16.msra.mxu0 %v2733
        %2835 = vmatpush.bf16.msra.mxu0 %v2729
        %2836 = vmatpush.bf16.msra.mxu0 %v2725
        %2837 = vmatpush.bf16.msra.mxu0 %v2721
        %2838 = vmatpush.bf16.msra.mxu0 %v2717
        %2839 = vmatpush.bf16.msra.mxu0 %v2713
        %2840 = vmatmul.bf16.gmra.mxu0 %v2524
        %v2841 = vpop.f32.mrf.mxu0
        %v2842 = vadd.f32 0.0, %v2841
        %v2843 = vpop.f32.mrf.mxu0
        %v2844 = vadd.f32 0.0, %v2843
        %2845 = vmatmul.bf16.gmra.mxu0 %v2539
        %v2846 = vpop.f32.mrf.mxu0
        %v2847 = vadd.f32 0.0, %v2846
        %v2848 = vpop.f32.mrf.mxu0
        %v2849 = vadd.f32 0.0, %v2848
        %2850 = vdwg.mxu0
        %2851 = vmatpush.bf16.msra.mxu0 0
        %2852 = vmatpush.bf16.msra.mxu0 0
        %2853 = vmatpush.bf16.msra.mxu0 %v2765
        %2854 = vmatpush.bf16.msra.mxu0 %v2761
        %2855 = vmatpush.bf16.msra.mxu0 %v2757
        %2856 = vmatpush.bf16.msra.mxu0 %v2753
        %2857 = vmatpush.bf16.msra.mxu0 %v2749
        %2858 = vmatpush.bf16.msra.mxu0 %v2745
        %2859 = vmatmul.bf16.gmra.mxu0 %v2827
        %v2860 = vpop.f32.mrf.mxu0
        %v2861 = vadd.f32 %v2842, %v2860
        %v2862 = vpop.f32.mrf.mxu0
        %v2863 = vadd.f32 %v2844, %v2862
        %2864 = vmatmul.bf16.gmra.mxu0 %v2830
        %v2865 = vpop.f32.mrf.mxu0
        %v2866 = vadd.f32 %v2847, %v2865
        %v2867 = vpop.f32.mrf.mxu0
        %v2868 = vadd.f32 %v2849, %v2867
        %2869 = vdwg.mxu0
        %2870 = vmatpush.bf16.msra.mxu0 %v2742
        %2871 = vmatpush.bf16.msra.mxu0 %v2738
        %2872 = vmatpush.bf16.msra.mxu0 %v2734
        %2873 = vmatpush.bf16.msra.mxu0 %v2730
        %2874 = vmatpush.bf16.msra.mxu0 %v2726
        %2875 = vmatpush.bf16.msra.mxu0 %v2722
        %2876 = vmatpush.bf16.msra.mxu0 %v2718
        %2877 = vmatpush.bf16.msra.mxu0 %v2714
        %2878 = vmatmul.bf16.gmra.mxu0 %v2524
        %v2879 = vpop.f32.mrf.mxu0
        %v2880 = vadd.f32 0.0, %v2879
        %v2881 = vpop.f32.mrf.mxu0
        %v2882 = vadd.f32 0.0, %v2881
        %2883 = vmatmul.bf16.gmra.mxu0 %v2539
        %v2884 = vpop.f32.mrf.mxu0
        %v2885 = vadd.f32 0.0, %v2884
        %v2886 = vpop.f32.mrf.mxu0
        %v2887 = vadd.f32 0.0, %v2886
        %2888 = vdwg.mxu0
        %2889 = vmatpush.bf16.msra.mxu0 0
        %2890 = vmatpush.bf16.msra.mxu0 0
        %2891 = vmatpush.bf16.msra.mxu0 %v2766
        %2892 = vmatpush.bf16.msra.mxu0 %v2762
        %2893 = vmatpush.bf16.msra.mxu0 %v2758
        %2894 = vmatpush.bf16.msra.mxu0 %v2754
        %2895 = vmatpush.bf16.msra.mxu0 %v2750
        %2896 = vmatpush.bf16.msra.mxu0 %v2746
        %2897 = vmatmul.bf16.gmra.mxu0 %v2827
        %v2898 = vpop.f32.mrf.mxu0
        %v2899 = vadd.f32 %v2880, %v2898
        %v2900 = vpop.f32.mrf.mxu0
        %v2901 = vadd.f32 %v2882, %v2900
        %2902 = vmatmul.bf16.gmra.mxu0 %v2830
        %v2903 = vpop.f32.mrf.mxu0
        %v2904 = vadd.f32 %v2885, %v2903
        %v2905 = vpop.f32.mrf.mxu0
        %v2906 = vadd.f32 %v2887, %v2905
        %2907 = vdwg.mxu0
        %2908 = vmatpush.bf16.msra.mxu0 %v2743
        %2909 = vmatpush.bf16.msra.mxu0 %v2739
        %2910 = vmatpush.bf16.msra.mxu0 %v2735
        %2911 = vmatpush.bf16.msra.mxu0 %v2731
        %2912 = vmatpush.bf16.msra.mxu0 %v2727
        %2913 = vmatpush.bf16.msra.mxu0 %v2723
        %2914 = vmatpush.bf16.msra.mxu0 %v2719
        %2915 = vmatpush.bf16.msra.mxu0 %v2715
        %2916 = vmatmul.bf16.gmra.mxu0 %v2524
        %v2917 = vpop.f32.mrf.mxu0
        %v2918 = vadd.f32 0.0, %v2917
        %v2919 = vpop.f32.mrf.mxu0
        %v2920 = vadd.f32 0.0, %v2919
        %2921 = vmatmul.bf16.gmra.mxu0 %v2539
        %v2922 = vpop.f32.mrf.mxu0
        %v2923 = vadd.f32 0.0, %v2922
        %v2924 = vpop.f32.mrf.mxu0
        %v2925 = vadd.f32 0.0, %v2924
        %2926 = vdwg.mxu0
        %2927 = vmatpush.bf16.msra.mxu0 0
        %2928 = vmatpush.bf16.msra.mxu0 0
        %2929 = vmatpush.bf16.msra.mxu0 %v2767
        %2930 = vmatpush.bf16.msra.mxu0 %v2763
        %2931 = vmatpush.bf16.msra.mxu0 %v2759
        %2932 = vmatpush.bf16.msra.mxu0 %v2755
        %2933 = vmatpush.bf16.msra.mxu0 %v2751
        %2934 = vmatpush.bf16.msra.mxu0 %v2747
        %2935 = vmatmul.bf16.gmra.mxu0 %v2827
        %v2936 = vpop.f32.mrf.mxu0
        %v2937 = vadd.f32 %v2918, %v2936
        %v2938 = vpop.f32.mrf.mxu0
        %v2939 = vadd.f32 %v2920, %v2938
        %2940 = vmatmul.bf16.gmra.mxu0 %v2830
        %v2941 = vpop.f32.mrf.mxu0
        %v2942 = vadd.f32 %v2923, %v2941
        %v2943 = vpop.f32.mrf.mxu0
        %v2944 = vadd.f32 %v2925, %v2943
        %2945 = vdwg.mxu0
        %2946 = vmatpush.bf16.msra.mxu0 %v2744
        %2947 = vmatpush.bf16.msra.mxu0 %v2740
        %2948 = vmatpush.bf16.msra.mxu0 %v2736
        %2949 = vmatpush.bf16.msra.mxu0 %v2732
        %2950 = vmatpush.bf16.msra.mxu0 %v2728
        %2951 = vmatpush.bf16.msra.mxu0 %v2724
        %2952 = vmatpush.bf16.msra.mxu0 %v2720
        %2953 = vmatpush.bf16.msra.mxu0 %v2716
        %2954 = vmatmul.bf16.gmra.mxu0 %v2524
        %v2955 = vpop.f32.mrf.mxu0
        %v2956 = vadd.f32 0.0, %v2955
        %v2957 = vpop.f32.mrf.mxu0
        %v2958 = vadd.f32 0.0, %v2957
        %2959 = vmatmul.bf16.gmra.mxu0 %v2539
        %v2960 = vpop.f32.mrf.mxu0
        %v2961 = vadd.f32 0.0, %v2960
        %v2962 = vpop.f32.mrf.mxu0
        %v2963 = vadd.f32 0.0, %v2962
        %2964 = vdwg.mxu0
        %2965 = vmatpush.bf16.msra.mxu0 0
        %2966 = vmatpush.bf16.msra.mxu0 0
        %2967 = vmatpush.bf16.msra.mxu0 %v2768
        %2968 = vmatpush.bf16.msra.mxu0 %v2764
        %2969 = vmatpush.bf16.msra.mxu0 %v2760
        %2970 = vmatpush.bf16.msra.mxu0 %v2756
        %2971 = vmatpush.bf16.msra.mxu0 %v2752
        %2972 = vmatpush.bf16.msra.mxu0 %v2748
        %2973 = vmatmul.bf16.gmra.mxu0 %v2827
        %v2974 = vpop.f32.mrf.mxu0
        %v2975 = vadd.f32 %v2956, %v2974
        %v2976 = vpop.f32.mrf.mxu0
        %v2977 = vadd.f32 %v2958, %v2976
        %2978 = vmatmul.bf16.gmra.mxu0 %v2830
        %v2979 = vpop.f32.mrf.mxu0
        %v2980 = vadd.f32 %v2961, %v2979
        %v2981 = vpop.f32.mrf.mxu0
        %v2982 = vadd.f32 %v2963, %v2981
        %2983 = vdwg.mxu0
        %v2985 = vunpack.c.l.b16 %v2382
        %v2986 = vunpack.c.h.b16 %v2382
        %v2987 = vpack.c.b16 %v2985, %v2505
        %v2988 = vpack.c.b16 %v2986, %v2506
        %v3047 = vunpack.c.l.b16 %v2383
        %v3048 = vunpack.c.h.b16 %v2383
        %v3049 = vunpack.c.l.b16 %v2384
        %v3050 = vunpack.c.h.b16 %v2384
        %v3051 = vunpack.c.l.b16 %v2385
        %v3052 = vunpack.c.h.b16 %v2385
        %v3053 = vunpack.c.l.b16 %v2386
        %v3054 = vunpack.c.h.b16 %v2386
        %v3055 = vunpack.c.l.b16 %v2387
        %v3056 = vunpack.c.h.b16 %v2387
        %v3057 = vunpack.c.l.b16 %v2388
        %v3058 = vunpack.c.h.b16 %v2388
        %v3059 = vunpack.c.l.b16 %v2389
        %v3060 = vunpack.c.h.b16 %v2389
        %v3061 = vunpack.c.l.b16 %v2390
        %v3062 = vunpack.c.h.b16 %v2390
        %v3063 = vunpack.c.l.b16 %v2391
        %v3064 = vunpack.c.h.b16 %v2391
        %v3065 = vunpack.c.l.b16 %v2392
        %v3066 = vunpack.c.h.b16 %v2392
        %v3067 = vunpack.c.l.b16 %v2393
        %v3068 = vunpack.c.h.b16 %v2393
        %v3069 = vunpack.c.l.b16 %v2394
        %v3070 = vunpack.c.h.b16 %v2394
        %v3071 = vunpack.c.l.b16 %v2395
        %v3072 = vunpack.c.h.b16 %v2395
        %v3073 = vunpack.c.l.b16 %v2396
        %v3074 = vunpack.c.h.b16 %v2396
        %v3075 = vunpack.c.l.b16 %v2397
        %v3076 = vunpack.c.h.b16 %v2397
        %v3077 = vunpack.c.l.b16 %v2398
        %v3078 = vunpack.c.h.b16 %v2398
        %v3079 = vunpack.c.l.b16 %v2399
        %v3080 = vunpack.c.h.b16 %v2399
        %v3081 = vunpack.c.l.b16 %v2400
        %v3082 = vunpack.c.h.b16 %v2400
        %v3083 = vunpack.c.l.b16 %v2401
        %v3084 = vunpack.c.h.b16 %v2401
        %v3085 = vunpack.c.l.b16 %v2402
        %v3086 = vunpack.c.h.b16 %v2402
        %v3087 = vunpack.c.l.b16 %v2403
        %v3088 = vunpack.c.h.b16 %v2403
        %v3089 = vunpack.c.l.b16 %v2404
        %v3090 = vunpack.c.h.b16 %v2404
        %v3091 = vunpack.c.l.b16 %v2405
        %v3092 = vunpack.c.h.b16 %v2405
        %v3093 = vunpack.c.l.b16 %v2406
        %v3094 = vunpack.c.h.b16 %v2406
        %v3095 = vunpack.c.l.b16 %v2407
        %v3096 = vunpack.c.h.b16 %v2407
        %v3097 = vunpack.c.l.b16 %v2408
        %v3098 = vunpack.c.h.b16 %v2408
        %v3099 = vunpack.c.l.b16 %v2409
        %v3100 = vunpack.c.h.b16 %v2409
        %v3101 = vunpack.c.l.b16 %v2410
        %v3102 = vunpack.c.h.b16 %v2410
        %v3103 = vunpack.c.l.b16 %v2411
        %v3104 = vunpack.c.h.b16 %v2411
        %v3105 = vunpack.c.l.b16 %v2412
        %v3106 = vunpack.c.h.b16 %v2412
        %v3107 = vunpack.c.l.b16 %v2413
        %v3108 = vunpack.c.h.b16 %v2413
        %v3109 = vunpack.c.l.b16 %v2414
        %v3110 = vunpack.c.h.b16 %v2414
        %v3111 = vunpack.c.l.b16 %v2415
        %v3112 = vunpack.c.h.b16 %v2415
        %v3113 = vunpack.c.l.b16 %v2416
        %v3114 = vunpack.c.h.b16 %v2416
        %v3115 = vunpack.c.l.b16 %v2417
        %v3116 = vunpack.c.h.b16 %v2417
        %v3117 = vunpack.c.l.b16 %v2418
        %v3118 = vunpack.c.h.b16 %v2418
        %v3119 = vunpack.c.l.b16 %v2419
        %v3120 = vunpack.c.h.b16 %v2419
        %v3121 = vunpack.c.l.b16 %v2420
        %v3122 = vunpack.c.h.b16 %v2420
        %v3123 = vunpack.c.l.b16 %v2421
        %v3124 = vunpack.c.h.b16 %v2421
        %v3125 = vunpack.c.l.b16 %v2422
        %v3126 = vunpack.c.h.b16 %v2422
        %v3127 = vunpack.c.l.b16 %v2423
        %v3128 = vunpack.c.h.b16 %v2423
        %v3129 = vunpack.c.l.b16 %v2424
        %v3130 = vunpack.c.h.b16 %v2424
        %v3131 = vunpack.c.l.b16 %v2425
        %v3132 = vunpack.c.h.b16 %v2425
        %v3133 = vunpack.c.l.b16 %v2426
        %v3134 = vunpack.c.h.b16 %v2426
        %v3135 = vunpack.c.l.b16 %v2427
        %v3136 = vunpack.c.h.b16 %v2427
        %v3137 = vunpack.c.l.b16 %v2428
        %v3138 = vunpack.c.h.b16 %v2428
        %v3139 = vunpack.c.l.b16 %v2429
        %v3140 = vunpack.c.h.b16 %v2429
        %v3141 = vunpack.c.l.b16 %v2430
        %v3142 = vunpack.c.h.b16 %v2430
        %v3143 = vunpack.c.l.b16 %v2431
        %v3144 = vunpack.c.h.b16 %v2431
        %v3145 = vunpack.c.l.b16 %v2432
        %v3146 = vunpack.c.h.b16 %v2432
        %v3147 = vunpack.c.l.b16 %v2433
        %v3148 = vunpack.c.h.b16 %v2433
        %v3149 = vunpack.c.l.b16 %v2434
        %v3150 = vunpack.c.h.b16 %v2434
        %v3151 = vunpack.c.l.b16 %v2435
        %v3152 = vunpack.c.h.b16 %v2435
        %v3153 = vunpack.c.l.b16 %v2436
        %v3154 = vunpack.c.h.b16 %v2436
        %v3155 = vunpack.c.l.b16 %v2437
        %v3156 = vunpack.c.h.b16 %v2437
        %v3157 = vunpack.c.l.b16 %v2438
        %v3158 = vunpack.c.h.b16 %v2438
        %v3159 = vpack.c.b16 %v3051, %v3047
        %v3160 = vpack.c.b16 %v3052, %v3048
        %v3161 = vpack.c.b16 %v3053, %v3049
        %v3162 = vpack.c.b16 %v3054, %v3050
        %v3163 = vpack.c.b16 %v3059, %v3055
        %v3164 = vpack.c.b16 %v3060, %v3056
        %v3165 = vpack.c.b16 %v3061, %v3057
        %v3166 = vpack.c.b16 %v3062, %v3058
        %v3167 = vpack.c.b16 %v3067, %v3063
        %v3168 = vpack.c.b16 %v3068, %v3064
        %v3169 = vpack.c.b16 %v3069, %v3065
        %v3170 = vpack.c.b16 %v3070, %v3066
        %v3171 = vpack.c.b16 %v3075, %v3071
        %v3172 = vpack.c.b16 %v3076, %v3072
        %v3173 = vpack.c.b16 %v3077, %v3073
        %v3174 = vpack.c.b16 %v3078, %v3074
        %v3175 = vpack.c.b16 %v3083, %v3079
        %v3176 = vpack.c.b16 %v3084, %v3080
        %v3177 = vpack.c.b16 %v3085, %v3081
        %v3178 = vpack.c.b16 %v3086, %v3082
        %v3179 = vpack.c.b16 %v3091, %v3087
        %v3180 = vpack.c.b16 %v3092, %v3088
        %v3181 = vpack.c.b16 %v3093, %v3089
        %v3182 = vpack.c.b16 %v3094, %v3090
        %v3183 = vpack.c.b16 %v3099, %v3095
        %v3184 = vpack.c.b16 %v3100, %v3096
        %v3185 = vpack.c.b16 %v3101, %v3097
        %v3186 = vpack.c.b16 %v3102, %v3098
        %v3187 = vpack.c.b16 %v3107, %v3103
        %v3188 = vpack.c.b16 %v3108, %v3104
        %v3189 = vpack.c.b16 %v3109, %v3105
        %v3190 = vpack.c.b16 %v3110, %v3106
        %v3191 = vpack.c.b16 %v3115, %v3111
        %v3192 = vpack.c.b16 %v3116, %v3112
        %v3193 = vpack.c.b16 %v3117, %v3113
        %v3194 = vpack.c.b16 %v3118, %v3114
        %v3195 = vpack.c.b16 %v3123, %v3119
        %v3196 = vpack.c.b16 %v3124, %v3120
        %v3197 = vpack.c.b16 %v3125, %v3121
        %v3198 = vpack.c.b16 %v3126, %v3122
        %v3199 = vpack.c.b16 %v3131, %v3127
        %v3200 = vpack.c.b16 %v3132, %v3128
        %v3201 = vpack.c.b16 %v3133, %v3129
        %v3202 = vpack.c.b16 %v3134, %v3130
        %v3203 = vpack.c.b16 %v3139, %v3135
        %v3204 = vpack.c.b16 %v3140, %v3136
        %v3205 = vpack.c.b16 %v3141, %v3137
        %v3206 = vpack.c.b16 %v3142, %v3138
        %v3207 = vpack.c.b16 %v3147, %v3143
        %v3208 = vpack.c.b16 %v3148, %v3144
        %v3209 = vpack.c.b16 %v3149, %v3145
        %v3210 = vpack.c.b16 %v3150, %v3146
        %v3211 = vpack.c.b16 %v3155, %v3151
        %v3212 = vpack.c.b16 %v3156, %v3152
        %v3213 = vpack.c.b16 %v3157, %v3153
        %v3214 = vpack.c.b16 %v3158, %v3154
        %v3271 = vsel %vm2825, %v2510, 0
        %v3274 = vsel %vm2825, %v2988, 0
        %3276 = vmatpush.bf16.msra.mxu0 %v3187
        %3277 = vmatpush.bf16.msra.mxu0 %v3183
        %3278 = vmatpush.bf16.msra.mxu0 %v3179
        %3279 = vmatpush.bf16.msra.mxu0 %v3175
        %3280 = vmatpush.bf16.msra.mxu0 %v3171
        %3281 = vmatpush.bf16.msra.mxu0 %v3167
        %3282 = vmatpush.bf16.msra.mxu0 %v3163
        %3283 = vmatpush.bf16.msra.mxu0 %v3159
        %3284 = vmatmul.bf16.gmra.mxu0 %v2509
        %v3285 = vpop.f32.mrf.mxu0
        %v3286 = vadd.f32 %v2861, %v3285
        %v3287 = vpop.f32.mrf.mxu0
        %v3288 = vadd.f32 %v2863, %v3287
        %3289 = vmatmul.bf16.gmra.mxu0 %v2987
        %v3290 = vpop.f32.mrf.mxu0
        %v3291 = vadd.f32 %v2866, %v3290
        %v3292 = vpop.f32.mrf.mxu0
        %v3293 = vadd.f32 %v2868, %v3292
        %3294 = vdwg.mxu0
        %3295 = vmatpush.bf16.msra.mxu0 0
        %3296 = vmatpush.bf16.msra.mxu0 0
        %3297 = vmatpush.bf16.msra.mxu0 %v3211
        %3298 = vmatpush.bf16.msra.mxu0 %v3207
        %3299 = vmatpush.bf16.msra.mxu0 %v3203
        %3300 = vmatpush.bf16.msra.mxu0 %v3199
        %3301 = vmatpush.bf16.msra.mxu0 %v3195
        %3302 = vmatpush.bf16.msra.mxu0 %v3191
        %3303 = vmatmul.bf16.gmra.mxu0 %v3271
        %v3304 = vpop.f32.mrf.mxu0
        %v3305 = vadd.f32 %v3286, %v3304
        %v3306 = vpop.f32.mrf.mxu0
        %v3307 = vadd.f32 %v3288, %v3306
        %3308 = vmatmul.bf16.gmra.mxu0 %v3274
        %v3309 = vpop.f32.mrf.mxu0
        %v3310 = vadd.f32 %v3291, %v3309
        %v3311 = vpop.f32.mrf.mxu0
        %v3312 = vadd.f32 %v3293, %v3311
        %3313 = vdwg.mxu0
        %3314 = vmatpush.bf16.msra.mxu0 %v3188
        %3315 = vmatpush.bf16.msra.mxu0 %v3184
        %3316 = vmatpush.bf16.msra.mxu0 %v3180
        %3317 = vmatpush.bf16.msra.mxu0 %v3176
        %3318 = vmatpush.bf16.msra.mxu0 %v3172
        %3319 = vmatpush.bf16.msra.mxu0 %v3168
        %3320 = vmatpush.bf16.msra.mxu0 %v3164
        %3321 = vmatpush.bf16.msra.mxu0 %v3160
        %3322 = vmatmul.bf16.gmra.mxu0 %v2509
        %v3323 = vpop.f32.mrf.mxu0
        %v3324 = vadd.f32 %v2899, %v3323
        %v3325 = vpop.f32.mrf.mxu0
        %v3326 = vadd.f32 %v2901, %v3325
        %3327 = vmatmul.bf16.gmra.mxu0 %v2987
        %v3328 = vpop.f32.mrf.mxu0
        %v3329 = vadd.f32 %v2904, %v3328
        %v3330 = vpop.f32.mrf.mxu0
        %v3331 = vadd.f32 %v2906, %v3330
        %3332 = vdwg.mxu0
        %3333 = vmatpush.bf16.msra.mxu0 0
        %3334 = vmatpush.bf16.msra.mxu0 0
        %3335 = vmatpush.bf16.msra.mxu0 %v3212
        %3336 = vmatpush.bf16.msra.mxu0 %v3208
        %3337 = vmatpush.bf16.msra.mxu0 %v3204
        %3338 = vmatpush.bf16.msra.mxu0 %v3200
        %3339 = vmatpush.bf16.msra.mxu0 %v3196
        %3340 = vmatpush.bf16.msra.mxu0 %v3192
        %3341 = vmatmul.bf16.gmra.mxu0 %v3271
        %v3342 = vpop.f32.mrf.mxu0
        %v3343 = vadd.f32 %v3324, %v3342
        %v3344 = vpop.f32.mrf.mxu0
        %v3345 = vadd.f32 %v3326, %v3344
        %3346 = vmatmul.bf16.gmra.mxu0 %v3274
        %v3347 = vpop.f32.mrf.mxu0
        %v3348 = vadd.f32 %v3329, %v3347
        %v3349 = vpop.f32.mrf.mxu0
        %v3350 = vadd.f32 %v3331, %v3349
        %3351 = vdwg.mxu0
        %3352 = vmatpush.bf16.msra.mxu0 %v3189
        %3353 = vmatpush.bf16.msra.mxu0 %v3185
        %3354 = vmatpush.bf16.msra.mxu0 %v3181
        %3355 = vmatpush.bf16.msra.mxu0 %v3177
        %3356 = vmatpush.bf16.msra.mxu0 %v3173
        %3357 = vmatpush.bf16.msra.mxu0 %v3169
        %3358 = vmatpush.bf16.msra.mxu0 %v3165
        %3359 = vmatpush.bf16.msra.mxu0 %v3161
        %3360 = vmatmul.bf16.gmra.mxu0 %v2509
        %v3361 = vpop.f32.mrf.mxu0
        %v3362 = vadd.f32 %v2937, %v3361
        %v3363 = vpop.f32.mrf.mxu0
        %v3364 = vadd.f32 %v2939, %v3363
        %3365 = vmatmul.bf16.gmra.mxu0 %v2987
        %v3366 = vpop.f32.mrf.mxu0
        %v3367 = vadd.f32 %v2942, %v3366
        %v3368 = vpop.f32.mrf.mxu0
        %v3369 = vadd.f32 %v2944, %v3368
        %3370 = vdwg.mxu0
        %3371 = vmatpush.bf16.msra.mxu0 0
        %3372 = vmatpush.bf16.msra.mxu0 0
        %3373 = vmatpush.bf16.msra.mxu0 %v3213
        %3374 = vmatpush.bf16.msra.mxu0 %v3209
        %3375 = vmatpush.bf16.msra.mxu0 %v3205
        %3376 = vmatpush.bf16.msra.mxu0 %v3201
        %3377 = vmatpush.bf16.msra.mxu0 %v3197
        %3378 = vmatpush.bf16.msra.mxu0 %v3193
        %3379 = vmatmul.bf16.gmra.mxu0 %v3271
        %v3380 = vpop.f32.mrf.mxu0
        %v3381 = vadd.f32 %v3362, %v3380
        %v3382 = vpop.f32.mrf.mxu0
        %v3383 = vadd.f32 %v3364, %v3382
        %3384 = vmatmul.bf16.gmra.mxu0 %v3274
        %v3385 = vpop.f32.mrf.mxu0
        %v3386 = vadd.f32 %v3367, %v3385
        %v3387 = vpop.f32.mrf.mxu0
        %v3388 = vadd.f32 %v3369, %v3387
        %3389 = vdwg.mxu0
        %3390 = vmatpush.bf16.msra.mxu0 %v3190
        %3391 = vmatpush.bf16.msra.mxu0 %v3186
        %3392 = vmatpush.bf16.msra.mxu0 %v3182
        %3393 = vmatpush.bf16.msra.mxu0 %v3178
        %3394 = vmatpush.bf16.msra.mxu0 %v3174
        %3395 = vmatpush.bf16.msra.mxu0 %v3170
        %3396 = vmatpush.bf16.msra.mxu0 %v3166
        %3397 = vmatpush.bf16.msra.mxu0 %v3162
        %3398 = vmatmul.bf16.gmra.mxu0 %v2509
        %v3399 = vpop.f32.mrf.mxu0
        %v3400 = vadd.f32 %v2975, %v3399
        %v3401 = vpop.f32.mrf.mxu0
        %v3402 = vadd.f32 %v2977, %v3401
        %3403 = vmatmul.bf16.gmra.mxu0 %v2987
        %v3404 = vpop.f32.mrf.mxu0
        %v3405 = vadd.f32 %v2980, %v3404
        %v3406 = vpop.f32.mrf.mxu0
        %v3407 = vadd.f32 %v2982, %v3406
        %3408 = vdwg.mxu0
        %3409 = vmatpush.bf16.msra.mxu0 0
        %3410 = vmatpush.bf16.msra.mxu0 0
        %3411 = vmatpush.bf16.msra.mxu0 %v3214
        %3412 = vmatpush.bf16.msra.mxu0 %v3210
        %3413 = vmatpush.bf16.msra.mxu0 %v3206
        %3414 = vmatpush.bf16.msra.mxu0 %v3202
        %3415 = vmatpush.bf16.msra.mxu0 %v3198
        %3416 = vmatpush.bf16.msra.mxu0 %v3194
        %3417 = vmatmul.bf16.gmra.mxu0 %v3271
        %v3418 = vpop.f32.mrf.mxu0
        %v3419 = vadd.f32 %v3400, %v3418
        %v3420 = vpop.f32.mrf.mxu0
        %v3421 = vadd.f32 %v3402, %v3420
        %3422 = vmatmul.bf16.gmra.mxu0 %v3274
        %v3423 = vpop.f32.mrf.mxu0
        %v3424 = vadd.f32 %v3405, %v3423
        %v3425 = vpop.f32.mrf.mxu0
        %v3426 = vadd.f32 %v3407, %v3425
        %3427 = vdwg.mxu0
        %v3428 = vld [vmem:[#allocation3] sm:$0xee]
        %s3429 = scalar_lea.vmem [#allocation12], 896
        %v3430 = vld [vmem:[%s3429] sm:$0xff]
        %v3431 = vld [vmem:[%s3429 + $0x8] sm:$0xff]
        %v3432 = vld [vmem:[%s3429 + $0x10] sm:$0xff]
        %v3433 = vld [vmem:[%s3429 + $0x18] sm:$0xff]
        %v3434 = vld [vmem:[%s3429 + $0x20] sm:$0xff]
        %v3435 = vld [vmem:[%s3429 + $0x28] sm:$0xff]
        %v3436 = vld [vmem:[%s3429 + $0x30] sm:$0xff]
        %v3437 = vld [vmem:[%s3429 + $0x38] sm:$0xff]
        %v3438 = vld [vmem:[%s3429 + $0x40] sm:$0xff]
        %v3439 = vld [vmem:[%s3429 + $0x48] sm:$0xff]
        %v3440 = vld [vmem:[%s3429 + $0x50] sm:$0xff]
        %v3441 = vld [vmem:[%s3429 + $0x58] sm:$0xff]
        %v3442 = vld [vmem:[%s3429 + $0x60] sm:$0xff]
        %v3443 = vld [vmem:[%s3429 + $0x68] sm:$0xff]
        %v3444 = vld [vmem:[%s3429 + $0x70] sm:$0xff]
        %v3445 = vld [vmem:[%s3429 + $0x78] sm:$0xff]
        %v3446 = vld [vmem:[%s3429 + $0x80] sm:$0xff]
        %v3447 = vld [vmem:[%s3429 + $0x88] sm:$0xff]
        %v3448 = vld [vmem:[%s3429 + $0x90] sm:$0xff]
        %v3449 = vld [vmem:[%s3429 + $0x98] sm:$0xff]
        %v3450 = vld [vmem:[%s3429 + $0xa0] sm:$0xff]
        %v3451 = vld [vmem:[%s3429 + $0xa8] sm:$0xff]
        %v3452 = vld [vmem:[%s3429 + $0xb0] sm:$0xff]
        %v3453 = vld [vmem:[%s3429 + $0xb8] sm:$0xff]
        %v3454 = vld [vmem:[%s3429 + $0xc0] sm:$0xff]
        %v3455 = vld [vmem:[%s3429 + $0xc8] sm:$0xff]
        %v3456 = vld [vmem:[%s3429 + $0xd0] sm:$0xff]
        %v3457 = vld [vmem:[%s3429 + $0xd8] sm:$0xff]
        %v3458 = vld [vmem:[%s3429 + $0xe0] sm:$0xff]
        %v3459 = vld [vmem:[%s3429 + $0xe8] sm:$0xff]
        %v3460 = vld [vmem:[%s3429 + $0xf0] sm:$0xff]
        %v3461 = vld [vmem:[%s3429 + $0xf8] sm:$0xff]
        %v3462 = vld [vmem:[%s3429 + $0x100] sm:$0xff]
        %v3463 = vld [vmem:[%s3429 + $0x108] sm:$0xff]
        %v3464 = vld [vmem:[%s3429 + $0x110] sm:$0xff]
        %v3465 = vld [vmem:[%s3429 + $0x118] sm:$0xff]
        %v3466 = vld [vmem:[%s3429 + $0x120] sm:$0xff]
        %v3467 = vld [vmem:[%s3429 + $0x128] sm:$0xff]
        %v3468 = vld [vmem:[%s3429 + $0x130] sm:$0xff]
        %v3469 = vld [vmem:[%s3429 + $0x138] sm:$0xff]
        %v3470 = vld [vmem:[%s3429 + $0x140] sm:$0xff]
        %v3471 = vld [vmem:[%s3429 + $0x148] sm:$0xff]
        %v3472 = vld [vmem:[%s3429 + $0x150] sm:$0xff]
        %v3473 = vld [vmem:[%s3429 + $0x158] sm:$0xff]
        %v3474 = vld [vmem:[%s3429 + $0x160] sm:$0xff]
        %v3475 = vld [vmem:[%s3429 + $0x168] sm:$0xff]
        %v3476 = vld [vmem:[%s3429 + $0x170] sm:$0xff]
        %v3477 = vld [vmem:[%s3429 + $0x178] sm:$0xff]
        %v3478 = vld [vmem:[%s3429 + $0x180] sm:$0xff]
        %v3479 = vld [vmem:[%s3429 + $0x188] sm:$0xff]
        %v3480 = vld [vmem:[%s3429 + $0x190] sm:$0xff]
        %v3481 = vld [vmem:[%s3429 + $0x198] sm:$0xff]
        %v3482 = vld [vmem:[%s3429 + $0x1a0] sm:$0xff]
        %v3483 = vld [vmem:[%s3429 + $0x1a8] sm:$0xff]
        %v3484 = vld [vmem:[%s3429 + $0x1b0] sm:$0xff]
        %v3485 = vld [vmem:[%s3429 + $0x1b8] sm:$0xff]
        %v3487 = vunpack.c.l.b16 %v3428
        %v3488 = vunpack.c.h.b16 %v3428
        %v3489 = vpack.c.b16 %v2503, %v3487
        %v3490 = vpack.c.b16 %v2504, %v3488
        %v3491 = vrot.slane %v3489, 1
        %v3492 = vrot.slane %v2511, 1
        %v3493 = vsel %vm1096, %v3491, %v3492
        %v3494 = vrot.slane %v3490, 1
        %v3495 = vrot.slane %v2512, 1
        %v3496 = vsel %vm1096, %v3494, %v3495
        %v3555 = vunpack.c.l.b16 %v3430
        %v3556 = vunpack.c.h.b16 %v3430
        %v3557 = vunpack.c.l.b16 %v3431
        %v3558 = vunpack.c.h.b16 %v3431
        %v3559 = vunpack.c.l.b16 %v3432
        %v3560 = vunpack.c.h.b16 %v3432
        %v3561 = vunpack.c.l.b16 %v3433
        %v3562 = vunpack.c.h.b16 %v3433
        %v3563 = vunpack.c.l.b16 %v3434
        %v3564 = vunpack.c.h.b16 %v3434
        %v3565 = vunpack.c.l.b16 %v3435
        %v3566 = vunpack.c.h.b16 %v3435
        %v3567 = vunpack.c.l.b16 %v3436
        %v3568 = vunpack.c.h.b16 %v3436
        %v3569 = vunpack.c.l.b16 %v3437
        %v3570 = vunpack.c.h.b16 %v3437
        %v3571 = vunpack.c.l.b16 %v3438
        %v3572 = vunpack.c.h.b16 %v3438
        %v3573 = vunpack.c.l.b16 %v3439
        %v3574 = vunpack.c.h.b16 %v3439
        %v3575 = vunpack.c.l.b16 %v3440
        %v3576 = vunpack.c.h.b16 %v3440
        %v3577 = vunpack.c.l.b16 %v3441
        %v3578 = vunpack.c.h.b16 %v3441
        %v3579 = vunpack.c.l.b16 %v3442
        %v3580 = vunpack.c.h.b16 %v3442
        %v3581 = vunpack.c.l.b16 %v3443
        %v3582 = vunpack.c.h.b16 %v3443
        %v3583 = vunpack.c.l.b16 %v3444
        %v3584 = vunpack.c.h.b16 %v3444
        %v3585 = vunpack.c.l.b16 %v3445
        %v3586 = vunpack.c.h.b16 %v3445
        %v3587 = vunpack.c.l.b16 %v3446
        %v3588 = vunpack.c.h.b16 %v3446
        %v3589 = vunpack.c.l.b16 %v3447
        %v3590 = vunpack.c.h.b16 %v3447
        %v3591 = vunpack.c.l.b16 %v3448
        %v3592 = vunpack.c.h.b16 %v3448
        %v3593 = vunpack.c.l.b16 %v3449
        %v3594 = vunpack.c.h.b16 %v3449
        %v3595 = vunpack.c.l.b16 %v3450
        %v3596 = vunpack.c.h.b16 %v3450
        %v3597 = vunpack.c.l.b16 %v3451
        %v3598 = vunpack.c.h.b16 %v3451
        %v3599 = vunpack.c.l.b16 %v3452
        %v3600 = vunpack.c.h.b16 %v3452
        %v3601 = vunpack.c.l.b16 %v3453
        %v3602 = vunpack.c.h.b16 %v3453
        %v3603 = vunpack.c.l.b16 %v3454
        %v3604 = vunpack.c.h.b16 %v3454
        %v3605 = vunpack.c.l.b16 %v3455
        %v3606 = vunpack.c.h.b16 %v3455
        %v3607 = vunpack.c.l.b16 %v3456
        %v3608 = vunpack.c.h.b16 %v3456
        %v3609 = vunpack.c.l.b16 %v3457
        %v3610 = vunpack.c.h.b16 %v3457
        %v3611 = vunpack.c.l.b16 %v3458
        %v3612 = vunpack.c.h.b16 %v3458
        %v3613 = vunpack.c.l.b16 %v3459
        %v3614 = vunpack.c.h.b16 %v3459
        %v3615 = vunpack.c.l.b16 %v3460
        %v3616 = vunpack.c.h.b16 %v3460
        %v3617 = vunpack.c.l.b16 %v3461
        %v3618 = vunpack.c.h.b16 %v3461
        %v3619 = vunpack.c.l.b16 %v3462
        %v3620 = vunpack.c.h.b16 %v3462
        %v3621 = vunpack.c.l.b16 %v3463
        %v3622 = vunpack.c.h.b16 %v3463
        %v3623 = vunpack.c.l.b16 %v3464
        %v3624 = vunpack.c.h.b16 %v3464
        %v3625 = vunpack.c.l.b16 %v3465
        %v3626 = vunpack.c.h.b16 %v3465
        %v3627 = vunpack.c.l.b16 %v3466
        %v3628 = vunpack.c.h.b16 %v3466
        %v3629 = vunpack.c.l.b16 %v3467
        %v3630 = vunpack.c.h.b16 %v3467
        %v3631 = vunpack.c.l.b16 %v3468
        %v3632 = vunpack.c.h.b16 %v3468
        %v3633 = vunpack.c.l.b16 %v3469
        %v3634 = vunpack.c.h.b16 %v3469
        %v3635 = vunpack.c.l.b16 %v3470
        %v3636 = vunpack.c.h.b16 %v3470
        %v3637 = vunpack.c.l.b16 %v3471
        %v3638 = vunpack.c.h.b16 %v3471
        %v3639 = vunpack.c.l.b16 %v3472
        %v3640 = vunpack.c.h.b16 %v3472
        %v3641 = vunpack.c.l.b16 %v3473
        %v3642 = vunpack.c.h.b16 %v3473
        %v3643 = vunpack.c.l.b16 %v3474
        %v3644 = vunpack.c.h.b16 %v3474
        %v3645 = vunpack.c.l.b16 %v3475
        %v3646 = vunpack.c.h.b16 %v3475
        %v3647 = vunpack.c.l.b16 %v3476
        %v3648 = vunpack.c.h.b16 %v3476
        %v3649 = vunpack.c.l.b16 %v3477
        %v3650 = vunpack.c.h.b16 %v3477
        %v3651 = vunpack.c.l.b16 %v3478
        %v3652 = vunpack.c.h.b16 %v3478
        %v3653 = vunpack.c.l.b16 %v3479
        %v3654 = vunpack.c.h.b16 %v3479
        %v3655 = vunpack.c.l.b16 %v3480
        %v3656 = vunpack.c.h.b16 %v3480
        %v3657 = vunpack.c.l.b16 %v3481
        %v3658 = vunpack.c.h.b16 %v3481
        %v3659 = vunpack.c.l.b16 %v3482
        %v3660 = vunpack.c.h.b16 %v3482
        %v3661 = vunpack.c.l.b16 %v3483
        %v3662 = vunpack.c.h.b16 %v3483
        %v3663 = vunpack.c.l.b16 %v3484
        %v3664 = vunpack.c.h.b16 %v3484
        %v3665 = vunpack.c.l.b16 %v3485
        %v3666 = vunpack.c.h.b16 %v3485
        %v3667 = vpack.c.b16 %v3559, %v3555
        %v3668 = vpack.c.b16 %v3560, %v3556
        %v3669 = vpack.c.b16 %v3561, %v3557
        %v3670 = vpack.c.b16 %v3562, %v3558
        %v3671 = vpack.c.b16 %v3567, %v3563
        %v3672 = vpack.c.b16 %v3568, %v3564
        %v3673 = vpack.c.b16 %v3569, %v3565
        %v3674 = vpack.c.b16 %v3570, %v3566
        %v3675 = vpack.c.b16 %v3575, %v3571
        %v3676 = vpack.c.b16 %v3576, %v3572
        %v3677 = vpack.c.b16 %v3577, %v3573
        %v3678 = vpack.c.b16 %v3578, %v3574
        %v3679 = vpack.c.b16 %v3583, %v3579
        %v3680 = vpack.c.b16 %v3584, %v3580
        %v3681 = vpack.c.b16 %v3585, %v3581
        %v3682 = vpack.c.b16 %v3586, %v3582
        %v3683 = vpack.c.b16 %v3591, %v3587
        %v3684 = vpack.c.b16 %v3592, %v3588
        %v3685 = vpack.c.b16 %v3593, %v3589
        %v3686 = vpack.c.b16 %v3594, %v3590
        %v3687 = vpack.c.b16 %v3599, %v3595
        %v3688 = vpack.c.b16 %v3600, %v3596
        %v3689 = vpack.c.b16 %v3601, %v3597
        %v3690 = vpack.c.b16 %v3602, %v3598
        %v3691 = vpack.c.b16 %v3607, %v3603
        %v3692 = vpack.c.b16 %v3608, %v3604
        %v3693 = vpack.c.b16 %v3609, %v3605
        %v3694 = vpack.c.b16 %v3610, %v3606
        %v3695 = vpack.c.b16 %v3615, %v3611
        %v3696 = vpack.c.b16 %v3616, %v3612
        %v3697 = vpack.c.b16 %v3617, %v3613
        %v3698 = vpack.c.b16 %v3618, %v3614
        %v3699 = vpack.c.b16 %v3623, %v3619
        %v3700 = vpack.c.b16 %v3624, %v3620
        %v3701 = vpack.c.b16 %v3625, %v3621
        %v3702 = vpack.c.b16 %v3626, %v3622
        %v3703 = vpack.c.b16 %v3631, %v3627
        %v3704 = vpack.c.b16 %v3632, %v3628
        %v3705 = vpack.c.b16 %v3633, %v3629
        %v3706 = vpack.c.b16 %v3634, %v3630
        %v3707 = vpack.c.b16 %v3639, %v3635
        %v3708 = vpack.c.b16 %v3640, %v3636
        %v3709 = vpack.c.b16 %v3641, %v3637
        %v3710 = vpack.c.b16 %v3642, %v3638
        %v3711 = vpack.c.b16 %v3647, %v3643
        %v3712 = vpack.c.b16 %v3648, %v3644
        %v3713 = vpack.c.b16 %v3649, %v3645
        %v3714 = vpack.c.b16 %v3650, %v3646
        %v3715 = vpack.c.b16 %v3655, %v3651
        %v3716 = vpack.c.b16 %v3656, %v3652
        %v3717 = vpack.c.b16 %v3657, %v3653
        %v3718 = vpack.c.b16 %v3658, %v3654
        %v3719 = vpack.c.b16 %v3663, %v3659
        %v3720 = vpack.c.b16 %v3664, %v3660
        %v3721 = vpack.c.b16 %v3665, %v3661
        %v3722 = vpack.c.b16 %v3666, %v3662
        %v3780 = vsel %vm2825, %v3496, 0
        %v3783 = vsel %vm2825, %v3495, 0
        %3785 = vmatpush.bf16.msra.mxu0 %v3695
        %3786 = vmatpush.bf16.msra.mxu0 %v3691
        %3787 = vmatpush.bf16.msra.mxu0 %v3687
        %3788 = vmatpush.bf16.msra.mxu0 %v3683
        %3789 = vmatpush.bf16.msra.mxu0 %v3679
        %3790 = vmatpush.bf16.msra.mxu0 %v3675
        %3791 = vmatpush.bf16.msra.mxu0 %v3671
        %3792 = vmatpush.bf16.msra.mxu0 %v3667
        %3793 = vmatmul.bf16.gmra.mxu0 %v3493
        %v3794 = vpop.f32.mrf.mxu0
        %v3795 = vadd.f32 0.0, %v3794
        %v3796 = vpop.f32.mrf.mxu0
        %v3797 = vadd.f32 0.0, %v3796
        %3798 = vmatmul.bf16.gmra.mxu0 %v3492
        %v3799 = vpop.f32.mrf.mxu0
        %v3800 = vadd.f32 0.0, %v3799
        %v3801 = vpop.f32.mrf.mxu0
        %v3802 = vadd.f32 0.0, %v3801
        %3803 = vdwg.mxu0
        %3804 = vmatpush.bf16.msra.mxu0 0
        %3805 = vmatpush.bf16.msra.mxu0 0
        %3806 = vmatpush.bf16.msra.mxu0 %v3719
        %3807 = vmatpush.bf16.msra.mxu0 %v3715
        %3808 = vmatpush.bf16.msra.mxu0 %v3711
        %3809 = vmatpush.bf16.msra.mxu0 %v3707
        %3810 = vmatpush.bf16.msra.mxu0 %v3703
        %3811 = vmatpush.bf16.msra.mxu0 %v3699
        %3812 = vmatmul.bf16.gmra.mxu0 %v3780
        %v3813 = vpop.f32.mrf.mxu0
        %v3814 = vadd.f32 %v3795, %v3813
        %v3815 = vpop.f32.mrf.mxu0
        %v3816 = vadd.f32 %v3797, %v3815
        %3817 = vmatmul.bf16.gmra.mxu0 %v3783
        %v3818 = vpop.f32.mrf.mxu0
        %v3819 = vadd.f32 %v3800, %v3818
        %v3820 = vpop.f32.mrf.mxu0
        %v3821 = vadd.f32 %v3802, %v3820
        %3822 = vdwg.mxu0
        %3823 = vmatpush.bf16.msra.mxu0 %v3696
        %3824 = vmatpush.bf16.msra.mxu0 %v3692
        %3825 = vmatpush.bf16.msra.mxu0 %v3688
        %3826 = vmatpush.bf16.msra.mxu0 %v3684
        %3827 = vmatpush.bf16.msra.mxu0 %v3680
        %3828 = vmatpush.bf16.msra.mxu0 %v3676
        %3829 = vmatpush.bf16.msra.mxu0 %v3672
        %3830 = vmatpush.bf16.msra.mxu0 %v3668
        %3831 = vmatmul.bf16.gmra.mxu0 %v3493
        %v3832 = vpop.f32.mrf.mxu0
        %v3833 = vadd.f32 0.0, %v3832
        %v3834 = vpop.f32.mrf.mxu0
        %v3835 = vadd.f32 0.0, %v3834
        %3836 = vmatmul.bf16.gmra.mxu0 %v3492
        %v3837 = vpop.f32.mrf.mxu0
        %v3838 = vadd.f32 0.0, %v3837
        %v3839 = vpop.f32.mrf.mxu0
        %v3840 = vadd.f32 0.0, %v3839
        %3841 = vdwg.mxu0
        %3842 = vmatpush.bf16.msra.mxu0 0
        %3843 = vmatpush.bf16.msra.mxu0 0
        %3844 = vmatpush.bf16.msra.mxu0 %v3720
        %3845 = vmatpush.bf16.msra.mxu0 %v3716
        %3846 = vmatpush.bf16.msra.mxu0 %v3712
        %3847 = vmatpush.bf16.msra.mxu0 %v3708
        %3848 = vmatpush.bf16.msra.mxu0 %v3704
        %3849 = vmatpush.bf16.msra.mxu0 %v3700
        %3850 = vmatmul.bf16.gmra.mxu0 %v3780
        %v3851 = vpop.f32.mrf.mxu0
        %v3852 = vadd.f32 %v3833, %v3851
        %v3853 = vpop.f32.mrf.mxu0
        %v3854 = vadd.f32 %v3835, %v3853
        %3855 = vmatmul.bf16.gmra.mxu0 %v3783
        %v3856 = vpop.f32.mrf.mxu0
        %v3857 = vadd.f32 %v3838, %v3856
        %v3858 = vpop.f32.mrf.mxu0
        %v3859 = vadd.f32 %v3840, %v3858
        %3860 = vdwg.mxu0
        %3861 = vmatpush.bf16.msra.mxu0 %v3697
        %3862 = vmatpush.bf16.msra.mxu0 %v3693
        %3863 = vmatpush.bf16.msra.mxu0 %v3689
        %3864 = vmatpush.bf16.msra.mxu0 %v3685
        %3865 = vmatpush.bf16.msra.mxu0 %v3681
        %3866 = vmatpush.bf16.msra.mxu0 %v3677
        %3867 = vmatpush.bf16.msra.mxu0 %v3673
        %3868 = vmatpush.bf16.msra.mxu0 %v3669
        %3869 = vmatmul.bf16.gmra.mxu0 %v3493
        %v3870 = vpop.f32.mrf.mxu0
        %v3871 = vadd.f32 0.0, %v3870
        %v3872 = vpop.f32.mrf.mxu0
        %v3873 = vadd.f32 0.0, %v3872
        %3874 = vmatmul.bf16.gmra.mxu0 %v3492
        %v3875 = vpop.f32.mrf.mxu0
        %v3876 = vadd.f32 0.0, %v3875
        %v3877 = vpop.f32.mrf.mxu0
        %v3878 = vadd.f32 0.0, %v3877
        %3879 = vdwg.mxu0
        %3880 = vmatpush.bf16.msra.mxu0 0
        %3881 = vmatpush.bf16.msra.mxu0 0
        %3882 = vmatpush.bf16.msra.mxu0 %v3721
        %3883 = vmatpush.bf16.msra.mxu0 %v3717
        %3884 = vmatpush.bf16.msra.mxu0 %v3713
        %3885 = vmatpush.bf16.msra.mxu0 %v3709
        %3886 = vmatpush.bf16.msra.mxu0 %v3705
        %3887 = vmatpush.bf16.msra.mxu0 %v3701
        %3888 = vmatmul.bf16.gmra.mxu0 %v3780
        %v3889 = vpop.f32.mrf.mxu0
        %v3890 = vadd.f32 %v3871, %v3889
        %v3891 = vpop.f32.mrf.mxu0
        %v3892 = vadd.f32 %v3873, %v3891
        %3893 = vmatmul.bf16.gmra.mxu0 %v3783
        %v3894 = vpop.f32.mrf.mxu0
        %v3895 = vadd.f32 %v3876, %v3894
        %v3896 = vpop.f32.mrf.mxu0
        %v3897 = vadd.f32 %v3878, %v3896
        %3898 = vdwg.mxu0
        %3899 = vmatpush.bf16.msra.mxu0 %v3698
        %3900 = vmatpush.bf16.msra.mxu0 %v3694
        %3901 = vmatpush.bf16.msra.mxu0 %v3690
        %3902 = vmatpush.bf16.msra.mxu0 %v3686
        %3903 = vmatpush.bf16.msra.mxu0 %v3682
        %3904 = vmatpush.bf16.msra.mxu0 %v3678
        %3905 = vmatpush.bf16.msra.mxu0 %v3674
        %3906 = vmatpush.bf16.msra.mxu0 %v3670
        %3907 = vmatmul.bf16.gmra.mxu0 %v3493
        %v3908 = vpop.f32.mrf.mxu0
        %v3909 = vadd.f32 0.0, %v3908
        %v3910 = vpop.f32.mrf.mxu0
        %v3911 = vadd.f32 0.0, %v3910
        %3912 = vmatmul.bf16.gmra.mxu0 %v3492
        %v3913 = vpop.f32.mrf.mxu0
        %v3914 = vadd.f32 0.0, %v3913
        %v3915 = vpop.f32.mrf.mxu0
        %v3916 = vadd.f32 0.0, %v3915
        %3917 = vdwg.mxu0
        %3918 = vmatpush.bf16.msra.mxu0 0
        %3919 = vmatpush.bf16.msra.mxu0 0
        %3920 = vmatpush.bf16.msra.mxu0 %v3722
        %3921 = vmatpush.bf16.msra.mxu0 %v3718
        %3922 = vmatpush.bf16.msra.mxu0 %v3714
        %3923 = vmatpush.bf16.msra.mxu0 %v3710
        %3924 = vmatpush.bf16.msra.mxu0 %v3706
        %3925 = vmatpush.bf16.msra.mxu0 %v3702
        %3926 = vmatmul.bf16.gmra.mxu0 %v3780
        %v3927 = vpop.f32.mrf.mxu0
        %v3928 = vadd.f32 %v3909, %v3927
        %v3929 = vpop.f32.mrf.mxu0
        %v3930 = vadd.f32 %v3911, %v3929
        %3931 = vmatmul.bf16.gmra.mxu0 %v3783
        %v3932 = vpop.f32.mrf.mxu0
        %v3933 = vadd.f32 %v3914, %v3932
        %v3934 = vpop.f32.mrf.mxu0
        %v3935 = vadd.f32 %v3916, %v3934
        %3936 = vdwg.mxu0
        %v3937 = vadd.f32 %v3305, %v3814
        %v3938 = vadd.f32 %v3343, %v3852
        %v3939 = vadd.f32 %v3381, %v3890
        %v3940 = vadd.f32 %v3419, %v3928
        %v3941 = vadd.f32 %v3307, %v3816
        %v3942 = vadd.f32 %v3345, %v3854
        %v3943 = vadd.f32 %v3383, %v3892
        %v3944 = vadd.f32 %v3421, %v3930
        %v3945 = vadd.f32 %v3310, %v3819
        %v3946 = vadd.f32 %v3348, %v3857
        %v3947 = vadd.f32 %v3386, %v3895
        %v3948 = vadd.f32 %v3424, %v3933
        %v3949 = vadd.f32 %v3312, %v3821
        %v3950 = vadd.f32 %v3350, %v3859
        %v3951 = vadd.f32 %v3388, %v3897
        %v3952 = vadd.f32 %v3426, %v3935
        %v3953 = vld [vmem:[#allocation14] sm:$0xf]
        %v3955 = vperm.slane %v3953, 0
        %v3956 = vperm.slane %v3953, 1
        %v3957 = vperm.slane %v3953, 2
        %v3958 = vperm.slane %v3953, 3
        %v3963 = vadd.f32 %v3937, %v3955
        %v3964 = vadd.f32 %v3938, %v3956
        %v3965 = vadd.f32 %v3939, %v3957
        %v3966 = vadd.f32 %v3940, %v3958
        %v3967 = vadd.f32 %v3941, %v3955
        %v3968 = vadd.f32 %v3942, %v3956
        %v3969 = vadd.f32 %v3943, %v3957
        %v3970 = vadd.f32 %v3944, %v3958
        %v3971 = vadd.f32 %v3945, %v3955
        %v3972 = vadd.f32 %v3946, %v3956
        %v3973 = vadd.f32 %v3947, %v3957
        %v3974 = vadd.f32 %v3948, %v3958
        %v3975 = vadd.f32 %v3949, %v3955
        %v3976 = vadd.f32 %v3950, %v3956
        %v3977 = vadd.f32 %v3951, %v3957
        %v3978 = vadd.f32 %v3952, %v3958
        %v3979 = vmax.f32 %v3963, 0.0
        %v3980 = vmax.f32 %v3964, 0.0
        %v3981 = vmax.f32 %v3965, 0.0
        %v3982 = vmax.f32 %v3966, 0.0
        %v3983 = vmax.f32 %v3967, 0.0
        %v3984 = vmax.f32 %v3968, 0.0
        %v3985 = vmax.f32 %v3969, 0.0
        %v3986 = vmax.f32 %v3970, 0.0
        %v3987 = vmax.f32 %v3971, 0.0
        %v3988 = vmax.f32 %v3972, 0.0
        %v3989 = vmax.f32 %v3973, 0.0
        %v3990 = vmax.f32 %v3974, 0.0
        %v3991 = vmax.f32 %v3975, 0.0
        %v3992 = vmax.f32 %v3976, 0.0
        %v3993 = vmax.f32 %v3977, 0.0
        %v3994 = vmax.f32 %v3978, 0.0
        %3995 = vrot.lane.b32.xlu0 %v3979, 64
        %v3996 = vpop.permute.xlu0 %3995
        %3997 = vrot.lane.b32.xlu0 %v3983, 64
        %v3998 = vpop.permute.xlu0 %3997
        %3999 = vrot.lane.b32.xlu0 %v3987, 64
        %v4000 = vpop.permute.xlu0 %3999
        %4001 = vrot.lane.b32.xlu0 %v3991, 64
        %v4002 = vpop.permute.xlu0 %4001
        %v4003 = vsel %vm1370, %v3996, %v3982
        %v4004 = vsel %vm1370, %v3998, %v3986
        %v4005 = vsel %vm1370, %v4000, %v3990
        %v4006 = vsel %vm1370, %v4002, %v3994
        %4023 = vrot.lane.b32.xlu0 %v3979, 96
        %v4024 = vpop.permute.xlu0 %4023
        %4025 = vrot.lane.b32.xlu0 %v3980, 96
        %v4026 = vpop.permute.xlu0 %4025
        %4027 = vrot.lane.b32.xlu0 %v3981, 96
        %v4028 = vpop.permute.xlu0 %4027
        %4029 = vrot.lane.b32.xlu0 %v4003, 96
        %v4030 = vpop.permute.xlu0 %4029
        %4031 = vrot.lane.b32.xlu0 %v3983, 96
        %v4032 = vpop.permute.xlu0 %4031
        %4033 = vrot.lane.b32.xlu0 %v3984, 96
        %v4034 = vpop.permute.xlu0 %4033
        %4035 = vrot.lane.b32.xlu0 %v3985, 96
        %v4036 = vpop.permute.xlu0 %4035
        %4037 = vrot.lane.b32.xlu0 %v4004, 96
        %v4038 = vpop.permute.xlu0 %4037
        %4039 = vrot.lane.b32.xlu0 %v3987, 96
        %v4040 = vpop.permute.xlu0 %4039
        %4041 = vrot.lane.b32.xlu0 %v3988, 96
        %v4042 = vpop.permute.xlu0 %4041
        %4043 = vrot.lane.b32.xlu0 %v3989, 96
        %v4044 = vpop.permute.xlu0 %4043
        %4045 = vrot.lane.b32.xlu0 %v4005, 96
        %v4046 = vpop.permute.xlu0 %4045
        %4047 = vrot.lane.b32.xlu0 %v3991, 96
        %v4048 = vpop.permute.xlu0 %4047
        %4049 = vrot.lane.b32.xlu0 %v3992, 96
        %v4050 = vpop.permute.xlu0 %4049
        %4051 = vrot.lane.b32.xlu0 %v3993, 96
        %v4052 = vpop.permute.xlu0 %4051
        %4053 = vrot.lane.b32.xlu0 %v4006, 96
        %v4054 = vpop.permute.xlu0 %4053
        %v4055 = vsel %vm2825, %v4024, %v4026
        %v4056 = vsel %vm2825, %v4026, %v4028
        %v4057 = vsel %vm2825, %v4028, %v4030
        %v4058 = vsel %vm2825, %v4032, %v4034
        %v4059 = vsel %vm2825, %v4034, %v4036
        %v4060 = vsel %vm2825, %v4036, %v4038
        %v4061 = vsel %vm2825, %v4040, %v4042
        %v4062 = vsel %vm2825, %v4042, %v4044
        %v4063 = vsel %vm2825, %v4044, %v4046
        %v4064 = vsel %vm2825, %v4048, %v4050
        %v4065 = vsel %vm2825, %v4050, %v4052
        %v4066 = vsel %vm2825, %v4052, %v4054
        %v4083 = vmax.f32 %v3979, %v4055
        %v4084 = vmax.f32 %v3980, %v4056
        %v4085 = vmax.f32 %v3981, %v4057
        %v4086 = vmax.f32 %v3982, %v4030
        %v4087 = vmax.f32 %v3983, %v4058
        %v4088 = vmax.f32 %v3984, %v4059
        %v4089 = vmax.f32 %v3985, %v4060
        %v4090 = vmax.f32 %v3986, %v4038
        %v4091 = vmax.f32 %v3987, %v4061
        %v4092 = vmax.f32 %v3988, %v4062
        %v4093 = vmax.f32 %v3989, %v4063
        %v4094 = vmax.f32 %v3990, %v4046
        %v4095 = vmax.f32 %v3991, %v4064
        %v4096 = vmax.f32 %v3992, %v4065
        %v4097 = vmax.f32 %v3993, %v4066
        %v4098 = vmax.f32 %v3994, %v4054
        %v4099 = vpack.c.bf16 %v4087, %v4083
        %v4100 = vpack.c.bf16 %v4088, %v4084
        %v4101 = vpack.c.bf16 %v4089, %v4085
        %v4102 = vpack.c.bf16 %v4090, %v4086
        %v4103 = vpack.c.bf16 %v4095, %v4091
        %v4104 = vpack.c.bf16 %v4096, %v4092
        %v4105 = vpack.c.bf16 %v4097, %v4093
        %v4106 = vpack.c.bf16 %v4098, %v4094
        %v4107 = vld [vmem:[#allocation15] sm:$0xf]
        %v4108 = vld [vmem:[#allocation15 + $0x4] sm:$0x7]
        %v4111 = vunpack.c.l.b16 %v4107
        %v4112 = vunpack.c.l.b16 %v4108
        %v4113 = vpack.c.b16 %v4112, %v4111
        %v4115 = vsel %vm775, %v4113, 0
        %v4118 = vsel %vm788, %v4103, 0
        %v4121 = vsel %vm788, %v4104, 0
        %v4124 = vsel %vm788, %v4105, 0
        %v4127 = vsel %vm788, %v4106, 0
        %4129 = vmatpush.bf16.msra.mxu0 0
        %4130 = vmatpush.bf16.msra.mxu0 0
        %4131 = vmatpush.bf16.msra.mxu0 0
        %4132 = vmatpush.bf16.msra.mxu0 0
        %4133 = vmatpush.bf16.msra.mxu0 0
        %4134 = vmatpush.bf16.msra.mxu0 0
        %4135 = vmatpush.bf16.msra.mxu0 %v4118
        %4136 = vmatpush.bf16.msra.mxu0 %v4099
        %4137 = vmatmul.bf16.gmra.mxu0 %v4115
        %v4138 = vpop.f32.mrf.mxu0
        %v4139 = vadd.f32 0.0, %v4138
        %v4140 = vpop.f32.mrf.mxu0
        %v4141 = vadd.f32 0.0, %v4140
        %4142 = vdwg.mxu0
        %4143 = vmatpush.bf16.msra.mxu0 0
        %4144 = vmatpush.bf16.msra.mxu0 0
        %4145 = vmatpush.bf16.msra.mxu0 0
        %4146 = vmatpush.bf16.msra.mxu0 0
        %4147 = vmatpush.bf16.msra.mxu0 0
        %4148 = vmatpush.bf16.msra.mxu0 0
        %4149 = vmatpush.bf16.msra.mxu0 %v4121
        %4150 = vmatpush.bf16.msra.mxu0 %v4100
        %4151 = vmatmul.bf16.gmra.mxu0 %v4115
        %v4152 = vpop.f32.mrf.mxu0
        %v4153 = vadd.f32 0.0, %v4152
        %v4154 = vpop.f32.mrf.mxu0
        %v4155 = vadd.f32 0.0, %v4154
        %4156 = vdwg.mxu0
        %4157 = vmatpush.bf16.msra.mxu0 0
        %4158 = vmatpush.bf16.msra.mxu0 0
        %4159 = vmatpush.bf16.msra.mxu0 0
        %4160 = vmatpush.bf16.msra.mxu0 0
        %4161 = vmatpush.bf16.msra.mxu0 0
        %4162 = vmatpush.bf16.msra.mxu0 0
        %4163 = vmatpush.bf16.msra.mxu0 %v4124
        %4164 = vmatpush.bf16.msra.mxu0 %v4101
        %4165 = vmatmul.bf16.gmra.mxu0 %v4115
        %v4166 = vpop.f32.mrf.mxu0
        %v4167 = vadd.f32 0.0, %v4166
        %v4168 = vpop.f32.mrf.mxu0
        %v4169 = vadd.f32 0.0, %v4168
        %4170 = vdwg.mxu0
        %4171 = vmatpush.bf16.msra.mxu0 0
        %4172 = vmatpush.bf16.msra.mxu0 0
        %4173 = vmatpush.bf16.msra.mxu0 0
        %4174 = vmatpush.bf16.msra.mxu0 0
        %4175 = vmatpush.bf16.msra.mxu0 0
        %4176 = vmatpush.bf16.msra.mxu0 0
        %4177 = vmatpush.bf16.msra.mxu0 %v4127
        %4178 = vmatpush.bf16.msra.mxu0 %v4102
        %4179 = vmatmul.bf16.gmra.mxu0 %v4115
        %v4180 = vpop.f32.mrf.mxu0
        %v4181 = vadd.f32 0.0, %v4180
        %v4182 = vpop.f32.mrf.mxu0
        %v4183 = vadd.f32 0.0, %v4182
        %4184 = vdwg.mxu0
        %v4185 = vld [vmem:[#allocation17] sm:$0xf]
        %v4186 = vld [vmem:[#allocation17 + $0x4] sm:$0x7]
        %v4189 = vunpack.c.l.b16 %v4185
        %v4190 = vunpack.c.l.b16 %v4186
        %v4191 = vpack.c.b16 %v4190, %v4189
        %v4193 = vsel %vm775, %v4191, 0
        %4195 = vmatpush.bf16.msra.mxu0 0
        %4196 = vmatpush.bf16.msra.mxu0 0
        %4197 = vmatpush.bf16.msra.mxu0 0
        %4198 = vmatpush.bf16.msra.mxu0 0
        %4199 = vmatpush.bf16.msra.mxu0 0
        %4200 = vmatpush.bf16.msra.mxu0 0
        %4201 = vmatpush.bf16.msra.mxu0 %v4118
        %4202 = vmatpush.bf16.msra.mxu0 %v4099
        %4203 = vmatmul.bf16.gmra.mxu0 %v4193
        %v4204 = vpop.f32.mrf.mxu0
        %v4205 = vadd.f32 0.0, %v4204
        %v4206 = vpop.f32.mrf.mxu0
        %v4207 = vadd.f32 0.0, %v4206
        %4208 = vdwg.mxu0
        %4209 = vmatpush.bf16.msra.mxu0 0
        %4210 = vmatpush.bf16.msra.mxu0 0
        %4211 = vmatpush.bf16.msra.mxu0 0
        %4212 = vmatpush.bf16.msra.mxu0 0
        %4213 = vmatpush.bf16.msra.mxu0 0
        %4214 = vmatpush.bf16.msra.mxu0 0
        %4215 = vmatpush.bf16.msra.mxu0 %v4121
        %4216 = vmatpush.bf16.msra.mxu0 %v4100
        %4217 = vmatmul.bf16.gmra.mxu0 %v4193
        %v4218 = vpop.f32.mrf.mxu0
        %v4219 = vadd.f32 0.0, %v4218
        %v4220 = vpop.f32.mrf.mxu0
        %v4221 = vadd.f32 0.0, %v4220
        %4222 = vdwg.mxu0
        %4223 = vmatpush.bf16.msra.mxu0 0
        %4224 = vmatpush.bf16.msra.mxu0 0
        %4225 = vmatpush.bf16.msra.mxu0 0
        %4226 = vmatpush.bf16.msra.mxu0 0
        %4227 = vmatpush.bf16.msra.mxu0 0
        %4228 = vmatpush.bf16.msra.mxu0 0
        %4229 = vmatpush.bf16.msra.mxu0 %v4124
        %4230 = vmatpush.bf16.msra.mxu0 %v4101
        %4231 = vmatmul.bf16.gmra.mxu0 %v4193
        %v4232 = vpop.f32.mrf.mxu0
        %v4233 = vadd.f32 0.0, %v4232
        %v4234 = vpop.f32.mrf.mxu0
        %v4235 = vadd.f32 0.0, %v4234
        %4236 = vdwg.mxu0
        %4237 = vmatpush.bf16.msra.mxu0 0
        %4238 = vmatpush.bf16.msra.mxu0 0
        %4239 = vmatpush.bf16.msra.mxu0 0
        %4240 = vmatpush.bf16.msra.mxu0 0
        %4241 = vmatpush.bf16.msra.mxu0 0
        %4242 = vmatpush.bf16.msra.mxu0 0
        %4243 = vmatpush.bf16.msra.mxu0 %v4127
        %4244 = vmatpush.bf16.msra.mxu0 %v4102
        %4245 = vmatmul.bf16.gmra.mxu0 %v4193
        %v4246 = vpop.f32.mrf.mxu0
        %v4247 = vadd.f32 0.0, %v4246
        %v4248 = vpop.f32.mrf.mxu0
        %v4249 = vadd.f32 0.0, %v4248
        %4250 = vdwg.mxu0
        %v4251 = vmax.f32 %v4139, %v4205
        %v4252 = vmax.f32 %v4153, %v4219
        %v4253 = vmax.f32 %v4167, %v4233
        %v4254 = vmax.f32 %v4181, %v4247
        %v4255 = vmax.f32 %v4141, %v4207
        %v4256 = vmax.f32 %v4155, %v4221
        %v4257 = vmax.f32 %v4169, %v4235
        %v4258 = vmax.f32 %v4183, %v4249
        %v4259 = vpack.c.bf16 %v4255, %v4251
        %v4260 = vpack.c.bf16 %v4256, %v4252
        %v4261 = vpack.c.bf16 %v4257, %v4253
        %v4262 = vpack.c.bf16 %v4258, %v4254
        %v4263 = vld [vmem:[#allocation18] sm:$0xff]
        %v4264 = vld [vmem:[#allocation18 + $0x8] sm:$0xff]
        %v4265 = vld [vmem:[#allocation18 + $0x10] sm:$0xff]
        %v4266 = vld [vmem:[#allocation18 + $0x18] sm:$0xff]
        %v4267 = vld [vmem:[#allocation18 + $0x20] sm:$0xff]
        %v4268 = vld [vmem:[#allocation18 + $0x28] sm:$0xff]
        %v4269 = vld [vmem:[#allocation18 + $0x30] sm:$0xff]
        %v4270 = vld [vmem:[#allocation18 + $0x38] sm:$0xff]
        %v4271 = vld [vmem:[#allocation18 + $0x40] sm:$0xff]
        %v4272 = vld [vmem:[#allocation18 + $0x48] sm:$0xff]
        %v4273 = vld [vmem:[#allocation18 + $0x50] sm:$0xff]
        %v4274 = vld [vmem:[#allocation18 + $0x58] sm:$0xff]
        %v4275 = vld [vmem:[#allocation18 + $0x60] sm:$0xff]
        %v4276 = vld [vmem:[#allocation18 + $0x68] sm:$0xff]
        %v4277 = vld [vmem:[#allocation18 + $0x70] sm:$0xff]
        %v4278 = vld [vmem:[#allocation18 + $0x78] sm:$0xff]
        %v4279 = vld [vmem:[#allocation18 + $0x80] sm:$0xff]
        %v4280 = vld [vmem:[#allocation18 + $0x88] sm:$0xff]
        %v4281 = vld [vmem:[#allocation18 + $0x90] sm:$0xff]
        %v4282 = vld [vmem:[#allocation18 + $0x98] sm:$0xff]
        %v4283 = vld [vmem:[#allocation18 + $0xa0] sm:$0xff]
        %v4284 = vld [vmem:[#allocation18 + $0xa8] sm:$0xff]
        %v4285 = vld [vmem:[#allocation18 + $0xb0] sm:$0xff]
        %v4286 = vld [vmem:[#allocation18 + $0xb8] sm:$0xff]
        %v4287 = vld [vmem:[#allocation18 + $0xc0] sm:$0xff]
        %v4288 = vld [vmem:[#allocation18 + $0xc8] sm:$0xff]
        %v4289 = vld [vmem:[#allocation18 + $0xd0] sm:$0xff]
        %v4290 = vld [vmem:[#allocation18 + $0xd8] sm:$0xff]
        %v4291 = vld [vmem:[#allocation18 + $0xe0] sm:$0xff]
        %v4292 = vld [vmem:[#allocation18 + $0xe8] sm:$0xff]
        %v4293 = vld [vmem:[#allocation18 + $0xf0] sm:$0xff]
        %v4294 = vld [vmem:[#allocation18 + $0xf8] sm:$0xff]
        %v4295 = vld [vmem:[#allocation18 + $0x100] sm:$0xff]
        %v4296 = vld [vmem:[#allocation18 + $0x108] sm:$0xff]
        %v4297 = vld [vmem:[#allocation18 + $0x110] sm:$0xff]
        %v4298 = vld [vmem:[#allocation18 + $0x118] sm:$0xff]
        %v4299 = vld [vmem:[#allocation18 + $0x120] sm:$0xff]
        %v4300 = vld [vmem:[#allocation18 + $0x128] sm:$0xff]
        %v4301 = vld [vmem:[#allocation18 + $0x130] sm:$0xff]
        %v4302 = vld [vmem:[#allocation18 + $0x138] sm:$0xff]
        %v4303 = vld [vmem:[#allocation18 + $0x140] sm:$0xff]
        %v4304 = vld [vmem:[#allocation18 + $0x148] sm:$0xff]
        %v4305 = vld [vmem:[#allocation18 + $0x150] sm:$0xff]
        %v4306 = vld [vmem:[#allocation18 + $0x158] sm:$0xff]
        %v4307 = vld [vmem:[#allocation18 + $0x160] sm:$0xff]
        %v4308 = vld [vmem:[#allocation18 + $0x168] sm:$0xff]
        %v4309 = vld [vmem:[#allocation18 + $0x170] sm:$0xff]
        %v4310 = vld [vmem:[#allocation18 + $0x178] sm:$0xff]
        %v4311 = vld [vmem:[#allocation18 + $0x180] sm:$0xff]
        %v4312 = vld [vmem:[#allocation18 + $0x188] sm:$0xff]
        %v4313 = vld [vmem:[#allocation18 + $0x190] sm:$0xff]
        %v4314 = vld [vmem:[#allocation18 + $0x198] sm:$0xff]
        %v4315 = vld [vmem:[#allocation18 + $0x1a0] sm:$0xff]
        %v4316 = vld [vmem:[#allocation18 + $0x1a8] sm:$0xff]
        %v4317 = vld [vmem:[#allocation18 + $0x1b0] sm:$0xff]
        %v4318 = vld [vmem:[#allocation18 + $0x1b8] sm:$0xff]
        %v4375 = vunpack.c.l.b16 %v4263
        %v4376 = vunpack.c.h.b16 %v4263
        %v4377 = vunpack.c.l.b16 %v4264
        %v4378 = vunpack.c.h.b16 %v4264
        %v4379 = vunpack.c.l.b16 %v4265
        %v4380 = vunpack.c.h.b16 %v4265
        %v4381 = vunpack.c.l.b16 %v4266
        %v4382 = vunpack.c.h.b16 %v4266
        %v4383 = vunpack.c.l.b16 %v4267
        %v4384 = vunpack.c.h.b16 %v4267
        %v4385 = vunpack.c.l.b16 %v4268
        %v4386 = vunpack.c.h.b16 %v4268
        %v4387 = vunpack.c.l.b16 %v4269
        %v4388 = vunpack.c.h.b16 %v4269
        %v4389 = vunpack.c.l.b16 %v4270
        %v4390 = vunpack.c.h.b16 %v4270
        %v4391 = vunpack.c.l.b16 %v4271
        %v4392 = vunpack.c.h.b16 %v4271
        %v4393 = vunpack.c.l.b16 %v4272
        %v4394 = vunpack.c.h.b16 %v4272
        %v4395 = vunpack.c.l.b16 %v4273
        %v4396 = vunpack.c.h.b16 %v4273
        %v4397 = vunpack.c.l.b16 %v4274
        %v4398 = vunpack.c.h.b16 %v4274
        %v4399 = vunpack.c.l.b16 %v4275
        %v4400 = vunpack.c.h.b16 %v4275
        %v4401 = vunpack.c.l.b16 %v4276
        %v4402 = vunpack.c.h.b16 %v4276
        %v4403 = vunpack.c.l.b16 %v4277
        %v4404 = vunpack.c.h.b16 %v4277
        %v4405 = vunpack.c.l.b16 %v4278
        %v4406 = vunpack.c.h.b16 %v4278
        %v4407 = vunpack.c.l.b16 %v4279
        %v4408 = vunpack.c.h.b16 %v4279
        %v4409 = vunpack.c.l.b16 %v4280
        %v4410 = vunpack.c.h.b16 %v4280
        %v4411 = vunpack.c.l.b16 %v4281
        %v4412 = vunpack.c.h.b16 %v4281
        %v4413 = vunpack.c.l.b16 %v4282
        %v4414 = vunpack.c.h.b16 %v4282
        %v4415 = vunpack.c.l.b16 %v4283
        %v4416 = vunpack.c.h.b16 %v4283
        %v4417 = vunpack.c.l.b16 %v4284
        %v4418 = vunpack.c.h.b16 %v4284
        %v4419 = vunpack.c.l.b16 %v4285
        %v4420 = vunpack.c.h.b16 %v4285
        %v4421 = vunpack.c.l.b16 %v4286
        %v4422 = vunpack.c.h.b16 %v4286
        %v4423 = vunpack.c.l.b16 %v4287
        %v4424 = vunpack.c.h.b16 %v4287
        %v4425 = vunpack.c.l.b16 %v4288
        %v4426 = vunpack.c.h.b16 %v4288
        %v4427 = vunpack.c.l.b16 %v4289
        %v4428 = vunpack.c.h.b16 %v4289
        %v4429 = vunpack.c.l.b16 %v4290
        %v4430 = vunpack.c.h.b16 %v4290
        %v4431 = vunpack.c.l.b16 %v4291
        %v4432 = vunpack.c.h.b16 %v4291
        %v4433 = vunpack.c.l.b16 %v4292
        %v4434 = vunpack.c.h.b16 %v4292
        %v4435 = vunpack.c.l.b16 %v4293
        %v4436 = vunpack.c.h.b16 %v4293
        %v4437 = vunpack.c.l.b16 %v4294
        %v4438 = vunpack.c.h.b16 %v4294
        %v4439 = vunpack.c.l.b16 %v4295
        %v4440 = vunpack.c.h.b16 %v4295
        %v4441 = vunpack.c.l.b16 %v4296
        %v4442 = vunpack.c.h.b16 %v4296
        %v4443 = vunpack.c.l.b16 %v4297
        %v4444 = vunpack.c.h.b16 %v4297
        %v4445 = vunpack.c.l.b16 %v4298
        %v4446 = vunpack.c.h.b16 %v4298
        %v4447 = vunpack.c.l.b16 %v4299
        %v4448 = vunpack.c.h.b16 %v4299
        %v4449 = vunpack.c.l.b16 %v4300
        %v4450 = vunpack.c.h.b16 %v4300
        %v4451 = vunpack.c.l.b16 %v4301
        %v4452 = vunpack.c.h.b16 %v4301
        %v4453 = vunpack.c.l.b16 %v4302
        %v4454 = vunpack.c.h.b16 %v4302
        %v4455 = vunpack.c.l.b16 %v4303
        %v4456 = vunpack.c.h.b16 %v4303
        %v4457 = vunpack.c.l.b16 %v4304
        %v4458 = vunpack.c.h.b16 %v4304
        %v4459 = vunpack.c.l.b16 %v4305
        %v4460 = vunpack.c.h.b16 %v4305
        %v4461 = vunpack.c.l.b16 %v4306
        %v4462 = vunpack.c.h.b16 %v4306
        %v4463 = vunpack.c.l.b16 %v4307
        %v4464 = vunpack.c.h.b16 %v4307
        %v4465 = vunpack.c.l.b16 %v4308
        %v4466 = vunpack.c.h.b16 %v4308
        %v4467 = vunpack.c.l.b16 %v4309
        %v4468 = vunpack.c.h.b16 %v4309
        %v4469 = vunpack.c.l.b16 %v4310
        %v4470 = vunpack.c.h.b16 %v4310
        %v4471 = vunpack.c.l.b16 %v4311
        %v4472 = vunpack.c.h.b16 %v4311
        %v4473 = vunpack.c.l.b16 %v4312
        %v4474 = vunpack.c.h.b16 %v4312
        %v4475 = vunpack.c.l.b16 %v4313
        %v4476 = vunpack.c.h.b16 %v4313
        %v4477 = vunpack.c.l.b16 %v4314
        %v4478 = vunpack.c.h.b16 %v4314
        %v4479 = vunpack.c.l.b16 %v4315
        %v4480 = vunpack.c.h.b16 %v4315
        %v4481 = vunpack.c.l.b16 %v4316
        %v4482 = vunpack.c.h.b16 %v4316
        %v4483 = vunpack.c.l.b16 %v4317
        %v4484 = vunpack.c.h.b16 %v4317
        %v4485 = vunpack.c.l.b16 %v4318
        %v4486 = vunpack.c.h.b16 %v4318
        %v4487 = vpack.c.b16 %v4377, %v4375
        %v4488 = vpack.c.b16 %v4378, %v4376
        %v4489 = vpack.c.b16 %v4381, %v4379
        %v4490 = vpack.c.b16 %v4382, %v4380
        %v4491 = vpack.c.b16 %v4385, %v4383
        %v4492 = vpack.c.b16 %v4386, %v4384
        %v4493 = vpack.c.b16 %v4389, %v4387
        %v4494 = vpack.c.b16 %v4390, %v4388
        %v4495 = vpack.c.b16 %v4393, %v4391
        %v4496 = vpack.c.b16 %v4394, %v4392
        %v4497 = vpack.c.b16 %v4397, %v4395
        %v4498 = vpack.c.b16 %v4398, %v4396
        %v4499 = vpack.c.b16 %v4401, %v4399
        %v4500 = vpack.c.b16 %v4402, %v4400
        %v4501 = vpack.c.b16 %v4405, %v4403
        %v4502 = vpack.c.b16 %v4406, %v4404
        %v4503 = vpack.c.b16 %v4409, %v4407
        %v4504 = vpack.c.b16 %v4410, %v4408
        %v4505 = vpack.c.b16 %v4413, %v4411
        %v4506 = vpack.c.b16 %v4414, %v4412
        %v4507 = vpack.c.b16 %v4417, %v4415
        %v4508 = vpack.c.b16 %v4418, %v4416
        %v4509 = vpack.c.b16 %v4421, %v4419
        %v4510 = vpack.c.b16 %v4422, %v4420
        %v4511 = vpack.c.b16 %v4425, %v4423
        %v4512 = vpack.c.b16 %v4426, %v4424
        %v4513 = vpack.c.b16 %v4429, %v4427
        %v4514 = vpack.c.b16 %v4430, %v4428
        %v4515 = vpack.c.b16 %v4433, %v4431
        %v4516 = vpack.c.b16 %v4434, %v4432
        %v4517 = vpack.c.b16 %v4437, %v4435
        %v4518 = vpack.c.b16 %v4438, %v4436
        %v4519 = vpack.c.b16 %v4441, %v4439
        %v4520 = vpack.c.b16 %v4442, %v4440
        %v4521 = vpack.c.b16 %v4445, %v4443
        %v4522 = vpack.c.b16 %v4446, %v4444
        %v4523 = vpack.c.b16 %v4449, %v4447
        %v4524 = vpack.c.b16 %v4450, %v4448
        %v4525 = vpack.c.b16 %v4453, %v4451
        %v4526 = vpack.c.b16 %v4454, %v4452
        %v4527 = vpack.c.b16 %v4457, %v4455
        %v4528 = vpack.c.b16 %v4458, %v4456
        %v4529 = vpack.c.b16 %v4461, %v4459
        %v4530 = vpack.c.b16 %v4462, %v4460
        %v4531 = vpack.c.b16 %v4465, %v4463
        %v4532 = vpack.c.b16 %v4466, %v4464
        %v4533 = vpack.c.b16 %v4469, %v4467
        %v4534 = vpack.c.b16 %v4470, %v4468
        %v4535 = vpack.c.b16 %v4473, %v4471
        %v4536 = vpack.c.b16 %v4474, %v4472
        %v4537 = vpack.c.b16 %v4477, %v4475
        %v4538 = vpack.c.b16 %v4478, %v4476
        %v4539 = vpack.c.b16 %v4481, %v4479
        %v4540 = vpack.c.b16 %v4482, %v4480
        %v4541 = vpack.c.b16 %v4485, %v4483
        %v4542 = vpack.c.b16 %v4486, %v4484
        %v4600 = vsel %vm2136, %v4262, 0
        %4602 = vmatpush.bf16.msra.mxu0 %v4501
        %4603 = vmatpush.bf16.msra.mxu0 %v4499
        %4604 = vmatpush.bf16.msra.mxu0 %v4497
        %4605 = vmatpush.bf16.msra.mxu0 %v4495
        %4606 = vmatpush.bf16.msra.mxu0 %v4493
        %4607 = vmatpush.bf16.msra.mxu0 %v4491
        %4608 = vmatpush.bf16.msra.mxu0 %v4489
        %4609 = vmatpush.bf16.msra.mxu0 %v4487
        %4610 = vmatmul.bf16.gmra.mxu0 %v4259
        %v4611 = vpop.f32.mrf.mxu0
        %v4612 = vadd.f32 0.0, %v4611
        %v4613 = vpop.f32.mrf.mxu0
        %v4614 = vadd.f32 0.0, %v4613
        %4615 = vdwg.mxu0
        %4616 = vmatpush.bf16.msra.mxu0 %v4517
        %4617 = vmatpush.bf16.msra.mxu0 %v4515
        %4618 = vmatpush.bf16.msra.mxu0 %v4513
        %4619 = vmatpush.bf16.msra.mxu0 %v4511
        %4620 = vmatpush.bf16.msra.mxu0 %v4509
        %4621 = vmatpush.bf16.msra.mxu0 %v4507
        %4622 = vmatpush.bf16.msra.mxu0 %v4505
        %4623 = vmatpush.bf16.msra.mxu0 %v4503
        %4624 = vmatmul.bf16.gmra.mxu0 %v4260
        %v4625 = vpop.f32.mrf.mxu0
        %v4626 = vadd.f32 %v4612, %v4625
        %v4627 = vpop.f32.mrf.mxu0
        %v4628 = vadd.f32 %v4614, %v4627
        %4629 = vdwg.mxu0
        %4630 = vmatpush.bf16.msra.mxu0 %v4533
        %4631 = vmatpush.bf16.msra.mxu0 %v4531
        %4632 = vmatpush.bf16.msra.mxu0 %v4529
        %4633 = vmatpush.bf16.msra.mxu0 %v4527
        %4634 = vmatpush.bf16.msra.mxu0 %v4525
        %4635 = vmatpush.bf16.msra.mxu0 %v4523
        %4636 = vmatpush.bf16.msra.mxu0 %v4521
        %4637 = vmatpush.bf16.msra.mxu0 %v4519
        %4638 = vmatmul.bf16.gmra.mxu0 %v4261
        %v4639 = vpop.f32.mrf.mxu0
        %v4640 = vadd.f32 %v4626, %v4639
        %v4641 = vpop.f32.mrf.mxu0
        %v4642 = vadd.f32 %v4628, %v4641
        %4643 = vdwg.mxu0
        %4644 = vmatpush.bf16.msra.mxu0 0
        %4645 = vmatpush.bf16.msra.mxu0 0
        %4646 = vmatpush.bf16.msra.mxu0 0
        %4647 = vmatpush.bf16.msra.mxu0 0
        %4648 = vmatpush.bf16.msra.mxu0 %v4541
        %4649 = vmatpush.bf16.msra.mxu0 %v4539
        %4650 = vmatpush.bf16.msra.mxu0 %v4537
        %4651 = vmatpush.bf16.msra.mxu0 %v4535
        %4652 = vmatmul.bf16.gmra.mxu0 %v4600
        %v4653 = vpop.f32.mrf.mxu0
        %v4654 = vadd.f32 %v4640, %v4653
        %v4655 = vpop.f32.mrf.mxu0
        %v4656 = vadd.f32 %v4642, %v4655
        %4657 = vdwg.mxu0
        %4658 = vmatpush.bf16.msra.mxu0 %v4502
        %4659 = vmatpush.bf16.msra.mxu0 %v4500
        %4660 = vmatpush.bf16.msra.mxu0 %v4498
        %4661 = vmatpush.bf16.msra.mxu0 %v4496
        %4662 = vmatpush.bf16.msra.mxu0 %v4494
        %4663 = vmatpush.bf16.msra.mxu0 %v4492
        %4664 = vmatpush.bf16.msra.mxu0 %v4490
        %4665 = vmatpush.bf16.msra.mxu0 %v4488
        %4666 = vmatmul.bf16.gmra.mxu0 %v4259
        %v4667 = vpop.f32.mrf.mxu0
        %v4668 = vadd.f32 0.0, %v4667
        %v4669 = vpop.f32.mrf.mxu0
        %v4670 = vadd.f32 0.0, %v4669
        %4671 = vdwg.mxu0
        %4672 = vmatpush.bf16.msra.mxu0 %v4518
        %4673 = vmatpush.bf16.msra.mxu0 %v4516
        %4674 = vmatpush.bf16.msra.mxu0 %v4514
        %4675 = vmatpush.bf16.msra.mxu0 %v4512
        %4676 = vmatpush.bf16.msra.mxu0 %v4510
        %4677 = vmatpush.bf16.msra.mxu0 %v4508
        %4678 = vmatpush.bf16.msra.mxu0 %v4506
        %4679 = vmatpush.bf16.msra.mxu0 %v4504
        %4680 = vmatmul.bf16.gmra.mxu0 %v4260
        %v4681 = vpop.f32.mrf.mxu0
        %v4682 = vadd.f32 %v4668, %v4681
        %v4683 = vpop.f32.mrf.mxu0
        %v4684 = vadd.f32 %v4670, %v4683
        %4685 = vdwg.mxu0
        %4686 = vmatpush.bf16.msra.mxu0 %v4534
        %4687 = vmatpush.bf16.msra.mxu0 %v4532
        %4688 = vmatpush.bf16.msra.mxu0 %v4530
        %4689 = vmatpush.bf16.msra.mxu0 %v4528
        %4690 = vmatpush.bf16.msra.mxu0 %v4526
        %4691 = vmatpush.bf16.msra.mxu0 %v4524
        %4692 = vmatpush.bf16.msra.mxu0 %v4522
        %4693 = vmatpush.bf16.msra.mxu0 %v4520
        %4694 = vmatmul.bf16.gmra.mxu0 %v4261
        %v4695 = vpop.f32.mrf.mxu0
        %v4696 = vadd.f32 %v4682, %v4695
        %v4697 = vpop.f32.mrf.mxu0
        %v4698 = vadd.f32 %v4684, %v4697
        %4699 = vdwg.mxu0
        %4700 = vmatpush.bf16.msra.mxu0 0
        %4701 = vmatpush.bf16.msra.mxu0 0
        %4702 = vmatpush.bf16.msra.mxu0 0
        %4703 = vmatpush.bf16.msra.mxu0 0
        %4704 = vmatpush.bf16.msra.mxu0 %v4542
        %4705 = vmatpush.bf16.msra.mxu0 %v4540
        %4706 = vmatpush.bf16.msra.mxu0 %v4538
        %4707 = vmatpush.bf16.msra.mxu0 %v4536
        %4708 = vmatmul.bf16.gmra.mxu0 %v4600
        %v4709 = vpop.f32.mrf.mxu0
        %v4710 = vadd.f32 %v4696, %v4709
        %v4711 = vpop.f32.mrf.mxu0
        %v4712 = vadd.f32 %v4698, %v4711
        %4713 = vdwg.mxu0
        %v4714 = vpack.c.bf16 %v4710, %v4654
        %v4715 = vpack.c.bf16 %v4712, %v4656
        %4716 = vst.msk [vmem:[%s548] sm:$0xff] %vm2366, %v4714
        %vm4717 = vcmask 1042432
        %vm4718 = vcmask 784388
        %vm4719 = vmor %vm4718, %vm4717
        %4720 = vst.msk [vmem:[%s548 + $0x8] sm:$0x77] %vm4719, %v4715
        %p4721 = scmp.lt.s32.totalorder %s28, 1
        %s4722 = scalar_select %p4721, %s28, 1
        %s4723 = smul.addr %s4722, 4
        %s4724 = smul.addr %s4723, 4
        %s4725 = scalar_lea.vmem %s11, %s4724
        // Predicated region
        $region105: #{net_forward.2} parent=63 // pred_check
          %p4726 = pneg %p282
        $region106: #{net_forward.2} parent=63 // pred_check_branch
          %4728 = sbr.rel (%p4726) target = $region108
        $region107: #{net_forward.2} parent=63 // pred_region
          _
        $region108: #{net_forward.2} parent=63 // pred_fallthru
          _
      $region64: #{net_forward.2} parent=5 // pred_fallthru
        _
      %p4729 = scmp.le.s32.totalorder 2, %s23
      // Predicated region
      $region109: #{net_forward.2} parent=5 // pred_check
        %p4730 = pneg %p4729
      $region110: #{net_forward.2} parent=5 // pred_check_branch
        %4732 = sbr.rel (%p4730) target = $region112
      $region111: #{net_forward.2} parent=5 // pred_region
        %s4733 = ssub.s32 %s23, 2
        // Predicated region
        $region113: #{net_forward.2} parent=111 // pred_check
          %p4734 = pneg %p288
        $region114: #{net_forward.2} parent=111 // pred_check_branch
          %4736 = sbr.rel (%p4734) target = $region116
        $region115: #{net_forward.2} parent=111 // pred_region
          %p4737 = scmp.lt.s32.totalorder %s29, 1
          %s4738 = scalar_select %p4737, %s29, 1
          %s4739 = smul.addr %s4738, 4
          %s4740 = smul.addr %s4739, 4
          %s4741 = scalar_lea.vmem %s11, %s4740
        $region116: #{net_forward.2} parent=111 // pred_fallthru
          _
      $region112: #{net_forward.2} parent=5 // pred_fallthru
        _
    $region6: #{net_forward.2} parent=1 // loop_footer
      %s27 = sadd.s32 1, %s23
    $region7: #{net_forward.2} parent=1 // loop_footer_branch
      %22 = sbr.rel target = $region3
    $region8: #{net_forward.2} parent=1 // loop_exit
      _
    %4742 = vsyncpa [#allocation5], 1
    %s4743 = scalar_lea.sflag [#allocation5], 1
    %4744 = vsyncpa %s4743, 1
    %4745 = vsyncpa [#allocation7], 1
    %4746 = vsyncpa [#allocation10], 1
    %4747 = vsyncpa [#allocation13], 1
    %4748 = vsyncpa [#allocation16], 1
    %4749 = vsyncpa [#allocation19], 1

</llo_original>
